<compile_context>
chip_gen: v7x
topology: tpu7x:2x2x1
jax: 0.10.0
libtpu: 0.0.40
codegen_flags: <defaults>
</compile_context>

<pallas_src>
import functools
import math

import jax
import jax.numpy as jnp
from jax.experimental import pallas as pl
from jax.experimental.pallas import tpu as pltpu


COMPUTE_DTYPE = jnp.bfloat16   # MXU-input dtype (f32 accumulation)
ACT_DTYPE = jnp.bfloat16       # inter-kernel activation dtype
LN_EPS = 1e-5

_SINGLE_BUFFER_WEIGHTS = True  # pl.Buffered(1) on resident FFN weights (v7x VMEM relief)


def _vmem_limit_bytes():
    """~half of physical VMEM: ~64 MiB on v5e/v6e (128 MiB), ~32 MiB on v7x (64 MiB)."""
    cap = 128 * 1024 * 1024
    try:
        get_info = getattr(pltpu, "get_tpu_info", None)
        if get_info is not None:
            cap = int(getattr(get_info(), "vmem_capacity_bytes", cap))
    except Exception:
        pass
    return int(min(max(cap // 2, 32 * 1024 * 1024), 100 * 1024 * 1024))


_VMEM_LIMIT = _vmem_limit_bytes()


def _pick_tile(dim, target, align):
    """Largest tile <= target that is a multiple of `align` and divides `dim`.

    Falls back to the full dimension (a full-dim block is always legal wrt the
    (8, 128) constraint)."""
    if dim <= target:
        return dim
    t = (target // align) * align
    while t >= align:
        if dim % t == 0:
            return t
        t -= align
    return dim


def _resident_spec(shape, index_map):
    """BlockSpec for a weight whose index_map is constant across the grid: it is
    fetched once, so request single buffering (halves its VMEM footprint)."""
    if _SINGLE_BUFFER_WEIGHTS and hasattr(pl, "Buffered"):
        try:
            return pl.BlockSpec(shape, index_map,
                                pipeline_mode=pl.Buffered(buffer_count=1))
        except Exception:
            pass
    return pl.BlockSpec(shape, index_map)


# ---------------------------------------------------------------------------
# Fused multi-output projection:  y_i = x @ w_i + b_i  (shared pass over x).
# Used for the self-attention QKV (3 outputs), cross-attention Q (1 output)
# and cross-attention KV (2 outputs).  Outputs are bf16.
# ---------------------------------------------------------------------------

def _fused_proj_kernel(x_ref, *refs, n_out):
    w_refs = refs[:n_out]
    b_refs = refs[n_out:2 * n_out]
    o_refs = refs[2 * n_out:3 * n_out]
    acc_refs = refs[3 * n_out:]

    @pl.when(pl.program_id(1) == 0)
    def _():
        for acc in acc_refs:
            acc[...] = jnp.zeros_like(acc)

    xb = x_ref[...].astype(COMPUTE_DTYPE)
    for w, acc in zip(w_refs, acc_refs):
        acc[...] += jnp.dot(xb, w[...].astype(COMPUTE_DTYPE),
                            preferred_element_type=jnp.float32)

    @pl.when(pl.program_id(1) == pl.num_programs(1) - 1)
    def _():
        for o, b, acc in zip(o_refs, b_refs, acc_refs):
            o[...] = (acc[...] + b[...]).astype(o.dtype)


def fused_projections(x, weights, biases):
    """x: (M, K); w_i: (K, N_i) bf16; b_i: (1, N_i) f32 -> tuple of (M, N_i) bf16."""
    M, K = x.shape
    n = len(weights)
    dims = [w.shape[1] for w in weights]
    tm = _pick_tile(M, 512, 8)
    tk = _pick_tile(K, 512, 128)

    in_specs = [pl.BlockSpec((tm, tk), lambda i, k: (i, k))]
    in_specs += [pl.BlockSpec((tk, N), lambda i, k: (k, 0)) for N in dims]
    in_specs += [pl.BlockSpec((1, N), lambda i, k: (0, 0)) for N in dims]
    out_specs = tuple(pl.BlockSpec((tm, N), lambda i, k: (i, 0)) for N in dims)
    out_shape = tuple(jax.ShapeDtypeStruct((M, N), ACT_DTYPE) for N in dims)

    outs = pl.pallas_call(
        functools.partial(_fused_proj_kernel, n_out=n),
        out_shape=out_shape,
        grid=(M // tm, K // tk),
        in_specs=in_specs,
        out_specs=out_specs,
        scratch_shapes=[pltpu.VMEM((tm, N), jnp.float32) for N in dims],
        compiler_params=pltpu.CompilerParams(
            dimension_semantics=("parallel", "arbitrary"),
            vmem_limit_bytes=_VMEM_LIMIT),
    )(x, *weights, *biases)
    if not isinstance(outs, (tuple, list)):
        outs = (outs,)
    return tuple(outs)


# ---------------------------------------------------------------------------
# Projection + residual-add + LayerNorm  (post-norm attention epilogue)
# ---------------------------------------------------------------------------

def _proj_add_ln_kernel(x_ref, w_ref, b_ref, r_ref, g_ref, bt_ref, o_ref, acc_ref):
    @pl.when(pl.program_id(1) == 0)
    def _():
        acc_ref[...] = jnp.zeros_like(acc_ref)

    acc_ref[...] += jnp.dot(x_ref[...].astype(COMPUTE_DTYPE),
                            w_ref[...].astype(COMPUTE_DTYPE),
                            preferred_element_type=jnp.float32)

    @pl.when(pl.program_id(1) == pl.num_programs(1) - 1)
    def _():
        z = acc_ref[...] + b_ref[...] + r_ref[...].astype(jnp.float32)
        mu = jnp.mean(z, axis=-1, keepdims=True)
        var = jnp.mean(jnp.square(z - mu), axis=-1, keepdims=True)
        y = (z - mu) * jax.lax.rsqrt(var + LN_EPS) * g_ref[...] + bt_ref[...]
        o_ref[...] = y.astype(o_ref.dtype)


def proj_add_layer_norm(x, w, b, residual, gamma, beta):
    """LayerNorm(residual + x @ w + b); E kept un-tiled so the LN row reduction
    stays inside one block."""
    M, K = x.shape
    E = w.shape[1]
    tm = _pick_tile(M, 512, 8)
    tk = _pick_tile(K, 512, 128)
    return pl.pallas_call(
        _proj_add_ln_kernel,
        out_shape=jax.ShapeDtypeStruct((M, E), ACT_DTYPE),
        grid=(M // tm, K // tk),
        in_specs=[pl.BlockSpec((tm, tk), lambda i, k: (i, k)),
                  pl.BlockSpec((tk, E), lambda i, k: (k, 0)),
                  pl.BlockSpec((1, E), lambda i, k: (0, 0)),
                  pl.BlockSpec((tm, E), lambda i, k: (i, 0)),
                  pl.BlockSpec((1, E), lambda i, k: (0, 0)),
                  pl.BlockSpec((1, E), lambda i, k: (0, 0))],
        out_specs=pl.BlockSpec((tm, E), lambda i, k: (i, 0)),
        scratch_shapes=[pltpu.VMEM((tm, E), jnp.float32)],
        compiler_params=pltpu.CompilerParams(
            dimension_semantics=("parallel", "arbitrary"),
            vmem_limit_bytes=_VMEM_LIMIT),
    )(x, w, b, residual, gamma, beta)


# ---------------------------------------------------------------------------
# Fused feed-forward: LayerNorm(x + relu(x@w1+b1)@w2 + b2)
# The (tm, F) hidden activation lives only in VMEM/vregs.
# ---------------------------------------------------------------------------

def _ffn_kernel(x_ref, w1_ref, b1_ref, w2_ref, b2_ref, g_ref, bt_ref, o_ref):
    x = x_ref[...].astype(COMPUTE_DTYPE)
    h = jnp.dot(x, w1_ref[...].astype(COMPUTE_DTYPE),
                preferred_element_type=jnp.float32) + b1_ref[...]
    h = jnp.maximum(h, 0.0)
    y = jnp.dot(h.astype(COMPUTE_DTYPE), w2_ref[...].astype(COMPUTE_DTYPE),
                preferred_element_type=jnp.float32) + b2_ref[...]
    z = x.astype(jnp.float32) + y
    mu = jnp.mean(z, axis=-1, keepdims=True)
    var = jnp.mean(jnp.square(z - mu), axis=-1, keepdims=True)
    o_ref[...] = ((z - mu) * jax.lax.rsqrt(var + LN_EPS) * g_ref[...]
                  + bt_ref[...]).astype(o_ref.dtype)


def ffn_add_layer_norm(x, w1, b1, w2, b2, gamma, beta):
    M, E = x.shape
    F = w1.shape[1]
    tm = _pick_tile(M, 512, 8)
    return pl.pallas_call(
        _ffn_kernel,
        out_shape=jax.ShapeDtypeStruct((M, E), ACT_DTYPE),
        grid=(M // tm,),
        in_specs=[pl.BlockSpec((tm, E), lambda i: (i, 0)),
                  _resident_spec((E, F), lambda i: (0, 0)),   # fetched once
                  pl.BlockSpec((1, F), lambda i: (0, 0)),
                  _resident_spec((F, E), lambda i: (0, 0)),   # fetched once
                  pl.BlockSpec((1, E), lambda i: (0, 0)),
                  pl.BlockSpec((1, E), lambda i: (0, 0)),
                  pl.BlockSpec((1, E), lambda i: (0, 0))],
        out_specs=pl.BlockSpec((tm, E), lambda i: (i, 0)),
        compiler_params=pltpu.CompilerParams(
            dimension_semantics=("parallel",),
            vmem_limit_bytes=_VMEM_LIMIT),
    )(x, w1, b1, w2, b2, gamma, beta)


# ---------------------------------------------------------------------------
# Standalone LayerNorm (final encoder/decoder norm, f32 output)
# ---------------------------------------------------------------------------

def _ln_kernel(x_ref, g_ref, b_ref, o_ref):
    x = x_ref[...].astype(jnp.float32)
    mu = jnp.mean(x, axis=-1, keepdims=True)
    var = jnp.mean(jnp.square(x - mu), axis=-1, keepdims=True)
    o_ref[...] = ((x - mu) * jax.lax.rsqrt(var + LN_EPS) * g_ref[...]
                  + b_ref[...]).astype(o_ref.dtype)


def layer_norm(x, gamma, beta, out_dtype=jnp.float32):
    M, E = x.shape
    tm = _pick_tile(M, 1024, 8)
    return pl.pallas_call(
        _ln_kernel,
        out_shape=jax.ShapeDtypeStruct((M, E), out_dtype),
        grid=(M // tm,),
        in_specs=[pl.BlockSpec((tm, E), lambda i: (i, 0)),
                  pl.BlockSpec((1, E), lambda i: (0, 0)),
                  pl.BlockSpec((1, E), lambda i: (0, 0))],
        out_specs=pl.BlockSpec((tm, E), lambda i: (i, 0)),
        compiler_params=pltpu.CompilerParams(
            dimension_semantics=("parallel",),
            vmem_limit_bytes=_VMEM_LIMIT),
    )(x, gamma, beta)


# ---------------------------------------------------------------------------
# Attention: grid = (batch, q-tile).  Q, K, V arrive as separate (B, S, E)
# bf16 arrays (lane-aligned blocks, no packed-slab slicing); heads are a
# static in-kernel loop whose per-head result is stored directly into o_ref.
# ---------------------------------------------------------------------------

def _attn_kernel(q_ref, k_ref, v_ref, o_ref, *, num_heads, scale):
    # Fold the 1/sqrt(Dh) scale into q (tq*E multiplies instead of tq*Sk per head).
    q = (q_ref[0].astype(jnp.float32) * scale).astype(COMPUTE_DTYPE)   # (tq, E)
    k = k_ref[0].astype(COMPUTE_DTYPE)                                 # (Sk, E)
    v = v_ref[0].astype(COMPUTE_DTYPE)                                 # (Sk, E)
    head_dim = q.shape[-1] // num_heads
    # TODO(synk): for long sequences (S >~ 512) add a kv-block grid axis with an
    # online-softmax (flash) accumulator instead of the full (tq, Sk) score tile,
    # and pack >=2 heads on the N axis of the P@V matmul for 256-wide MXUs.
    for h in range(num_heads):
        sl = slice(h * head_dim, (h + 1) * head_dim)
        s = jax.lax.dot_general(q[:, sl], k[:, sl], (((1,), (1,)), ((), ())),
                                preferred_element_type=jnp.float32)    # (tq, Sk) f32
        s = s - jnp.max(s, axis=-1, keepdims=True)
        p = jnp.exp(s)
        p = p * pl.reciprocal(jnp.sum(p, axis=-1, keepdims=True), approx=True)
        oh = jnp.dot(p.astype(COMPUTE_DTYPE), v[:, sl],
                     preferred_element_type=jnp.float32)
        o_ref[0, :, sl] = oh.astype(o_ref.dtype)   # direct store, no concatenate


def attention(q, k, v, num_heads):
    """q: (B, Sq, E), k/v: (B, Sk, E) bf16 -> (B, Sq, E) bf16 (per-head softmax attn)."""
    B, Sq, E = q.shape
    Sk = k.shape[1]
    scale = 1.0 / math.sqrt(E // num_heads)
    tq = _pick_tile(Sq, 256, 8)
    return pl.pallas_call(
        functools.partial(_attn_kernel, num_heads=num_heads, scale=scale),
        out_shape=jax.ShapeDtypeStruct((B, Sq, E), ACT_DTYPE),
        grid=(B, Sq // tq),
        in_specs=[pl.BlockSpec((1, tq, E), lambda b, i: (b, i, 0)),
                  pl.BlockSpec((1, Sk, E), lambda b, i: (b, 0, 0)),
                  pl.BlockSpec((1, Sk, E), lambda b, i: (b, 0, 0))],
        out_specs=pl.BlockSpec((1, tq, E), lambda b, i: (b, i, 0)),
        compiler_params=pltpu.CompilerParams(
            dimension_semantics=("parallel", "parallel"),
            vmem_limit_bytes=_VMEM_LIMIT),
    )(q, k, v)


# ---------------------------------------------------------------------------
# Transformer sublayers / layers (parameter plumbing + free reshapes only)
# ---------------------------------------------------------------------------

def self_attn_sublayer(x, p, ln_g, ln_b, num_heads):
    """LayerNorm(x + Wo @ MHA(x, x, x)) -- post-norm self-attention block."""
    B, S, E = x.shape
    x2 = x.reshape(B * S, E)
    q, k, v = fused_projections(x2, [p["w_q"], p["w_k"], p["w_v"]],
                                [p["b_q"], p["b_k"], p["b_v"]])
    attn = attention(q.reshape(B, S, E), k.reshape(B, S, E), v.reshape(B, S, E),
                     num_heads)
    out = proj_add_layer_norm(attn.reshape(B * S, E), p["wo"], p["bo"],
                              x2, ln_g, ln_b)
    return out.reshape(B, S, E)


def cross_attn_sublayer(x, mem, p, ln_g, ln_b, num_heads):
    """LayerNorm(x + Wo @ MHA(x, mem, mem)) -- decoder cross-attention block."""
    B, Sq, E = x.shape
    Sk = mem.shape[1]
    x2 = x.reshape(B * Sq, E)
    (q,) = fused_projections(x2, [p["w_q"]], [p["b_q"]])
    k, v = fused_projections(mem.reshape(B * Sk, E), [p["w_k"], p["w_v"]],
                             [p["b_k"], p["b_v"]])
    attn = attention(q.reshape(B, Sq, E), k.reshape(B, Sk, E), v.reshape(B, Sk, E),
                     num_heads)
    out = proj_add_layer_norm(attn.reshape(B * Sq, E), p["wo"], p["bo"],
                              x2, ln_g, ln_b)
    return out.reshape(B, Sq, E)


def ffn_sublayer(x, w1, b1, w2, b2, ln_g, ln_b):
    B, S, E = x.shape
    out = ffn_add_layer_norm(x.reshape(B * S, E), w1, b1, w2, b2, ln_g, ln_b)
    return out.reshape(B, S, E)


def encoder_layer(x, p, num_heads):
    x = self_attn_sublayer(x, p["self_attn"], p["ln1_g"], p["ln1_b"], num_heads)
    x = ffn_sublayer(x, p["w1"], p["b1"], p["w2"], p["b2"], p["ln2_g"], p["ln2_b"])
    return x


def decoder_layer(x, mem, p, num_heads):
    x = self_attn_sublayer(x, p["self_attn"], p["ln1_g"], p["ln1_b"], num_heads)
    x = cross_attn_sublayer(x, mem, p["cross_attn"], p["ln2_g"], p["ln2_b"], num_heads)
    x = ffn_sublayer(x, p["w1"], p["b1"], p["w2"], p["b2"], p["ln3_g"], p["ln3_b"])
    return x


def bert_forward(params, sequences, num_heads):
    # TODO(synk): dropout layers are treated as identity (eval-mode semantics);
    # the embedding gather stays in plain XLA (jnp.take).
    embedding = jnp.take(params["embedding"], sequences, axis=0)     # (B, S, E) f32
    B, S, E = embedding.shape

    # Encoder stack (bf16 activation stream) + final LayerNorm (f32 output).
    x = embedding.astype(ACT_DTYPE)
    for p in params["encoder_layers"]:
        x = encoder_layer(x, p, num_heads)
    g, b = params["encoder_norm"]
    encoding = layer_norm(x.reshape(B * S, E), g, b).reshape(B, S, E)

    # Decoder stack (tgt = embedding, memory = encoding) + final LayerNorm.
    mem = encoding.astype(ACT_DTYPE)
    y = embedding.astype(ACT_DTYPE)
    for p in params["decoder_layers"]:
        y = decoder_layer(y, mem, p, num_heads)
    g, b = params["decoder_norm"]
    decoding = layer_norm(y.reshape(B * S, E), g, b).reshape(B, S, E)

    return embedding, encoding, decoding


# ---------------------------------------------------------------------------
# Deterministic parameter initialization (shapes per BERT.__init__).
# Weights are stored in bf16 (MXU input dtype); biases / LN params in f32.
# Note: when loading a real PyTorch checkpoint, nn.MultiheadAttention's packed
# in_proj_weight (3E, E) must be split into [q; k; v] row blocks and each
# transposed to (in, out) before landing in w_q / w_k / w_v.
# ---------------------------------------------------------------------------

def init_params(key, vocab, E, F, layers):
    keys = iter(jax.random.split(key, 512))

    def dense(shape, scale=0.05):
        return scale * jax.random.normal(next(keys), shape, jnp.float32)

    def w(shape):
        return dense(shape).astype(COMPUTE_DTYPE)

    def bias(n):
        return dense((1, n))

    def ones(n):
        return jnp.ones((1, n), jnp.float32)

    def zeros(n):
        return jnp.zeros((1, n), jnp.float32)

    def attn_params():
        return dict(w_q=w((E, E)), b_q=bias(E),
                    w_k=w((E, E)), b_k=bias(E),
                    w_v=w((E, E)), b_v=bias(E),
                    wo=w((E, E)), bo=bias(E))

    emb = 0.1 * jax.random.normal(next(keys), (vocab, E), jnp.float32)
    emb = emb.at[0].set(0.0)   # padding_idx=0

    enc_layers = []
    for _ in range(layers):
        enc_layers.append(dict(
            self_attn=attn_params(),
            ln1_g=ones(E), ln1_b=zeros(E),
            w1=w((E, F)), b1=bias(F),
            w2=w((F, E)), b2=bias(E),
            ln2_g=ones(E), ln2_b=zeros(E)))

    dec_layers = []
    for _ in range(layers):
        dec_layers.append(dict(
            self_attn=attn_params(),
            ln1_g=ones(E), ln1_b=zeros(E),
            cross_attn=attn_params(),
            ln2_g=ones(E), ln2_b=zeros(E),
            w1=w((E, F)), b1=bias(F),
            w2=w((F, E)), b2=bias(E),
            ln3_g=ones(E), ln3_b=zeros(E)))

    return dict(
        embedding=emb,
        encoder_layers=enc_layers,
        encoder_norm=(ones(E), zeros(E)),
        decoder_layers=dec_layers,
        decoder_norm=(ones(E), zeros(E)),
    )


# ---------------------------------------------------------------------------

if __name__ == "__main__":
    VOCAB = 24          # amino-acid vocabulary
    EMBED = 32          # embedding_size
    HEADS = 4           # transformer_heads
    FF = 64             # transformer_size
    LAYERS = 2          # transformer_layers
    B, S = 2, 8         # batch, sequence length

    key = jax.random.PRNGKey(0)
    pkey, dkey = jax.random.split(key)
    params = init_params(pkey, VOCAB, EMBED, FF, LAYERS)
    sequences = jax.random.randint(dkey, (B, S), 0, VOCAB, dtype=jnp.int32)

    def run():
        fwd = jax.jit(functools.partial(bert_forward, num_heads=HEADS))
        out = fwd(params, sequences)
        jax.block_until_ready(out)
        return out

    try:
        embedding, encoding, decoding = run()
    except Exception:
        # Fallback: if this JAX/libtpu build rejects single-buffered resident
        # weights (pl.Buffered(1)), disable them and retry once.
        _SINGLE_BUFFER_WEIGHTS = False
        embedding, encoding, decoding = run()

    assert embedding.shape == (B, S, EMBED)
    assert encoding.shape == (B, S, EMBED)
    assert decoding.shape == (B, S, EMBED)
    assert bool(jnp.all(jnp.isfinite(encoding)))
    assert bool(jnp.all(jnp.isfinite(decoding)))
    print("KERNEL_OK")
</pallas_src>

<mosaic_0001>
module attributes {stable_mosaic.version = 11 : i64} {
  func.func @_attn_kernel(%arg0: i32, %arg1: i32, %arg2: memref<1x8x32xbf16, #tpu.memory_space<vmem>>, %arg3: memref<1x8x32xbf16, #tpu.memory_space<vmem>>, %arg4: memref<1x8x32xbf16, #tpu.memory_space<vmem>>, %arg5: memref<1x8x32xbf16, #tpu.memory_space<vmem>>) attributes {dimension_semantics = [#tpu.dimension_semantics<parallel>, #tpu.dimension_semantics<parallel>], iteration_bounds = array<i64: 2, 1>, scalar_prefetch = 0 : i64, scratch_operands = 0 : i64, tpu.core_type = #tpu.core_type<tc>, window_params = [{transform_indices = @transform_0, window_bounds = array<i64: 1, 8, 32>}, {transform_indices = @transform_1, window_bounds = array<i64: 1, 8, 32>}, {transform_indices = @transform_2, window_bounds = array<i64: 1, 8, 32>}, {transform_indices = @transform_3, window_bounds = array<i64: 1, 8, 32>}]} {
    %c0 = arith.constant 0 : index
    %c0_0 = arith.constant 0 : index
    %c0_1 = arith.constant 0 : index
    %0 = vector.load %arg2[%c0, %c0_0, %c0_1] : memref<1x8x32xbf16, #tpu.memory_space<vmem>>, vector<1x8x32xbf16>
    %1 = vector.shape_cast %0 : vector<1x8x32xbf16> to vector<8x32xbf16>
    %2 = arith.extf %1 : vector<8x32xbf16> to vector<8x32xf32>
    %cst = arith.constant 0.353553385 : f32
    %3 = vector.broadcast %cst : f32 to vector<8x32xf32>
    %4 = arith.mulf %2, %3 : vector<8x32xf32>
    %5 = arith.truncf %4 : vector<8x32xf32> to vector<8x32xbf16>
    %c0_2 = arith.constant 0 : index
    %c0_3 = arith.constant 0 : index
    %c0_4 = arith.constant 0 : index
    %6 = vector.load %arg3[%c0_2, %c0_3, %c0_4] : memref<1x8x32xbf16, #tpu.memory_space<vmem>>, vector<1x8x32xbf16>
    %7 = vector.shape_cast %6 : vector<1x8x32xbf16> to vector<8x32xbf16>
    %c0_5 = arith.constant 0 : index
    %c0_6 = arith.constant 0 : index
    %c0_7 = arith.constant 0 : index
    %8 = vector.load %arg4[%c0_5, %c0_6, %c0_7] : memref<1x8x32xbf16, #tpu.memory_space<vmem>>, vector<1x8x32xbf16>
    %9 = vector.shape_cast %8 : vector<1x8x32xbf16> to vector<8x32xbf16>
    %10 = vector.extract_strided_slice %5 {offsets = [0, 0], sizes = [8, 8], strides = [1, 1]} : vector<8x32xbf16> to vector<8x8xbf16>
    %11 = vector.extract_strided_slice %7 {offsets = [0, 0], sizes = [8, 8], strides = [1, 1]} : vector<8x32xbf16> to vector<8x8xbf16>
    %cst_8 = arith.constant dense<0.000000e+00> : vector<8x8xf32>
    %12 = tpu.matmul %10, %11, %cst_8 {dimension_numbers = #tpu.dot_dimension_numbers<[1], [1], [0], [0], [0, 0, 1, 0], [], []>} : vector<8x8xbf16>, vector<8x8xbf16>, vector<8x8xf32> -> vector<8x8xf32>
    %cst_9 = arith.constant dense<0xFF800000> : vector<8xf32>
    %13 = vector.multi_reduction <maximumf>, %12, %cst_9 [1] : vector<8x8xf32> to vector<8xf32>
    %14 = vector.shape_cast %13 : vector<8xf32> to vector<8x1xf32>
    %15 = vector.broadcast %14 : vector<8x1xf32> to vector<8x8xf32>
    %16 = arith.subf %12, %15 : vector<8x8xf32>
    %17 = math.exp %16 : vector<8x8xf32>
    %cst_10 = arith.constant dense<0.000000e+00> : vector<8xf32>
    %18 = vector.multi_reduction <add>, %17, %cst_10 [1] : vector<8x8xf32> to vector<8xf32>
    %19 = vector.shape_cast %18 : vector<8xf32> to vector<8x1xf32>
    %20 = tpu.reciprocal %19 {approx = true} : vector<8x1xf32> -> vector<8x1xf32>
    %21 = vector.broadcast %20 : vector<8x1xf32> to vector<8x8xf32>
    %22 = arith.mulf %17, %21 : vector<8x8xf32>
    %23 = arith.truncf %22 : vector<8x8xf32> to vector<8x8xbf16>
    %24 = vector.extract_strided_slice %9 {offsets = [0, 0], sizes = [8, 8], strides = [1, 1]} : vector<8x32xbf16> to vector<8x8xbf16>
    %cst_11 = arith.constant dense<0.000000e+00> : vector<8x8xf32>
    %25 = tpu.matmul %23, %24, %cst_11 {dimension_numbers = #tpu.dot_dimension_numbers<[1], [0], [0], [1], [0, 0, 1, 1], [], []>} : vector<8x8xbf16>, vector<8x8xbf16>, vector<8x8xf32> -> vector<8x8xf32>
    %26 = arith.truncf %25 : vector<8x8xf32> to vector<8x8xbf16>
    %c0_12 = arith.constant 0 : index
    %c0_13 = arith.constant 0 : index
    %c0_14 = arith.constant 0 : index
    %27 = vector.load %arg5[%c0_12, %c0_13, %c0_14] : memref<1x8x32xbf16, #tpu.memory_space<vmem>>, vector<1x8x8xbf16>
    %28 = vector.shape_cast %27 : vector<1x8x8xbf16> to vector<8x8xbf16>
    %29 = vector.shape_cast %26 : vector<8x8xbf16> to vector<1x8x8xbf16>
    tpu.vector_store %arg5[%c0_12, %c0_13, %c0_14], %29 {strides = array<i32>} : memref<1x8x32xbf16, #tpu.memory_space<vmem>>, vector<1x8x8xbf16>,
    %30 = vector.extract_strided_slice %5 {offsets = [0, 8], sizes = [8, 8], strides = [1, 1]} : vector<8x32xbf16> to vector<8x8xbf16>
    %31 = vector.extract_strided_slice %7 {offsets = [0, 8], sizes = [8, 8], strides = [1, 1]} : vector<8x32xbf16> to vector<8x8xbf16>
    %cst_15 = arith.constant dense<0.000000e+00> : vector<8x8xf32>
    %32 = tpu.matmul %30, %31, %cst_15 {dimension_numbers = #tpu.dot_dimension_numbers<[1], [1], [0], [0], [0, 0, 1, 0], [], []>} : vector<8x8xbf16>, vector<8x8xbf16>, vector<8x8xf32> -> vector<8x8xf32>
    %cst_16 = arith.constant dense<0xFF800000> : vector<8xf32>
    %33 = vector.multi_reduction <maximumf>, %32, %cst_16 [1] : vector<8x8xf32> to vector<8xf32>
    %34 = vector.shape_cast %33 : vector<8xf32> to vector<8x1xf32>
    %35 = vector.broadcast %34 : vector<8x1xf32> to vector<8x8xf32>
    %36 = arith.subf %32, %35 : vector<8x8xf32>
    %37 = math.exp %36 : vector<8x8xf32>
    %cst_17 = arith.constant dense<0.000000e+00> : vector<8xf32>
    %38 = vector.multi_reduction <add>, %37, %cst_17 [1] : vector<8x8xf32> to vector<8xf32>
    %39 = vector.shape_cast %38 : vector<8xf32> to vector<8x1xf32>
    %40 = tpu.reciprocal %39 {approx = true} : vector<8x1xf32> -> vector<8x1xf32>
    %41 = vector.broadcast %40 : vector<8x1xf32> to vector<8x8xf32>
    %42 = arith.mulf %37, %41 : vector<8x8xf32>
    %43 = arith.truncf %42 : vector<8x8xf32> to vector<8x8xbf16>
    %44 = vector.extract_strided_slice %9 {offsets = [0, 8], sizes = [8, 8], strides = [1, 1]} : vector<8x32xbf16> to vector<8x8xbf16>
    %cst_18 = arith.constant dense<0.000000e+00> : vector<8x8xf32>
    %45 = tpu.matmul %43, %44, %cst_18 {dimension_numbers = #tpu.dot_dimension_numbers<[1], [0], [0], [1], [0, 0, 1, 1], [], []>} : vector<8x8xbf16>, vector<8x8xbf16>, vector<8x8xf32> -> vector<8x8xf32>
    %46 = arith.truncf %45 : vector<8x8xf32> to vector<8x8xbf16>
    %c0_19 = arith.constant 0 : index
    %c0_20 = arith.constant 0 : index
    %c8 = arith.constant 8 : index
    %47 = vector.load %arg5[%c0_19, %c0_20, %c8] : memref<1x8x32xbf16, #tpu.memory_space<vmem>>, vector<1x8x8xbf16>
    %48 = vector.shape_cast %47 : vector<1x8x8xbf16> to vector<8x8xbf16>
    %49 = vector.shape_cast %46 : vector<8x8xbf16> to vector<1x8x8xbf16>
    tpu.vector_store %arg5[%c0_19, %c0_20, %c8], %49 {strides = array<i32>} : memref<1x8x32xbf16, #tpu.memory_space<vmem>>, vector<1x8x8xbf16>,
    %50 = vector.extract_strided_slice %5 {offsets = [0, 16], sizes = [8, 8], strides = [1, 1]} : vector<8x32xbf16> to vector<8x8xbf16>
    %51 = vector.extract_strided_slice %7 {offsets = [0, 16], sizes = [8, 8], strides = [1, 1]} : vector<8x32xbf16> to vector<8x8xbf16>
    %cst_21 = arith.constant dense<0.000000e+00> : vector<8x8xf32>
    %52 = tpu.matmul %50, %51, %cst_21 {dimension_numbers = #tpu.dot_dimension_numbers<[1], [1], [0], [0], [0, 0, 1, 0], [], []>} : vector<8x8xbf16>, vector<8x8xbf16>, vector<8x8xf32> -> vector<8x8xf32>
    %cst_22 = arith.constant dense<0xFF800000> : vector<8xf32>
    %53 = vector.multi_reduction <maximumf>, %52, %cst_22 [1] : vector<8x8xf32> to vector<8xf32>
    %54 = vector.shape_cast %53 : vector<8xf32> to vector<8x1xf32>
    %55 = vector.broadcast %54 : vector<8x1xf32> to vector<8x8xf32>
    %56 = arith.subf %52, %55 : vector<8x8xf32>
    %57 = math.exp %56 : vector<8x8xf32>
    %cst_23 = arith.constant dense<0.000000e+00> : vector<8xf32>
    %58 = vector.multi_reduction <add>, %57, %cst_23 [1] : vector<8x8xf32> to vector<8xf32>
    %59 = vector.shape_cast %58 : vector<8xf32> to vector<8x1xf32>
    %60 = tpu.reciprocal %59 {approx = true} : vector<8x1xf32> -> vector<8x1xf32>
    %61 = vector.broadcast %60 : vector<8x1xf32> to vector<8x8xf32>
    %62 = arith.mulf %57, %61 : vector<8x8xf32>
    %63 = arith.truncf %62 : vector<8x8xf32> to vector<8x8xbf16>
    %64 = vector.extract_strided_slice %9 {offsets = [0, 16], sizes = [8, 8], strides = [1, 1]} : vector<8x32xbf16> to vector<8x8xbf16>
    %cst_24 = arith.constant dense<0.000000e+00> : vector<8x8xf32>
    %65 = tpu.matmul %63, %64, %cst_24 {dimension_numbers = #tpu.dot_dimension_numbers<[1], [0], [0], [1], [0, 0, 1, 1], [], []>} : vector<8x8xbf16>, vector<8x8xbf16>, vector<8x8xf32> -> vector<8x8xf32>
    %66 = arith.truncf %65 : vector<8x8xf32> to vector<8x8xbf16>
    %c0_25 = arith.constant 0 : index
    %c0_26 = arith.constant 0 : index
    %c16 = arith.constant 16 : index
    %67 = vector.load %arg5[%c0_25, %c0_26, %c16] : memref<1x8x32xbf16, #tpu.memory_space<vmem>>, vector<1x8x8xbf16>
    %68 = vector.shape_cast %67 : vector<1x8x8xbf16> to vector<8x8xbf16>
    %69 = vector.shape_cast %66 : vector<8x8xbf16> to vector<1x8x8xbf16>
    tpu.vector_store %arg5[%c0_25, %c0_26, %c16], %69 {strides = array<i32>} : memref<1x8x32xbf16, #tpu.memory_space<vmem>>, vector<1x8x8xbf16>,
    %70 = vector.extract_strided_slice %5 {offsets = [0, 24], sizes = [8, 8], strides = [1, 1]} : vector<8x32xbf16> to vector<8x8xbf16>
    %71 = vector.extract_strided_slice %7 {offsets = [0, 24], sizes = [8, 8], strides = [1, 1]} : vector<8x32xbf16> to vector<8x8xbf16>
    %cst_27 = arith.constant dense<0.000000e+00> : vector<8x8xf32>
    %72 = tpu.matmul %70, %71, %cst_27 {dimension_numbers = #tpu.dot_dimension_numbers<[1], [1], [0], [0], [0, 0, 1, 0], [], []>} : vector<8x8xbf16>, vector<8x8xbf16>, vector<8x8xf32> -> vector<8x8xf32>
    %cst_28 = arith.constant dense<0xFF800000> : vector<8xf32>
    %73 = vector.multi_reduction <maximumf>, %72, %cst_28 [1] : vector<8x8xf32> to vector<8xf32>
    %74 = vector.shape_cast %73 : vector<8xf32> to vector<8x1xf32>
    %75 = vector.broadcast %74 : vector<8x1xf32> to vector<8x8xf32>
    %76 = arith.subf %72, %75 : vector<8x8xf32>
    %77 = math.exp %76 : vector<8x8xf32>
    %cst_29 = arith.constant dense<0.000000e+00> : vector<8xf32>
    %78 = vector.multi_reduction <add>, %77, %cst_29 [1] : vector<8x8xf32> to vector<8xf32>
    %79 = vector.shape_cast %78 : vector<8xf32> to vector<8x1xf32>
    %80 = tpu.reciprocal %79 {approx = true} : vector<8x1xf32> -> vector<8x1xf32>
    %81 = vector.broadcast %80 : vector<8x1xf32> to vector<8x8xf32>
    %82 = arith.mulf %77, %81 : vector<8x8xf32>
    %83 = arith.truncf %82 : vector<8x8xf32> to vector<8x8xbf16>
    %84 = vector.extract_strided_slice %9 {offsets = [0, 24], sizes = [8, 8], strides = [1, 1]} : vector<8x32xbf16> to vector<8x8xbf16>
    %cst_30 = arith.constant dense<0.000000e+00> : vector<8x8xf32>
    %85 = tpu.matmul %83, %84, %cst_30 {dimension_numbers = #tpu.dot_dimension_numbers<[1], [0], [0], [1], [0, 0, 1, 1], [], []>} : vector<8x8xbf16>, vector<8x8xbf16>, vector<8x8xf32> -> vector<8x8xf32>
    %86 = arith.truncf %85 : vector<8x8xf32> to vector<8x8xbf16>
    %c0_31 = arith.constant 0 : index
    %c0_32 = arith.constant 0 : index
    %c24 = arith.constant 24 : index
    %87 = vector.load %arg5[%c0_31, %c0_32, %c24] : memref<1x8x32xbf16, #tpu.memory_space<vmem>>, vector<1x8x8xbf16>
    %88 = vector.shape_cast %87 : vector<1x8x8xbf16> to vector<8x8xbf16>
    %89 = vector.shape_cast %86 : vector<8x8xbf16> to vector<1x8x8xbf16>
    tpu.vector_store %arg5[%c0_31, %c0_32, %c24], %89 {strides = array<i32>} : memref<1x8x32xbf16, #tpu.memory_space<vmem>>, vector<1x8x8xbf16>,
    return
  }
  func.func @transform_0(%arg0: i32, %arg1: i32) -> (i32, i32, i32) {
    %c0_i32 = arith.constant 0 : i32
    %c0_i32_0 = arith.constant 0 : i32
    return %arg0, %arg1, %c0_i32 : i32, i32, i32
  }
  func.func @transform_1(%arg0: i32, %arg1: i32) -> (i32, i32, i32) {
    %c0_i32 = arith.constant 0 : i32
    %c0_i32_0 = arith.constant 0 : i32
    %c0_i32_1 = arith.constant 0 : i32
    return %arg0, %c0_i32, %c0_i32_0 : i32, i32, i32
  }
  func.func @transform_2(%arg0: i32, %arg1: i32) -> (i32, i32, i32) {
    %c0_i32 = arith.constant 0 : i32
    %c0_i32_0 = arith.constant 0 : i32
    %c0_i32_1 = arith.constant 0 : i32
    return %arg0, %c0_i32, %c0_i32_0 : i32, i32, i32
  }
  func.func @transform_3(%arg0: i32, %arg1: i32) -> (i32, i32, i32) {
    %c0_i32 = arith.constant 0 : i32
    %c0_i32_0 = arith.constant 0 : i32
    return %arg0, %arg1, %c0_i32 : i32, i32, i32
  }
}

module attributes {stable_mosaic.version = 11 : i64} {
  func.func @_fused_proj_kernel(%arg0: i32, %arg1: i32, %arg2: memref<16x32xbf16, #tpu.memory_space<vmem>>, %arg3: memref<32x32xbf16, #tpu.memory_space<vmem>>, %arg4: memref<32x32xbf16, #tpu.memory_space<vmem>>, %arg5: memref<32x32xbf16, #tpu.memory_space<vmem>>, %arg6: memref<1x32xf32, #tpu.memory_space<vmem>>, %arg7: memref<1x32xf32, #tpu.memory_space<vmem>>, %arg8: memref<1x32xf32, #tpu.memory_space<vmem>>, %arg9: memref<16x32xbf16, #tpu.memory_space<vmem>>, %arg10: memref<16x32xbf16, #tpu.memory_space<vmem>>, %arg11: memref<16x32xbf16, #tpu.memory_space<vmem>>, %arg12: memref<16x32xf32, #tpu.memory_space<vmem>>, %arg13: memref<16x32xf32, #tpu.memory_space<vmem>>, %arg14: memref<16x32xf32, #tpu.memory_space<vmem>>) attributes {dimension_semantics = [#tpu.dimension_semantics<parallel>, #tpu.dimension_semantics<arbitrary>], iteration_bounds = array<i64: 1, 1>, scalar_prefetch = 0 : i64, scratch_operands = 3 : i64, tpu.core_type = #tpu.core_type<tc>, window_params = [{transform_indices = @transform_0, window_bounds = array<i64: 16, 32>}, {transform_indices = @transform_1, window_bounds = array<i64: 32, 32>}, {transform_indices = @transform_2, window_bounds = array<i64: 32, 32>}, {transform_indices = @transform_3, window_bounds = array<i64: 32, 32>}, {pipeline_mode = #tpu.pipeline_mode<synchronous>, transform_indices = @transform_4, window_bounds = array<i64: 1, 32>}, {pipeline_mode = #tpu.pipeline_mode<synchronous>, transform_indices = @transform_5, window_bounds = array<i64: 1, 32>}, {pipeline_mode = #tpu.pipeline_mode<synchronous>, transform_indices = @transform_6, window_bounds = array<i64: 1, 32>}, {transform_indices = @transform_7, window_bounds = array<i64: 16, 32>}, {transform_indices = @transform_8, window_bounds = array<i64: 16, 32>}, {transform_indices = @transform_9, window_bounds = array<i64: 16, 32>}]} {
    %c0_i32 = arith.constant 0 : i32
    %0 = arith.cmpi eq, %arg1, %c0_i32 : i32
    %1 = arith.extui %0 : i1 to i32
    %c0_i32_0 = arith.constant 0 : i32
    %2 = arith.cmpi ne, %1, %c0_i32_0 : i32
    scf.if %2 {
      %cst_24 = arith.constant 0.000000e+00 : f32
      %22 = vector.broadcast %cst_24 : f32 to vector<16x32xf32>
      %c0_25 = arith.constant 0 : index
      %c0_26 = arith.constant 0 : index
      %23 = vector.load %arg12[%c0_25, %c0_26] : memref<16x32xf32, #tpu.memory_space<vmem>>, vector<16x32xf32>
      tpu.vector_store %arg12[%c0_25, %c0_26], %22 {strides = array<i32>} : memref<16x32xf32, #tpu.memory_space<vmem>>, vector<16x32xf32>,
      %cst_27 = arith.constant 0.000000e+00 : f32
      %24 = vector.broadcast %cst_27 : f32 to vector<16x32xf32>
      %c0_28 = arith.constant 0 : index
      %c0_29 = arith.constant 0 : index
      %25 = vector.load %arg13[%c0_28, %c0_29] : memref<16x32xf32, #tpu.memory_space<vmem>>, vector<16x32xf32>
      tpu.vector_store %arg13[%c0_28, %c0_29], %24 {strides = array<i32>} : memref<16x32xf32, #tpu.memory_space<vmem>>, vector<16x32xf32>,
      %cst_30 = arith.constant 0.000000e+00 : f32
      %26 = vector.broadcast %cst_30 : f32 to vector<16x32xf32>
      %c0_31 = arith.constant 0 : index
      %c0_32 = arith.constant 0 : index
      %27 = vector.load %arg14[%c0_31, %c0_32] : memref<16x32xf32, #tpu.memory_space<vmem>>, vector<16x32xf32>
      tpu.vector_store %arg14[%c0_31, %c0_32], %26 {strides = array<i32>} : memref<16x32xf32, #tpu.memory_space<vmem>>, vector<16x32xf32>,
    } else {
    }
    %c0 = arith.constant 0 : index
    %c0_1 = arith.constant 0 : index
    %3 = vector.load %arg2[%c0, %c0_1] : memref<16x32xbf16, #tpu.memory_space<vmem>>, vector<16x32xbf16>
    %c0_2 = arith.constant 0 : index
    %c0_3 = arith.constant 0 : index
    %4 = vector.load %arg12[%c0_2, %c0_3] : memref<16x32xf32, #tpu.memory_space<vmem>>, vector<16x32xf32>
    %c0_4 = arith.constant 0 : index
    %c0_5 = arith.constant 0 : index
    %5 = vector.load %arg3[%c0_4, %c0_5] : memref<32x32xbf16, #tpu.memory_space<vmem>>, vector<32x32xbf16>
    %cst = arith.constant dense<0.000000e+00> : vector<16x32xf32>
    %6 = tpu.matmul %3, %5, %cst {dimension_numbers = #tpu.dot_dimension_numbers<[1], [0], [0], [1], [0, 0, 1, 1], [], []>} : vector<16x32xbf16>, vector<32x32xbf16>, vector<16x32xf32> -> vector<16x32xf32>
    %7 = arith.addf %4, %6 : vector<16x32xf32>
    %c0_6 = arith.constant 0 : index
    %c0_7 = arith.constant 0 : index
    %8 = vector.load %arg12[%c0_6, %c0_7] : memref<16x32xf32, #tpu.memory_space<vmem>>, vector<16x32xf32>
    tpu.vector_store %arg12[%c0_6, %c0_7], %7 {strides = array<i32>} : memref<16x32xf32, #tpu.memory_space<vmem>>, vector<16x32xf32>,
    %c0_8 = arith.constant 0 : index
    %c0_9 = arith.constant 0 : index
    %9 = vector.load %arg13[%c0_8, %c0_9] : memref<16x32xf32, #tpu.memory_space<vmem>>, vector<16x32xf32>
    %c0_10 = arith.constant 0 : index
    %c0_11 = arith.constant 0 : index
    %10 = vector.load %arg4[%c0_10, %c0_11] : memref<32x32xbf16, #tpu.memory_space<vmem>>, vector<32x32xbf16>
    %cst_12 = arith.constant dense<0.000000e+00> : vector<16x32xf32>
    %11 = tpu.matmul %3, %10, %cst_12 {dimension_numbers = #tpu.dot_dimension_numbers<[1], [0], [0], [1], [0, 0, 1, 1], [], []>} : vector<16x32xbf16>, vector<32x32xbf16>, vector<16x32xf32> -> vector<16x32xf32>
    %12 = arith.addf %9, %11 : vector<16x32xf32>
    %c0_13 = arith.constant 0 : index
    %c0_14 = arith.constant 0 : index
    %13 = vector.load %arg13[%c0_13, %c0_14] : memref<16x32xf32, #tpu.memory_space<vmem>>, vector<16x32xf32>
    tpu.vector_store %arg13[%c0_13, %c0_14], %12 {strides = array<i32>} : memref<16x32xf32, #tpu.memory_space<vmem>>, vector<16x32xf32>,
    %c0_15 = arith.constant 0 : index
    %c0_16 = arith.constant 0 : index
    %14 = vector.load %arg14[%c0_15, %c0_16] : memref<16x32xf32, #tpu.memory_space<vmem>>, vector<16x32xf32>
    %c0_17 = arith.constant 0 : index
    %c0_18 = arith.constant 0 : index
    %15 = vector.load %arg5[%c0_17, %c0_18] : memref<32x32xbf16, #tpu.memory_space<vmem>>, vector<32x32xbf16>
    %cst_19 = arith.constant dense<0.000000e+00> : vector<16x32xf32>
    %16 = tpu.matmul %3, %15, %cst_19 {dimension_numbers = #tpu.dot_dimension_numbers<[1], [0], [0], [1], [0, 0, 1, 1], [], []>} : vector<16x32xbf16>, vector<32x32xbf16>, vector<16x32xf32> -> vector<16x32xf32>
    %17 = arith.addf %14, %16 : vector<16x32xf32>
    %c0_20 = arith.constant 0 : index
    %c0_21 = arith.constant 0 : index
    %18 = vector.load %arg14[%c0_20, %c0_21] : memref<16x32xf32, #tpu.memory_space<vmem>>, vector<16x32xf32>
    tpu.vector_store %arg14[%c0_20, %c0_21], %17 {strides = array<i32>} : memref<16x32xf32, #tpu.memory_space<vmem>>, vector<16x32xf32>,
    %c0_i32_22 = arith.constant 0 : i32
    %19 = arith.cmpi eq, %arg1, %c0_i32_22 : i32
    %20 = arith.extui %19 : i1 to i32
    %c0_i32_23 = arith.constant 0 : i32
    %21 = arith.cmpi ne, %20, %c0_i32_23 : i32
    scf.if %21 {
      %c0_24 = arith.constant 0 : index
      %c0_25 = arith.constant 0 : index
      %22 = vector.load %arg12[%c0_24, %c0_25] : memref<16x32xf32, #tpu.memory_space<vmem>>, vector<16x32xf32>
      %c0_26 = arith.constant 0 : index
      %c0_27 = arith.constant 0 : index
      %23 = vector.load %arg6[%c0_26, %c0_27] : memref<1x32xf32, #tpu.memory_space<vmem>>, vector<1x32xf32>
      %24 = vector.broadcast %23 : vector<1x32xf32> to vector<16x32xf32>
      %25 = arith.addf %22, %24 : vector<16x32xf32>
      %26 = arith.truncf %25 : vector<16x32xf32> to vector<16x32xbf16>
      %c0_28 = arith.constant 0 : index
      %c0_29 = arith.constant 0 : index
      %27 = vector.load %arg9[%c0_28, %c0_29] : memref<16x32xbf16, #tpu.memory_space<vmem>>, vector<16x32xbf16>
      tpu.vector_store %arg9[%c0_28, %c0_29], %26 {strides = array<i32>} : memref<16x32xbf16, #tpu.memory_space<vmem>>, vector<16x32xbf16>,
      %c0_30 = arith.constant 0 : index
      %c0_31 = arith.constant 0 : index
      %28 = vector.load %arg13[%c0_30, %c0_31] : memref<16x32xf32, #tpu.memory_space<vmem>>, vector<16x32xf32>
      %c0_32 = arith.constant 0 : index
      %c0_33 = arith.constant 0 : index
      %29 = vector.load %arg7[%c0_32, %c0_33] : memref<1x32xf32, #tpu.memory_space<vmem>>, vector<1x32xf32>
      %30 = vector.broadcast %29 : vector<1x32xf32> to vector<16x32xf32>
      %31 = arith.addf %28, %30 : vector<16x32xf32>
      %32 = arith.truncf %31 : vector<16x32xf32> to vector<16x32xbf16>
      %c0_34 = arith.constant 0 : index
      %c0_35 = arith.constant 0 : index
      %33 = vector.load %arg10[%c0_34, %c0_35] : memref<16x32xbf16, #tpu.memory_space<vmem>>, vector<16x32xbf16>
      tpu.vector_store %arg10[%c0_34, %c0_35], %32 {strides = array<i32>} : memref<16x32xbf16, #tpu.memory_space<vmem>>, vector<16x32xbf16>,
      %c0_36 = arith.constant 0 : index
      %c0_37 = arith.constant 0 : index
      %34 = vector.load %arg14[%c0_36, %c0_37] : memref<16x32xf32, #tpu.memory_space<vmem>>, vector<16x32xf32>
      %c0_38 = arith.constant 0 : index
      %c0_39 = arith.constant 0 : index
      %35 = vector.load %arg8[%c0_38, %c0_39] : memref<1x32xf32, #tpu.memory_space<vmem>>, vector<1x32xf32>
      %36 = vector.broadcast %35 : vector<1x32xf32> to vector<16x32xf32>
      %37 = arith.addf %34, %36 : vector<16x32xf32>
      %38 = arith.truncf %37 : vector<16x32xf32> to vector<16x32xbf16>
      %c0_40 = arith.constant 0 : index
      %c0_41 = arith.constant 0 : index
      %39 = vector.load %arg11[%c0_40, %c0_41] : memref<16x32xbf16, #tpu.memory_space<vmem>>, vector<16x32xbf16>
      tpu.vector_store %arg11[%c0_40, %c0_41], %38 {strides = array<i32>} : memref<16x32xbf16, #tpu.memory_space<vmem>>, vector<16x32xbf16>,
    } else {
    }
    return
  }
  func.func @transform_0(%arg0: i32, %arg1: i32) -> (i32, i32) {
    %c0_i32 = arith.constant 0 : i32
    return %arg0, %arg1 : i32, i32
  }
  func.func @transform_1(%arg0: i32, %arg1: i32) -> (i32, i32) {
    %c0_i32 = arith.constant 0 : i32
    %c0_i32_0 = arith.constant 0 : i32
    return %arg1, %c0_i32 : i32, i32
  }
  func.func @transform_2(%arg0: i32, %arg1: i32) -> (i32, i32) {
    %c0_i32 = arith.constant 0 : i32
    %c0_i32_0 = arith.constant 0 : i32
    return %arg1, %c0_i32 : i32, i32
  }
  func.func @transform_3(%arg0: i32, %arg1: i32) -> (i32, i32) {
    %c0_i32 = arith.constant 0 : i32
    %c0_i32_0 = arith.constant 0 : i32
    return %arg1, %c0_i32 : i32, i32
  }
  func.func @transform_4(%arg0: i32, %arg1: i32) -> (i32, i32) {
    %c0_i32 = arith.constant 0 : i32
    %c0_i32_0 = arith.constant 0 : i32
    %c0_i32_1 = arith.constant 0 : i32
    return %c0_i32, %c0_i32_0 : i32, i32
  }
  func.func @transform_5(%arg0: i32, %arg1: i32) -> (i32, i32) {
    %c0_i32 = arith.constant 0 : i32
    %c0_i32_0 = arith.constant 0 : i32
    %c0_i32_1 = arith.constant 0 : i32
    return %c0_i32, %c0_i32_0 : i32, i32
  }
  func.func @transform_6(%arg0: i32, %arg1: i32) -> (i32, i32) {
    %c0_i32 = arith.constant 0 : i32
    %c0_i32_0 = arith.constant 0 : i32
    %c0_i32_1 = arith.constant 0 : i32
    return %c0_i32, %c0_i32_0 : i32, i32
  }
  func.func @transform_7(%arg0: i32, %arg1: i32) -> (i32, i32) {
    %c0_i32 = arith.constant 0 : i32
    %c0_i32_0 = arith.constant 0 : i32
    return %arg0, %c0_i32 : i32, i32
  }
  func.func @transform_8(%arg0: i32, %arg1: i32) -> (i32, i32) {
    %c0_i32 = arith.constant 0 : i32
    %c0_i32_0 = arith.constant 0 : i32
    return %arg0, %c0_i32 : i32, i32
  }
  func.func @transform_9(%arg0: i32, %arg1: i32) -> (i32, i32) {
    %c0_i32 = arith.constant 0 : i32
    %c0_i32_0 = arith.constant 0 : i32
    return %arg0, %c0_i32 : i32, i32
  }
}

module attributes {stable_mosaic.version = 11 : i64} {
  func.func @_proj_add_ln_kernel(%arg0: i32, %arg1: i32, %arg2: memref<16x32xbf16, #tpu.memory_space<vmem>>, %arg3: memref<32x32xbf16, #tpu.memory_space<vmem>>, %arg4: memref<1x32xf32, #tpu.memory_space<vmem>>, %arg5: memref<16x32xbf16, #tpu.memory_space<vmem>>, %arg6: memref<1x32xf32, #tpu.memory_space<vmem>>, %arg7: memref<1x32xf32, #tpu.memory_space<vmem>>, %arg8: memref<16x32xbf16, #tpu.memory_space<vmem>>, %arg9: memref<16x32xf32, #tpu.memory_space<vmem>>) attributes {dimension_semantics = [#tpu.dimension_semantics<parallel>, #tpu.dimension_semantics<arbitrary>], iteration_bounds = array<i64: 1, 1>, scalar_prefetch = 0 : i64, scratch_operands = 1 : i64, tpu.core_type = #tpu.core_type<tc>, window_params = [{transform_indices = @transform_0, window_bounds = array<i64: 16, 32>}, {transform_indices = @transform_1, window_bounds = array<i64: 32, 32>}, {pipeline_mode = #tpu.pipeline_mode<synchronous>, transform_indices = @transform_2, window_bounds = array<i64: 1, 32>}, {transform_indices = @transform_3, window_bounds = array<i64: 16, 32>}, {pipeline_mode = #tpu.pipeline_mode<synchronous>, transform_indices = @transform_4, window_bounds = array<i64: 1, 32>}, {pipeline_mode = #tpu.pipeline_mode<synchronous>, transform_indices = @transform_5, window_bounds = array<i64: 1, 32>}, {transform_indices = @transform_6, window_bounds = array<i64: 16, 32>}]} {
    %c0_i32 = arith.constant 0 : i32
    %0 = arith.cmpi eq, %arg1, %c0_i32 : i32
    %1 = arith.extui %0 : i1 to i32
    %c0_i32_0 = arith.constant 0 : i32
    %2 = arith.cmpi ne, %1, %c0_i32_0 : i32
    scf.if %2 {
      %cst_10 = arith.constant 0.000000e+00 : f32
      %12 = vector.broadcast %cst_10 : f32 to vector<16x32xf32>
      %c0_11 = arith.constant 0 : index
      %c0_12 = arith.constant 0 : index
      %13 = vector.load %arg9[%c0_11, %c0_12] : memref<16x32xf32, #tpu.memory_space<vmem>>, vector<16x32xf32>
      tpu.vector_store %arg9[%c0_11, %c0_12], %12 {strides = array<i32>} : memref<16x32xf32, #tpu.memory_space<vmem>>, vector<16x32xf32>,
    } else {
    }
    %c0 = arith.constant 0 : index
    %c0_1 = arith.constant 0 : index
    %3 = vector.load %arg9[%c0, %c0_1] : memref<16x32xf32, #tpu.memory_space<vmem>>, vector<16x32xf32>
    %c0_2 = arith.constant 0 : index
    %c0_3 = arith.constant 0 : index
    %4 = vector.load %arg2[%c0_2, %c0_3] : memref<16x32xbf16, #tpu.memory_space<vmem>>, vector<16x32xbf16>
    %c0_4 = arith.constant 0 : index
    %c0_5 = arith.constant 0 : index
    %5 = vector.load %arg3[%c0_4, %c0_5] : memref<32x32xbf16, #tpu.memory_space<vmem>>, vector<32x32xbf16>
    %cst = arith.constant dense<0.000000e+00> : vector<16x32xf32>
    %6 = tpu.matmul %4, %5, %cst {dimension_numbers = #tpu.dot_dimension_numbers<[1], [0], [0], [1], [0, 0, 1, 1], [], []>} : vector<16x32xbf16>, vector<32x32xbf16>, vector<16x32xf32> -> vector<16x32xf32>
    %7 = arith.addf %3, %6 : vector<16x32xf32>
    %c0_6 = arith.constant 0 : index
    %c0_7 = arith.constant 0 : index
    %8 = vector.load %arg9[%c0_6, %c0_7] : memref<16x32xf32, #tpu.memory_space<vmem>>, vector<16x32xf32>
    tpu.vector_store %arg9[%c0_6, %c0_7], %7 {strides = array<i32>} : memref<16x32xf32, #tpu.memory_space<vmem>>, vector<16x32xf32>,
    %c0_i32_8 = arith.constant 0 : i32
    %9 = arith.cmpi eq, %arg1, %c0_i32_8 : i32
    %10 = arith.extui %9 : i1 to i32
    %c0_i32_9 = arith.constant 0 : i32
    %11 = arith.cmpi ne, %10, %c0_i32_9 : i32
    scf.if %11 {
      %c0_10 = arith.constant 0 : index
      %c0_11 = arith.constant 0 : index
      %12 = vector.load %arg9[%c0_10, %c0_11] : memref<16x32xf32, #tpu.memory_space<vmem>>, vector<16x32xf32>
      %c0_12 = arith.constant 0 : index
      %c0_13 = arith.constant 0 : index
      %13 = vector.load %arg4[%c0_12, %c0_13] : memref<1x32xf32, #tpu.memory_space<vmem>>, vector<1x32xf32>
      %14 = vector.broadcast %13 : vector<1x32xf32> to vector<16x32xf32>
      %15 = arith.addf %12, %14 : vector<16x32xf32>
      %c0_14 = arith.constant 0 : index
      %c0_15 = arith.constant 0 : index
      %16 = vector.load %arg5[%c0_14, %c0_15] : memref<16x32xbf16, #tpu.memory_space<vmem>>, vector<16x32xbf16>
      %17 = arith.extf %16 : vector<16x32xbf16> to vector<16x32xf32>
      %18 = arith.addf %15, %17 : vector<16x32xf32>
      %cst_16 = arith.constant dense<0.000000e+00> : vector<16xf32>
      %19 = vector.multi_reduction <add>, %18, %cst_16 [1] : vector<16x32xf32> to vector<16xf32>
      %20 = vector.shape_cast %19 : vector<16xf32> to vector<16x1xf32>
      %cst_17 = arith.constant 3.200000e+01 : f32
      %21 = vector.broadcast %cst_17 : f32 to vector<16x1xf32>
      %22 = arith.divf %20, %21 : vector<16x1xf32>
      %23 = vector.broadcast %22 : vector<16x1xf32> to vector<16x32xf32>
      %24 = arith.subf %18, %23 : vector<16x32xf32>
      %25 = arith.mulf %24, %24 : vector<16x32xf32>
      %cst_18 = arith.constant dense<0.000000e+00> : vector<16xf32>
      %26 = vector.multi_reduction <add>, %25, %cst_18 [1] : vector<16x32xf32> to vector<16xf32>
      %27 = vector.shape_cast %26 : vector<16xf32> to vector<16x1xf32>
      %cst_19 = arith.constant 3.200000e+01 : f32
      %28 = vector.broadcast %cst_19 : f32 to vector<16x1xf32>
      %29 = arith.divf %27, %28 : vector<16x1xf32>
      %30 = vector.broadcast %22 : vector<16x1xf32> to vector<16x32xf32>
      %31 = arith.subf %18, %30 : vector<16x32xf32>
      %cst_20 = arith.constant 9.99999974E-6 : f32
      %32 = vector.broadcast %cst_20 : f32 to vector<16x1xf32>
      %33 = arith.addf %29, %32 : vector<16x1xf32>
      %34 = math.rsqrt %33 : vector<16x1xf32>
      %35 = vector.broadcast %34 : vector<16x1xf32> to vector<16x32xf32>
      %36 = arith.mulf %31, %35 : vector<16x32xf32>
      %c0_21 = arith.constant 0 : index
      %c0_22 = arith.constant 0 : index
      %37 = vector.load %arg6[%c0_21, %c0_22] : memref<1x32xf32, #tpu.memory_space<vmem>>, vector<1x32xf32>
      %38 = vector.broadcast %37 : vector<1x32xf32> to vector<16x32xf32>
      %39 = arith.mulf %36, %38 : vector<16x32xf32>
      %c0_23 = arith.constant 0 : index
      %c0_24 = arith.constant 0 : index
      %40 = vector.load %arg7[%c0_23, %c0_24] : memref<1x32xf32, #tpu.memory_space<vmem>>, vector<1x32xf32>
      %41 = vector.broadcast %40 : vector<1x32xf32> to vector<16x32xf32>
      %42 = arith.addf %39, %41 : vector<16x32xf32>
      %43 = arith.truncf %42 : vector<16x32xf32> to vector<16x32xbf16>
      %c0_25 = arith.constant 0 : index
      %c0_26 = arith.constant 0 : index
      %44 = vector.load %arg8[%c0_25, %c0_26] : memref<16x32xbf16, #tpu.memory_space<vmem>>, vector<16x32xbf16>
      tpu.vector_store %arg8[%c0_25, %c0_26], %43 {strides = array<i32>} : memref<16x32xbf16, #tpu.memory_space<vmem>>, vector<16x32xbf16>,
    } else {
    }
    return
  }
  func.func @transform_0(%arg0: i32, %arg1: i32) -> (i32, i32) {
    %c0_i32 = arith.constant 0 : i32
    return %arg0, %arg1 : i32, i32
  }
  func.func @transform_1(%arg0: i32, %arg1: i32) -> (i32, i32) {
    %c0_i32 = arith.constant 0 : i32
    %c0_i32_0 = arith.constant 0 : i32
    return %arg1, %c0_i32 : i32, i32
  }
  func.func @transform_2(%arg0: i32, %arg1: i32) -> (i32, i32) {
    %c0_i32 = arith.constant 0 : i32
    %c0_i32_0 = arith.constant 0 : i32
    %c0_i32_1 = arith.constant 0 : i32
    return %c0_i32, %c0_i32_0 : i32, i32
  }
  func.func @transform_3(%arg0: i32, %arg1: i32) -> (i32, i32) {
    %c0_i32 = arith.constant 0 : i32
    %c0_i32_0 = arith.constant 0 : i32
    return %arg0, %c0_i32 : i32, i32
  }
  func.func @transform_4(%arg0: i32, %arg1: i32) -> (i32, i32) {
    %c0_i32 = arith.constant 0 : i32
    %c0_i32_0 = arith.constant 0 : i32
    %c0_i32_1 = arith.constant 0 : i32
    return %c0_i32, %c0_i32_0 : i32, i32
  }
  func.func @transform_5(%arg0: i32, %arg1: i32) -> (i32, i32) {
    %c0_i32 = arith.constant 0 : i32
    %c0_i32_0 = arith.constant 0 : i32
    %c0_i32_1 = arith.constant 0 : i32
    return %c0_i32, %c0_i32_0 : i32, i32
  }
  func.func @transform_6(%arg0: i32, %arg1: i32) -> (i32, i32) {
    %c0_i32 = arith.constant 0 : i32
    %c0_i32_0 = arith.constant 0 : i32
    return %arg0, %c0_i32 : i32, i32
  }
}

module attributes {stable_mosaic.version = 11 : i64} {
  func.func @_ffn_kernel(%arg0: i32, %arg1: memref<16x32xbf16, #tpu.memory_space<vmem>>, %arg2: memref<32x64xbf16, #tpu.memory_space<vmem>>, %arg3: memref<1x64xf32, #tpu.memory_space<vmem>>, %arg4: memref<64x32xbf16, #tpu.memory_space<vmem>>, %arg5: memref<1x32xf32, #tpu.memory_space<vmem>>, %arg6: memref<1x32xf32, #tpu.memory_space<vmem>>, %arg7: memref<1x32xf32, #tpu.memory_space<vmem>>, %arg8: memref<16x32xbf16, #tpu.memory_space<vmem>>) attributes {dimension_semantics = [#tpu.dimension_semantics<parallel>], iteration_bounds = array<i64: 1>, scalar_prefetch = 0 : i64, scratch_operands = 0 : i64, tpu.core_type = #tpu.core_type<tc>, window_params = [{transform_indices = @transform_0, window_bounds = array<i64: 16, 32>}, {pipeline_mode = #tpu.pipeline_mode<synchronous>, transform_indices = @transform_1, window_bounds = array<i64: 32, 64>}, {pipeline_mode = #tpu.pipeline_mode<synchronous>, transform_indices = @transform_2, window_bounds = array<i64: 1, 64>}, {pipeline_mode = #tpu.pipeline_mode<synchronous>, transform_indices = @transform_3, window_bounds = array<i64: 64, 32>}, {pipeline_mode = #tpu.pipeline_mode<synchronous>, transform_indices = @transform_4, window_bounds = array<i64: 1, 32>}, {pipeline_mode = #tpu.pipeline_mode<synchronous>, transform_indices = @transform_5, window_bounds = array<i64: 1, 32>}, {pipeline_mode = #tpu.pipeline_mode<synchronous>, transform_indices = @transform_6, window_bounds = array<i64: 1, 32>}, {transform_indices = @transform_7, window_bounds = array<i64: 16, 32>}]} {
    %c0 = arith.constant 0 : index
    %c0_0 = arith.constant 0 : index
    %0 = vector.load %arg1[%c0, %c0_0] : memref<16x32xbf16, #tpu.memory_space<vmem>>, vector<16x32xbf16>
    %c0_1 = arith.constant 0 : index
    %c0_2 = arith.constant 0 : index
    %1 = vector.load %arg2[%c0_1, %c0_2] : memref<32x64xbf16, #tpu.memory_space<vmem>>, vector<32x64xbf16>
    %cst = arith.constant dense<0.000000e+00> : vector<16x64xf32>
    %2 = tpu.matmul %0, %1, %cst {dimension_numbers = #tpu.dot_dimension_numbers<[1], [0], [0], [1], [0, 0, 1, 1], [], []>} : vector<16x32xbf16>, vector<32x64xbf16>, vector<16x64xf32> -> vector<16x64xf32>
    %c0_3 = arith.constant 0 : index
    %c0_4 = arith.constant 0 : index
    %3 = vector.load %arg3[%c0_3, %c0_4] : memref<1x64xf32, #tpu.memory_space<vmem>>, vector<1x64xf32>
    %4 = vector.broadcast %3 : vector<1x64xf32> to vector<16x64xf32>
    %5 = arith.addf %2, %4 : vector<16x64xf32>
    %cst_5 = arith.constant 0.000000e+00 : f32
    %6 = vector.broadcast %cst_5 : f32 to vector<16x64xf32>
    %7 = arith.maximumf %5, %6 : vector<16x64xf32>
    %8 = arith.truncf %7 : vector<16x64xf32> to vector<16x64xbf16>
    %c0_6 = arith.constant 0 : index
    %c0_7 = arith.constant 0 : index
    %9 = vector.load %arg4[%c0_6, %c0_7] : memref<64x32xbf16, #tpu.memory_space<vmem>>, vector<64x32xbf16>
    %cst_8 = arith.constant dense<0.000000e+00> : vector<16x32xf32>
    %10 = tpu.matmul %8, %9, %cst_8 {dimension_numbers = #tpu.dot_dimension_numbers<[1], [0], [0], [1], [0, 0, 1, 1], [], []>} : vector<16x64xbf16>, vector<64x32xbf16>, vector<16x32xf32> -> vector<16x32xf32>
    %c0_9 = arith.constant 0 : index
    %c0_10 = arith.constant 0 : index
    %11 = vector.load %arg5[%c0_9, %c0_10] : memref<1x32xf32, #tpu.memory_space<vmem>>, vector<1x32xf32>
    %12 = vector.broadcast %11 : vector<1x32xf32> to vector<16x32xf32>
    %13 = arith.addf %10, %12 : vector<16x32xf32>
    %14 = arith.extf %0 : vector<16x32xbf16> to vector<16x32xf32>
    %15 = arith.addf %14, %13 : vector<16x32xf32>
    %cst_11 = arith.constant dense<0.000000e+00> : vector<16xf32>
    %16 = vector.multi_reduction <add>, %15, %cst_11 [1] : vector<16x32xf32> to vector<16xf32>
    %17 = vector.shape_cast %16 : vector<16xf32> to vector<16x1xf32>
    %cst_12 = arith.constant 3.200000e+01 : f32
    %18 = vector.broadcast %cst_12 : f32 to vector<16x1xf32>
    %19 = arith.divf %17, %18 : vector<16x1xf32>
    %20 = vector.broadcast %19 : vector<16x1xf32> to vector<16x32xf32>
    %21 = arith.subf %15, %20 : vector<16x32xf32>
    %22 = arith.mulf %21, %21 : vector<16x32xf32>
    %cst_13 = arith.constant dense<0.000000e+00> : vector<16xf32>
    %23 = vector.multi_reduction <add>, %22, %cst_13 [1] : vector<16x32xf32> to vector<16xf32>
    %24 = vector.shape_cast %23 : vector<16xf32> to vector<16x1xf32>
    %cst_14 = arith.constant 3.200000e+01 : f32
    %25 = vector.broadcast %cst_14 : f32 to vector<16x1xf32>
    %26 = arith.divf %24, %25 : vector<16x1xf32>
    %27 = vector.broadcast %19 : vector<16x1xf32> to vector<16x32xf32>
    %28 = arith.subf %15, %27 : vector<16x32xf32>
    %cst_15 = arith.constant 9.99999974E-6 : f32
    %29 = vector.broadcast %cst_15 : f32 to vector<16x1xf32>
    %30 = arith.addf %26, %29 : vector<16x1xf32>
    %31 = math.rsqrt %30 : vector<16x1xf32>
    %32 = vector.broadcast %31 : vector<16x1xf32> to vector<16x32xf32>
    %33 = arith.mulf %28, %32 : vector<16x32xf32>
    %c0_16 = arith.constant 0 : index
    %c0_17 = arith.constant 0 : index
    %34 = vector.load %arg6[%c0_16, %c0_17] : memref<1x32xf32, #tpu.memory_space<vmem>>, vector<1x32xf32>
    %35 = vector.broadcast %34 : vector<1x32xf32> to vector<16x32xf32>
    %36 = arith.mulf %33, %35 : vector<16x32xf32>
    %c0_18 = arith.constant 0 : index
    %c0_19 = arith.constant 0 : index
    %37 = vector.load %arg7[%c0_18, %c0_19] : memref<1x32xf32, #tpu.memory_space<vmem>>, vector<1x32xf32>
    %38 = vector.broadcast %37 : vector<1x32xf32> to vector<16x32xf32>
    %39 = arith.addf %36, %38 : vector<16x32xf32>
    %40 = arith.truncf %39 : vector<16x32xf32> to vector<16x32xbf16>
    %c0_20 = arith.constant 0 : index
    %c0_21 = arith.constant 0 : index
    %41 = vector.load %arg8[%c0_20, %c0_21] : memref<16x32xbf16, #tpu.memory_space<vmem>>, vector<16x32xbf16>
    tpu.vector_store %arg8[%c0_20, %c0_21], %40 {strides = array<i32>} : memref<16x32xbf16, #tpu.memory_space<vmem>>, vector<16x32xbf16>,
    return
  }
  func.func @transform_0(%arg0: i32) -> (i32, i32) {
    %c0_i32 = arith.constant 0 : i32
    %c0_i32_0 = arith.constant 0 : i32
    return %arg0, %c0_i32 : i32, i32
  }
  func.func @transform_1(%arg0: i32) -> (i32, i32) {
    %c0_i32 = arith.constant 0 : i32
    %c0_i32_0 = arith.constant 0 : i32
    %c0_i32_1 = arith.constant 0 : i32
    return %c0_i32, %c0_i32_0 : i32, i32
  }
  func.func @transform_2(%arg0: i32) -> (i32, i32) {
    %c0_i32 = arith.constant 0 : i32
    %c0_i32_0 = arith.constant 0 : i32
    %c0_i32_1 = arith.constant 0 : i32
    return %c0_i32, %c0_i32_0 : i32, i32
  }
  func.func @transform_3(%arg0: i32) -> (i32, i32) {
    %c0_i32 = arith.constant 0 : i32
    %c0_i32_0 = arith.constant 0 : i32
    %c0_i32_1 = arith.constant 0 : i32
    return %c0_i32, %c0_i32_0 : i32, i32
  }
  func.func @transform_4(%arg0: i32) -> (i32, i32) {
    %c0_i32 = arith.constant 0 : i32
    %c0_i32_0 = arith.constant 0 : i32
    %c0_i32_1 = arith.constant 0 : i32
    return %c0_i32, %c0_i32_0 : i32, i32
  }
  func.func @transform_5(%arg0: i32) -> (i32, i32) {
    %c0_i32 = arith.constant 0 : i32
    %c0_i32_0 = arith.constant 0 : i32
    %c0_i32_1 = arith.constant 0 : i32
    return %c0_i32, %c0_i32_0 : i32, i32
  }
  func.func @transform_6(%arg0: i32) -> (i32, i32) {
    %c0_i32 = arith.constant 0 : i32
    %c0_i32_0 = arith.constant 0 : i32
    %c0_i32_1 = arith.constant 0 : i32
    return %c0_i32, %c0_i32_0 : i32, i32
  }
  func.func @transform_7(%arg0: i32) -> (i32, i32) {
    %c0_i32 = arith.constant 0 : i32
    %c0_i32_0 = arith.constant 0 : i32
    return %arg0, %c0_i32 : i32, i32
  }
}

module attributes {stable_mosaic.version = 11 : i64} {
  func.func @_fused_proj_kernel(%arg0: i32, %arg1: i32, %arg2: memref<16x32xbf16, #tpu.memory_space<vmem>>, %arg3: memref<32x32xbf16, #tpu.memory_space<vmem>>, %arg4: memref<1x32xf32, #tpu.memory_space<vmem>>, %arg5: memref<16x32xbf16, #tpu.memory_space<vmem>>, %arg6: memref<16x32xf32, #tpu.memory_space<vmem>>) attributes {dimension_semantics = [#tpu.dimension_semantics<parallel>, #tpu.dimension_semantics<arbitrary>], iteration_bounds = array<i64: 1, 1>, scalar_prefetch = 0 : i64, scratch_operands = 1 : i64, tpu.core_type = #tpu.core_type<tc>, window_params = [{transform_indices = @transform_0, window_bounds = array<i64: 16, 32>}, {transform_indices = @transform_1, window_bounds = array<i64: 32, 32>}, {pipeline_mode = #tpu.pipeline_mode<synchronous>, transform_indices = @transform_2, window_bounds = array<i64: 1, 32>}, {transform_indices = @transform_3, window_bounds = array<i64: 16, 32>}]} {
    %c0_i32 = arith.constant 0 : i32
    %0 = arith.cmpi eq, %arg1, %c0_i32 : i32
    %1 = arith.extui %0 : i1 to i32
    %c0_i32_0 = arith.constant 0 : i32
    %2 = arith.cmpi ne, %1, %c0_i32_0 : i32
    scf.if %2 {
      %cst_10 = arith.constant 0.000000e+00 : f32
      %12 = vector.broadcast %cst_10 : f32 to vector<16x32xf32>
      %c0_11 = arith.constant 0 : index
      %c0_12 = arith.constant 0 : index
      %13 = vector.load %arg6[%c0_11, %c0_12] : memref<16x32xf32, #tpu.memory_space<vmem>>, vector<16x32xf32>
      tpu.vector_store %arg6[%c0_11, %c0_12], %12 {strides = array<i32>} : memref<16x32xf32, #tpu.memory_space<vmem>>, vector<16x32xf32>,
    } else {
    }
    %c0 = arith.constant 0 : index
    %c0_1 = arith.constant 0 : index
    %3 = vector.load %arg2[%c0, %c0_1] : memref<16x32xbf16, #tpu.memory_space<vmem>>, vector<16x32xbf16>
    %c0_2 = arith.constant 0 : index
    %c0_3 = arith.constant 0 : index
    %4 = vector.load %arg6[%c0_2, %c0_3] : memref<16x32xf32, #tpu.memory_space<vmem>>, vector<16x32xf32>
    %c0_4 = arith.constant 0 : index
    %c0_5 = arith.constant 0 : index
    %5 = vector.load %arg3[%c0_4, %c0_5] : memref<32x32xbf16, #tpu.memory_space<vmem>>, vector<32x32xbf16>
    %cst = arith.constant dense<0.000000e+00> : vector<16x32xf32>
    %6 = tpu.matmul %3, %5, %cst {dimension_numbers = #tpu.dot_dimension_numbers<[1], [0], [0], [1], [0, 0, 1, 1], [], []>} : vector<16x32xbf16>, vector<32x32xbf16>, vector<16x32xf32> -> vector<16x32xf32>
    %7 = arith.addf %4, %6 : vector<16x32xf32>
    %c0_6 = arith.constant 0 : index
    %c0_7 = arith.constant 0 : index
    %8 = vector.load %arg6[%c0_6, %c0_7] : memref<16x32xf32, #tpu.memory_space<vmem>>, vector<16x32xf32>
    tpu.vector_store %arg6[%c0_6, %c0_7], %7 {strides = array<i32>} : memref<16x32xf32, #tpu.memory_space<vmem>>, vector<16x32xf32>,
    %c0_i32_8 = arith.constant 0 : i32
    %9 = arith.cmpi eq, %arg1, %c0_i32_8 : i32
    %10 = arith.extui %9 : i1 to i32
    %c0_i32_9 = arith.constant 0 : i32
    %11 = arith.cmpi ne, %10, %c0_i32_9 : i32
    scf.if %11 {
      %c0_10 = arith.constant 0 : index
      %c0_11 = arith.constant 0 : index
      %12 = vector.load %arg6[%c0_10, %c0_11] : memref<16x32xf32, #tpu.memory_space<vmem>>, vector<16x32xf32>
      %c0_12 = arith.constant 0 : index
      %c0_13 = arith.constant 0 : index
      %13 = vector.load %arg4[%c0_12, %c0_13] : memref<1x32xf32, #tpu.memory_space<vmem>>, vector<1x32xf32>
      %14 = vector.broadcast %13 : vector<1x32xf32> to vector<16x32xf32>
      %15 = arith.addf %12, %14 : vector<16x32xf32>
      %16 = arith.truncf %15 : vector<16x32xf32> to vector<16x32xbf16>
      %c0_14 = arith.constant 0 : index
      %c0_15 = arith.constant 0 : index
      %17 = vector.load %arg5[%c0_14, %c0_15] : memref<16x32xbf16, #tpu.memory_space<vmem>>, vector<16x32xbf16>
      tpu.vector_store %arg5[%c0_14, %c0_15], %16 {strides = array<i32>} : memref<16x32xbf16, #tpu.memory_space<vmem>>, vector<16x32xbf16>,
    } else {
    }
    return
  }
  func.func @transform_0(%arg0: i32, %arg1: i32) -> (i32, i32) {
    %c0_i32 = arith.constant 0 : i32
    return %arg0, %arg1 : i32, i32
  }
  func.func @transform_1(%arg0: i32, %arg1: i32) -> (i32, i32) {
    %c0_i32 = arith.constant 0 : i32
    %c0_i32_0 = arith.constant 0 : i32
    return %arg1, %c0_i32 : i32, i32
  }
  func.func @transform_2(%arg0: i32, %arg1: i32) -> (i32, i32) {
    %c0_i32 = arith.constant 0 : i32
    %c0_i32_0 = arith.constant 0 : i32
    %c0_i32_1 = arith.constant 0 : i32
    return %c0_i32, %c0_i32_0 : i32, i32
  }
  func.func @transform_3(%arg0: i32, %arg1: i32) -> (i32, i32) {
    %c0_i32 = arith.constant 0 : i32
    %c0_i32_0 = arith.constant 0 : i32
    return %arg0, %c0_i32 : i32, i32
  }
}

module attributes {stable_mosaic.version = 11 : i64} {
  func.func @_ln_kernel(%arg0: i32, %arg1: memref<16x32xbf16, #tpu.memory_space<vmem>>, %arg2: memref<1x32xf32, #tpu.memory_space<vmem>>, %arg3: memref<1x32xf32, #tpu.memory_space<vmem>>, %arg4: memref<16x32xf32, #tpu.memory_space<vmem>>) attributes {dimension_semantics = [#tpu.dimension_semantics<parallel>], iteration_bounds = array<i64: 1>, scalar_prefetch = 0 : i64, scratch_operands = 0 : i64, tpu.core_type = #tpu.core_type<tc>, window_params = [{transform_indices = @transform_0, window_bounds = array<i64: 16, 32>}, {pipeline_mode = #tpu.pipeline_mode<synchronous>, transform_indices = @transform_1, window_bounds = array<i64: 1, 32>}, {pipeline_mode = #tpu.pipeline_mode<synchronous>, transform_indices = @transform_2, window_bounds = array<i64: 1, 32>}, {transform_indices = @transform_3, window_bounds = array<i64: 16, 32>}]} {
    %c0 = arith.constant 0 : index
    %c0_0 = arith.constant 0 : index
    %0 = vector.load %arg1[%c0, %c0_0] : memref<16x32xbf16, #tpu.memory_space<vmem>>, vector<16x32xbf16>
    %1 = arith.extf %0 : vector<16x32xbf16> to vector<16x32xf32>
    %cst = arith.constant dense<0.000000e+00> : vector<16xf32>
    %2 = vector.multi_reduction <add>, %1, %cst [1] : vector<16x32xf32> to vector<16xf32>
    %3 = vector.shape_cast %2 : vector<16xf32> to vector<16x1xf32>
    %cst_1 = arith.constant 3.200000e+01 : f32
    %4 = vector.broadcast %cst_1 : f32 to vector<16x1xf32>
    %5 = arith.divf %3, %4 : vector<16x1xf32>
    %6 = vector.broadcast %5 : vector<16x1xf32> to vector<16x32xf32>
    %7 = arith.subf %1, %6 : vector<16x32xf32>
    %8 = arith.mulf %7, %7 : vector<16x32xf32>
    %cst_2 = arith.constant dense<0.000000e+00> : vector<16xf32>
    %9 = vector.multi_reduction <add>, %8, %cst_2 [1] : vector<16x32xf32> to vector<16xf32>
    %10 = vector.shape_cast %9 : vector<16xf32> to vector<16x1xf32>
    %cst_3 = arith.constant 3.200000e+01 : f32
    %11 = vector.broadcast %cst_3 : f32 to vector<16x1xf32>
    %12 = arith.divf %10, %11 : vector<16x1xf32>
    %13 = vector.broadcast %5 : vector<16x1xf32> to vector<16x32xf32>
    %14 = arith.subf %1, %13 : vector<16x32xf32>
    %cst_4 = arith.constant 9.99999974E-6 : f32
    %15 = vector.broadcast %cst_4 : f32 to vector<16x1xf32>
    %16 = arith.addf %12, %15 : vector<16x1xf32>
    %17 = math.rsqrt %16 : vector<16x1xf32>
    %18 = vector.broadcast %17 : vector<16x1xf32> to vector<16x32xf32>
    %19 = arith.mulf %14, %18 : vector<16x32xf32>
    %c0_5 = arith.constant 0 : index
    %c0_6 = arith.constant 0 : index
    %20 = vector.load %arg2[%c0_5, %c0_6] : memref<1x32xf32, #tpu.memory_space<vmem>>, vector<1x32xf32>
    %21 = vector.broadcast %20 : vector<1x32xf32> to vector<16x32xf32>
    %22 = arith.mulf %19, %21 : vector<16x32xf32>
    %c0_7 = arith.constant 0 : index
    %c0_8 = arith.constant 0 : index
    %23 = vector.load %arg3[%c0_7, %c0_8] : memref<1x32xf32, #tpu.memory_space<vmem>>, vector<1x32xf32>
    %24 = vector.broadcast %23 : vector<1x32xf32> to vector<16x32xf32>
    %25 = arith.addf %22, %24 : vector<16x32xf32>
    %c0_9 = arith.constant 0 : index
    %c0_10 = arith.constant 0 : index
    %26 = vector.load %arg4[%c0_9, %c0_10] : memref<16x32xf32, #tpu.memory_space<vmem>>, vector<16x32xf32>
    tpu.vector_store %arg4[%c0_9, %c0_10], %25 {strides = array<i32>} : memref<16x32xf32, #tpu.memory_space<vmem>>, vector<16x32xf32>,
    return
  }
  func.func @transform_0(%arg0: i32) -> (i32, i32) {
    %c0_i32 = arith.constant 0 : i32
    %c0_i32_0 = arith.constant 0 : i32
    return %arg0, %c0_i32 : i32, i32
  }
  func.func @transform_1(%arg0: i32) -> (i32, i32) {
    %c0_i32 = arith.constant 0 : i32
    %c0_i32_0 = arith.constant 0 : i32
    %c0_i32_1 = arith.constant 0 : i32
    return %c0_i32, %c0_i32_0 : i32, i32
  }
  func.func @transform_2(%arg0: i32) -> (i32, i32) {
    %c0_i32 = arith.constant 0 : i32
    %c0_i32_0 = arith.constant 0 : i32
    %c0_i32_1 = arith.constant 0 : i32
    return %c0_i32, %c0_i32_0 : i32, i32
  }
  func.func @transform_3(%arg0: i32) -> (i32, i32) {
    %c0_i32 = arith.constant 0 : i32
    %c0_i32_0 = arith.constant 0 : i32
    return %arg0, %c0_i32 : i32, i32
  }
}

module attributes {stable_mosaic.version = 11 : i64} {
  func.func @_fused_proj_kernel(%arg0: i32, %arg1: i32, %arg2: memref<16x32xbf16, #tpu.memory_space<vmem>>, %arg3: memref<32x32xbf16, #tpu.memory_space<vmem>>, %arg4: memref<32x32xbf16, #tpu.memory_space<vmem>>, %arg5: memref<1x32xf32, #tpu.memory_space<vmem>>, %arg6: memref<1x32xf32, #tpu.memory_space<vmem>>, %arg7: memref<16x32xbf16, #tpu.memory_space<vmem>>, %arg8: memref<16x32xbf16, #tpu.memory_space<vmem>>, %arg9: memref<16x32xf32, #tpu.memory_space<vmem>>, %arg10: memref<16x32xf32, #tpu.memory_space<vmem>>) attributes {dimension_semantics = [#tpu.dimension_semantics<parallel>, #tpu.dimension_semantics<arbitrary>], iteration_bounds = array<i64: 1, 1>, scalar_prefetch = 0 : i64, scratch_operands = 2 : i64, tpu.core_type = #tpu.core_type<tc>, window_params = [{transform_indices = @transform_0, window_bounds = array<i64: 16, 32>}, {transform_indices = @transform_1, window_bounds = array<i64: 32, 32>}, {transform_indices = @transform_2, window_bounds = array<i64: 32, 32>}, {pipeline_mode = #tpu.pipeline_mode<synchronous>, transform_indices = @transform_3, window_bounds = array<i64: 1, 32>}, {pipeline_mode = #tpu.pipeline_mode<synchronous>, transform_indices = @transform_4, window_bounds = array<i64: 1, 32>}, {transform_indices = @transform_5, window_bounds = array<i64: 16, 32>}, {transform_indices = @transform_6, window_bounds = array<i64: 16, 32>}]} {
    %c0_i32 = arith.constant 0 : i32
    %0 = arith.cmpi eq, %arg1, %c0_i32 : i32
    %1 = arith.extui %0 : i1 to i32
    %c0_i32_0 = arith.constant 0 : i32
    %2 = arith.cmpi ne, %1, %c0_i32_0 : i32
    scf.if %2 {
      %cst_17 = arith.constant 0.000000e+00 : f32
      %17 = vector.broadcast %cst_17 : f32 to vector<16x32xf32>
      %c0_18 = arith.constant 0 : index
      %c0_19 = arith.constant 0 : index
      %18 = vector.load %arg9[%c0_18, %c0_19] : memref<16x32xf32, #tpu.memory_space<vmem>>, vector<16x32xf32>
      tpu.vector_store %arg9[%c0_18, %c0_19], %17 {strides = array<i32>} : memref<16x32xf32, #tpu.memory_space<vmem>>, vector<16x32xf32>,
      %cst_20 = arith.constant 0.000000e+00 : f32
      %19 = vector.broadcast %cst_20 : f32 to vector<16x32xf32>
      %c0_21 = arith.constant 0 : index
      %c0_22 = arith.constant 0 : index
      %20 = vector.load %arg10[%c0_21, %c0_22] : memref<16x32xf32, #tpu.memory_space<vmem>>, vector<16x32xf32>
      tpu.vector_store %arg10[%c0_21, %c0_22], %19 {strides = array<i32>} : memref<16x32xf32, #tpu.memory_space<vmem>>, vector<16x32xf32>,
    } else {
    }
    %c0 = arith.constant 0 : index
    %c0_1 = arith.constant 0 : index
    %3 = vector.load %arg2[%c0, %c0_1] : memref<16x32xbf16, #tpu.memory_space<vmem>>, vector<16x32xbf16>
    %c0_2 = arith.constant 0 : index
    %c0_3 = arith.constant 0 : index
    %4 = vector.load %arg9[%c0_2, %c0_3] : memref<16x32xf32, #tpu.memory_space<vmem>>, vector<16x32xf32>
    %c0_4 = arith.constant 0 : index
    %c0_5 = arith.constant 0 : index
    %5 = vector.load %arg3[%c0_4, %c0_5] : memref<32x32xbf16, #tpu.memory_space<vmem>>, vector<32x32xbf16>
    %cst = arith.constant dense<0.000000e+00> : vector<16x32xf32>
    %6 = tpu.matmul %3, %5, %cst {dimension_numbers = #tpu.dot_dimension_numbers<[1], [0], [0], [1], [0, 0, 1, 1], [], []>} : vector<16x32xbf16>, vector<32x32xbf16>, vector<16x32xf32> -> vector<16x32xf32>
    %7 = arith.addf %4, %6 : vector<16x32xf32>
    %c0_6 = arith.constant 0 : index
    %c0_7 = arith.constant 0 : index
    %8 = vector.load %arg9[%c0_6, %c0_7] : memref<16x32xf32, #tpu.memory_space<vmem>>, vector<16x32xf32>
    tpu.vector_store %arg9[%c0_6, %c0_7], %7 {strides = array<i32>} : memref<16x32xf32, #tpu.memory_space<vmem>>, vector<16x32xf32>,
    %c0_8 = arith.constant 0 : index
    %c0_9 = arith.constant 0 : index
    %9 = vector.load %arg10[%c0_8, %c0_9] : memref<16x32xf32, #tpu.memory_space<vmem>>, vector<16x32xf32>
    %c0_10 = arith.constant 0 : index
    %c0_11 = arith.constant 0 : index
    %10 = vector.load %arg4[%c0_10, %c0_11] : memref<32x32xbf16, #tpu.memory_space<vmem>>, vector<32x32xbf16>
    %cst_12 = arith.constant dense<0.000000e+00> : vector<16x32xf32>
    %11 = tpu.matmul %3, %10, %cst_12 {dimension_numbers = #tpu.dot_dimension_numbers<[1], [0], [0], [1], [0, 0, 1, 1], [], []>} : vector<16x32xbf16>, vector<32x32xbf16>, vector<16x32xf32> -> vector<16x32xf32>
    %12 = arith.addf %9, %11 : vector<16x32xf32>
    %c0_13 = arith.constant 0 : index
    %c0_14 = arith.constant 0 : index
    %13 = vector.load %arg10[%c0_13, %c0_14] : memref<16x32xf32, #tpu.memory_space<vmem>>, vector<16x32xf32>
    tpu.vector_store %arg10[%c0_13, %c0_14], %12 {strides = array<i32>} : memref<16x32xf32, #tpu.memory_space<vmem>>, vector<16x32xf32>,
    %c0_i32_15 = arith.constant 0 : i32
    %14 = arith.cmpi eq, %arg1, %c0_i32_15 : i32
    %15 = arith.extui %14 : i1 to i32
    %c0_i32_16 = arith.constant 0 : i32
    %16 = arith.cmpi ne, %15, %c0_i32_16 : i32
    scf.if %16 {
      %c0_17 = arith.constant 0 : index
      %c0_18 = arith.constant 0 : index
      %17 = vector.load %arg9[%c0_17, %c0_18] : memref<16x32xf32, #tpu.memory_space<vmem>>, vector<16x32xf32>
      %c0_19 = arith.constant 0 : index
      %c0_20 = arith.constant 0 : index
      %18 = vector.load %arg5[%c0_19, %c0_20] : memref<1x32xf32, #tpu.memory_space<vmem>>, vector<1x32xf32>
      %19 = vector.broadcast %18 : vector<1x32xf32> to vector<16x32xf32>
      %20 = arith.addf %17, %19 : vector<16x32xf32>
      %21 = arith.truncf %20 : vector<16x32xf32> to vector<16x32xbf16>
      %c0_21 = arith.constant 0 : index
      %c0_22 = arith.constant 0 : index
      %22 = vector.load %arg7[%c0_21, %c0_22] : memref<16x32xbf16, #tpu.memory_space<vmem>>, vector<16x32xbf16>
      tpu.vector_store %arg7[%c0_21, %c0_22], %21 {strides = array<i32>} : memref<16x32xbf16, #tpu.memory_space<vmem>>, vector<16x32xbf16>,
      %c0_23 = arith.constant 0 : index
      %c0_24 = arith.constant 0 : index
      %23 = vector.load %arg10[%c0_23, %c0_24] : memref<16x32xf32, #tpu.memory_space<vmem>>, vector<16x32xf32>
      %c0_25 = arith.constant 0 : index
      %c0_26 = arith.constant 0 : index
      %24 = vector.load %arg6[%c0_25, %c0_26] : memref<1x32xf32, #tpu.memory_space<vmem>>, vector<1x32xf32>
      %25 = vector.broadcast %24 : vector<1x32xf32> to vector<16x32xf32>
      %26 = arith.addf %23, %25 : vector<16x32xf32>
      %27 = arith.truncf %26 : vector<16x32xf32> to vector<16x32xbf16>
      %c0_27 = arith.constant 0 : index
      %c0_28 = arith.constant 0 : index
      %28 = vector.load %arg8[%c0_27, %c0_28] : memref<16x32xbf16, #tpu.memory_space<vmem>>, vector<16x32xbf16>
      tpu.vector_store %arg8[%c0_27, %c0_28], %27 {strides = array<i32>} : memref<16x32xbf16, #tpu.memory_space<vmem>>, vector<16x32xbf16>,
    } else {
    }
    return
  }
  func.func @transform_0(%arg0: i32, %arg1: i32) -> (i32, i32) {
    %c0_i32 = arith.constant 0 : i32
    return %arg0, %arg1 : i32, i32
  }
  func.func @transform_1(%arg0: i32, %arg1: i32) -> (i32, i32) {
    %c0_i32 = arith.constant 0 : i32
    %c0_i32_0 = arith.constant 0 : i32
    return %arg1, %c0_i32 : i32, i32
  }
  func.func @transform_2(%arg0: i32, %arg1: i32) -> (i32, i32) {
    %c0_i32 = arith.constant 0 : i32
    %c0_i32_0 = arith.constant 0 : i32
    return %arg1, %c0_i32 : i32, i32
  }
  func.func @transform_3(%arg0: i32, %arg1: i32) -> (i32, i32) {
    %c0_i32 = arith.constant 0 : i32
    %c0_i32_0 = arith.constant 0 : i32
    %c0_i32_1 = arith.constant 0 : i32
    return %c0_i32, %c0_i32_0 : i32, i32
  }
  func.func @transform_4(%arg0: i32, %arg1: i32) -> (i32, i32) {
    %c0_i32 = arith.constant 0 : i32
    %c0_i32_0 = arith.constant 0 : i32
    %c0_i32_1 = arith.constant 0 : i32
    return %c0_i32, %c0_i32_0 : i32, i32
  }
  func.func @transform_5(%arg0: i32, %arg1: i32) -> (i32, i32) {
    %c0_i32 = arith.constant 0 : i32
    %c0_i32_0 = arith.constant 0 : i32
    return %arg0, %c0_i32 : i32, i32
  }
  func.func @transform_6(%arg0: i32, %arg1: i32) -> (i32, i32) {
    %c0_i32 = arith.constant 0 : i32
    %c0_i32_0 = arith.constant 0 : i32
    return %arg0, %c0_i32 : i32, i32
  }
}

module attributes {stable_mosaic.version = 11 : i64} {
  func.func @_attn_kernel(%arg0: i32, %arg1: i32, %arg2: memref<1x8x32xbf16, #tpu.memory_space<vmem>>, %arg3: memref<1x8x32xbf16, #tpu.memory_space<vmem>>, %arg4: memref<1x8x32xbf16, #tpu.memory_space<vmem>>, %arg5: memref<1x8x32xbf16, #tpu.memory_space<vmem>>) attributes {dimension_semantics = [#tpu.dimension_semantics<parallel>, #tpu.dimension_semantics<parallel>], iteration_bounds = array<i64: 2, 1>, scalar_prefetch = 0 : i64, scratch_operands = 0 : i64, tpu.core_type = #tpu.core_type<tc>, window_params = [{transform_indices = @transform_0, window_bounds = array<i64: 1, 8, 32>}, {transform_indices = @transform_1, window_bounds = array<i64: 1, 8, 32>}, {transform_indices = @transform_2, window_bounds = array<i64: 1, 8, 32>}, {transform_indices = @transform_3, window_bounds = array<i64: 1, 8, 32>}]} {
    %c0 = arith.constant 0 : index
    %c0_0 = arith.constant 0 : index
    %c0_1 = arith.constant 0 : index
    %0 = vector.load %arg2[%c0, %c0_0, %c0_1] : memref<1x8x32xbf16, #tpu.memory_space<vmem>>, vector<1x8x32xbf16>
    %1 = vector.shape_cast %0 : vector<1x8x32xbf16> to vector<8x32xbf16>
    %2 = arith.extf %1 : vector<8x32xbf16> to vector<8x32xf32>
    %cst = arith.constant 0.353553385 : f32
    %3 = vector.broadcast %cst : f32 to vector<8x32xf32>
    %4 = arith.mulf %2, %3 : vector<8x32xf32>
    %5 = arith.truncf %4 : vector<8x32xf32> to vector<8x32xbf16>
    %c0_2 = arith.constant 0 : index
    %c0_3 = arith.constant 0 : index
    %c0_4 = arith.constant 0 : index
    %6 = vector.load %arg3[%c0_2, %c0_3, %c0_4] : memref<1x8x32xbf16, #tpu.memory_space<vmem>>, vector<1x8x32xbf16>
    %7 = vector.shape_cast %6 : vector<1x8x32xbf16> to vector<8x32xbf16>
    %c0_5 = arith.constant 0 : index
    %c0_6 = arith.constant 0 : index
    %c0_7 = arith.constant 0 : index
    %8 = vector.load %arg4[%c0_5, %c0_6, %c0_7] : memref<1x8x32xbf16, #tpu.memory_space<vmem>>, vector<1x8x32xbf16>
    %9 = vector.shape_cast %8 : vector<1x8x32xbf16> to vector<8x32xbf16>
    %10 = vector.extract_strided_slice %5 {offsets = [0, 0], sizes = [8, 8], strides = [1, 1]} : vector<8x32xbf16> to vector<8x8xbf16>
    %11 = vector.extract_strided_slice %7 {offsets = [0, 0], sizes = [8, 8], strides = [1, 1]} : vector<8x32xbf16> to vector<8x8xbf16>
    %cst_8 = arith.constant dense<0.000000e+00> : vector<8x8xf32>
    %12 = tpu.matmul %10, %11, %cst_8 {dimension_numbers = #tpu.dot_dimension_numbers<[1], [1], [0], [0], [0, 0, 1, 0], [], []>} : vector<8x8xbf16>, vector<8x8xbf16>, vector<8x8xf32> -> vector<8x8xf32>
    %cst_9 = arith.constant dense<0xFF800000> : vector<8xf32>
    %13 = vector.multi_reduction <maximumf>, %12, %cst_9 [1] : vector<8x8xf32> to vector<8xf32>
    %14 = vector.shape_cast %13 : vector<8xf32> to vector<8x1xf32>
    %15 = vector.broadcast %14 : vector<8x1xf32> to vector<8x8xf32>
    %16 = arith.subf %12, %15 : vector<8x8xf32>
    %17 = math.exp %16 : vector<8x8xf32>
    %cst_10 = arith.constant dense<0.000000e+00> : vector<8xf32>
    %18 = vector.multi_reduction <add>, %17, %cst_10 [1] : vector<8x8xf32> to vector<8xf32>
    %19 = vector.shape_cast %18 : vector<8xf32> to vector<8x1xf32>
    %20 = tpu.reciprocal %19 {approx = true} : vector<8x1xf32> -> vector<8x1xf32>
    %21 = vector.broadcast %20 : vector<8x1xf32> to vector<8x8xf32>
    %22 = arith.mulf %17, %21 : vector<8x8xf32>
    %23 = arith.truncf %22 : vector<8x8xf32> to vector<8x8xbf16>
    %24 = vector.extract_strided_slice %9 {offsets = [0, 0], sizes = [8, 8], strides = [1, 1]} : vector<8x32xbf16> to vector<8x8xbf16>
    %cst_11 = arith.constant dense<0.000000e+00> : vector<8x8xf32>
    %25 = tpu.matmul %23, %24, %cst_11 {dimension_numbers = #tpu.dot_dimension_numbers<[1], [0], [0], [1], [0, 0, 1, 1], [], []>} : vector<8x8xbf16>, vector<8x8xbf16>, vector<8x8xf32> -> vector<8x8xf32>
    %26 = arith.truncf %25 : vector<8x8xf32> to vector<8x8xbf16>
    %c0_12 = arith.constant 0 : index
    %c0_13 = arith.constant 0 : index
    %c0_14 = arith.constant 0 : index
    %27 = vector.load %arg5[%c0_12, %c0_13, %c0_14] : memref<1x8x32xbf16, #tpu.memory_space<vmem>>, vector<1x8x8xbf16>
    %28 = vector.shape_cast %27 : vector<1x8x8xbf16> to vector<8x8xbf16>
    %29 = vector.shape_cast %26 : vector<8x8xbf16> to vector<1x8x8xbf16>
    tpu.vector_store %arg5[%c0_12, %c0_13, %c0_14], %29 {strides = array<i32>} : memref<1x8x32xbf16, #tpu.memory_space<vmem>>, vector<1x8x8xbf16>,
    %30 = vector.extract_strided_slice %5 {offsets = [0, 8], sizes = [8, 8], strides = [1, 1]} : vector<8x32xbf16> to vector<8x8xbf16>
    %31 = vector.extract_strided_slice %7 {offsets = [0, 8], sizes = [8, 8], strides = [1, 1]} : vector<8x32xbf16> to vector<8x8xbf16>
    %cst_15 = arith.constant dense<0.000000e+00> : vector<8x8xf32>
    %32 = tpu.matmul %30, %31, %cst_15 {dimension_numbers = #tpu.dot_dimension_numbers<[1], [1], [0], [0], [0, 0, 1, 0], [], []>} : vector<8x8xbf16>, vector<8x8xbf16>, vector<8x8xf32> -> vector<8x8xf32>
    %cst_16 = arith.constant dense<0xFF800000> : vector<8xf32>
    %33 = vector.multi_reduction <maximumf>, %32, %cst_16 [1] : vector<8x8xf32> to vector<8xf32>
    %34 = vector.shape_cast %33 : vector<8xf32> to vector<8x1xf32>
    %35 = vector.broadcast %34 : vector<8x1xf32> to vector<8x8xf32>
    %36 = arith.subf %32, %35 : vector<8x8xf32>
    %37 = math.exp %36 : vector<8x8xf32>
    %cst_17 = arith.constant dense<0.000000e+00> : vector<8xf32>
    %38 = vector.multi_reduction <add>, %37, %cst_17 [1] : vector<8x8xf32> to vector<8xf32>
    %39 = vector.shape_cast %38 : vector<8xf32> to vector<8x1xf32>
    %40 = tpu.reciprocal %39 {approx = true} : vector<8x1xf32> -> vector<8x1xf32>
    %41 = vector.broadcast %40 : vector<8x1xf32> to vector<8x8xf32>
    %42 = arith.mulf %37, %41 : vector<8x8xf32>
    %43 = arith.truncf %42 : vector<8x8xf32> to vector<8x8xbf16>
    %44 = vector.extract_strided_slice %9 {offsets = [0, 8], sizes = [8, 8], strides = [1, 1]} : vector<8x32xbf16> to vector<8x8xbf16>
    %cst_18 = arith.constant dense<0.000000e+00> : vector<8x8xf32>
    %45 = tpu.matmul %43, %44, %cst_18 {dimension_numbers = #tpu.dot_dimension_numbers<[1], [0], [0], [1], [0, 0, 1, 1], [], []>} : vector<8x8xbf16>, vector<8x8xbf16>, vector<8x8xf32> -> vector<8x8xf32>
    %46 = arith.truncf %45 : vector<8x8xf32> to vector<8x8xbf16>
    %c0_19 = arith.constant 0 : index
    %c0_20 = arith.constant 0 : index
    %c8 = arith.constant 8 : index
    %47 = vector.load %arg5[%c0_19, %c0_20, %c8] : memref<1x8x32xbf16, #tpu.memory_space<vmem>>, vector<1x8x8xbf16>
    %48 = vector.shape_cast %47 : vector<1x8x8xbf16> to vector<8x8xbf16>
    %49 = vector.shape_cast %46 : vector<8x8xbf16> to vector<1x8x8xbf16>
    tpu.vector_store %arg5[%c0_19, %c0_20, %c8], %49 {strides = array<i32>} : memref<1x8x32xbf16, #tpu.memory_space<vmem>>, vector<1x8x8xbf16>,
    %50 = vector.extract_strided_slice %5 {offsets = [0, 16], sizes = [8, 8], strides = [1, 1]} : vector<8x32xbf16> to vector<8x8xbf16>
    %51 = vector.extract_strided_slice %7 {offsets = [0, 16], sizes = [8, 8], strides = [1, 1]} : vector<8x32xbf16> to vector<8x8xbf16>
    %cst_21 = arith.constant dense<0.000000e+00> : vector<8x8xf32>
    %52 = tpu.matmul %50, %51, %cst_21 {dimension_numbers = #tpu.dot_dimension_numbers<[1], [1], [0], [0], [0, 0, 1, 0], [], []>} : vector<8x8xbf16>, vector<8x8xbf16>, vector<8x8xf32> -> vector<8x8xf32>
    %cst_22 = arith.constant dense<0xFF800000> : vector<8xf32>
    %53 = vector.multi_reduction <maximumf>, %52, %cst_22 [1] : vector<8x8xf32> to vector<8xf32>
    %54 = vector.shape_cast %53 : vector<8xf32> to vector<8x1xf32>
    %55 = vector.broadcast %54 : vector<8x1xf32> to vector<8x8xf32>
    %56 = arith.subf %52, %55 : vector<8x8xf32>
    %57 = math.exp %56 : vector<8x8xf32>
    %cst_23 = arith.constant dense<0.000000e+00> : vector<8xf32>
    %58 = vector.multi_reduction <add>, %57, %cst_23 [1] : vector<8x8xf32> to vector<8xf32>
    %59 = vector.shape_cast %58 : vector<8xf32> to vector<8x1xf32>
    %60 = tpu.reciprocal %59 {approx = true} : vector<8x1xf32> -> vector<8x1xf32>
    %61 = vector.broadcast %60 : vector<8x1xf32> to vector<8x8xf32>
    %62 = arith.mulf %57, %61 : vector<8x8xf32>
    %63 = arith.truncf %62 : vector<8x8xf32> to vector<8x8xbf16>
    %64 = vector.extract_strided_slice %9 {offsets = [0, 16], sizes = [8, 8], strides = [1, 1]} : vector<8x32xbf16> to vector<8x8xbf16>
    %cst_24 = arith.constant dense<0.000000e+00> : vector<8x8xf32>
    %65 = tpu.matmul %63, %64, %cst_24 {dimension_numbers = #tpu.dot_dimension_numbers<[1], [0], [0], [1], [0, 0, 1, 1], [], []>} : vector<8x8xbf16>, vector<8x8xbf16>, vector<8x8xf32> -> vector<8x8xf32>
    %66 = arith.truncf %65 : vector<8x8xf32> to vector<8x8xbf16>
    %c0_25 = arith.constant 0 : index
    %c0_26 = arith.constant 0 : index
    %c16 = arith.constant 16 : index
    %67 = vector.load %arg5[%c0_25, %c0_26, %c16] : memref<1x8x32xbf16, #tpu.memory_space<vmem>>, vector<1x8x8xbf16>
    %68 = vector.shape_cast %67 : vector<1x8x8xbf16> to vector<8x8xbf16>
    %69 = vector.shape_cast %66 : vector<8x8xbf16> to vector<1x8x8xbf16>
    tpu.vector_store %arg5[%c0_25, %c0_26, %c16], %69 {strides = array<i32>} : memref<1x8x32xbf16, #tpu.memory_space<vmem>>, vector<1x8x8xbf16>,
    %70 = vector.extract_strided_slice %5 {offsets = [0, 24], sizes = [8, 8], strides = [1, 1]} : vector<8x32xbf16> to vector<8x8xbf16>
    %71 = vector.extract_strided_slice %7 {offsets = [0, 24], sizes = [8, 8], strides = [1, 1]} : vector<8x32xbf16> to vector<8x8xbf16>
    %cst_27 = arith.constant dense<0.000000e+00> : vector<8x8xf32>
    %72 = tpu.matmul %70, %71, %cst_27 {dimension_numbers = #tpu.dot_dimension_numbers<[1], [1], [0], [0], [0, 0, 1, 0], [], []>} : vector<8x8xbf16>, vector<8x8xbf16>, vector<8x8xf32> -> vector<8x8xf32>
    %cst_28 = arith.constant dense<0xFF800000> : vector<8xf32>
    %73 = vector.multi_reduction <maximumf>, %72, %cst_28 [1] : vector<8x8xf32> to vector<8xf32>
    %74 = vector.shape_cast %73 : vector<8xf32> to vector<8x1xf32>
    %75 = vector.broadcast %74 : vector<8x1xf32> to vector<8x8xf32>
    %76 = arith.subf %72, %75 : vector<8x8xf32>
    %77 = math.exp %76 : vector<8x8xf32>
    %cst_29 = arith.constant dense<0.000000e+00> : vector<8xf32>
    %78 = vector.multi_reduction <add>, %77, %cst_29 [1] : vector<8x8xf32> to vector<8xf32>
    %79 = vector.shape_cast %78 : vector<8xf32> to vector<8x1xf32>
    %80 = tpu.reciprocal %79 {approx = true} : vector<8x1xf32> -> vector<8x1xf32>
    %81 = vector.broadcast %80 : vector<8x1xf32> to vector<8x8xf32>
    %82 = arith.mulf %77, %81 : vector<8x8xf32>
    %83 = arith.truncf %82 : vector<8x8xf32> to vector<8x8xbf16>
    %84 = vector.extract_strided_slice %9 {offsets = [0, 24], sizes = [8, 8], strides = [1, 1]} : vector<8x32xbf16> to vector<8x8xbf16>
    %cst_30 = arith.constant dense<0.000000e+00> : vector<8x8xf32>
    %85 = tpu.matmul %83, %84, %cst_30 {dimension_numbers = #tpu.dot_dimension_numbers<[1], [0], [0], [1], [0, 0, 1, 1], [], []>} : vector<8x8xbf16>, vector<8x8xbf16>, vector<8x8xf32> -> vector<8x8xf32>
    %86 = arith.truncf %85 : vector<8x8xf32> to vector<8x8xbf16>
    %c0_31 = arith.constant 0 : index
    %c0_32 = arith.constant 0 : index
    %c24 = arith.constant 24 : index
    %87 = vector.load %arg5[%c0_31, %c0_32, %c24] : memref<1x8x32xbf16, #tpu.memory_space<vmem>>, vector<1x8x8xbf16>
    %88 = vector.shape_cast %87 : vector<1x8x8xbf16> to vector<8x8xbf16>
    %89 = vector.shape_cast %86 : vector<8x8xbf16> to vector<1x8x8xbf16>
    tpu.vector_store %arg5[%c0_31, %c0_32, %c24], %89 {strides = array<i32>} : memref<1x8x32xbf16, #tpu.memory_space<vmem>>, vector<1x8x8xbf16>,
    return
  }
  func.func @transform_0(%arg0: i32, %arg1: i32) -> (i32, i32, i32) {
    %c0_i32 = arith.constant 0 : i32
    %c0_i32_0 = arith.constant 0 : i32
    return %arg0, %arg1, %c0_i32 : i32, i32, i32
  }
  func.func @transform_1(%arg0: i32, %arg1: i32) -> (i32, i32, i32) {
    %c0_i32 = arith.constant 0 : i32
    %c0_i32_0 = arith.constant 0 : i32
    %c0_i32_1 = arith.constant 0 : i32
    return %arg0, %c0_i32, %c0_i32_0 : i32, i32, i32
  }
  func.func @transform_2(%arg0: i32, %arg1: i32) -> (i32, i32, i32) {
    %c0_i32 = arith.constant 0 : i32
    %c0_i32_0 = arith.constant 0 : i32
    %c0_i32_1 = arith.constant 0 : i32
    return %arg0, %c0_i32, %c0_i32_0 : i32, i32, i32
  }
  func.func @transform_3(%arg0: i32, %arg1: i32) -> (i32, i32, i32) {
    %c0_i32 = arith.constant 0 : i32
    %c0_i32_0 = arith.constant 0 : i32
    return %arg0, %arg1, %c0_i32 : i32, i32, i32
  }
}

module attributes {stable_mosaic.version = 11 : i64} {
  func.func @_fused_proj_kernel(%arg0: i32, %arg1: i32, %arg2: memref<16x32xbf16, #tpu.memory_space<vmem>>, %arg3: memref<32x32xbf16, #tpu.memory_space<vmem>>, %arg4: memref<32x32xbf16, #tpu.memory_space<vmem>>, %arg5: memref<32x32xbf16, #tpu.memory_space<vmem>>, %arg6: memref<1x32xf32, #tpu.memory_space<vmem>>, %arg7: memref<1x32xf32, #tpu.memory_space<vmem>>, %arg8: memref<1x32xf32, #tpu.memory_space<vmem>>, %arg9: memref<16x32xbf16, #tpu.memory_space<vmem>>, %arg10: memref<16x32xbf16, #tpu.memory_space<vmem>>, %arg11: memref<16x32xbf16, #tpu.memory_space<vmem>>, %arg12: memref<16x32xf32, #tpu.memory_space<vmem>>, %arg13: memref<16x32xf32, #tpu.memory_space<vmem>>, %arg14: memref<16x32xf32, #tpu.memory_space<vmem>>) attributes {dimension_semantics = [#tpu.dimension_semantics<parallel>, #tpu.dimension_semantics<arbitrary>], iteration_bounds = array<i64: 1, 1>, scalar_prefetch = 0 : i64, scratch_operands = 3 : i64, tpu.core_type = #tpu.core_type<tc>, window_params = [{transform_indices = @transform_0, window_bounds = array<i64: 16, 32>}, {transform_indices = @transform_1, window_bounds = array<i64: 32, 32>}, {transform_indices = @transform_2, window_bounds = array<i64: 32, 32>}, {transform_indices = @transform_3, window_bounds = array<i64: 32, 32>}, {pipeline_mode = #tpu.pipeline_mode<synchronous>, transform_indices = @transform_4, window_bounds = array<i64: 1, 32>}, {pipeline_mode = #tpu.pipeline_mode<synchronous>, transform_indices = @transform_5, window_bounds = array<i64: 1, 32>}, {pipeline_mode = #tpu.pipeline_mode<synchronous>, transform_indices = @transform_6, window_bounds = array<i64: 1, 32>}, {transform_indices = @transform_7, window_bounds = array<i64: 16, 32>}, {transform_indices = @transform_8, window_bounds = array<i64: 16, 32>}, {transform_indices = @transform_9, window_bounds = array<i64: 16, 32>}]} {
    %c0_i32 = arith.constant 0 : i32
    %0 = arith.cmpi eq, %arg1, %c0_i32 : i32
    %1 = arith.extui %0 : i1 to i32
    %c0_i32_0 = arith.constant 0 : i32
    %2 = arith.cmpi ne, %1, %c0_i32_0 : i32
    scf.if %2 {
      %cst_24 = arith.constant 0.000000e+00 : f32
      %22 = vector.broadcast %cst_24 : f32 to vector<16x32xf32>
      %c0_25 = arith.constant 0 : index
      %c0_26 = arith.constant 0 : index
      %23 = vector.load %arg12[%c0_25, %c0_26] : memref<16x32xf32, #tpu.memory_space<vmem>>, vector<16x32xf32>
      tpu.vector_store %arg12[%c0_25, %c0_26], %22 {strides = array<i32>} : memref<16x32xf32, #tpu.memory_space<vmem>>, vector<16x32xf32>,
      %cst_27 = arith.constant 0.000000e+00 : f32
      %24 = vector.broadcast %cst_27 : f32 to vector<16x32xf32>
      %c0_28 = arith.constant 0 : index
      %c0_29 = arith.constant 0 : index
      %25 = vector.load %arg13[%c0_28, %c0_29] : memref<16x32xf32, #tpu.memory_space<vmem>>, vector<16x32xf32>
      tpu.vector_store %arg13[%c0_28, %c0_29], %24 {strides = array<i32>} : memref<16x32xf32, #tpu.memory_space<vmem>>, vector<16x32xf32>,
      %cst_30 = arith.constant 0.000000e+00 : f32
      %26 = vector.broadcast %cst_30 : f32 to vector<16x32xf32>
      %c0_31 = arith.constant 0 : index
      %c0_32 = arith.constant 0 : index
      %27 = vector.load %arg14[%c0_31, %c0_32] : memref<16x32xf32, #tpu.memory_space<vmem>>, vector<16x32xf32>
      tpu.vector_store %arg14[%c0_31, %c0_32], %26 {strides = array<i32>} : memref<16x32xf32, #tpu.memory_space<vmem>>, vector<16x32xf32>,
    } else {
    }
    %c0 = arith.constant 0 : index
    %c0_1 = arith.constant 0 : index
    %3 = vector.load %arg2[%c0, %c0_1] : memref<16x32xbf16, #tpu.memory_space<vmem>>, vector<16x32xbf16>
    %c0_2 = arith.constant 0 : index
    %c0_3 = arith.constant 0 : index
    %4 = vector.load %arg12[%c0_2, %c0_3] : memref<16x32xf32, #tpu.memory_space<vmem>>, vector<16x32xf32>
    %c0_4 = arith.constant 0 : index
    %c0_5 = arith.constant 0 : index
    %5 = vector.load %arg3[%c0_4, %c0_5] : memref<32x32xbf16, #tpu.memory_space<vmem>>, vector<32x32xbf16>
    %cst = arith.constant dense<0.000000e+00> : vector<16x32xf32>
    %6 = tpu.matmul %3, %5, %cst {dimension_numbers = #tpu.dot_dimension_numbers<[1], [0], [0], [1], [0, 0, 1, 1], [], []>} : vector<16x32xbf16>, vector<32x32xbf16>, vector<16x32xf32> -> vector<16x32xf32>
    %7 = arith.addf %4, %6 : vector<16x32xf32>
    %c0_6 = arith.constant 0 : index
    %c0_7 = arith.constant 0 : index
    %8 = vector.load %arg12[%c0_6, %c0_7] : memref<16x32xf32, #tpu.memory_space<vmem>>, vector<16x32xf32>
    tpu.vector_store %arg12[%c0_6, %c0_7], %7 {strides = array<i32>} : memref<16x32xf32, #tpu.memory_space<vmem>>, vector<16x32xf32>,
    %c0_8 = arith.constant 0 : index
    %c0_9 = arith.constant 0 : index
    %9 = vector.load %arg13[%c0_8, %c0_9] : memref<16x32xf32, #tpu.memory_space<vmem>>, vector<16x32xf32>
    %c0_10 = arith.constant 0 : index
    %c0_11 = arith.constant 0 : index
    %10 = vector.load %arg4[%c0_10, %c0_11] : memref<32x32xbf16, #tpu.memory_space<vmem>>, vector<32x32xbf16>
    %cst_12 = arith.constant dense<0.000000e+00> : vector<16x32xf32>
    %11 = tpu.matmul %3, %10, %cst_12 {dimension_numbers = #tpu.dot_dimension_numbers<[1], [0], [0], [1], [0, 0, 1, 1], [], []>} : vector<16x32xbf16>, vector<32x32xbf16>, vector<16x32xf32> -> vector<16x32xf32>
    %12 = arith.addf %9, %11 : vector<16x32xf32>
    %c0_13 = arith.constant 0 : index
    %c0_14 = arith.constant 0 : index
    %13 = vector.load %arg13[%c0_13, %c0_14] : memref<16x32xf32, #tpu.memory_space<vmem>>, vector<16x32xf32>
    tpu.vector_store %arg13[%c0_13, %c0_14], %12 {strides = array<i32>} : memref<16x32xf32, #tpu.memory_space<vmem>>, vector<16x32xf32>,
    %c0_15 = arith.constant 0 : index
    %c0_16 = arith.constant 0 : index
    %14 = vector.load %arg14[%c0_15, %c0_16] : memref<16x32xf32, #tpu.memory_space<vmem>>, vector<16x32xf32>
    %c0_17 = arith.constant 0 : index
    %c0_18 = arith.constant 0 : index
    %15 = vector.load %arg5[%c0_17, %c0_18] : memref<32x32xbf16, #tpu.memory_space<vmem>>, vector<32x32xbf16>
    %cst_19 = arith.constant dense<0.000000e+00> : vector<16x32xf32>
    %16 = tpu.matmul %3, %15, %cst_19 {dimension_numbers = #tpu.dot_dimension_numbers<[1], [0], [0], [1], [0, 0, 1, 1], [], []>} : vector<16x32xbf16>, vector<32x32xbf16>, vector<16x32xf32> -> vector<16x32xf32>
    %17 = arith.addf %14, %16 : vector<16x32xf32>
    %c0_20 = arith.constant 0 : index
    %c0_21 = arith.constant 0 : index
    %18 = vector.load %arg14[%c0_20, %c0_21] : memref<16x32xf32, #tpu.memory_space<vmem>>, vector<16x32xf32>
    tpu.vector_store %arg14[%c0_20, %c0_21], %17 {strides = array<i32>} : memref<16x32xf32, #tpu.memory_space<vmem>>, vector<16x32xf32>,
    %c0_i32_22 = arith.constant 0 : i32
    %19 = arith.cmpi eq, %arg1, %c0_i32_22 : i32
    %20 = arith.extui %19 : i1 to i32
    %c0_i32_23 = arith.constant 0 : i32
    %21 = arith.cmpi ne, %20, %c0_i32_23 : i32
    scf.if %21 {
      %c0_24 = arith.constant 0 : index
      %c0_25 = arith.constant 0 : index
      %22 = vector.load %arg12[%c0_24, %c0_25] : memref<16x32xf32, #tpu.memory_space<vmem>>, vector<16x32xf32>
      %c0_26 = arith.constant 0 : index
      %c0_27 = arith.constant 0 : index
      %23 = vector.load %arg6[%c0_26, %c0_27] : memref<1x32xf32, #tpu.memory_space<vmem>>, vector<1x32xf32>
      %24 = vector.broadcast %23 : vector<1x32xf32> to vector<16x32xf32>
      %25 = arith.addf %22, %24 : vector<16x32xf32>
      %26 = arith.truncf %25 : vector<16x32xf32> to vector<16x32xbf16>
      %c0_28 = arith.constant 0 : index
      %c0_29 = arith.constant 0 : index
      %27 = vector.load %arg9[%c0_28, %c0_29] : memref<16x32xbf16, #tpu.memory_space<vmem>>, vector<16x32xbf16>
      tpu.vector_store %arg9[%c0_28, %c0_29], %26 {strides = array<i32>} : memref<16x32xbf16, #tpu.memory_space<vmem>>, vector<16x32xbf16>,
      %c0_30 = arith.constant 0 : index
      %c0_31 = arith.constant 0 : index
      %28 = vector.load %arg13[%c0_30, %c0_31] : memref<16x32xf32, #tpu.memory_space<vmem>>, vector<16x32xf32>
      %c0_32 = arith.constant 0 : index
      %c0_33 = arith.constant 0 : index
      %29 = vector.load %arg7[%c0_32, %c0_33] : memref<1x32xf32, #tpu.memory_space<vmem>>, vector<1x32xf32>
      %30 = vector.broadcast %29 : vector<1x32xf32> to vector<16x32xf32>
      %31 = arith.addf %28, %30 : vector<16x32xf32>
      %32 = arith.truncf %31 : vector<16x32xf32> to vector<16x32xbf16>
      %c0_34 = arith.constant 0 : index
      %c0_35 = arith.constant 0 : index
      %33 = vector.load %arg10[%c0_34, %c0_35] : memref<16x32xbf16, #tpu.memory_space<vmem>>, vector<16x32xbf16>
      tpu.vector_store %arg10[%c0_34, %c0_35], %32 {strides = array<i32>} : memref<16x32xbf16, #tpu.memory_space<vmem>>, vector<16x32xbf16>,
      %c0_36 = arith.constant 0 : index
      %c0_37 = arith.constant 0 : index
      %34 = vector.load %arg14[%c0_36, %c0_37] : memref<16x32xf32, #tpu.memory_space<vmem>>, vector<16x32xf32>
      %c0_38 = arith.constant 0 : index
      %c0_39 = arith.constant 0 : index
      %35 = vector.load %arg8[%c0_38, %c0_39] : memref<1x32xf32, #tpu.memory_space<vmem>>, vector<1x32xf32>
      %36 = vector.broadcast %35 : vector<1x32xf32> to vector<16x32xf32>
      %37 = arith.addf %34, %36 : vector<16x32xf32>
      %38 = arith.truncf %37 : vector<16x32xf32> to vector<16x32xbf16>
      %c0_40 = arith.constant 0 : index
      %c0_41 = arith.constant 0 : index
      %39 = vector.load %arg11[%c0_40, %c0_41] : memref<16x32xbf16, #tpu.memory_space<vmem>>, vector<16x32xbf16>
      tpu.vector_store %arg11[%c0_40, %c0_41], %38 {strides = array<i32>} : memref<16x32xbf16, #tpu.memory_space<vmem>>, vector<16x32xbf16>,
    } else {
    }
    return
  }
  func.func @transform_0(%arg0: i32, %arg1: i32) -> (i32, i32) {
    %c0_i32 = arith.constant 0 : i32
    return %arg0, %arg1 : i32, i32
  }
  func.func @transform_1(%arg0: i32, %arg1: i32) -> (i32, i32) {
    %c0_i32 = arith.constant 0 : i32
    %c0_i32_0 = arith.constant 0 : i32
    return %arg1, %c0_i32 : i32, i32
  }
  func.func @transform_2(%arg0: i32, %arg1: i32) -> (i32, i32) {
    %c0_i32 = arith.constant 0 : i32
    %c0_i32_0 = arith.constant 0 : i32
    return %arg1, %c0_i32 : i32, i32
  }
  func.func @transform_3(%arg0: i32, %arg1: i32) -> (i32, i32) {
    %c0_i32 = arith.constant 0 : i32
    %c0_i32_0 = arith.constant 0 : i32
    return %arg1, %c0_i32 : i32, i32
  }
  func.func @transform_4(%arg0: i32, %arg1: i32) -> (i32, i32) {
    %c0_i32 = arith.constant 0 : i32
    %c0_i32_0 = arith.constant 0 : i32
    %c0_i32_1 = arith.constant 0 : i32
    return %c0_i32, %c0_i32_0 : i32, i32
  }
  func.func @transform_5(%arg0: i32, %arg1: i32) -> (i32, i32) {
    %c0_i32 = arith.constant 0 : i32
    %c0_i32_0 = arith.constant 0 : i32
    %c0_i32_1 = arith.constant 0 : i32
    return %c0_i32, %c0_i32_0 : i32, i32
  }
  func.func @transform_6(%arg0: i32, %arg1: i32) -> (i32, i32) {
    %c0_i32 = arith.constant 0 : i32
    %c0_i32_0 = arith.constant 0 : i32
    %c0_i32_1 = arith.constant 0 : i32
    return %c0_i32, %c0_i32_0 : i32, i32
  }
  func.func @transform_7(%arg0: i32, %arg1: i32) -> (i32, i32) {
    %c0_i32 = arith.constant 0 : i32
    %c0_i32_0 = arith.constant 0 : i32
    return %arg0, %c0_i32 : i32, i32
  }
  func.func @transform_8(%arg0: i32, %arg1: i32) -> (i32, i32) {
    %c0_i32 = arith.constant 0 : i32
    %c0_i32_0 = arith.constant 0 : i32
    return %arg0, %c0_i32 : i32, i32
  }
  func.func @transform_9(%arg0: i32, %arg1: i32) -> (i32, i32) {
    %c0_i32 = arith.constant 0 : i32
    %c0_i32_0 = arith.constant 0 : i32
    return %arg0, %c0_i32 : i32, i32
  }
}

module attributes {stable_mosaic.version = 11 : i64} {
  func.func @_proj_add_ln_kernel(%arg0: i32, %arg1: i32, %arg2: memref<16x32xbf16, #tpu.memory_space<vmem>>, %arg3: memref<32x32xbf16, #tpu.memory_space<vmem>>, %arg4: memref<1x32xf32, #tpu.memory_space<vmem>>, %arg5: memref<16x32xbf16, #tpu.memory_space<vmem>>, %arg6: memref<1x32xf32, #tpu.memory_space<vmem>>, %arg7: memref<1x32xf32, #tpu.memory_space<vmem>>, %arg8: memref<16x32xbf16, #tpu.memory_space<vmem>>, %arg9: memref<16x32xf32, #tpu.memory_space<vmem>>) attributes {dimension_semantics = [#tpu.dimension_semantics<parallel>, #tpu.dimension_semantics<arbitrary>], iteration_bounds = array<i64: 1, 1>, scalar_prefetch = 0 : i64, scratch_operands = 1 : i64, tpu.core_type = #tpu.core_type<tc>, window_params = [{transform_indices = @transform_0, window_bounds = array<i64: 16, 32>}, {transform_indices = @transform_1, window_bounds = array<i64: 32, 32>}, {pipeline_mode = #tpu.pipeline_mode<synchronous>, transform_indices = @transform_2, window_bounds = array<i64: 1, 32>}, {transform_indices = @transform_3, window_bounds = array<i64: 16, 32>}, {pipeline_mode = #tpu.pipeline_mode<synchronous>, transform_indices = @transform_4, window_bounds = array<i64: 1, 32>}, {pipeline_mode = #tpu.pipeline_mode<synchronous>, transform_indices = @transform_5, window_bounds = array<i64: 1, 32>}, {transform_indices = @transform_6, window_bounds = array<i64: 16, 32>}]} {
    %c0_i32 = arith.constant 0 : i32
    %0 = arith.cmpi eq, %arg1, %c0_i32 : i32
    %1 = arith.extui %0 : i1 to i32
    %c0_i32_0 = arith.constant 0 : i32
    %2 = arith.cmpi ne, %1, %c0_i32_0 : i32
    scf.if %2 {
      %cst_10 = arith.constant 0.000000e+00 : f32
      %12 = vector.broadcast %cst_10 : f32 to vector<16x32xf32>
      %c0_11 = arith.constant 0 : index
      %c0_12 = arith.constant 0 : index
      %13 = vector.load %arg9[%c0_11, %c0_12] : memref<16x32xf32, #tpu.memory_space<vmem>>, vector<16x32xf32>
      tpu.vector_store %arg9[%c0_11, %c0_12], %12 {strides = array<i32>} : memref<16x32xf32, #tpu.memory_space<vmem>>, vector<16x32xf32>,
    } else {
    }
    %c0 = arith.constant 0 : index
    %c0_1 = arith.constant 0 : index
    %3 = vector.load %arg9[%c0, %c0_1] : memref<16x32xf32, #tpu.memory_space<vmem>>, vector<16x32xf32>
    %c0_2 = arith.constant 0 : index
    %c0_3 = arith.constant 0 : index
    %4 = vector.load %arg2[%c0_2, %c0_3] : memref<16x32xbf16, #tpu.memory_space<vmem>>, vector<16x32xbf16>
    %c0_4 = arith.constant 0 : index
    %c0_5 = arith.constant 0 : index
    %5 = vector.load %arg3[%c0_4, %c0_5] : memref<32x32xbf16, #tpu.memory_space<vmem>>, vector<32x32xbf16>
    %cst = arith.constant dense<0.000000e+00> : vector<16x32xf32>
    %6 = tpu.matmul %4, %5, %cst {dimension_numbers = #tpu.dot_dimension_numbers<[1], [0], [0], [1], [0, 0, 1, 1], [], []>} : vector<16x32xbf16>, vector<32x32xbf16>, vector<16x32xf32> -> vector<16x32xf32>
    %7 = arith.addf %3, %6 : vector<16x32xf32>
    %c0_6 = arith.constant 0 : index
    %c0_7 = arith.constant 0 : index
    %8 = vector.load %arg9[%c0_6, %c0_7] : memref<16x32xf32, #tpu.memory_space<vmem>>, vector<16x32xf32>
    tpu.vector_store %arg9[%c0_6, %c0_7], %7 {strides = array<i32>} : memref<16x32xf32, #tpu.memory_space<vmem>>, vector<16x32xf32>,
    %c0_i32_8 = arith.constant 0 : i32
    %9 = arith.cmpi eq, %arg1, %c0_i32_8 : i32
    %10 = arith.extui %9 : i1 to i32
    %c0_i32_9 = arith.constant 0 : i32
    %11 = arith.cmpi ne, %10, %c0_i32_9 : i32
    scf.if %11 {
      %c0_10 = arith.constant 0 : index
      %c0_11 = arith.constant 0 : index
      %12 = vector.load %arg9[%c0_10, %c0_11] : memref<16x32xf32, #tpu.memory_space<vmem>>, vector<16x32xf32>
      %c0_12 = arith.constant 0 : index
      %c0_13 = arith.constant 0 : index
      %13 = vector.load %arg4[%c0_12, %c0_13] : memref<1x32xf32, #tpu.memory_space<vmem>>, vector<1x32xf32>
      %14 = vector.broadcast %13 : vector<1x32xf32> to vector<16x32xf32>
      %15 = arith.addf %12, %14 : vector<16x32xf32>
      %c0_14 = arith.constant 0 : index
      %c0_15 = arith.constant 0 : index
      %16 = vector.load %arg5[%c0_14, %c0_15] : memref<16x32xbf16, #tpu.memory_space<vmem>>, vector<16x32xbf16>
      %17 = arith.extf %16 : vector<16x32xbf16> to vector<16x32xf32>
      %18 = arith.addf %15, %17 : vector<16x32xf32>
      %cst_16 = arith.constant dense<0.000000e+00> : vector<16xf32>
      %19 = vector.multi_reduction <add>, %18, %cst_16 [1] : vector<16x32xf32> to vector<16xf32>
      %20 = vector.shape_cast %19 : vector<16xf32> to vector<16x1xf32>
      %cst_17 = arith.constant 3.200000e+01 : f32
      %21 = vector.broadcast %cst_17 : f32 to vector<16x1xf32>
      %22 = arith.divf %20, %21 : vector<16x1xf32>
      %23 = vector.broadcast %22 : vector<16x1xf32> to vector<16x32xf32>
      %24 = arith.subf %18, %23 : vector<16x32xf32>
      %25 = arith.mulf %24, %24 : vector<16x32xf32>
      %cst_18 = arith.constant dense<0.000000e+00> : vector<16xf32>
      %26 = vector.multi_reduction <add>, %25, %cst_18 [1] : vector<16x32xf32> to vector<16xf32>
      %27 = vector.shape_cast %26 : vector<16xf32> to vector<16x1xf32>
      %cst_19 = arith.constant 3.200000e+01 : f32
      %28 = vector.broadcast %cst_19 : f32 to vector<16x1xf32>
      %29 = arith.divf %27, %28 : vector<16x1xf32>
      %30 = vector.broadcast %22 : vector<16x1xf32> to vector<16x32xf32>
      %31 = arith.subf %18, %30 : vector<16x32xf32>
      %cst_20 = arith.constant 9.99999974E-6 : f32
      %32 = vector.broadcast %cst_20 : f32 to vector<16x1xf32>
      %33 = arith.addf %29, %32 : vector<16x1xf32>
      %34 = math.rsqrt %33 : vector<16x1xf32>
      %35 = vector.broadcast %34 : vector<16x1xf32> to vector<16x32xf32>
      %36 = arith.mulf %31, %35 : vector<16x32xf32>
      %c0_21 = arith.constant 0 : index
      %c0_22 = arith.constant 0 : index
      %37 = vector.load %arg6[%c0_21, %c0_22] : memref<1x32xf32, #tpu.memory_space<vmem>>, vector<1x32xf32>
      %38 = vector.broadcast %37 : vector<1x32xf32> to vector<16x32xf32>
      %39 = arith.mulf %36, %38 : vector<16x32xf32>
      %c0_23 = arith.constant 0 : index
      %c0_24 = arith.constant 0 : index
      %40 = vector.load %arg7[%c0_23, %c0_24] : memref<1x32xf32, #tpu.memory_space<vmem>>, vector<1x32xf32>
      %41 = vector.broadcast %40 : vector<1x32xf32> to vector<16x32xf32>
      %42 = arith.addf %39, %41 : vector<16x32xf32>
      %43 = arith.truncf %42 : vector<16x32xf32> to vector<16x32xbf16>
      %c0_25 = arith.constant 0 : index
      %c0_26 = arith.constant 0 : index
      %44 = vector.load %arg8[%c0_25, %c0_26] : memref<16x32xbf16, #tpu.memory_space<vmem>>, vector<16x32xbf16>
      tpu.vector_store %arg8[%c0_25, %c0_26], %43 {strides = array<i32>} : memref<16x32xbf16, #tpu.memory_space<vmem>>, vector<16x32xbf16>,
    } else {
    }
    return
  }
  func.func @transform_0(%arg0: i32, %arg1: i32) -> (i32, i32) {
    %c0_i32 = arith.constant 0 : i32
    return %arg0, %arg1 : i32, i32
  }
  func.func @transform_1(%arg0: i32, %arg1: i32) -> (i32, i32) {
    %c0_i32 = arith.constant 0 : i32
    %c0_i32_0 = arith.constant 0 : i32
    return %arg1, %c0_i32 : i32, i32
  }
  func.func @transform_2(%arg0: i32, %arg1: i32) -> (i32, i32) {
    %c0_i32 = arith.constant 0 : i32
    %c0_i32_0 = arith.constant 0 : i32
    %c0_i32_1 = arith.constant 0 : i32
    return %c0_i32, %c0_i32_0 : i32, i32
  }
  func.func @transform_3(%arg0: i32, %arg1: i32) -> (i32, i32) {
    %c0_i32 = arith.constant 0 : i32
    %c0_i32_0 = arith.constant 0 : i32
    return %arg0, %c0_i32 : i32, i32
  }
  func.func @transform_4(%arg0: i32, %arg1: i32) -> (i32, i32) {
    %c0_i32 = arith.constant 0 : i32
    %c0_i32_0 = arith.constant 0 : i32
    %c0_i32_1 = arith.constant 0 : i32
    return %c0_i32, %c0_i32_0 : i32, i32
  }
  func.func @transform_5(%arg0: i32, %arg1: i32) -> (i32, i32) {
    %c0_i32 = arith.constant 0 : i32
    %c0_i32_0 = arith.constant 0 : i32
    %c0_i32_1 = arith.constant 0 : i32
    return %c0_i32, %c0_i32_0 : i32, i32
  }
  func.func @transform_6(%arg0: i32, %arg1: i32) -> (i32, i32) {
    %c0_i32 = arith.constant 0 : i32
    %c0_i32_0 = arith.constant 0 : i32
    return %arg0, %c0_i32 : i32, i32
  }
}

module attributes {stable_mosaic.version = 11 : i64} {
  func.func @_ffn_kernel(%arg0: i32, %arg1: memref<16x32xbf16, #tpu.memory_space<vmem>>, %arg2: memref<32x64xbf16, #tpu.memory_space<vmem>>, %arg3: memref<1x64xf32, #tpu.memory_space<vmem>>, %arg4: memref<64x32xbf16, #tpu.memory_space<vmem>>, %arg5: memref<1x32xf32, #tpu.memory_space<vmem>>, %arg6: memref<1x32xf32, #tpu.memory_space<vmem>>, %arg7: memref<1x32xf32, #tpu.memory_space<vmem>>, %arg8: memref<16x32xbf16, #tpu.memory_space<vmem>>) attributes {dimension_semantics = [#tpu.dimension_semantics<parallel>], iteration_bounds = array<i64: 1>, scalar_prefetch = 0 : i64, scratch_operands = 0 : i64, tpu.core_type = #tpu.core_type<tc>, window_params = [{transform_indices = @transform_0, window_bounds = array<i64: 16, 32>}, {pipeline_mode = #tpu.pipeline_mode<synchronous>, transform_indices = @transform_1, window_bounds = array<i64: 32, 64>}, {pipeline_mode = #tpu.pipeline_mode<synchronous>, transform_indices = @transform_2, window_bounds = array<i64: 1, 64>}, {pipeline_mode = #tpu.pipeline_mode<synchronous>, transform_indices = @transform_3, window_bounds = array<i64: 64, 32>}, {pipeline_mode = #tpu.pipeline_mode<synchronous>, transform_indices = @transform_4, window_bounds = array<i64: 1, 32>}, {pipeline_mode = #tpu.pipeline_mode<synchronous>, transform_indices = @transform_5, window_bounds = array<i64: 1, 32>}, {pipeline_mode = #tpu.pipeline_mode<synchronous>, transform_indices = @transform_6, window_bounds = array<i64: 1, 32>}, {transform_indices = @transform_7, window_bounds = array<i64: 16, 32>}]} {
    %c0 = arith.constant 0 : index
    %c0_0 = arith.constant 0 : index
    %0 = vector.load %arg1[%c0, %c0_0] : memref<16x32xbf16, #tpu.memory_space<vmem>>, vector<16x32xbf16>
    %c0_1 = arith.constant 0 : index
    %c0_2 = arith.constant 0 : index
    %1 = vector.load %arg2[%c0_1, %c0_2] : memref<32x64xbf16, #tpu.memory_space<vmem>>, vector<32x64xbf16>
    %cst = arith.constant dense<0.000000e+00> : vector<16x64xf32>
    %2 = tpu.matmul %0, %1, %cst {dimension_numbers = #tpu.dot_dimension_numbers<[1], [0], [0], [1], [0, 0, 1, 1], [], []>} : vector<16x32xbf16>, vector<32x64xbf16>, vector<16x64xf32> -> vector<16x64xf32>
    %c0_3 = arith.constant 0 : index
    %c0_4 = arith.constant 0 : index
    %3 = vector.load %arg3[%c0_3, %c0_4] : memref<1x64xf32, #tpu.memory_space<vmem>>, vector<1x64xf32>
    %4 = vector.broadcast %3 : vector<1x64xf32> to vector<16x64xf32>
    %5 = arith.addf %2, %4 : vector<16x64xf32>
    %cst_5 = arith.constant 0.000000e+00 : f32
    %6 = vector.broadcast %cst_5 : f32 to vector<16x64xf32>
    %7 = arith.maximumf %5, %6 : vector<16x64xf32>
    %8 = arith.truncf %7 : vector<16x64xf32> to vector<16x64xbf16>
    %c0_6 = arith.constant 0 : index
    %c0_7 = arith.constant 0 : index
    %9 = vector.load %arg4[%c0_6, %c0_7] : memref<64x32xbf16, #tpu.memory_space<vmem>>, vector<64x32xbf16>
    %cst_8 = arith.constant dense<0.000000e+00> : vector<16x32xf32>
    %10 = tpu.matmul %8, %9, %cst_8 {dimension_numbers = #tpu.dot_dimension_numbers<[1], [0], [0], [1], [0, 0, 1, 1], [], []>} : vector<16x64xbf16>, vector<64x32xbf16>, vector<16x32xf32> -> vector<16x32xf32>
    %c0_9 = arith.constant 0 : index
    %c0_10 = arith.constant 0 : index
    %11 = vector.load %arg5[%c0_9, %c0_10] : memref<1x32xf32, #tpu.memory_space<vmem>>, vector<1x32xf32>
    %12 = vector.broadcast %11 : vector<1x32xf32> to vector<16x32xf32>
    %13 = arith.addf %10, %12 : vector<16x32xf32>
    %14 = arith.extf %0 : vector<16x32xbf16> to vector<16x32xf32>
    %15 = arith.addf %14, %13 : vector<16x32xf32>
    %cst_11 = arith.constant dense<0.000000e+00> : vector<16xf32>
    %16 = vector.multi_reduction <add>, %15, %cst_11 [1] : vector<16x32xf32> to vector<16xf32>
    %17 = vector.shape_cast %16 : vector<16xf32> to vector<16x1xf32>
    %cst_12 = arith.constant 3.200000e+01 : f32
    %18 = vector.broadcast %cst_12 : f32 to vector<16x1xf32>
    %19 = arith.divf %17, %18 : vector<16x1xf32>
    %20 = vector.broadcast %19 : vector<16x1xf32> to vector<16x32xf32>
    %21 = arith.subf %15, %20 : vector<16x32xf32>
    %22 = arith.mulf %21, %21 : vector<16x32xf32>
    %cst_13 = arith.constant dense<0.000000e+00> : vector<16xf32>
    %23 = vector.multi_reduction <add>, %22, %cst_13 [1] : vector<16x32xf32> to vector<16xf32>
    %24 = vector.shape_cast %23 : vector<16xf32> to vector<16x1xf32>
    %cst_14 = arith.constant 3.200000e+01 : f32
    %25 = vector.broadcast %cst_14 : f32 to vector<16x1xf32>
    %26 = arith.divf %24, %25 : vector<16x1xf32>
    %27 = vector.broadcast %19 : vector<16x1xf32> to vector<16x32xf32>
    %28 = arith.subf %15, %27 : vector<16x32xf32>
    %cst_15 = arith.constant 9.99999974E-6 : f32
    %29 = vector.broadcast %cst_15 : f32 to vector<16x1xf32>
    %30 = arith.addf %26, %29 : vector<16x1xf32>
    %31 = math.rsqrt %30 : vector<16x1xf32>
    %32 = vector.broadcast %31 : vector<16x1xf32> to vector<16x32xf32>
    %33 = arith.mulf %28, %32 : vector<16x32xf32>
    %c0_16 = arith.constant 0 : index
    %c0_17 = arith.constant 0 : index
    %34 = vector.load %arg6[%c0_16, %c0_17] : memref<1x32xf32, #tpu.memory_space<vmem>>, vector<1x32xf32>
    %35 = vector.broadcast %34 : vector<1x32xf32> to vector<16x32xf32>
    %36 = arith.mulf %33, %35 : vector<16x32xf32>
    %c0_18 = arith.constant 0 : index
    %c0_19 = arith.constant 0 : index
    %37 = vector.load %arg7[%c0_18, %c0_19] : memref<1x32xf32, #tpu.memory_space<vmem>>, vector<1x32xf32>
    %38 = vector.broadcast %37 : vector<1x32xf32> to vector<16x32xf32>
    %39 = arith.addf %36, %38 : vector<16x32xf32>
    %40 = arith.truncf %39 : vector<16x32xf32> to vector<16x32xbf16>
    %c0_20 = arith.constant 0 : index
    %c0_21 = arith.constant 0 : index
    %41 = vector.load %arg8[%c0_20, %c0_21] : memref<16x32xbf16, #tpu.memory_space<vmem>>, vector<16x32xbf16>
    tpu.vector_store %arg8[%c0_20, %c0_21], %40 {strides = array<i32>} : memref<16x32xbf16, #tpu.memory_space<vmem>>, vector<16x32xbf16>,
    return
  }
  func.func @transform_0(%arg0: i32) -> (i32, i32) {
    %c0_i32 = arith.constant 0 : i32
    %c0_i32_0 = arith.constant 0 : i32
    return %arg0, %c0_i32 : i32, i32
  }
  func.func @transform_1(%arg0: i32) -> (i32, i32) {
    %c0_i32 = arith.constant 0 : i32
    %c0_i32_0 = arith.constant 0 : i32
    %c0_i32_1 = arith.constant 0 : i32
    return %c0_i32, %c0_i32_0 : i32, i32
  }
  func.func @transform_2(%arg0: i32) -> (i32, i32) {
    %c0_i32 = arith.constant 0 : i32
    %c0_i32_0 = arith.constant 0 : i32
    %c0_i32_1 = arith.constant 0 : i32
    return %c0_i32, %c0_i32_0 : i32, i32
  }
  func.func @transform_3(%arg0: i32) -> (i32, i32) {
    %c0_i32 = arith.constant 0 : i32
    %c0_i32_0 = arith.constant 0 : i32
    %c0_i32_1 = arith.constant 0 : i32
    return %c0_i32, %c0_i32_0 : i32, i32
  }
  func.func @transform_4(%arg0: i32) -> (i32, i32) {
    %c0_i32 = arith.constant 0 : i32
    %c0_i32_0 = arith.constant 0 : i32
    %c0_i32_1 = arith.constant 0 : i32
    return %c0_i32, %c0_i32_0 : i32, i32
  }
  func.func @transform_5(%arg0: i32) -> (i32, i32) {
    %c0_i32 = arith.constant 0 : i32
    %c0_i32_0 = arith.constant 0 : i32
    %c0_i32_1 = arith.constant 0 : i32
    return %c0_i32, %c0_i32_0 : i32, i32
  }
  func.func @transform_6(%arg0: i32) -> (i32, i32) {
    %c0_i32 = arith.constant 0 : i32
    %c0_i32_0 = arith.constant 0 : i32
    %c0_i32_1 = arith.constant 0 : i32
    return %c0_i32, %c0_i32_0 : i32, i32
  }
  func.func @transform_7(%arg0: i32) -> (i32, i32) {
    %c0_i32 = arith.constant 0 : i32
    %c0_i32_0 = arith.constant 0 : i32
    return %arg0, %c0_i32 : i32, i32
  }
}

module attributes {stable_mosaic.version = 11 : i64} {
  func.func @_fused_proj_kernel(%arg0: i32, %arg1: i32, %arg2: memref<16x32xbf16, #tpu.memory_space<vmem>>, %arg3: memref<32x32xbf16, #tpu.memory_space<vmem>>, %arg4: memref<1x32xf32, #tpu.memory_space<vmem>>, %arg5: memref<16x32xbf16, #tpu.memory_space<vmem>>, %arg6: memref<16x32xf32, #tpu.memory_space<vmem>>) attributes {dimension_semantics = [#tpu.dimension_semantics<parallel>, #tpu.dimension_semantics<arbitrary>], iteration_bounds = array<i64: 1, 1>, scalar_prefetch = 0 : i64, scratch_operands = 1 : i64, tpu.core_type = #tpu.core_type<tc>, window_params = [{transform_indices = @transform_0, window_bounds = array<i64: 16, 32>}, {transform_indices = @transform_1, window_bounds = array<i64: 32, 32>}, {pipeline_mode = #tpu.pipeline_mode<synchronous>, transform_indices = @transform_2, window_bounds = array<i64: 1, 32>}, {transform_indices = @transform_3, window_bounds = array<i64: 16, 32>}]} {
    %c0_i32 = arith.constant 0 : i32
    %0 = arith.cmpi eq, %arg1, %c0_i32 : i32
    %1 = arith.extui %0 : i1 to i32
    %c0_i32_0 = arith.constant 0 : i32
    %2 = arith.cmpi ne, %1, %c0_i32_0 : i32
    scf.if %2 {
      %cst_10 = arith.constant 0.000000e+00 : f32
      %12 = vector.broadcast %cst_10 : f32 to vector<16x32xf32>
      %c0_11 = arith.constant 0 : index
      %c0_12 = arith.constant 0 : index
      %13 = vector.load %arg6[%c0_11, %c0_12] : memref<16x32xf32, #tpu.memory_space<vmem>>, vector<16x32xf32>
      tpu.vector_store %arg6[%c0_11, %c0_12], %12 {strides = array<i32>} : memref<16x32xf32, #tpu.memory_space<vmem>>, vector<16x32xf32>,
    } else {
    }
    %c0 = arith.constant 0 : index
    %c0_1 = arith.constant 0 : index
    %3 = vector.load %arg2[%c0, %c0_1] : memref<16x32xbf16, #tpu.memory_space<vmem>>, vector<16x32xbf16>
    %c0_2 = arith.constant 0 : index
    %c0_3 = arith.constant 0 : index
    %4 = vector.load %arg6[%c0_2, %c0_3] : memref<16x32xf32, #tpu.memory_space<vmem>>, vector<16x32xf32>
    %c0_4 = arith.constant 0 : index
    %c0_5 = arith.constant 0 : index
    %5 = vector.load %arg3[%c0_4, %c0_5] : memref<32x32xbf16, #tpu.memory_space<vmem>>, vector<32x32xbf16>
    %cst = arith.constant dense<0.000000e+00> : vector<16x32xf32>
    %6 = tpu.matmul %3, %5, %cst {dimension_numbers = #tpu.dot_dimension_numbers<[1], [0], [0], [1], [0, 0, 1, 1], [], []>} : vector<16x32xbf16>, vector<32x32xbf16>, vector<16x32xf32> -> vector<16x32xf32>
    %7 = arith.addf %4, %6 : vector<16x32xf32>
    %c0_6 = arith.constant 0 : index
    %c0_7 = arith.constant 0 : index
    %8 = vector.load %arg6[%c0_6, %c0_7] : memref<16x32xf32, #tpu.memory_space<vmem>>, vector<16x32xf32>
    tpu.vector_store %arg6[%c0_6, %c0_7], %7 {strides = array<i32>} : memref<16x32xf32, #tpu.memory_space<vmem>>, vector<16x32xf32>,
    %c0_i32_8 = arith.constant 0 : i32
    %9 = arith.cmpi eq, %arg1, %c0_i32_8 : i32
    %10 = arith.extui %9 : i1 to i32
    %c0_i32_9 = arith.constant 0 : i32
    %11 = arith.cmpi ne, %10, %c0_i32_9 : i32
    scf.if %11 {
      %c0_10 = arith.constant 0 : index
      %c0_11 = arith.constant 0 : index
      %12 = vector.load %arg6[%c0_10, %c0_11] : memref<16x32xf32, #tpu.memory_space<vmem>>, vector<16x32xf32>
      %c0_12 = arith.constant 0 : index
      %c0_13 = arith.constant 0 : index
      %13 = vector.load %arg4[%c0_12, %c0_13] : memref<1x32xf32, #tpu.memory_space<vmem>>, vector<1x32xf32>
      %14 = vector.broadcast %13 : vector<1x32xf32> to vector<16x32xf32>
      %15 = arith.addf %12, %14 : vector<16x32xf32>
      %16 = arith.truncf %15 : vector<16x32xf32> to vector<16x32xbf16>
      %c0_14 = arith.constant 0 : index
      %c0_15 = arith.constant 0 : index
      %17 = vector.load %arg5[%c0_14, %c0_15] : memref<16x32xbf16, #tpu.memory_space<vmem>>, vector<16x32xbf16>
      tpu.vector_store %arg5[%c0_14, %c0_15], %16 {strides = array<i32>} : memref<16x32xbf16, #tpu.memory_space<vmem>>, vector<16x32xbf16>,
    } else {
    }
    return
  }
  func.func @transform_0(%arg0: i32, %arg1: i32) -> (i32, i32) {
    %c0_i32 = arith.constant 0 : i32
    return %arg0, %arg1 : i32, i32
  }
  func.func @transform_1(%arg0: i32, %arg1: i32) -> (i32, i32) {
    %c0_i32 = arith.constant 0 : i32
    %c0_i32_0 = arith.constant 0 : i32
    return %arg1, %c0_i32 : i32, i32
  }
  func.func @transform_2(%arg0: i32, %arg1: i32) -> (i32, i32) {
    %c0_i32 = arith.constant 0 : i32
    %c0_i32_0 = arith.constant 0 : i32
    %c0_i32_1 = arith.constant 0 : i32
    return %c0_i32, %c0_i32_0 : i32, i32
  }
  func.func @transform_3(%arg0: i32, %arg1: i32) -> (i32, i32) {
    %c0_i32 = arith.constant 0 : i32
    %c0_i32_0 = arith.constant 0 : i32
    return %arg0, %c0_i32 : i32, i32
  }
}

module attributes {stable_mosaic.version = 11 : i64} {
  func.func @_ln_kernel(%arg0: i32, %arg1: memref<16x32xbf16, #tpu.memory_space<vmem>>, %arg2: memref<1x32xf32, #tpu.memory_space<vmem>>, %arg3: memref<1x32xf32, #tpu.memory_space<vmem>>, %arg4: memref<16x32xf32, #tpu.memory_space<vmem>>) attributes {dimension_semantics = [#tpu.dimension_semantics<parallel>], iteration_bounds = array<i64: 1>, scalar_prefetch = 0 : i64, scratch_operands = 0 : i64, tpu.core_type = #tpu.core_type<tc>, window_params = [{transform_indices = @transform_0, window_bounds = array<i64: 16, 32>}, {pipeline_mode = #tpu.pipeline_mode<synchronous>, transform_indices = @transform_1, window_bounds = array<i64: 1, 32>}, {pipeline_mode = #tpu.pipeline_mode<synchronous>, transform_indices = @transform_2, window_bounds = array<i64: 1, 32>}, {transform_indices = @transform_3, window_bounds = array<i64: 16, 32>}]} {
    %c0 = arith.constant 0 : index
    %c0_0 = arith.constant 0 : index
    %0 = vector.load %arg1[%c0, %c0_0] : memref<16x32xbf16, #tpu.memory_space<vmem>>, vector<16x32xbf16>
    %1 = arith.extf %0 : vector<16x32xbf16> to vector<16x32xf32>
    %cst = arith.constant dense<0.000000e+00> : vector<16xf32>
    %2 = vector.multi_reduction <add>, %1, %cst [1] : vector<16x32xf32> to vector<16xf32>
    %3 = vector.shape_cast %2 : vector<16xf32> to vector<16x1xf32>
    %cst_1 = arith.constant 3.200000e+01 : f32
    %4 = vector.broadcast %cst_1 : f32 to vector<16x1xf32>
    %5 = arith.divf %3, %4 : vector<16x1xf32>
    %6 = vector.broadcast %5 : vector<16x1xf32> to vector<16x32xf32>
    %7 = arith.subf %1, %6 : vector<16x32xf32>
    %8 = arith.mulf %7, %7 : vector<16x32xf32>
    %cst_2 = arith.constant dense<0.000000e+00> : vector<16xf32>
    %9 = vector.multi_reduction <add>, %8, %cst_2 [1] : vector<16x32xf32> to vector<16xf32>
    %10 = vector.shape_cast %9 : vector<16xf32> to vector<16x1xf32>
    %cst_3 = arith.constant 3.200000e+01 : f32
    %11 = vector.broadcast %cst_3 : f32 to vector<16x1xf32>
    %12 = arith.divf %10, %11 : vector<16x1xf32>
    %13 = vector.broadcast %5 : vector<16x1xf32> to vector<16x32xf32>
    %14 = arith.subf %1, %13 : vector<16x32xf32>
    %cst_4 = arith.constant 9.99999974E-6 : f32
    %15 = vector.broadcast %cst_4 : f32 to vector<16x1xf32>
    %16 = arith.addf %12, %15 : vector<16x1xf32>
    %17 = math.rsqrt %16 : vector<16x1xf32>
    %18 = vector.broadcast %17 : vector<16x1xf32> to vector<16x32xf32>
    %19 = arith.mulf %14, %18 : vector<16x32xf32>
    %c0_5 = arith.constant 0 : index
    %c0_6 = arith.constant 0 : index
    %20 = vector.load %arg2[%c0_5, %c0_6] : memref<1x32xf32, #tpu.memory_space<vmem>>, vector<1x32xf32>
    %21 = vector.broadcast %20 : vector<1x32xf32> to vector<16x32xf32>
    %22 = arith.mulf %19, %21 : vector<16x32xf32>
    %c0_7 = arith.constant 0 : index
    %c0_8 = arith.constant 0 : index
    %23 = vector.load %arg3[%c0_7, %c0_8] : memref<1x32xf32, #tpu.memory_space<vmem>>, vector<1x32xf32>
    %24 = vector.broadcast %23 : vector<1x32xf32> to vector<16x32xf32>
    %25 = arith.addf %22, %24 : vector<16x32xf32>
    %c0_9 = arith.constant 0 : index
    %c0_10 = arith.constant 0 : index
    %26 = vector.load %arg4[%c0_9, %c0_10] : memref<16x32xf32, #tpu.memory_space<vmem>>, vector<16x32xf32>
    tpu.vector_store %arg4[%c0_9, %c0_10], %25 {strides = array<i32>} : memref<16x32xf32, #tpu.memory_space<vmem>>, vector<16x32xf32>,
    return
  }
  func.func @transform_0(%arg0: i32) -> (i32, i32) {
    %c0_i32 = arith.constant 0 : i32
    %c0_i32_0 = arith.constant 0 : i32
    return %arg0, %c0_i32 : i32, i32
  }
  func.func @transform_1(%arg0: i32) -> (i32, i32) {
    %c0_i32 = arith.constant 0 : i32
    %c0_i32_0 = arith.constant 0 : i32
    %c0_i32_1 = arith.constant 0 : i32
    return %c0_i32, %c0_i32_0 : i32, i32
  }
  func.func @transform_2(%arg0: i32) -> (i32, i32) {
    %c0_i32 = arith.constant 0 : i32
    %c0_i32_0 = arith.constant 0 : i32
    %c0_i32_1 = arith.constant 0 : i32
    return %c0_i32, %c0_i32_0 : i32, i32
  }
  func.func @transform_3(%arg0: i32) -> (i32, i32) {
    %c0_i32 = arith.constant 0 : i32
    %c0_i32_0 = arith.constant 0 : i32
    return %arg0, %c0_i32 : i32, i32
  }
}

module attributes {stable_mosaic.version = 11 : i64} {
  func.func @_fused_proj_kernel(%arg0: i32, %arg1: i32, %arg2: memref<16x32xbf16, #tpu.memory_space<vmem>>, %arg3: memref<32x32xbf16, #tpu.memory_space<vmem>>, %arg4: memref<32x32xbf16, #tpu.memory_space<vmem>>, %arg5: memref<1x32xf32, #tpu.memory_space<vmem>>, %arg6: memref<1x32xf32, #tpu.memory_space<vmem>>, %arg7: memref<16x32xbf16, #tpu.memory_space<vmem>>, %arg8: memref<16x32xbf16, #tpu.memory_space<vmem>>, %arg9: memref<16x32xf32, #tpu.memory_space<vmem>>, %arg10: memref<16x32xf32, #tpu.memory_space<vmem>>) attributes {dimension_semantics = [#tpu.dimension_semantics<parallel>, #tpu.dimension_semantics<arbitrary>], iteration_bounds = array<i64: 1, 1>, scalar_prefetch = 0 : i64, scratch_operands = 2 : i64, tpu.core_type = #tpu.core_type<tc>, window_params = [{transform_indices = @transform_0, window_bounds = array<i64: 16, 32>}, {transform_indices = @transform_1, window_bounds = array<i64: 32, 32>}, {transform_indices = @transform_2, window_bounds = array<i64: 32, 32>}, {pipeline_mode = #tpu.pipeline_mode<synchronous>, transform_indices = @transform_3, window_bounds = array<i64: 1, 32>}, {pipeline_mode = #tpu.pipeline_mode<synchronous>, transform_indices = @transform_4, window_bounds = array<i64: 1, 32>}, {transform_indices = @transform_5, window_bounds = array<i64: 16, 32>}, {transform_indices = @transform_6, window_bounds = array<i64: 16, 32>}]} {
    %c0_i32 = arith.constant 0 : i32
    %0 = arith.cmpi eq, %arg1, %c0_i32 : i32
    %1 = arith.extui %0 : i1 to i32
    %c0_i32_0 = arith.constant 0 : i32
    %2 = arith.cmpi ne, %1, %c0_i32_0 : i32
    scf.if %2 {
      %cst_17 = arith.constant 0.000000e+00 : f32
      %17 = vector.broadcast %cst_17 : f32 to vector<16x32xf32>
      %c0_18 = arith.constant 0 : index
      %c0_19 = arith.constant 0 : index
      %18 = vector.load %arg9[%c0_18, %c0_19] : memref<16x32xf32, #tpu.memory_space<vmem>>, vector<16x32xf32>
      tpu.vector_store %arg9[%c0_18, %c0_19], %17 {strides = array<i32>} : memref<16x32xf32, #tpu.memory_space<vmem>>, vector<16x32xf32>,
      %cst_20 = arith.constant 0.000000e+00 : f32
      %19 = vector.broadcast %cst_20 : f32 to vector<16x32xf32>
      %c0_21 = arith.constant 0 : index
      %c0_22 = arith.constant 0 : index
      %20 = vector.load %arg10[%c0_21, %c0_22] : memref<16x32xf32, #tpu.memory_space<vmem>>, vector<16x32xf32>
      tpu.vector_store %arg10[%c0_21, %c0_22], %19 {strides = array<i32>} : memref<16x32xf32, #tpu.memory_space<vmem>>, vector<16x32xf32>,
    } else {
    }
    %c0 = arith.constant 0 : index
    %c0_1 = arith.constant 0 : index
    %3 = vector.load %arg2[%c0, %c0_1] : memref<16x32xbf16, #tpu.memory_space<vmem>>, vector<16x32xbf16>
    %c0_2 = arith.constant 0 : index
    %c0_3 = arith.constant 0 : index
    %4 = vector.load %arg9[%c0_2, %c0_3] : memref<16x32xf32, #tpu.memory_space<vmem>>, vector<16x32xf32>
    %c0_4 = arith.constant 0 : index
    %c0_5 = arith.constant 0 : index
    %5 = vector.load %arg3[%c0_4, %c0_5] : memref<32x32xbf16, #tpu.memory_space<vmem>>, vector<32x32xbf16>
    %cst = arith.constant dense<0.000000e+00> : vector<16x32xf32>
    %6 = tpu.matmul %3, %5, %cst {dimension_numbers = #tpu.dot_dimension_numbers<[1], [0], [0], [1], [0, 0, 1, 1], [], []>} : vector<16x32xbf16>, vector<32x32xbf16>, vector<16x32xf32> -> vector<16x32xf32>
    %7 = arith.addf %4, %6 : vector<16x32xf32>
    %c0_6 = arith.constant 0 : index
    %c0_7 = arith.constant 0 : index
    %8 = vector.load %arg9[%c0_6, %c0_7] : memref<16x32xf32, #tpu.memory_space<vmem>>, vector<16x32xf32>
    tpu.vector_store %arg9[%c0_6, %c0_7], %7 {strides = array<i32>} : memref<16x32xf32, #tpu.memory_space<vmem>>, vector<16x32xf32>,
    %c0_8 = arith.constant 0 : index
    %c0_9 = arith.constant 0 : index
    %9 = vector.load %arg10[%c0_8, %c0_9] : memref<16x32xf32, #tpu.memory_space<vmem>>, vector<16x32xf32>
    %c0_10 = arith.constant 0 : index
    %c0_11 = arith.constant 0 : index
    %10 = vector.load %arg4[%c0_10, %c0_11] : memref<32x32xbf16, #tpu.memory_space<vmem>>, vector<32x32xbf16>
    %cst_12 = arith.constant dense<0.000000e+00> : vector<16x32xf32>
    %11 = tpu.matmul %3, %10, %cst_12 {dimension_numbers = #tpu.dot_dimension_numbers<[1], [0], [0], [1], [0, 0, 1, 1], [], []>} : vector<16x32xbf16>, vector<32x32xbf16>, vector<16x32xf32> -> vector<16x32xf32>
    %12 = arith.addf %9, %11 : vector<16x32xf32>
    %c0_13 = arith.constant 0 : index
    %c0_14 = arith.constant 0 : index
    %13 = vector.load %arg10[%c0_13, %c0_14] : memref<16x32xf32, #tpu.memory_space<vmem>>, vector<16x32xf32>
    tpu.vector_store %arg10[%c0_13, %c0_14], %12 {strides = array<i32>} : memref<16x32xf32, #tpu.memory_space<vmem>>, vector<16x32xf32>,
    %c0_i32_15 = arith.constant 0 : i32
    %14 = arith.cmpi eq, %arg1, %c0_i32_15 : i32
    %15 = arith.extui %14 : i1 to i32
    %c0_i32_16 = arith.constant 0 : i32
    %16 = arith.cmpi ne, %15, %c0_i32_16 : i32
    scf.if %16 {
      %c0_17 = arith.constant 0 : index
      %c0_18 = arith.constant 0 : index
      %17 = vector.load %arg9[%c0_17, %c0_18] : memref<16x32xf32, #tpu.memory_space<vmem>>, vector<16x32xf32>
      %c0_19 = arith.constant 0 : index
      %c0_20 = arith.constant 0 : index
      %18 = vector.load %arg5[%c0_19, %c0_20] : memref<1x32xf32, #tpu.memory_space<vmem>>, vector<1x32xf32>
      %19 = vector.broadcast %18 : vector<1x32xf32> to vector<16x32xf32>
      %20 = arith.addf %17, %19 : vector<16x32xf32>
      %21 = arith.truncf %20 : vector<16x32xf32> to vector<16x32xbf16>
      %c0_21 = arith.constant 0 : index
      %c0_22 = arith.constant 0 : index
      %22 = vector.load %arg7[%c0_21, %c0_22] : memref<16x32xbf16, #tpu.memory_space<vmem>>, vector<16x32xbf16>
      tpu.vector_store %arg7[%c0_21, %c0_22], %21 {strides = array<i32>} : memref<16x32xbf16, #tpu.memory_space<vmem>>, vector<16x32xbf16>,
      %c0_23 = arith.constant 0 : index
      %c0_24 = arith.constant 0 : index
      %23 = vector.load %arg10[%c0_23, %c0_24] : memref<16x32xf32, #tpu.memory_space<vmem>>, vector<16x32xf32>
      %c0_25 = arith.constant 0 : index
      %c0_26 = arith.constant 0 : index
      %24 = vector.load %arg6[%c0_25, %c0_26] : memref<1x32xf32, #tpu.memory_space<vmem>>, vector<1x32xf32>
      %25 = vector.broadcast %24 : vector<1x32xf32> to vector<16x32xf32>
      %26 = arith.addf %23, %25 : vector<16x32xf32>
      %27 = arith.truncf %26 : vector<16x32xf32> to vector<16x32xbf16>
      %c0_27 = arith.constant 0 : index
      %c0_28 = arith.constant 0 : index
      %28 = vector.load %arg8[%c0_27, %c0_28] : memref<16x32xbf16, #tpu.memory_space<vmem>>, vector<16x32xbf16>
      tpu.vector_store %arg8[%c0_27, %c0_28], %27 {strides = array<i32>} : memref<16x32xbf16, #tpu.memory_space<vmem>>, vector<16x32xbf16>,
    } else {
    }
    return
  }
  func.func @transform_0(%arg0: i32, %arg1: i32) -> (i32, i32) {
    %c0_i32 = arith.constant 0 : i32
    return %arg0, %arg1 : i32, i32
  }
  func.func @transform_1(%arg0: i32, %arg1: i32) -> (i32, i32) {
    %c0_i32 = arith.constant 0 : i32
    %c0_i32_0 = arith.constant 0 : i32
    return %arg1, %c0_i32 : i32, i32
  }
  func.func @transform_2(%arg0: i32, %arg1: i32) -> (i32, i32) {
    %c0_i32 = arith.constant 0 : i32
    %c0_i32_0 = arith.constant 0 : i32
    return %arg1, %c0_i32 : i32, i32
  }
  func.func @transform_3(%arg0: i32, %arg1: i32) -> (i32, i32) {
    %c0_i32 = arith.constant 0 : i32
    %c0_i32_0 = arith.constant 0 : i32
    %c0_i32_1 = arith.constant 0 : i32
    return %c0_i32, %c0_i32_0 : i32, i32
  }
  func.func @transform_4(%arg0: i32, %arg1: i32) -> (i32, i32) {
    %c0_i32 = arith.constant 0 : i32
    %c0_i32_0 = arith.constant 0 : i32
    %c0_i32_1 = arith.constant 0 : i32
    return %c0_i32, %c0_i32_0 : i32, i32
  }
  func.func @transform_5(%arg0: i32, %arg1: i32) -> (i32, i32) {
    %c0_i32 = arith.constant 0 : i32
    %c0_i32_0 = arith.constant 0 : i32
    return %arg0, %c0_i32 : i32, i32
  }
  func.func @transform_6(%arg0: i32, %arg1: i32) -> (i32, i32) {
    %c0_i32 = arith.constant 0 : i32
    %c0_i32_0 = arith.constant 0 : i32
    return %arg0, %c0_i32 : i32, i32
  }
}

</mosaic_0001>

<llo_original>
// kernel: bert_forward.29
$region0: #{bert_forward.29}
  #allocation0 [shape = 'u32[]', space=smem, size = 0x4, offset = 0x4, fixed_abs, tag = 'smem constant byte address 0x4 - core index']
  #allocation1 [shape = 'u32[144,128]{1,0:T(1,128)}', space=vmem, size = 0x12000, scoped, tag = 'internal scratch']
  %s0 = inlined_call_operand.hbm [shape: bf16[16,32], index: 0, kind: input, shape index: {}]
  %s1 = inlined_call_operand.hbm [shape: bf16[32,64], index: 1, kind: input, shape index: {}]
  %s2 = inlined_call_operand.hbm [shape: f32[1,64], index: 2, kind: input, shape index: {}]
  %s3 = inlined_call_operand.hbm [shape: bf16[64,32], index: 3, kind: input, shape index: {}]
  %s4 = inlined_call_operand.hbm [shape: f32[1,32], index: 4, kind: input, shape index: {}]
  %s5 = inlined_call_operand.hbm [shape: f32[1,32], index: 5, kind: input, shape index: {}]
  %s6 = inlined_call_operand.hbm [shape: f32[1,32], index: 6, kind: input, shape index: {}]
  %s7 = inlined_call_operand.hbm [shape: bf16[16,32], index: 7, kind: output, shape index: {}]
  %s8 = sld [smem:[#allocation0]]
  $region66: #{bert_forward.29} parent=0
    _
  %s10 = ssub.s32 1, %s8
  %s11 = scalar_select 0, %s10, %s8
  $region1: #{bert_forward.29} parent=0
    #allocation2 [shape = 'u8[4096]{0}', space=vmem, size = 0x1000, scoped, tag = 'input window, operand 0, single buffered']
    #allocation3 [shape = 's32[1]{0}', space=sflag, size = 0x4, scoped, tag = 'scoped memory for bert_forward.29']
    #allocation4 [shape = 's32[1]{0}', space=sflag, size = 0x4, scoped, tag = 'scoped memory for bert_forward.29']
    #allocation5 [shape = 'u8[8192]{0}', space=vmem, size = 0x2000, scoped, tag = 'input window, operand 1, single buffered']
    #allocation6 [shape = 's32[1]{0}', space=sflag, size = 0x4, scoped, tag = 'scoped memory for bert_forward.29']
    #allocation7 [shape = 'u8[512]{0}', space=vmem, size = 0x400, scoped, tag = 'input window, operand 2, single buffered']
    #allocation8 [shape = 'u8[16384]{0}', space=vmem, size = 0x4000, scoped, tag = 'input window, operand 3, single buffered']
    #allocation9 [shape = 's32[1]{0}', space=sflag, size = 0x4, scoped, tag = 'scoped memory for bert_forward.29']
    #allocation10 [shape = 'u8[512]{0}', space=vmem, size = 0x400, scoped, tag = 'input window, operand 4, single buffered']
    #allocation11 [shape = 'u8[512]{0}', space=vmem, size = 0x400, scoped, tag = 'input window, operand 5, single buffered']
    #allocation12 [shape = 's32[1]{0}', space=sflag, size = 0x4, scoped, tag = 'scoped memory for bert_forward.29']
    #allocation13 [shape = 'u8[512]{0}', space=vmem, size = 0x400, scoped, tag = 'input window, operand 6, single buffered']
    #allocation14 [shape = 'u8[4096]{0}', space=vmem, size = 0x1000, scoped, tag = 'output window, operand 0, single buffered']
    %12 = vsyncpa [#allocation3], 0
    %13 = vsyncpa [#allocation6], 0
    %14 = vsyncpa [#allocation9], 0
    %15 = vsyncpa [#allocation12], 0
    %16 = vsyncpa [#allocation4], 0
    // Predicated region
    $region2: #{bert_forward.29} parent=1 // pred_check
      _
    $region3: #{bert_forward.29} parent=1 // pred_check_branch
      %18 = sbr.rel (0) target = $region5
    $region4: #{bert_forward.29} parent=1 // pred_region
      %s20 = ssub.s32 128, 128
      %21 = vsyncadd [#allocation3], %s20
      %s22 = sshll.u32 [#allocation2], 4
      %s23 = int_to_ptr.vmem [resolvable:$true] %s22
      %28 = dma.hbm_to_vmem [thread:$0]  %s0, 128, %s23, [#allocation3], 64, 64, 4
    $region5: #{bert_forward.29} parent=1 // pred_fallthru
      _
    // Predicated region
    $region6: #{bert_forward.29} parent=1 // pred_check
      _
    $region7: #{bert_forward.29} parent=1 // pred_check_branch
      %30 = sbr.rel (0) target = $region9
    $region8: #{bert_forward.29} parent=1 // pred_region
      %s32 = ssub.s32 256, 256
      %33 = vsyncadd [#allocation6], %s32
      %s34 = sshll.u32 [#allocation5], 4
      %s35 = int_to_ptr.vmem [resolvable:$true] %s34
      %40 = dma.hbm_to_vmem [thread:$0]  %s1, 256, %s35, [#allocation6], 64, 64, 4
    $region9: #{bert_forward.29} parent=1 // pred_fallthru
      _
    // Predicated region
    $region10: #{bert_forward.29} parent=1 // pred_check
      _
    $region11: #{bert_forward.29} parent=1 // pred_check_branch
      %42 = sbr.rel (0) target = $region13
    $region12: #{bert_forward.29} parent=1 // pred_region
      %s44 = ssub.s32 16, 16
      %45 = vsyncadd [#allocation6], %s44
      %s47 = sshll.u32 [#allocation7], 4
      %s48 = int_to_ptr.vmem [resolvable:$true] %s47
      %50 = dma.hbm_to_vmem [thread:$0]  %s2, 16, %s48, [#allocation6]
    $region13: #{bert_forward.29} parent=1 // pred_fallthru
      _
    // Predicated region
    $region14: #{bert_forward.29} parent=1 // pred_check
      _
    $region15: #{bert_forward.29} parent=1 // pred_check_branch
      %52 = sbr.rel (0) target = $region17
    $region16: #{bert_forward.29} parent=1 // pred_region
      %s54 = ssub.s32 512, 512
      %55 = vsyncadd [#allocation9], %s54
      %s56 = sshll.u32 [#allocation8], 4
      %s57 = int_to_ptr.vmem [resolvable:$true] %s56
      %62 = dma.hbm_to_vmem [thread:$0]  %s3, 512, %s57, [#allocation9], 64, 64, 4
    $region17: #{bert_forward.29} parent=1 // pred_fallthru
      _
    // Predicated region
    $region18: #{bert_forward.29} parent=1 // pred_check
      _
    $region19: #{bert_forward.29} parent=1 // pred_check_branch
      %64 = sbr.rel (0) target = $region21
    $region20: #{bert_forward.29} parent=1 // pred_region
      %s66 = ssub.s32 16, 16
      %67 = vsyncadd [#allocation9], %s66
      %s69 = sshll.u32 [#allocation10], 4
      %s70 = int_to_ptr.vmem [resolvable:$true] %s69
      %72 = dma.hbm_to_vmem [thread:$0]  %s4, 16, %s70, [#allocation9]
    $region21: #{bert_forward.29} parent=1 // pred_fallthru
      _
    // Predicated region
    $region22: #{bert_forward.29} parent=1 // pred_check
      _
    $region23: #{bert_forward.29} parent=1 // pred_check_branch
      %74 = sbr.rel (0) target = $region25
    $region24: #{bert_forward.29} parent=1 // pred_region
      %s76 = ssub.s32 16, 16
      %77 = vsyncadd [#allocation12], %s76
      %s79 = sshll.u32 [#allocation11], 4
      %s80 = int_to_ptr.vmem [resolvable:$true] %s79
      %82 = dma.hbm_to_vmem [thread:$0]  %s5, 16, %s80, [#allocation12]
    $region25: #{bert_forward.29} parent=1 // pred_fallthru
      _
    // Predicated region
    $region26: #{bert_forward.29} parent=1 // pred_check
      _
    $region27: #{bert_forward.29} parent=1 // pred_check_branch
      %84 = sbr.rel (0) target = $region29
    $region28: #{bert_forward.29} parent=1 // pred_region
      %s86 = ssub.s32 16, 16
      %87 = vsyncadd [#allocation12], %s86
      %s89 = sshll.u32 [#allocation13], 4
      %s90 = int_to_ptr.vmem [resolvable:$true] %s89
      %92 = dma.hbm_to_vmem [thread:$0]  %s6, 16, %s90, [#allocation12]
    $region29: #{bert_forward.29} parent=1 // pred_fallthru
      _
    // Predicated region
    $region30: #{bert_forward.29} parent=1 // pred_check
      _
    $region31: #{bert_forward.29} parent=1 // pred_check_branch
      %94 = sbr.rel (0) target = $region33
    $region32: #{bert_forward.29} parent=1 // pred_region
      %95 = dma.done [#allocation3], 128
    $region33: #{bert_forward.29} parent=1 // pred_fallthru
      _
    // Predicated region
    $region34: #{bert_forward.29} parent=1 // pred_check
      _
    $region35: #{bert_forward.29} parent=1 // pred_check_branch
      %97 = sbr.rel (0) target = $region37
    $region36: #{bert_forward.29} parent=1 // pred_region
      %98 = dma.done [#allocation6], 256
    $region37: #{bert_forward.29} parent=1 // pred_fallthru
      _
    // Predicated region
    $region38: #{bert_forward.29} parent=1 // pred_check
      _
    $region39: #{bert_forward.29} parent=1 // pred_check_branch
      %100 = sbr.rel (0) target = $region41
    $region40: #{bert_forward.29} parent=1 // pred_region
      %101 = dma.done [#allocation6], 16
    $region41: #{bert_forward.29} parent=1 // pred_fallthru
      _
    // Predicated region
    $region42: #{bert_forward.29} parent=1 // pred_check
      _
    $region43: #{bert_forward.29} parent=1 // pred_check_branch
      %103 = sbr.rel (0) target = $region45
    $region44: #{bert_forward.29} parent=1 // pred_region
      %104 = dma.done [#allocation9], 512
    $region45: #{bert_forward.29} parent=1 // pred_fallthru
      _
    // Predicated region
    $region46: #{bert_forward.29} parent=1 // pred_check
      _
    $region47: #{bert_forward.29} parent=1 // pred_check_branch
      %106 = sbr.rel (0) target = $region49
    $region48: #{bert_forward.29} parent=1 // pred_region
      %107 = dma.done [#allocation9], 16
    $region49: #{bert_forward.29} parent=1 // pred_fallthru
      _
    // Predicated region
    $region50: #{bert_forward.29} parent=1 // pred_check
      _
    $region51: #{bert_forward.29} parent=1 // pred_check_branch
      %109 = sbr.rel (0) target = $region53
    $region52: #{bert_forward.29} parent=1 // pred_region
      %110 = dma.done [#allocation12], 16
    $region53: #{bert_forward.29} parent=1 // pred_fallthru
      _
    // Predicated region
    $region54: #{bert_forward.29} parent=1 // pred_check
      _
    $region55: #{bert_forward.29} parent=1 // pred_check_branch
      %112 = sbr.rel (0) target = $region57
    $region56: #{bert_forward.29} parent=1 // pred_region
      %113 = dma.done [#allocation12], 16
    $region57: #{bert_forward.29} parent=1 // pred_fallthru
      _
    %v115 = vld [vmem:[#allocation2] sm:$0xf]
    %v116 = vld [vmem:[#allocation2 + $0x4] sm:$0xf]
    %v117 = vld [vmem:[#allocation5] sm:$0xf]
    %v118 = vld [vmem:[#allocation5 + $0x4] sm:$0xf]
    %v119 = vld [vmem:[#allocation5 + $0x8] sm:$0xf]
    %v120 = vld [vmem:[#allocation5 + $0xc] sm:$0xf]
    %v121 = vld [vmem:[#allocation7] sm:$0x1]
    %v123 = vlaneseq
    %v124 = vshrl.u32 %v123, 7
    %v125 = vsub.s32 0, %v124
    %v126 = vrot.slane %v121, %v125
    %v130 = vunpack.c.l.b16 %v115
    %v131 = vunpack.c.l.b16 %v116
    %v132 = vpack.c.b16 %v131, %v130
    %v137 = vunpack.c.l.b16 %v117
    %v138 = vunpack.c.l.b16 %v118
    %v139 = vunpack.c.l.b16 %v119
    %v140 = vunpack.c.l.b16 %v120
    %v141 = vpack.c.b16 %v138, %v137
    %v142 = vpack.c.b16 %v140, %v139
    %vm145 = vcmask 261120
    %v147 = vsel %vm145, %v132, 0
    %149 = vmatprep.subr.bf16.mxu0 0
    %150 = vmatpush1.bf16.msra.mxu0 %v141
    %151 = vmatprep.subr.bf16.mxu0 0
    %152 = vmatpush1.bf16.msra.mxu0 %v142
    %153 = vmatprep.subr.bf16.mxu0 0
    %154 = vmatpush1.bf16.msra.mxu0 0
    %155 = vmatprep.subr.bf16.mxu0 0
    %156 = vmatpush1.bf16.msra.mxu0 0
    %157 = vmatprep.subr.bf16.mxu0 0
    %158 = vmatpush1.bf16.msra.mxu0 0
    %159 = vmatprep.subr.bf16.mxu0 0
    %160 = vmatpush1.bf16.msra.mxu0 0
    %161 = vmatprep.subr.bf16.mxu0 0
    %162 = vmatpush1.bf16.msra.mxu0 0
    %163 = vmatprep.subr.bf16.mxu0 0
    %164 = vmatpush1.bf16.msra.mxu0 0
    %165 = vmatprep.subr.bf16.mxu0 0
    %166 = vmatpush1.bf16.msra.mxu0 0
    %167 = vmatprep.subr.bf16.mxu0 0
    %168 = vmatpush1.bf16.msra.mxu0 0
    %169 = vmatprep.subr.bf16.mxu0 0
    %170 = vmatpush1.bf16.msra.mxu0 0
    %171 = vmatprep.subr.bf16.mxu0 0
    %172 = vmatpush1.bf16.msra.mxu0 0
    %173 = vmatprep.subr.bf16.mxu0 0
    %174 = vmatpush1.bf16.msra.mxu0 0
    %175 = vmatprep.subr.bf16.mxu0 0
    %176 = vmatpush1.bf16.msra.mxu0 0
    %177 = vmatprep.subr.bf16.mxu0 0
    %178 = vmatpush1.bf16.msra.mxu0 0
    %179 = vmatprep.subr.bf16.mxu0 0
    %180 = vmatpush1.bf16.msra.mxu0 0
    %181 = vmatprep.mubr.bf16.mxu0 0
    %182 = vmatmul.mubr.bf16.gmra.mrb[0].mxu0 %v147
    %v183 = vpop.f32.mrb[0].mxu0
    %v184 = vadd.f32 %v126, %v183
    %v185 = vpop.f32.mrb[0].mxu0
    %v186 = vpop.f32.mrb[0].mxu0
    %v187 = vadd.f32 %v126, %v186
    %v188 = vpop.f32.mrb[0].mxu0
    %189 = vdwg.mxu0
    %v190 = vmax.f32 %v184, 0.0
    %v191 = vmax.f32 %v187, 0.0
    %v192 = vpack.c.bf16 %v191, %v190
    %v193 = vld [vmem:[#allocation8] sm:$0xf]
    %v194 = vld [vmem:[#allocation8 + $0x4] sm:$0xf]
    %v195 = vld [vmem:[#allocation8 + $0x8] sm:$0xf]
    %v196 = vld [vmem:[#allocation8 + $0xc] sm:$0xf]
    %v197 = vld [vmem:[#allocation8 + $0x10] sm:$0xf]
    %v198 = vld [vmem:[#allocation8 + $0x14] sm:$0xf]
    %v199 = vld [vmem:[#allocation8 + $0x18] sm:$0xf]
    %v200 = vld [vmem:[#allocation8 + $0x1c] sm:$0xf]
    %v201 = vld [vmem:[#allocation10] sm:$0x1]
    %v203 = vlaneseq
    %v204 = vshrl.u32 %v203, 7
    %v205 = vsub.s32 0, %v204
    %v206 = vrot.slane %v201, %v205
    %v216 = vunpack.c.l.b16 %v193
    %v217 = vunpack.c.l.b16 %v194
    %v218 = vunpack.c.l.b16 %v195
    %v219 = vunpack.c.l.b16 %v196
    %v220 = vunpack.c.l.b16 %v197
    %v221 = vunpack.c.l.b16 %v198
    %v222 = vunpack.c.l.b16 %v199
    %v223 = vunpack.c.l.b16 %v200
    %v224 = vpack.c.b16 %v217, %v216
    %v225 = vpack.c.b16 %v219, %v218
    %v226 = vpack.c.b16 %v221, %v220
    %v227 = vpack.c.b16 %v223, %v222
    %vm232 = vcmask 523264
    %v234 = vsel %vm232, %v192, 0
    %236 = vmatprep.subr.bf16.mxu0 0
    %237 = vmatpush1.bf16.msra.mxu0 %v224
    %238 = vmatprep.subr.bf16.mxu0 0
    %239 = vmatpush1.bf16.msra.mxu0 %v225
    %240 = vmatprep.subr.bf16.mxu0 0
    %241 = vmatpush1.bf16.msra.mxu0 %v226
    %242 = vmatprep.subr.bf16.mxu0 0
    %243 = vmatpush1.bf16.msra.mxu0 %v227
    %244 = vmatprep.subr.bf16.mxu0 0
    %245 = vmatpush1.bf16.msra.mxu0 0
    %246 = vmatprep.subr.bf16.mxu0 0
    %247 = vmatpush1.bf16.msra.mxu0 0
    %248 = vmatprep.subr.bf16.mxu0 0
    %249 = vmatpush1.bf16.msra.mxu0 0
    %250 = vmatprep.subr.bf16.mxu0 0
    %251 = vmatpush1.bf16.msra.mxu0 0
    %252 = vmatprep.subr.bf16.mxu0 0
    %253 = vmatpush1.bf16.msra.mxu0 0
    %254 = vmatprep.subr.bf16.mxu0 0
    %255 = vmatpush1.bf16.msra.mxu0 0
    %256 = vmatprep.subr.bf16.mxu0 0
    %257 = vmatpush1.bf16.msra.mxu0 0
    %258 = vmatprep.subr.bf16.mxu0 0
    %259 = vmatpush1.bf16.msra.mxu0 0
    %260 = vmatprep.subr.bf16.mxu0 0
    %261 = vmatpush1.bf16.msra.mxu0 0
    %262 = vmatprep.subr.bf16.mxu0 0
    %263 = vmatpush1.bf16.msra.mxu0 0
    %264 = vmatprep.subr.bf16.mxu0 0
    %265 = vmatpush1.bf16.msra.mxu0 0
    %266 = vmatprep.subr.bf16.mxu0 0
    %267 = vmatpush1.bf16.msra.mxu0 0
    %268 = vmatprep.mubr.bf16.mxu0 0
    %269 = vmatmul.mubr.bf16.gmra.mrb[0].mxu0 %v234
    %v270 = vpop.f32.mrb[0].mxu0
    %v271 = vadd.f32 %v206, %v270
    %v272 = vpop.f32.mrb[0].mxu0
    %v273 = vpop.f32.mrb[0].mxu0
    %v274 = vadd.f32 %v206, %v273
    %v275 = vpop.f32.mrb[0].mxu0
    %276 = vdwg.mxu0
    %v277 = vunpack.c.l.bf16 %v115
    %v278 = vunpack.c.l.bf16 %v116
    %v279 = vadd.f32 %v277, %v271
    %v280 = vadd.f32 %v278, %v274
    %v281 = vsel %vm145, %v279, 0.0
    %282 = vadd.xlane.f32.xlu0 %v281
    %v283 = vpop.xlane.xlu0 %282
    %v284 = vsel %vm145, %v280, 0.0
    %285 = vadd.xlane.f32.xlu0 %v284
    %v286 = vpop.xlane.xlu0 %285
    %v287 = vrcp.pop 32.0
    %v288 = vmul.f32 %v283, %v287
    %v289 = vmul.f32 %v286, %v287
    %v290 = vsub.f32 %v279, %v288
    %v291 = vsub.f32 %v280, %v289
    %v292 = vmul.f32 %v290, %v290
    %v293 = vmul.f32 %v291, %v291
    %v294 = vsel %vm145, %v292, 0.0
    %295 = vadd.xlane.f32.xlu0 %v294
    %v296 = vpop.xlane.xlu0 %295
    %v297 = vsel %vm145, %v293, 0.0
    %298 = vadd.xlane.f32.xlu0 %v297
    %v299 = vpop.xlane.xlu0 %298
    %v300 = vmul.f32 %v296, %v287
    %v301 = vmul.f32 %v299, %v287
    %v302 = vadd.f32 %v300, 1e-05
    %v303 = vadd.f32 %v301, 1e-05
    %v304 = vrsqrt.pop %v302
    %v305 = vrsqrt.pop %v303
    %v306 = vmul.f32 %v290, %v304
    %v307 = vmul.f32 %v291, %v305
    %v308 = vld [vmem:[#allocation11] sm:$0x1]
    %v310 = vlaneseq
    %v311 = vshrl.u32 %v310, 7
    %v312 = vsub.s32 0, %v311
    %v313 = vrot.slane %v308, %v312
    %v315 = vmul.f32 %v306, %v313
    %v316 = vmul.f32 %v307, %v313
    %v317 = vld [vmem:[#allocation13] sm:$0x1]
    %v319 = vlaneseq
    %v320 = vshrl.u32 %v319, 7
    %v321 = vsub.s32 0, %v320
    %v322 = vrot.slane %v317, %v321
    %v324 = vadd.f32 %v315, %v322
    %v325 = vadd.f32 %v316, %v322
    %v326 = vpack.c.bf16 %v325, %v324
    %v328 = vunpack.c.l.b16 %v326
    %v329 = vunpack.c.h.b16 %v326
    %v330 = vpack.c.b16 %v328, %v328
    %v331 = vpack.c.b16 %v329, %v329
    %vm334 = vcmask 257024
    %335 = vst.msk [vmem:[#allocation14] sm:$0xf] %vm334, %v330
    %336 = vst.msk [vmem:[#allocation14 + $0x4] sm:$0xf] %vm334, %v331
    // Predicated region
    $region58: #{bert_forward.29} parent=1 // pred_check
      _
    $region59: #{bert_forward.29} parent=1 // pred_check_branch
      %338 = sbr.rel (0) target = $region61
    $region60: #{bert_forward.29} parent=1 // pred_region
      %s340 = ssub.s32 128, 128
      %341 = vsyncadd [#allocation4], %s340
      %s342 = sshll.u32 [#allocation14], 4
      %s343 = int_to_ptr.vmem [resolvable:$true] %s342
      %348 = dma.vmem_to_hbm [thread:$0]  %s343, 128, %s7, [#allocation4], 64, 64, 4
    $region61: #{bert_forward.29} parent=1 // pred_fallthru
      _
    // Predicated region
    $region62: #{bert_forward.29} parent=1 // pred_check
      _
    $region63: #{bert_forward.29} parent=1 // pred_check_branch
      %350 = sbr.rel (0) target = $region65
    $region64: #{bert_forward.29} parent=1 // pred_region
      %351 = dma.done [#allocation4], 128
    $region65: #{bert_forward.29} parent=1 // pred_fallthru
      _
    %352 = vsyncpa [#allocation3], 1
    %353 = vsyncpa [#allocation6], 1
    %354 = vsyncpa [#allocation9], 1
    %355 = vsyncpa [#allocation12], 1
    %356 = vsyncpa [#allocation4], 1

// kernel: bert_forward.28
$region0: #{bert_forward.28}
  #allocation0 [shape = 'u32[]', space=smem, size = 0x4, offset = 0x4, fixed_abs, tag = 'smem constant byte address 0x4 - core index']
  #allocation1 [shape = 'u32[144,128]{1,0:T(1,128)}', space=vmem, size = 0x12000, scoped, tag = 'internal scratch']
  #allocation2 [shape = 'f32[16,32]{1,0:T(8,128)}', space=vmem, size = 0x2000, scoped, tag = 'scratch operand']
  %s0 = inlined_call_operand.hbm [shape: bf16[16,32], index: 0, kind: input, shape index: {}]
  %s1 = inlined_call_operand.hbm [shape: bf16[32,32], index: 1, kind: input, shape index: {}]
  %s2 = inlined_call_operand.hbm [shape: f32[1,32], index: 2, kind: input, shape index: {}]
  %s3 = inlined_call_operand.hbm [shape: bf16[16,32], index: 3, kind: input, shape index: {}]
  %s4 = inlined_call_operand.hbm [shape: f32[1,32], index: 4, kind: input, shape index: {}]
  %s5 = inlined_call_operand.hbm [shape: f32[1,32], index: 5, kind: input, shape index: {}]
  %s6 = inlined_call_operand.hbm [shape: bf16[16,32], index: 6, kind: output, shape index: {}]
  %s7 = sld [smem:[#allocation0]]
  $region66: #{bert_forward.28} parent=0
    _
  %s9 = ssub.s32 1, %s7
  %s10 = scalar_select 0, %s9, %s7
  $region1: #{bert_forward.28} parent=0
    #allocation3 [shape = 'u8[4096]{0}', space=vmem, size = 0x1000, scoped, tag = 'input window, operand 0, single buffered']
    #allocation4 [shape = 's32[1]{0}', space=sflag, size = 0x4, scoped, tag = 'scoped memory for bert_forward.28']
    #allocation5 [shape = 's32[1]{0}', space=sflag, size = 0x4, scoped, tag = 'scoped memory for bert_forward.28']
    #allocation6 [shape = 'u8[8192]{0}', space=vmem, size = 0x2000, scoped, tag = 'input window, operand 1, single buffered']
    #allocation7 [shape = 's32[1]{0}', space=sflag, size = 0x4, scoped, tag = 'scoped memory for bert_forward.28']
    #allocation8 [shape = 'u8[512]{0}', space=vmem, size = 0x400, scoped, tag = 'input window, operand 2, single buffered']
    #allocation9 [shape = 'u8[4096]{0}', space=vmem, size = 0x1000, scoped, tag = 'input window, operand 3, single buffered']
    #allocation10 [shape = 's32[1]{0}', space=sflag, size = 0x4, scoped, tag = 'scoped memory for bert_forward.28']
    #allocation11 [shape = 'u8[512]{0}', space=vmem, size = 0x400, scoped, tag = 'input window, operand 4, single buffered']
    #allocation12 [shape = 'u8[512]{0}', space=vmem, size = 0x400, scoped, tag = 'input window, operand 5, single buffered']
    #allocation13 [shape = 's32[1]{0}', space=sflag, size = 0x4, scoped, tag = 'scoped memory for bert_forward.28']
    #allocation14 [shape = 'u8[4096]{0}', space=vmem, size = 0x1000, scoped, tag = 'output window, operand 0, single buffered']
    %11 = vsyncpa [#allocation4], 0
    %12 = vsyncpa [#allocation7], 0
    %13 = vsyncpa [#allocation10], 0
    %14 = vsyncpa [#allocation13], 0
    %15 = vsyncpa [#allocation5], 0
    // Predicated region
    $region2: #{bert_forward.28} parent=1 // pred_check
      _
    $region3: #{bert_forward.28} parent=1 // pred_check_branch
      %17 = sbr.rel (0) target = $region5
    $region4: #{bert_forward.28} parent=1 // pred_region
      %s19 = ssub.s32 128, 128
      %20 = vsyncadd [#allocation4], %s19
      %s21 = sshll.u32 [#allocation3], 4
      %s22 = int_to_ptr.vmem [resolvable:$true] %s21
      %27 = dma.hbm_to_vmem [thread:$0]  %s0, 128, %s22, [#allocation4], 64, 64, 4
    $region5: #{bert_forward.28} parent=1 // pred_fallthru
      _
    // Predicated region
    $region6: #{bert_forward.28} parent=1 // pred_check
      _
    $region7: #{bert_forward.28} parent=1 // pred_check_branch
      %29 = sbr.rel (0) target = $region9
    $region8: #{bert_forward.28} parent=1 // pred_region
      %s31 = ssub.s32 256, 256
      %32 = vsyncadd [#allocation7], %s31
      %s33 = sshll.u32 [#allocation6], 4
      %s34 = int_to_ptr.vmem [resolvable:$true] %s33
      %39 = dma.hbm_to_vmem [thread:$0]  %s1, 256, %s34, [#allocation7], 64, 64, 4
    $region9: #{bert_forward.28} parent=1 // pred_fallthru
      _
    // Predicated region
    $region10: #{bert_forward.28} parent=1 // pred_check
      _
    $region11: #{bert_forward.28} parent=1 // pred_check_branch
      %41 = sbr.rel (0) target = $region13
    $region12: #{bert_forward.28} parent=1 // pred_region
      %s43 = ssub.s32 16, 16
      %44 = vsyncadd [#allocation7], %s43
      %s46 = sshll.u32 [#allocation8], 4
      %s47 = int_to_ptr.vmem [resolvable:$true] %s46
      %49 = dma.hbm_to_vmem [thread:$0]  %s2, 16, %s47, [#allocation7]
    $region13: #{bert_forward.28} parent=1 // pred_fallthru
      _
    // Predicated region
    $region14: #{bert_forward.28} parent=1 // pred_check
      _
    $region15: #{bert_forward.28} parent=1 // pred_check_branch
      %51 = sbr.rel (0) target = $region17
    $region16: #{bert_forward.28} parent=1 // pred_region
      %s53 = ssub.s32 128, 128
      %54 = vsyncadd [#allocation10], %s53
      %s55 = sshll.u32 [#allocation9], 4
      %s56 = int_to_ptr.vmem [resolvable:$true] %s55
      %61 = dma.hbm_to_vmem [thread:$0]  %s3, 128, %s56, [#allocation10], 64, 64, 4
    $region17: #{bert_forward.28} parent=1 // pred_fallthru
      _
    // Predicated region
    $region18: #{bert_forward.28} parent=1 // pred_check
      _
    $region19: #{bert_forward.28} parent=1 // pred_check_branch
      %63 = sbr.rel (0) target = $region21
    $region20: #{bert_forward.28} parent=1 // pred_region
      %s65 = ssub.s32 16, 16
      %66 = vsyncadd [#allocation10], %s65
      %s68 = sshll.u32 [#allocation11], 4
      %s69 = int_to_ptr.vmem [resolvable:$true] %s68
      %71 = dma.hbm_to_vmem [thread:$0]  %s4, 16, %s69, [#allocation10]
    $region21: #{bert_forward.28} parent=1 // pred_fallthru
      _
    // Predicated region
    $region22: #{bert_forward.28} parent=1 // pred_check
      _
    $region23: #{bert_forward.28} parent=1 // pred_check_branch
      %73 = sbr.rel (0) target = $region25
    $region24: #{bert_forward.28} parent=1 // pred_region
      %s75 = ssub.s32 16, 16
      %76 = vsyncadd [#allocation13], %s75
      %s78 = sshll.u32 [#allocation12], 4
      %s79 = int_to_ptr.vmem [resolvable:$true] %s78
      %81 = dma.hbm_to_vmem [thread:$0]  %s5, 16, %s79, [#allocation13]
    $region25: #{bert_forward.28} parent=1 // pred_fallthru
      _
    // Predicated region
    $region26: #{bert_forward.28} parent=1 // pred_check
      _
    $region27: #{bert_forward.28} parent=1 // pred_check_branch
      %83 = sbr.rel (0) target = $region29
    $region28: #{bert_forward.28} parent=1 // pred_region
      %84 = dma.done [#allocation4], 128
    $region29: #{bert_forward.28} parent=1 // pred_fallthru
      _
    // Predicated region
    $region30: #{bert_forward.28} parent=1 // pred_check
      _
    $region31: #{bert_forward.28} parent=1 // pred_check_branch
      %86 = sbr.rel (0) target = $region33
    $region32: #{bert_forward.28} parent=1 // pred_region
      %87 = dma.done [#allocation7], 256
    $region33: #{bert_forward.28} parent=1 // pred_fallthru
      _
    // Predicated region
    $region34: #{bert_forward.28} parent=1 // pred_check
      _
    $region35: #{bert_forward.28} parent=1 // pred_check_branch
      %89 = sbr.rel (0) target = $region37
    $region36: #{bert_forward.28} parent=1 // pred_region
      %90 = dma.done [#allocation7], 16
    $region37: #{bert_forward.28} parent=1 // pred_fallthru
      _
    // Predicated region
    $region38: #{bert_forward.28} parent=1 // pred_check
      _
    $region39: #{bert_forward.28} parent=1 // pred_check_branch
      %92 = sbr.rel (0) target = $region41
    $region40: #{bert_forward.28} parent=1 // pred_region
      %93 = dma.done [#allocation10], 128
    $region41: #{bert_forward.28} parent=1 // pred_fallthru
      _
    // Predicated region
    $region42: #{bert_forward.28} parent=1 // pred_check
      _
    $region43: #{bert_forward.28} parent=1 // pred_check_branch
      %95 = sbr.rel (0) target = $region45
    $region44: #{bert_forward.28} parent=1 // pred_region
      %96 = dma.done [#allocation10], 16
    $region45: #{bert_forward.28} parent=1 // pred_fallthru
      _
    // Predicated region
    $region46: #{bert_forward.28} parent=1 // pred_check
      _
    $region47: #{bert_forward.28} parent=1 // pred_check_branch
      %98 = sbr.rel (0) target = $region49
    $region48: #{bert_forward.28} parent=1 // pred_region
      %99 = dma.done [#allocation13], 16
    $region49: #{bert_forward.28} parent=1 // pred_fallthru
      _
    %p101 = scmp.eq.s32.totalorder 0, 0
    // Predicated region
    $region50: #{bert_forward.28} parent=1 // pred_check
      %p102 = pneg %p101
    $region51: #{bert_forward.28} parent=1 // pred_check_branch
      %104 = sbr.rel (%p102) target = $region53
    $region52: #{bert_forward.28} parent=1 // pred_region
      %vm105 = vcmask 261120
      %106 = vst.msk [vmem:[#allocation2] sm:$0xff] %vm105, 0.0
      %107 = vst.msk [vmem:[#allocation2 + $0x8] sm:$0xff] %vm105, 0.0
    $region53: #{bert_forward.28} parent=1 // pred_fallthru
      _
    %v108 = vld [vmem:[#allocation2] sm:$0xff]
    %v109 = vld [vmem:[#allocation2 + $0x8] sm:$0xff]
    %v110 = vld [vmem:[#allocation3] sm:$0xf]
    %v111 = vld [vmem:[#allocation3 + $0x4] sm:$0xf]
    %v112 = vld [vmem:[#allocation6] sm:$0xf]
    %v113 = vld [vmem:[#allocation6 + $0x4] sm:$0xf]
    %v114 = vld [vmem:[#allocation6 + $0x8] sm:$0xf]
    %v115 = vld [vmem:[#allocation6 + $0xc] sm:$0xf]
    %v118 = vunpack.c.l.b16 %v110
    %v119 = vunpack.c.l.b16 %v111
    %v120 = vpack.c.b16 %v119, %v118
    %v125 = vunpack.c.l.b16 %v112
    %v126 = vunpack.c.l.b16 %v113
    %v127 = vunpack.c.l.b16 %v114
    %v128 = vunpack.c.l.b16 %v115
    %v129 = vpack.c.b16 %v126, %v125
    %v130 = vpack.c.b16 %v128, %v127
    %vm133 = vcmask 261120
    %v135 = vsel %vm133, %v120, 0
    %137 = vmatprep.subr.bf16.mxu0 0
    %138 = vmatpush1.bf16.msra.mxu0 %v129
    %139 = vmatprep.subr.bf16.mxu0 0
    %140 = vmatpush1.bf16.msra.mxu0 %v130
    %141 = vmatprep.subr.bf16.mxu0 0
    %142 = vmatpush1.bf16.msra.mxu0 0
    %143 = vmatprep.subr.bf16.mxu0 0
    %144 = vmatpush1.bf16.msra.mxu0 0
    %145 = vmatprep.subr.bf16.mxu0 0
    %146 = vmatpush1.bf16.msra.mxu0 0
    %147 = vmatprep.subr.bf16.mxu0 0
    %148 = vmatpush1.bf16.msra.mxu0 0
    %149 = vmatprep.subr.bf16.mxu0 0
    %150 = vmatpush1.bf16.msra.mxu0 0
    %151 = vmatprep.subr.bf16.mxu0 0
    %152 = vmatpush1.bf16.msra.mxu0 0
    %153 = vmatprep.subr.bf16.mxu0 0
    %154 = vmatpush1.bf16.msra.mxu0 0
    %155 = vmatprep.subr.bf16.mxu0 0
    %156 = vmatpush1.bf16.msra.mxu0 0
    %157 = vmatprep.subr.bf16.mxu0 0
    %158 = vmatpush1.bf16.msra.mxu0 0
    %159 = vmatprep.subr.bf16.mxu0 0
    %160 = vmatpush1.bf16.msra.mxu0 0
    %161 = vmatprep.subr.bf16.mxu0 0
    %162 = vmatpush1.bf16.msra.mxu0 0
    %163 = vmatprep.subr.bf16.mxu0 0
    %164 = vmatpush1.bf16.msra.mxu0 0
    %165 = vmatprep.subr.bf16.mxu0 0
    %166 = vmatpush1.bf16.msra.mxu0 0
    %167 = vmatprep.subr.bf16.mxu0 0
    %168 = vmatpush1.bf16.msra.mxu0 0
    %169 = vmatprep.mubr.bf16.mxu0 0
    %170 = vmatmul.mubr.bf16.gmra.mrb[0].mxu0 %v135
    %v171 = vpop.f32.mrb[0].mxu0
    %v172 = vadd.f32 0.0, %v171
    %v173 = vpop.f32.mrb[0].mxu0
    %v174 = vpop.f32.mrb[0].mxu0
    %v175 = vadd.f32 0.0, %v174
    %v176 = vpop.f32.mrb[0].mxu0
    %177 = vdwg.mxu0
    %v178 = vadd.f32 %v108, %v172
    %v179 = vadd.f32 %v109, %v175
    %180 = vst.msk [vmem:[#allocation2] sm:$0xff] %vm133, %v178
    %181 = vst.msk [vmem:[#allocation2 + $0x8] sm:$0xff] %vm133, %v179
    // Predicated region
    $region54: #{bert_forward.28} parent=1 // pred_check
      %p182 = pneg %p101
    $region55: #{bert_forward.28} parent=1 // pred_check_branch
      %184 = sbr.rel (%p182) target = $region57
    $region56: #{bert_forward.28} parent=1 // pred_region
      %v185 = vld [vmem:[#allocation2] sm:$0xff]
      %v186 = vld [vmem:[#allocation2 + $0x8] sm:$0xff]
      %v187 = vld [vmem:[#allocation8] sm:$0x1]
      %v189 = vlaneseq
      %v190 = vshrl.u32 %v189, 7
      %v191 = vsub.s32 0, %v190
      %v192 = vrot.slane %v187, %v191
      %v194 = vadd.f32 %v185, %v192
      %v195 = vadd.f32 %v186, %v192
      %v196 = vld [vmem:[#allocation9] sm:$0xf]
      %v197 = vld [vmem:[#allocation9 + $0x4] sm:$0xf]
      %v198 = vunpack.c.l.bf16 %v196
      %v199 = vunpack.c.l.bf16 %v197
      %v200 = vadd.f32 %v194, %v198
      %v201 = vadd.f32 %v195, %v199
      %v202 = vsel %vm133, %v200, 0.0
      %203 = vadd.xlane.f32.xlu0 %v202
      %v204 = vpop.xlane.xlu0 %203
      %v205 = vsel %vm133, %v201, 0.0
      %206 = vadd.xlane.f32.xlu0 %v205
      %v207 = vpop.xlane.xlu0 %206
      %v208 = vrcp.pop 32.0
      %v209 = vmul.f32 %v204, %v208
      %v210 = vmul.f32 %v207, %v208
      %v211 = vsub.f32 %v200, %v209
      %v212 = vsub.f32 %v201, %v210
      %v213 = vmul.f32 %v211, %v211
      %v214 = vmul.f32 %v212, %v212
      %v215 = vsel %vm133, %v213, 0.0
      %216 = vadd.xlane.f32.xlu0 %v215
      %v217 = vpop.xlane.xlu0 %216
      %v218 = vsel %vm133, %v214, 0.0
      %219 = vadd.xlane.f32.xlu0 %v218
      %v220 = vpop.xlane.xlu0 %219
      %v221 = vmul.f32 %v217, %v208
      %v222 = vmul.f32 %v220, %v208
      %v223 = vadd.f32 %v221, 1e-05
      %v224 = vadd.f32 %v222, 1e-05
      %v225 = vrsqrt.pop %v223
      %v226 = vrsqrt.pop %v224
      %v227 = vmul.f32 %v211, %v225
      %v228 = vmul.f32 %v212, %v226
      %v229 = vld [vmem:[#allocation11] sm:$0x1]
      %v231 = vlaneseq
      %v232 = vshrl.u32 %v231, 7
      %v233 = vsub.s32 0, %v232
      %v234 = vrot.slane %v229, %v233
      %v236 = vmul.f32 %v227, %v234
      %v237 = vmul.f32 %v228, %v234
      %v238 = vld [vmem:[#allocation12] sm:$0x1]
      %v240 = vlaneseq
      %v241 = vshrl.u32 %v240, 7
      %v242 = vsub.s32 0, %v241
      %v243 = vrot.slane %v238, %v242
      %v245 = vadd.f32 %v236, %v243
      %v246 = vadd.f32 %v237, %v243
      %v247 = vpack.c.bf16 %v246, %v245
      %v249 = vunpack.c.l.b16 %v247
      %v250 = vunpack.c.h.b16 %v247
      %v251 = vpack.c.b16 %v249, %v249
      %v252 = vpack.c.b16 %v250, %v250
      %vm255 = vcmask 257024
      %256 = vst.msk [vmem:[#allocation14] sm:$0xf] %vm255, %v251
      %257 = vst.msk [vmem:[#allocation14 + $0x4] sm:$0xf] %vm255, %v252
    $region57: #{bert_forward.28} parent=1 // pred_fallthru
      _
    // Predicated region
    $region58: #{bert_forward.28} parent=1 // pred_check
      _
    $region59: #{bert_forward.28} parent=1 // pred_check_branch
      %259 = sbr.rel (0) target = $region61
    $region60: #{bert_forward.28} parent=1 // pred_region
      %s261 = ssub.s32 128, 128
      %262 = vsyncadd [#allocation5], %s261
      %s263 = sshll.u32 [#allocation14], 4
      %s264 = int_to_ptr.vmem [resolvable:$true] %s263
      %269 = dma.vmem_to_hbm [thread:$0]  %s264, 128, %s6, [#allocation5], 64, 64, 4
    $region61: #{bert_forward.28} parent=1 // pred_fallthru
      _
    // Predicated region
    $region62: #{bert_forward.28} parent=1 // pred_check
      _
    $region63: #{bert_forward.28} parent=1 // pred_check_branch
      %271 = sbr.rel (0) target = $region65
    $region64: #{bert_forward.28} parent=1 // pred_region
      %272 = dma.done [#allocation5], 128
    $region65: #{bert_forward.28} parent=1 // pred_fallthru
      _
    %273 = vsyncpa [#allocation4], 1
    %274 = vsyncpa [#allocation7], 1
    %275 = vsyncpa [#allocation10], 1
    %276 = vsyncpa [#allocation13], 1
    %277 = vsyncpa [#allocation5], 1

// kernel: bert_forward.27
$region0: #{bert_forward.27}
  #allocation0 [shape = 'u32[]', space=smem, size = 0x4, offset = 0x4, fixed_abs, tag = 'smem constant byte address 0x4 - core index']
  #allocation1 [shape = 'u32[144,128]{1,0:T(1,128)}', space=vmem, size = 0x12000, scoped, tag = 'internal scratch']
  %s0 = inlined_call_operand.hbm [shape: bf16[2,8,32], index: 0, kind: input, shape index: {}]
  %s1 = inlined_call_operand.hbm [shape: bf16[2,8,32], index: 1, kind: input, shape index: {}]
  %s2 = inlined_call_operand.hbm [shape: bf16[2,8,32], index: 2, kind: input, shape index: {}]
  %s3 = inlined_call_operand.hbm [shape: bf16[2,8,32], index: 3, kind: output, shape index: {}]
  %s4 = sld [smem:[#allocation0]]
  $region57: #{bert_forward.27} parent=0
    _
  %s6 = ssub.s32 1, %s4
  %s7 = scalar_select 0, %s6, %s4
  $region1: #{bert_forward.27} parent=0
    #allocation2 [shape = 'u8[4096]{0}', space=vmem, size = 0x1000, scoped, tag = 'input window, operand 0']
    #allocation3 [shape = 's32[2]{0}', space=sflag, size = 0x8, scoped, tag = 'scoped memory for bert_forward.27']
    #allocation4 [shape = 's32[2]{0}', space=sflag, size = 0x8, scoped, tag = 'scoped memory for bert_forward.27']
    #allocation5 [shape = 'u8[4096]{0}', space=vmem, size = 0x1000, scoped, tag = 'input window, operand 1']
    #allocation6 [shape = 's32[2]{0}', space=sflag, size = 0x8, scoped, tag = 'scoped memory for bert_forward.27']
    #allocation7 [shape = 'u8[4096]{0}', space=vmem, size = 0x1000, scoped, tag = 'input window, operand 2']
    #allocation8 [shape = 'u8[4096]{0}', space=vmem, size = 0x1000, scoped, tag = 'output window, operand 0']
    %8 = vsyncpa [#allocation3], 0
    %s9 = scalar_lea.sflag [#allocation3], 1
    %10 = vsyncpa %s9, 0
    %11 = vsyncpa [#allocation6], 0
    %s12 = scalar_lea.sflag [#allocation6], 1
    %13 = vsyncpa %s12, 0
    %14 = vsyncpa [#allocation4], 0
    %s15 = scalar_lea.sflag [#allocation4], 1
    %16 = vsyncpa %s15, 0
    loop: start=0, step=1, limit=4
    $region2: #{bert_forward.27} parent=1 // loop_pre_header
      _
    $region3: #{bert_forward.27} parent=1 // loop_header
      %s18 = sphi 0, %s22
      %p19 = scmp.ge.s32.totalorder %s18, 4
      %s25 = sphi 0, %s37
      %s26 = sphi 0, %s33
      %s27 = sphi 0, %s25
      %s28 = sphi 0, %s26
      %s29 = sphi 0, %s27
      %s30 = sphi 0, %s28
      %s42 = sphi 0, %s44
      %s45 = sphi 0, %s42
      %s46 = sphi 0, %s45
      %s62 = sphi 0, %s46
      %s68 = sphi 0, %s70
      %s71 = sphi 0, %s68
      %s72 = sphi 0, %s71
      %s88 = sphi 0, %s72
      %s94 = sphi 0, %s96
      %s97 = sphi 0, %s94
      %s98 = sphi 0, %s97
      %s114 = sphi 0, %s98
      %s122 = sphi 0, %s124
      %s125 = sphi 0, %s122
      %s126 = sphi 0, %s125
      %s142 = sphi 0, %s126
    $region4: #{bert_forward.27} parent=1 // loop_header_branch
      %21 = sbr.rel (%p19) target = $region8
    $region5: #{bert_forward.27} parent=1 // loop_body
      %s23 = ssub.s32 %s18, 1
      %s24 = ssub.s32 %s18, 2
      %s31 = sadd.s32 1, %s26
      %p32 = scmp.ge.s32.totalorder %s31, 1
      %s33 = scalar_select %p32, 0, %s31
      %s34 = sadd.s32 1, %s25
      %s35 = scalar_select %p32, %s34, %s25
      %p36 = scmp.ge.s32.totalorder %s35, 2
      %s37 = scalar_select %p36, 0, %s35
      %s38 = ssub.s32 %s25, %s37
      %s39 = ssub.s32 %s26, %s33
      %s40 = sor.u32 %s38, %s39
      %p41 = scmp.eq.s32.totalorder %s40, 0
      %s43 = sadd.s32 %s42, 1
      %s44 = scalar_select %p41, %s42, %s43
      %p47 = pneg %p41
      %p48 = scmp.eq.s32.totalorder %s18, 1
      %p49 = por %p47, %p48
      %p50 = scmp.ne.s32.totalorder %s42, %s45
      %p51 = scmp.eq.s32.totalorder %s18, 0
      %p52 = por %p50, %p51
      %p53 = scmp.ne.s32.totalorder %s42, %s45
      %p54 = scmp.eq.s32.totalorder %s23, 1
      %p55 = por %p53, %p54
      %p56 = scmp.ne.s32.totalorder %s45, %s46
      %p57 = scmp.eq.s32.totalorder %s23, 0
      %p58 = por %p56, %p57
      %p59 = scmp.ne.s32.totalorder %s45, %s46
      %p60 = scmp.eq.s32.totalorder %s24, 1
      %p61 = por %p59, %p60
      %p63 = scmp.ne.s32.totalorder %s46, %s62
      %p64 = scmp.eq.s32.totalorder %s24, 0
      %p65 = por %p63, %p64
      %s66 = ssub.s32 %s25, %s37
      %p67 = scmp.eq.s32.totalorder %s66, 0
      %s69 = sadd.s32 %s68, 1
      %s70 = scalar_select %p67, %s68, %s69
      %p73 = pneg %p67
      %p74 = scmp.eq.s32.totalorder %s18, 1
      %p75 = por %p73, %p74
      %p76 = scmp.ne.s32.totalorder %s68, %s71
      %p77 = scmp.eq.s32.totalorder %s18, 0
      %p78 = por %p76, %p77
      %p79 = scmp.ne.s32.totalorder %s68, %s71
      %p80 = scmp.eq.s32.totalorder %s23, 1
      %p81 = por %p79, %p80
      %p82 = scmp.ne.s32.totalorder %s71, %s72
      %p83 = scmp.eq.s32.totalorder %s23, 0
      %p84 = por %p82, %p83
      %p85 = scmp.ne.s32.totalorder %s71, %s72
      %p86 = scmp.eq.s32.totalorder %s24, 1
      %p87 = por %p85, %p86
      %p89 = scmp.ne.s32.totalorder %s72, %s88
      %p90 = scmp.eq.s32.totalorder %s24, 0
      %p91 = por %p89, %p90
      %s92 = ssub.s32 %s25, %s37
      %p93 = scmp.eq.s32.totalorder %s92, 0
      %s95 = sadd.s32 %s94, 1
      %s96 = scalar_select %p93, %s94, %s95
      %p99 = pneg %p93
      %p100 = scmp.eq.s32.totalorder %s18, 1
      %p101 = por %p99, %p100
      %p102 = scmp.ne.s32.totalorder %s94, %s97
      %p103 = scmp.eq.s32.totalorder %s18, 0
      %p104 = por %p102, %p103
      %p105 = scmp.ne.s32.totalorder %s94, %s97
      %p106 = scmp.eq.s32.totalorder %s23, 1
      %p107 = por %p105, %p106
      %p108 = scmp.ne.s32.totalorder %s97, %s98
      %p109 = scmp.eq.s32.totalorder %s23, 0
      %p110 = por %p108, %p109
      %p111 = scmp.ne.s32.totalorder %s97, %s98
      %p112 = scmp.eq.s32.totalorder %s24, 1
      %p113 = por %p111, %p112
      %p115 = scmp.ne.s32.totalorder %s98, %s114
      %p116 = scmp.eq.s32.totalorder %s24, 0
      %p117 = por %p115, %p116
      %s118 = ssub.s32 %s25, %s37
      %s119 = ssub.s32 %s26, %s33
      %s120 = sor.u32 %s118, %s119
      %p121 = scmp.eq.s32.totalorder %s120, 0
      %s123 = sadd.s32 %s122, 1
      %s124 = scalar_select %p121, %s122, %s123
      %p127 = pneg %p121
      %p128 = scmp.eq.s32.totalorder %s18, 1
      %p129 = por %p127, %p128
      %p130 = scmp.ne.s32.totalorder %s122, %s125
      %p131 = scmp.eq.s32.totalorder %s18, 0
      %p132 = por %p130, %p131
      %p133 = scmp.ne.s32.totalorder %s122, %s125
      %p134 = scmp.eq.s32.totalorder %s23, 1
      %p135 = por %p133, %p134
      %p136 = scmp.ne.s32.totalorder %s125, %s126
      %p137 = scmp.eq.s32.totalorder %s23, 0
      %p138 = por %p136, %p137
      %p139 = scmp.ne.s32.totalorder %s125, %s126
      %p140 = scmp.eq.s32.totalorder %s24, 1
      %p141 = por %p139, %p140
      %p143 = scmp.ne.s32.totalorder %s126, %s142
      %p144 = scmp.eq.s32.totalorder %s24, 0
      %p145 = por %p143, %p144
      %p146 = scmp.le.s32.totalorder 1, %s18
      %p147 = scmp.lt.s32.totalorder %s18, 3
      %p148 = pnand %p146, %p147
      %p149 = pneg %p148
      // Predicated region
      $region9: #{bert_forward.27} parent=5 // pred_check
        _
      $region10: #{bert_forward.27} parent=5 // pred_check_branch
        %151 = sbr.rel (%p148) target = $region12
      $region11: #{bert_forward.27} parent=5 // pred_region
        %s152 = ssub.s32 %s18, 1
      $region12: #{bert_forward.27} parent=5 // pred_fallthru
        _
      %p153 = scmp.lt.s32.totalorder %s18, 2
      // Predicated region
      $region13: #{bert_forward.27} parent=5 // pred_check
        %p154 = pneg %p153
      $region14: #{bert_forward.27} parent=5 // pred_check_branch
        %156 = sbr.rel (%p154) target = $region16
      $region15: #{bert_forward.27} parent=5 // pred_region
        // Predicated region
        $region17: #{bert_forward.27} parent=15 // pred_check
          %p157 = pneg %p52
        $region18: #{bert_forward.27} parent=15 // pred_check_branch
          %159 = sbr.rel (%p157) target = $region20
        $region19: #{bert_forward.27} parent=15 // pred_region
          %s160 = sand.u32 %s42, 1
          %s161 = scalar_lea.sflag [#allocation3], %s160
          %s162 = sand.u32 %s42, 1
          %s163 = smul.addr %s162, 4
          %s164 = scalar_lea.vmem [#allocation2], %s163
          %s166 = ssub.s32 64, 64
          %167 = vsyncadd %s161, %s166
          %s168 = sadd.s32 %s26, %s25
          %s169 = smul.addr %s168, 64
          %s170 = scalar_lea.hbm %s0, %s169
          %s172 = sshll.u32 %s164, 4
          %s173 = int_to_ptr.vmem [resolvable:$true] %s172
          %175 = dma.hbm_to_vmem [thread:$0]  %s170, 64, %s173, %s161
        $region20: #{bert_forward.27} parent=15 // pred_fallthru
          _
        // Predicated region
        $region21: #{bert_forward.27} parent=15 // pred_check
          %p176 = pneg %p78
        $region22: #{bert_forward.27} parent=15 // pred_check_branch
          %178 = sbr.rel (%p176) target = $region24
        $region23: #{bert_forward.27} parent=15 // pred_region
          %s179 = sand.u32 %s18, 1
          %s180 = scalar_lea.sflag [#allocation6], %s179
          %s181 = sand.u32 %s68, 1
          %s182 = smul.addr %s181, 4
          %s183 = scalar_lea.vmem [#allocation5], %s182
          %s185 = ssub.s32 64, 64
          %186 = vsyncadd %s180, %s185
          %s187 = smul.addr %s25, 64
          %s188 = scalar_lea.hbm %s1, %s187
          %s190 = sshll.u32 %s183, 4
          %s191 = int_to_ptr.vmem [resolvable:$true] %s190
          %193 = dma.hbm_to_vmem [thread:$0]  %s188, 64, %s191, %s180
        $region24: #{bert_forward.27} parent=15 // pred_fallthru
          _
        // Predicated region
        $region25: #{bert_forward.27} parent=15 // pred_check
          %p194 = pneg %p104
        $region26: #{bert_forward.27} parent=15 // pred_check_branch
          %196 = sbr.rel (%p194) target = $region28
        $region27: #{bert_forward.27} parent=15 // pred_region
          %s197 = sand.u32 %s18, 1
          %s198 = scalar_lea.sflag [#allocation6], %s197
          %s199 = sand.u32 %s94, 1
          %s200 = smul.addr %s199, 4
          %s201 = scalar_lea.vmem [#allocation7], %s200
          %s203 = ssub.s32 64, 64
          %204 = vsyncadd %s198, %s203
          %s205 = smul.addr %s25, 64
          %s206 = scalar_lea.hbm %s2, %s205
          %s208 = sshll.u32 %s201, 4
          %s209 = int_to_ptr.vmem [resolvable:$true] %s208
          %211 = dma.hbm_to_vmem [thread:$0]  %s206, 64, %s209, %s198
        $region28: #{bert_forward.27} parent=15 // pred_fallthru
          _
      $region16: #{bert_forward.27} parent=5 // pred_fallthru
        _
      %p212 = scmp.le.s32.totalorder 1, %s18
      %p213 = scmp.lt.s32.totalorder %s18, 3
      %p214 = pnand %p212, %p213
      %p215 = pneg %p214
      // Predicated region
      $region29: #{bert_forward.27} parent=5 // pred_check
        _
      $region30: #{bert_forward.27} parent=5 // pred_check_branch
        %217 = sbr.rel (%p214) target = $region32
      $region31: #{bert_forward.27} parent=5 // pred_region
        %s218 = ssub.s32 %s18, 1
        %s219 = sand.u32 %s45, 1
        %s220 = scalar_lea.sflag [#allocation3], %s219
        %s221 = sand.u32 %s45, 1
        %s222 = smul.addr %s221, 4
        %s223 = scalar_lea.vmem [#allocation2], %s222
        // Predicated region
        $region33: #{bert_forward.27} parent=31 // pred_check
          %p224 = pneg %p58
        $region34: #{bert_forward.27} parent=31 // pred_check_branch
          %226 = sbr.rel (%p224) target = $region36
        $region35: #{bert_forward.27} parent=31 // pred_region
          %227 = dma.done %s220, 64
        $region36: #{bert_forward.27} parent=31 // pred_fallthru
          _
        %s228 = sand.u32 %s23, 1
        %s229 = scalar_lea.sflag [#allocation6], %s228
        %s230 = sand.u32 %s71, 1
        %s231 = smul.addr %s230, 4
        %s232 = scalar_lea.vmem [#allocation5], %s231
        // Predicated region
        $region37: #{bert_forward.27} parent=31 // pred_check
          %p233 = pneg %p84
        $region38: #{bert_forward.27} parent=31 // pred_check_branch
          %235 = sbr.rel (%p233) target = $region40
        $region39: #{bert_forward.27} parent=31 // pred_region
          %236 = dma.done %s229, 64
        $region40: #{bert_forward.27} parent=31 // pred_fallthru
          _
        %s237 = sand.u32 %s23, 1
        %s238 = scalar_lea.sflag [#allocation6], %s237
        %s239 = sand.u32 %s97, 1
        %s240 = smul.addr %s239, 4
        %s241 = scalar_lea.vmem [#allocation7], %s240
        // Predicated region
        $region41: #{bert_forward.27} parent=31 // pred_check
          %p242 = pneg %p110
        $region42: #{bert_forward.27} parent=31 // pred_check_branch
          %244 = sbr.rel (%p242) target = $region44
        $region43: #{bert_forward.27} parent=31 // pred_region
          %245 = dma.done %s238, 64
        $region44: #{bert_forward.27} parent=31 // pred_fallthru
          _
        %s246 = sand.u32 %s45, 1
        %s247 = scalar_lea.sflag [#allocation3], %s246
        %s248 = sand.u32 %s45, 1
        %s249 = smul.addr %s248, 4
        %s250 = scalar_lea.vmem [#allocation2], %s249
        %p251 = pneg %p58
        %p252 = pneg %p55
        %s253 = sand.u32 %s23, 1
        %s254 = scalar_lea.sflag [#allocation6], %s253
        %s255 = sand.u32 %s71, 1
        %s256 = smul.addr %s255, 4
        %s257 = scalar_lea.vmem [#allocation5], %s256
        %p258 = pneg %p84
        %p259 = pneg %p81
        %s260 = sand.u32 %s23, 1
        %s261 = scalar_lea.sflag [#allocation6], %s260
        %s262 = sand.u32 %s97, 1
        %s263 = smul.addr %s262, 4
        %s264 = scalar_lea.vmem [#allocation7], %s263
        %p265 = pneg %p110
        %p266 = pneg %p107
        %p267 = pneg %p138
        %p268 = pneg %p135
        %s269 = sand.u32 %s125, 1
        %s270 = scalar_lea.sflag [#allocation4], %s269
        %s271 = sand.u32 %s125, 1
        %s272 = smul.addr %s271, 4
        %s273 = scalar_lea.vmem [#allocation8], %s272
        %v275 = vld [vmem:[%s223] sm:$0xf]
        %v276 = vunpack.c.l.bf16 %v275
        %v277 = vmul.f32 %v276, 0.35355338
        %v278 = vpack.c.bf16 %v277, %v277
        %v279 = vld [vmem:[%s232] sm:$0xf]
        %v280 = vld [vmem:[%s241] sm:$0xf]
        %vm281 = vcmask 64512
        %v283 = vsel %vm281, %v278, 0
        %v286 = vsel %vm281, %v279, 0
        %288 = vmatprep.subr.bf16.mxu0 0
        %289 = vmatpush1.bf16.xpose.msra.mxu0 %v286
        %290 = vmatprep.subr.bf16.mxu0 0
        %291 = vmatpush1.bf16.xpose.msra.mxu0 0
        %292 = vmatprep.subr.bf16.mxu0 0
        %293 = vmatpush1.bf16.xpose.msra.mxu0 0
        %294 = vmatprep.subr.bf16.mxu0 0
        %295 = vmatpush1.bf16.xpose.msra.mxu0 0
        %296 = vmatprep.subr.bf16.mxu0 0
        %297 = vmatpush1.bf16.xpose.msra.mxu0 0
        %298 = vmatprep.subr.bf16.mxu0 0
        %299 = vmatpush1.bf16.xpose.msra.mxu0 0
        %300 = vmatprep.subr.bf16.mxu0 0
        %301 = vmatpush1.bf16.xpose.msra.mxu0 0
        %302 = vmatprep.subr.bf16.mxu0 0
        %303 = vmatpush1.bf16.xpose.msra.mxu0 0
        %304 = vmatprep.subr.bf16.mxu0 0
        %305 = vmatpush1.bf16.xpose.msra.mxu0 0
        %306 = vmatprep.subr.bf16.mxu0 0
        %307 = vmatpush1.bf16.xpose.msra.mxu0 0
        %308 = vmatprep.subr.bf16.mxu0 0
        %309 = vmatpush1.bf16.xpose.msra.mxu0 0
        %310 = vmatprep.subr.bf16.mxu0 0
        %311 = vmatpush1.bf16.xpose.msra.mxu0 0
        %312 = vmatprep.subr.bf16.mxu0 0
        %313 = vmatpush1.bf16.xpose.msra.mxu0 0
        %314 = vmatprep.subr.bf16.mxu0 0
        %315 = vmatpush1.bf16.xpose.msra.mxu0 0
        %316 = vmatprep.subr.bf16.mxu0 0
        %317 = vmatpush1.bf16.xpose.msra.mxu0 0
        %318 = vmatprep.subr.bf16.mxu0 0
        %319 = vmatpush1.bf16.xpose.msra.mxu0 0
        %320 = vmatprep.mubr.bf16.mxu0 0
        %321 = vmatmul.mubr.bf16.gmra.mrb[0].mxu0 %v283
        %v322 = vpop.f32.mrb[0].mxu0
        %v323 = vadd.f32 0.0, %v322
        %v324 = vpop.f32.mrb[0].mxu0
        %v325 = vpop.f32.mrb[0].mxu0
        %v326 = vpop.f32.mrb[0].mxu0
        %327 = vdwg.mxu0
        %v328 = vsel %vm281, %v323, -inf
        %329 = vmax.xlane.f32.xlu0 %v328
        %v330 = vpop.xlane.xlu0 %329
        %v331 = vsub.f32 %v323, %v330
        %v332 = vmul.f32 %v331, 1.442695
        %v333 = vpow.pop %v332
        %v334 = vsel %vm281, %v333, 0.0
        %335 = vadd.xlane.f32.xlu0 %v334
        %v336 = vpop.xlane.xlu0 %335
        %v337 = vrcp.pop %v336
        %v338 = vmul.f32 %v333, %v337
        %v339 = vpack.c.bf16 %v338, %v338
        %v341 = vsel %vm281, %v339, 0
        %vm343 = vcmask 1043456
        %v345 = vsel %vm343, %v280, 0
        %347 = vmatprep.subr.bf16.mxu0 0
        %348 = vmatpush1.bf16.msra.mxu0 %v345
        %349 = vmatprep.subr.bf16.mxu0 0
        %350 = vmatpush1.bf16.msra.mxu0 0
        %351 = vmatprep.subr.bf16.mxu0 0
        %352 = vmatpush1.bf16.msra.mxu0 0
        %353 = vmatprep.subr.bf16.mxu0 0
        %354 = vmatpush1.bf16.msra.mxu0 0
        %355 = vmatprep.subr.bf16.mxu0 0
        %356 = vmatpush1.bf16.msra.mxu0 0
        %357 = vmatprep.subr.bf16.mxu0 0
        %358 = vmatpush1.bf16.msra.mxu0 0
        %359 = vmatprep.subr.bf16.mxu0 0
        %360 = vmatpush1.bf16.msra.mxu0 0
        %361 = vmatprep.subr.bf16.mxu0 0
        %362 = vmatpush1.bf16.msra.mxu0 0
        %363 = vmatprep.subr.bf16.mxu0 0
        %364 = vmatpush1.bf16.msra.mxu0 0
        %365 = vmatprep.subr.bf16.mxu0 0
        %366 = vmatpush1.bf16.msra.mxu0 0
        %367 = vmatprep.subr.bf16.mxu0 0
        %368 = vmatpush1.bf16.msra.mxu0 0
        %369 = vmatprep.subr.bf16.mxu0 0
        %370 = vmatpush1.bf16.msra.mxu0 0
        %371 = vmatprep.subr.bf16.mxu0 0
        %372 = vmatpush1.bf16.msra.mxu0 0
        %373 = vmatprep.subr.bf16.mxu0 0
        %374 = vmatpush1.bf16.msra.mxu0 0
        %375 = vmatprep.subr.bf16.mxu0 0
        %376 = vmatpush1.bf16.msra.mxu0 0
        %377 = vmatprep.subr.bf16.mxu0 0
        %378 = vmatpush1.bf16.msra.mxu0 0
        %379 = vmatprep.mubr.bf16.mxu0 0
        %380 = vmatmul.mubr.bf16.gmra.mrb[0].mxu0 %v341
        %v381 = vpop.f32.mrb[0].mxu0
        %v382 = vadd.f32 0.0, %v381
        %v383 = vpop.f32.mrb[0].mxu0
        %v384 = vpop.f32.mrb[0].mxu0
        %v385 = vpop.f32.mrb[0].mxu0
        %386 = vdwg.mxu0
        %v387 = vpack.c.bf16 %v382, %v382
        %vm388 = vcmask 60416
        %389 = vst.msk [vmem:[%s273] sm:$0xf] %vm388, %v387
        %391 = vrot.lane.b32.xlu0 %v278, 120
        %v392 = vpop.permute.xlu0 %391
        %v394 = vunpack.c.l.b16 %v279
        %v395 = vpack.c.b16 %v394, %v394
        %396 = vrot.lane.b32.xlu0 %v395, 120
        %v397 = vpop.permute.xlu0 %396
        %v399 = vsel %vm281, %v392, 0
        %v402 = vsel %vm281, %v397, 0
        %404 = vmatprep.subr.bf16.mxu0 0
        %405 = vmatpush1.bf16.xpose.msra.mxu0 %v402
        %406 = vmatprep.subr.bf16.mxu0 0
        %407 = vmatpush1.bf16.xpose.msra.mxu0 0
        %408 = vmatprep.subr.bf16.mxu0 0
        %409 = vmatpush1.bf16.xpose.msra.mxu0 0
        %410 = vmatprep.subr.bf16.mxu0 0
        %411 = vmatpush1.bf16.xpose.msra.mxu0 0
        %412 = vmatprep.subr.bf16.mxu0 0
        %413 = vmatpush1.bf16.xpose.msra.mxu0 0
        %414 = vmatprep.subr.bf16.mxu0 0
        %415 = vmatpush1.bf16.xpose.msra.mxu0 0
        %416 = vmatprep.subr.bf16.mxu0 0
        %417 = vmatpush1.bf16.xpose.msra.mxu0 0
        %418 = vmatprep.subr.bf16.mxu0 0
        %419 = vmatpush1.bf16.xpose.msra.mxu0 0
        %420 = vmatprep.subr.bf16.mxu0 0
        %421 = vmatpush1.bf16.xpose.msra.mxu0 0
        %422 = vmatprep.subr.bf16.mxu0 0
        %423 = vmatpush1.bf16.xpose.msra.mxu0 0
        %424 = vmatprep.subr.bf16.mxu0 0
        %425 = vmatpush1.bf16.xpose.msra.mxu0 0
        %426 = vmatprep.subr.bf16.mxu0 0
        %427 = vmatpush1.bf16.xpose.msra.mxu0 0
        %428 = vmatprep.subr.bf16.mxu0 0
        %429 = vmatpush1.bf16.xpose.msra.mxu0 0
        %430 = vmatprep.subr.bf16.mxu0 0
        %431 = vmatpush1.bf16.xpose.msra.mxu0 0
        %432 = vmatprep.subr.bf16.mxu0 0
        %433 = vmatpush1.bf16.xpose.msra.mxu0 0
        %434 = vmatprep.subr.bf16.mxu0 0
        %435 = vmatpush1.bf16.xpose.msra.mxu0 0
        %436 = vmatprep.mubr.bf16.mxu0 0
        %437 = vmatmul.mubr.bf16.gmra.mrb[0].mxu0 %v399
        %v438 = vpop.f32.mrb[0].mxu0
        %v439 = vadd.f32 0.0, %v438
        %v440 = vpop.f32.mrb[0].mxu0
        %v441 = vpop.f32.mrb[0].mxu0
        %v442 = vpop.f32.mrb[0].mxu0
        %443 = vdwg.mxu0
        %v444 = vsel %vm281, %v439, -inf
        %445 = vmax.xlane.f32.xlu0 %v444
        %v446 = vpop.xlane.xlu0 %445
        %v447 = vsub.f32 %v439, %v446
        %v448 = vmul.f32 %v447, 1.442695
        %v449 = vpow.pop %v448
        %v450 = vsel %vm281, %v449, 0.0
        %451 = vadd.xlane.f32.xlu0 %v450
        %v452 = vpop.xlane.xlu0 %451
        %v453 = vrcp.pop %v452
        %v454 = vmul.f32 %v449, %v453
        %v455 = vpack.c.bf16 %v454, %v454
        %v457 = vunpack.c.l.b16 %v280
        %v458 = vpack.c.b16 %v457, %v457
        %459 = vrot.lane.b32.xlu0 %v458, 120
        %v460 = vpop.permute.xlu0 %459
        %v462 = vsel %vm281, %v455, 0
        %v465 = vsel %vm343, %v460, 0
        %467 = vmatprep.subr.bf16.mxu0 0
        %468 = vmatpush1.bf16.msra.mxu0 %v465
        %469 = vmatprep.subr.bf16.mxu0 0
        %470 = vmatpush1.bf16.msra.mxu0 0
        %471 = vmatprep.subr.bf16.mxu0 0
        %472 = vmatpush1.bf16.msra.mxu0 0
        %473 = vmatprep.subr.bf16.mxu0 0
        %474 = vmatpush1.bf16.msra.mxu0 0
        %475 = vmatprep.subr.bf16.mxu0 0
        %476 = vmatpush1.bf16.msra.mxu0 0
        %477 = vmatprep.subr.bf16.mxu0 0
        %478 = vmatpush1.bf16.msra.mxu0 0
        %479 = vmatprep.subr.bf16.mxu0 0
        %480 = vmatpush1.bf16.msra.mxu0 0
        %481 = vmatprep.subr.bf16.mxu0 0
        %482 = vmatpush1.bf16.msra.mxu0 0
        %483 = vmatprep.subr.bf16.mxu0 0
        %484 = vmatpush1.bf16.msra.mxu0 0
        %485 = vmatprep.subr.bf16.mxu0 0
        %486 = vmatpush1.bf16.msra.mxu0 0
        %487 = vmatprep.subr.bf16.mxu0 0
        %488 = vmatpush1.bf16.msra.mxu0 0
        %489 = vmatprep.subr.bf16.mxu0 0
        %490 = vmatpush1.bf16.msra.mxu0 0
        %491 = vmatprep.subr.bf16.mxu0 0
        %492 = vmatpush1.bf16.msra.mxu0 0
        %493 = vmatprep.subr.bf16.mxu0 0
        %494 = vmatpush1.bf16.msra.mxu0 0
        %495 = vmatprep.subr.bf16.mxu0 0
        %496 = vmatpush1.bf16.msra.mxu0 0
        %497 = vmatprep.subr.bf16.mxu0 0
        %498 = vmatpush1.bf16.msra.mxu0 0
        %499 = vmatprep.mubr.bf16.mxu0 0
        %500 = vmatmul.mubr.bf16.gmra.mrb[0].mxu0 %v462
        %v501 = vpop.f32.mrb[0].mxu0
        %v502 = vadd.f32 0.0, %v501
        %v503 = vpop.f32.mrb[0].mxu0
        %v504 = vpop.f32.mrb[0].mxu0
        %v505 = vpop.f32.mrb[0].mxu0
        %506 = vdwg.mxu0
        %v507 = vpack.c.bf16 %v502, %v502
        %v509 = vunpack.c.l.b16 %v507
        %v510 = vpack.c.b16 %v509, %v509
        %511 = vrot.lane.b32.xlu0 %v510, 8
        %v512 = vpop.permute.xlu0 %511
        %vm514 = vcmask 126016
        %515 = vst.msk [vmem:[%s273] sm:$0xf] %vm514, %v512
        %516 = vrot.lane.b32.xlu0 %v278, 112
        %v517 = vpop.permute.xlu0 %516
        %518 = vrot.lane.b32.xlu0 %v395, 112
        %v519 = vpop.permute.xlu0 %518
        %v521 = vsel %vm281, %v517, 0
        %v524 = vsel %vm281, %v519, 0
        %526 = vmatprep.subr.bf16.mxu0 0
        %527 = vmatpush1.bf16.xpose.msra.mxu0 %v524
        %528 = vmatprep.subr.bf16.mxu0 0
        %529 = vmatpush1.bf16.xpose.msra.mxu0 0
        %530 = vmatprep.subr.bf16.mxu0 0
        %531 = vmatpush1.bf16.xpose.msra.mxu0 0
        %532 = vmatprep.subr.bf16.mxu0 0
        %533 = vmatpush1.bf16.xpose.msra.mxu0 0
        %534 = vmatprep.subr.bf16.mxu0 0
        %535 = vmatpush1.bf16.xpose.msra.mxu0 0
        %536 = vmatprep.subr.bf16.mxu0 0
        %537 = vmatpush1.bf16.xpose.msra.mxu0 0
        %538 = vmatprep.subr.bf16.mxu0 0
        %539 = vmatpush1.bf16.xpose.msra.mxu0 0
        %540 = vmatprep.subr.bf16.mxu0 0
        %541 = vmatpush1.bf16.xpose.msra.mxu0 0
        %542 = vmatprep.subr.bf16.mxu0 0
        %543 = vmatpush1.bf16.xpose.msra.mxu0 0
        %544 = vmatprep.subr.bf16.mxu0 0
        %545 = vmatpush1.bf16.xpose.msra.mxu0 0
        %546 = vmatprep.subr.bf16.mxu0 0
        %547 = vmatpush1.bf16.xpose.msra.mxu0 0
        %548 = vmatprep.subr.bf16.mxu0 0
        %549 = vmatpush1.bf16.xpose.msra.mxu0 0
        %550 = vmatprep.subr.bf16.mxu0 0
        %551 = vmatpush1.bf16.xpose.msra.mxu0 0
        %552 = vmatprep.subr.bf16.mxu0 0
        %553 = vmatpush1.bf16.xpose.msra.mxu0 0
        %554 = vmatprep.subr.bf16.mxu0 0
        %555 = vmatpush1.bf16.xpose.msra.mxu0 0
        %556 = vmatprep.subr.bf16.mxu0 0
        %557 = vmatpush1.bf16.xpose.msra.mxu0 0
        %558 = vmatprep.mubr.bf16.mxu0 0
        %559 = vmatmul.mubr.bf16.gmra.mrb[0].mxu0 %v521
        %v560 = vpop.f32.mrb[0].mxu0
        %v561 = vadd.f32 0.0, %v560
        %v562 = vpop.f32.mrb[0].mxu0
        %v563 = vpop.f32.mrb[0].mxu0
        %v564 = vpop.f32.mrb[0].mxu0
        %565 = vdwg.mxu0
        %v566 = vsel %vm281, %v561, -inf
        %567 = vmax.xlane.f32.xlu0 %v566
        %v568 = vpop.xlane.xlu0 %567
        %v569 = vsub.f32 %v561, %v568
        %v570 = vmul.f32 %v569, 1.442695
        %v571 = vpow.pop %v570
        %v572 = vsel %vm281, %v571, 0.0
        %573 = vadd.xlane.f32.xlu0 %v572
        %v574 = vpop.xlane.xlu0 %573
        %v575 = vrcp.pop %v574
        %v576 = vmul.f32 %v571, %v575
        %v577 = vpack.c.bf16 %v576, %v576
        %578 = vrot.lane.b32.xlu0 %v458, 112
        %v579 = vpop.permute.xlu0 %578
        %v581 = vsel %vm281, %v577, 0
        %v584 = vsel %vm343, %v579, 0
        %586 = vmatprep.subr.bf16.mxu0 0
        %587 = vmatpush1.bf16.msra.mxu0 %v584
        %588 = vmatprep.subr.bf16.mxu0 0
        %589 = vmatpush1.bf16.msra.mxu0 0
        %590 = vmatprep.subr.bf16.mxu0 0
        %591 = vmatpush1.bf16.msra.mxu0 0
        %592 = vmatprep.subr.bf16.mxu0 0
        %593 = vmatpush1.bf16.msra.mxu0 0
        %594 = vmatprep.subr.bf16.mxu0 0
        %595 = vmatpush1.bf16.msra.mxu0 0
        %596 = vmatprep.subr.bf16.mxu0 0
        %597 = vmatpush1.bf16.msra.mxu0 0
        %598 = vmatprep.subr.bf16.mxu0 0
        %599 = vmatpush1.bf16.msra.mxu0 0
        %600 = vmatprep.subr.bf16.mxu0 0
        %601 = vmatpush1.bf16.msra.mxu0 0
        %602 = vmatprep.subr.bf16.mxu0 0
        %603 = vmatpush1.bf16.msra.mxu0 0
        %604 = vmatprep.subr.bf16.mxu0 0
        %605 = vmatpush1.bf16.msra.mxu0 0
        %606 = vmatprep.subr.bf16.mxu0 0
        %607 = vmatpush1.bf16.msra.mxu0 0
        %608 = vmatprep.subr.bf16.mxu0 0
        %609 = vmatpush1.bf16.msra.mxu0 0
        %610 = vmatprep.subr.bf16.mxu0 0
        %611 = vmatpush1.bf16.msra.mxu0 0
        %612 = vmatprep.subr.bf16.mxu0 0
        %613 = vmatpush1.bf16.msra.mxu0 0
        %614 = vmatprep.subr.bf16.mxu0 0
        %615 = vmatpush1.bf16.msra.mxu0 0
        %616 = vmatprep.subr.bf16.mxu0 0
        %617 = vmatpush1.bf16.msra.mxu0 0
        %618 = vmatprep.mubr.bf16.mxu0 0
        %619 = vmatmul.mubr.bf16.gmra.mrb[0].mxu0 %v581
        %v620 = vpop.f32.mrb[0].mxu0
        %v621 = vadd.f32 0.0, %v620
        %v622 = vpop.f32.mrb[0].mxu0
        %v623 = vpop.f32.mrb[0].mxu0
        %v624 = vpop.f32.mrb[0].mxu0
        %625 = vdwg.mxu0
        %v626 = vpack.c.bf16 %v621, %v621
        %v628 = vunpack.c.l.b16 %v626
        %v629 = vpack.c.b16 %v628, %v628
        %630 = vrot.lane.b32.xlu0 %v629, 16
        %v631 = vpop.permute.xlu0 %630
        %vm633 = vcmask 191616
        %634 = vst.msk [vmem:[%s273] sm:$0xf] %vm633, %v631
        %635 = vrot.lane.b32.xlu0 %v278, 104
        %v636 = vpop.permute.xlu0 %635
        %637 = vrot.lane.b32.xlu0 %v395, 104
        %v638 = vpop.permute.xlu0 %637
        %v640 = vsel %vm281, %v636, 0
        %v643 = vsel %vm281, %v638, 0
        %645 = vmatprep.subr.bf16.mxu0 0
        %646 = vmatpush1.bf16.xpose.msra.mxu0 %v643
        %647 = vmatprep.subr.bf16.mxu0 0
        %648 = vmatpush1.bf16.xpose.msra.mxu0 0
        %649 = vmatprep.subr.bf16.mxu0 0
        %650 = vmatpush1.bf16.xpose.msra.mxu0 0
        %651 = vmatprep.subr.bf16.mxu0 0
        %652 = vmatpush1.bf16.xpose.msra.mxu0 0
        %653 = vmatprep.subr.bf16.mxu0 0
        %654 = vmatpush1.bf16.xpose.msra.mxu0 0
        %655 = vmatprep.subr.bf16.mxu0 0
        %656 = vmatpush1.bf16.xpose.msra.mxu0 0
        %657 = vmatprep.subr.bf16.mxu0 0
        %658 = vmatpush1.bf16.xpose.msra.mxu0 0
        %659 = vmatprep.subr.bf16.mxu0 0
        %660 = vmatpush1.bf16.xpose.msra.mxu0 0
        %661 = vmatprep.subr.bf16.mxu0 0
        %662 = vmatpush1.bf16.xpose.msra.mxu0 0
        %663 = vmatprep.subr.bf16.mxu0 0
        %664 = vmatpush1.bf16.xpose.msra.mxu0 0
        %665 = vmatprep.subr.bf16.mxu0 0
        %666 = vmatpush1.bf16.xpose.msra.mxu0 0
        %667 = vmatprep.subr.bf16.mxu0 0
        %668 = vmatpush1.bf16.xpose.msra.mxu0 0
        %669 = vmatprep.subr.bf16.mxu0 0
        %670 = vmatpush1.bf16.xpose.msra.mxu0 0
        %671 = vmatprep.subr.bf16.mxu0 0
        %672 = vmatpush1.bf16.xpose.msra.mxu0 0
        %673 = vmatprep.subr.bf16.mxu0 0
        %674 = vmatpush1.bf16.xpose.msra.mxu0 0
        %675 = vmatprep.subr.bf16.mxu0 0
        %676 = vmatpush1.bf16.xpose.msra.mxu0 0
        %677 = vmatprep.mubr.bf16.mxu0 0
        %678 = vmatmul.mubr.bf16.gmra.mrb[0].mxu0 %v640
        %v679 = vpop.f32.mrb[0].mxu0
        %v680 = vadd.f32 0.0, %v679
        %v681 = vpop.f32.mrb[0].mxu0
        %v682 = vpop.f32.mrb[0].mxu0
        %v683 = vpop.f32.mrb[0].mxu0
        %684 = vdwg.mxu0
        %v685 = vsel %vm281, %v680, -inf
        %686 = vmax.xlane.f32.xlu0 %v685
        %v687 = vpop.xlane.xlu0 %686
        %v688 = vsub.f32 %v680, %v687
        %v689 = vmul.f32 %v688, 1.442695
        %v690 = vpow.pop %v689
        %v691 = vsel %vm281, %v690, 0.0
        %692 = vadd.xlane.f32.xlu0 %v691
        %v693 = vpop.xlane.xlu0 %692
        %v694 = vrcp.pop %v693
        %v695 = vmul.f32 %v690, %v694
        %v696 = vpack.c.bf16 %v695, %v695
        %697 = vrot.lane.b32.xlu0 %v458, 104
        %v698 = vpop.permute.xlu0 %697
        %v700 = vsel %vm281, %v696, 0
        %v703 = vsel %vm343, %v698, 0
        %705 = vmatprep.subr.bf16.mxu0 0
        %706 = vmatpush1.bf16.msra.mxu0 %v703
        %707 = vmatprep.subr.bf16.mxu0 0
        %708 = vmatpush1.bf16.msra.mxu0 0
        %709 = vmatprep.subr.bf16.mxu0 0
        %710 = vmatpush1.bf16.msra.mxu0 0
        %711 = vmatprep.subr.bf16.mxu0 0
        %712 = vmatpush1.bf16.msra.mxu0 0
        %713 = vmatprep.subr.bf16.mxu0 0
        %714 = vmatpush1.bf16.msra.mxu0 0
        %715 = vmatprep.subr.bf16.mxu0 0
        %716 = vmatpush1.bf16.msra.mxu0 0
        %717 = vmatprep.subr.bf16.mxu0 0
        %718 = vmatpush1.bf16.msra.mxu0 0
        %719 = vmatprep.subr.bf16.mxu0 0
        %720 = vmatpush1.bf16.msra.mxu0 0
        %721 = vmatprep.subr.bf16.mxu0 0
        %722 = vmatpush1.bf16.msra.mxu0 0
        %723 = vmatprep.subr.bf16.mxu0 0
        %724 = vmatpush1.bf16.msra.mxu0 0
        %725 = vmatprep.subr.bf16.mxu0 0
        %726 = vmatpush1.bf16.msra.mxu0 0
        %727 = vmatprep.subr.bf16.mxu0 0
        %728 = vmatpush1.bf16.msra.mxu0 0
        %729 = vmatprep.subr.bf16.mxu0 0
        %730 = vmatpush1.bf16.msra.mxu0 0
        %731 = vmatprep.subr.bf16.mxu0 0
        %732 = vmatpush1.bf16.msra.mxu0 0
        %733 = vmatprep.subr.bf16.mxu0 0
        %734 = vmatpush1.bf16.msra.mxu0 0
        %735 = vmatprep.subr.bf16.mxu0 0
        %736 = vmatpush1.bf16.msra.mxu0 0
        %737 = vmatprep.mubr.bf16.mxu0 0
        %738 = vmatmul.mubr.bf16.gmra.mrb[0].mxu0 %v700
        %v739 = vpop.f32.mrb[0].mxu0
        %v740 = vadd.f32 0.0, %v739
        %v741 = vpop.f32.mrb[0].mxu0
        %v742 = vpop.f32.mrb[0].mxu0
        %v743 = vpop.f32.mrb[0].mxu0
        %744 = vdwg.mxu0
        %v745 = vpack.c.bf16 %v740, %v740
        %v747 = vunpack.c.l.b16 %v745
        %v748 = vpack.c.b16 %v747, %v747
        %749 = vrot.lane.b32.xlu0 %v748, 24
        %v750 = vpop.permute.xlu0 %749
        %vm752 = vcmask 257216
        %753 = vst.msk [vmem:[%s273] sm:$0xf] %vm752, %v750
        %s754 = sand.u32 %s125, 1
        %s755 = scalar_lea.sflag [#allocation4], %s754
        %s756 = sand.u32 %s125, 1
        %s757 = smul.addr %s756, 4
        %s758 = scalar_lea.vmem [#allocation8], %s757
        // Predicated region
        $region45: #{bert_forward.27} parent=31 // pred_check
          %p759 = pneg %p135
        $region46: #{bert_forward.27} parent=31 // pred_check_branch
          %761 = sbr.rel (%p759) target = $region48
        $region47: #{bert_forward.27} parent=31 // pred_region
          %s763 = ssub.s32 64, 64
          %764 = vsyncadd %s755, %s763
          %s765 = sadd.s32 %s28, %s27
          %s766 = smul.addr %s765, 64
          %s767 = scalar_lea.hbm %s3, %s766
          %s769 = sshll.u32 %s758, 4
          %s770 = int_to_ptr.vmem [resolvable:$true] %s769
          %772 = dma.vmem_to_hbm [thread:$0]  %s770, 64, %s767, %s755
        $region48: #{bert_forward.27} parent=31 // pred_fallthru
          _
      $region32: #{bert_forward.27} parent=5 // pred_fallthru
        _
      %p773 = scmp.le.s32.totalorder 2, %s18
      // Predicated region
      $region49: #{bert_forward.27} parent=5 // pred_check
        %p774 = pneg %p773
      $region50: #{bert_forward.27} parent=5 // pred_check_branch
        %776 = sbr.rel (%p774) target = $region52
      $region51: #{bert_forward.27} parent=5 // pred_region
        %s777 = ssub.s32 %s18, 2
        // Predicated region
        $region53: #{bert_forward.27} parent=51 // pred_check
          %p778 = pneg %p141
        $region54: #{bert_forward.27} parent=51 // pred_check_branch
          %780 = sbr.rel (%p778) target = $region56
        $region55: #{bert_forward.27} parent=51 // pred_region
          %s781 = sand.u32 %s126, 1
          %s782 = scalar_lea.sflag [#allocation4], %s781
          %s783 = sand.u32 %s126, 1
          %s784 = smul.addr %s783, 4
          %s785 = scalar_lea.vmem [#allocation8], %s784
          %786 = dma.done %s782, 64
        $region56: #{bert_forward.27} parent=51 // pred_fallthru
          _
      $region52: #{bert_forward.27} parent=5 // pred_fallthru
        _
    $region6: #{bert_forward.27} parent=1 // loop_footer
      %s22 = sadd.s32 1, %s18
    $region7: #{bert_forward.27} parent=1 // loop_footer_branch
      %17 = sbr.rel target = $region3
    $region8: #{bert_forward.27} parent=1 // loop_exit
      _
    %787 = vsyncpa [#allocation3], 1
    %s788 = scalar_lea.sflag [#allocation3], 1
    %789 = vsyncpa %s788, 1
    %790 = vsyncpa [#allocation6], 1
    %s791 = scalar_lea.sflag [#allocation6], 1
    %792 = vsyncpa %s791, 1
    %793 = vsyncpa [#allocation4], 1
    %s794 = scalar_lea.sflag [#allocation4], 1
    %795 = vsyncpa %s794, 1

// kernel: bert_forward.26
$region0: #{bert_forward.26}
  #allocation0 [shape = 'u32[]', space=smem, size = 0x4, offset = 0x4, fixed_abs, tag = 'smem constant byte address 0x4 - core index']
  #allocation1 [shape = 'u32[144,128]{1,0:T(1,128)}', space=vmem, size = 0x12000, scoped, tag = 'internal scratch']
  #allocation2 [shape = 'f32[16,32]{1,0:T(8,128)}', space=vmem, size = 0x2000, scoped, tag = 'scratch operand']
  #allocation3 [shape = 'f32[16,32]{1,0:T(8,128)}', space=vmem, size = 0x2000, scoped, tag = 'scratch operand']
  #allocation4 [shape = 'f32[16,32]{1,0:T(8,128)}', space=vmem, size = 0x2000, scoped, tag = 'scratch operand']
  %s0 = inlined_call_operand.hbm [shape: bf16[16,32], index: 0, kind: input, shape index: {}]
  %s1 = inlined_call_operand.hbm [shape: bf16[32,32], index: 1, kind: input, shape index: {}]
  %s2 = inlined_call_operand.hbm [shape: bf16[32,32], index: 2, kind: input, shape index: {}]
  %s3 = inlined_call_operand.hbm [shape: bf16[32,32], index: 3, kind: input, shape index: {}]
  %s4 = inlined_call_operand.hbm [shape: f32[1,32], index: 4, kind: input, shape index: {}]
  %s5 = inlined_call_operand.hbm [shape: f32[1,32], index: 5, kind: input, shape index: {}]
  %s6 = inlined_call_operand.hbm [shape: f32[1,32], index: 6, kind: input, shape index: {}]
  %s7 = inlined_call_operand.hbm [shape: bf16[16,32], index: 7, kind: output, shape index: {0}]
  %s8 = inlined_call_operand.hbm [shape: bf16[16,32], index: 8, kind: output, shape index: {1}]
  %s9 = inlined_call_operand.hbm [shape: bf16[16,32], index: 9, kind: output, shape index: {2}]
  %10 = xla_tuple %s7, %s8, %s9
  %s11 = sld [smem:[#allocation0]]
  $region90: #{bert_forward.26} parent=0
    _
  %s13 = ssub.s32 1, %s11
  %s14 = scalar_select 0, %s13, %s11
  $region1: #{bert_forward.26} parent=0
    #allocation5 [shape = 'u8[4096]{0}', space=vmem, size = 0x1000, scoped, tag = 'input window, operand 0, single buffered']
    #allocation6 [shape = 's32[1]{0}', space=sflag, size = 0x4, scoped, tag = 'scoped memory for bert_forward.26']
    #allocation7 [shape = 's32[1]{0}', space=sflag, size = 0x4, scoped, tag = 'scoped memory for bert_forward.26']
    #allocation8 [shape = 'u8[8192]{0}', space=vmem, size = 0x2000, scoped, tag = 'input window, operand 1, single buffered']
    #allocation9 [shape = 's32[1]{0}', space=sflag, size = 0x4, scoped, tag = 'scoped memory for bert_forward.26']
    #allocation10 [shape = 'u8[8192]{0}', space=vmem, size = 0x2000, scoped, tag = 'input window, operand 2, single buffered']
    #allocation11 [shape = 'u8[8192]{0}', space=vmem, size = 0x2000, scoped, tag = 'input window, operand 3, single buffered']
    #allocation12 [shape = 's32[1]{0}', space=sflag, size = 0x4, scoped, tag = 'scoped memory for bert_forward.26']
    #allocation13 [shape = 'u8[512]{0}', space=vmem, size = 0x400, scoped, tag = 'input window, operand 4, single buffered']
    #allocation14 [shape = 'u8[512]{0}', space=vmem, size = 0x400, scoped, tag = 'input window, operand 5, single buffered']
    #allocation15 [shape = 's32[1]{0}', space=sflag, size = 0x4, scoped, tag = 'scoped memory for bert_forward.26']
    #allocation16 [shape = 'u8[512]{0}', space=vmem, size = 0x400, scoped, tag = 'input window, operand 6, single buffered']
    #allocation17 [shape = 'u8[4096]{0}', space=vmem, size = 0x1000, scoped, tag = 'output window, operand 0, single buffered']
    #allocation18 [shape = 'u8[4096]{0}', space=vmem, size = 0x1000, scoped, tag = 'output window, operand 1, single buffered']
    #allocation19 [shape = 's32[1]{0}', space=sflag, size = 0x4, scoped, tag = 'scoped memory for bert_forward.26']
    #allocation20 [shape = 'u8[4096]{0}', space=vmem, size = 0x1000, scoped, tag = 'output window, operand 2, single buffered']
    %15 = vsyncpa [#allocation6], 0
    %16 = vsyncpa [#allocation9], 0
    %17 = vsyncpa [#allocation12], 0
    %18 = vsyncpa [#allocation15], 0
    %19 = vsyncpa [#allocation7], 0
    %20 = vsyncpa [#allocation19], 0
    // Predicated region
    $region2: #{bert_forward.26} parent=1 // pred_check
      _
    $region3: #{bert_forward.26} parent=1 // pred_check_branch
      %22 = sbr.rel (0) target = $region5
    $region4: #{bert_forward.26} parent=1 // pred_region
      %s24 = ssub.s32 128, 128
      %25 = vsyncadd [#allocation6], %s24
      %s26 = sshll.u32 [#allocation5], 4
      %s27 = int_to_ptr.vmem [resolvable:$true] %s26
      %32 = dma.hbm_to_vmem [thread:$0]  %s0, 128, %s27, [#allocation6], 64, 64, 4
    $region5: #{bert_forward.26} parent=1 // pred_fallthru
      _
    // Predicated region
    $region6: #{bert_forward.26} parent=1 // pred_check
      _
    $region7: #{bert_forward.26} parent=1 // pred_check_branch
      %34 = sbr.rel (0) target = $region9
    $region8: #{bert_forward.26} parent=1 // pred_region
      %s36 = ssub.s32 256, 256
      %37 = vsyncadd [#allocation9], %s36
      %s38 = sshll.u32 [#allocation8], 4
      %s39 = int_to_ptr.vmem [resolvable:$true] %s38
      %44 = dma.hbm_to_vmem [thread:$0]  %s1, 256, %s39, [#allocation9], 64, 64, 4
    $region9: #{bert_forward.26} parent=1 // pred_fallthru
      _
    // Predicated region
    $region10: #{bert_forward.26} parent=1 // pred_check
      _
    $region11: #{bert_forward.26} parent=1 // pred_check_branch
      %46 = sbr.rel (0) target = $region13
    $region12: #{bert_forward.26} parent=1 // pred_region
      %s48 = ssub.s32 256, 256
      %49 = vsyncadd [#allocation9], %s48
      %s50 = sshll.u32 [#allocation10], 4
      %s51 = int_to_ptr.vmem [resolvable:$true] %s50
      %56 = dma.hbm_to_vmem [thread:$0]  %s2, 256, %s51, [#allocation9], 64, 64, 4
    $region13: #{bert_forward.26} parent=1 // pred_fallthru
      _
    // Predicated region
    $region14: #{bert_forward.26} parent=1 // pred_check
      _
    $region15: #{bert_forward.26} parent=1 // pred_check_branch
      %58 = sbr.rel (0) target = $region17
    $region16: #{bert_forward.26} parent=1 // pred_region
      %s60 = ssub.s32 256, 256
      %61 = vsyncadd [#allocation12], %s60
      %s62 = sshll.u32 [#allocation11], 4
      %s63 = int_to_ptr.vmem [resolvable:$true] %s62
      %68 = dma.hbm_to_vmem [thread:$0]  %s3, 256, %s63, [#allocation12], 64, 64, 4
    $region17: #{bert_forward.26} parent=1 // pred_fallthru
      _
    // Predicated region
    $region18: #{bert_forward.26} parent=1 // pred_check
      _
    $region19: #{bert_forward.26} parent=1 // pred_check_branch
      %70 = sbr.rel (0) target = $region21
    $region20: #{bert_forward.26} parent=1 // pred_region
      %s72 = ssub.s32 16, 16
      %73 = vsyncadd [#allocation12], %s72
      %s75 = sshll.u32 [#allocation13], 4
      %s76 = int_to_ptr.vmem [resolvable:$true] %s75
      %78 = dma.hbm_to_vmem [thread:$0]  %s4, 16, %s76, [#allocation12]
    $region21: #{bert_forward.26} parent=1 // pred_fallthru
      _
    // Predicated region
    $region22: #{bert_forward.26} parent=1 // pred_check
      _
    $region23: #{bert_forward.26} parent=1 // pred_check_branch
      %80 = sbr.rel (0) target = $region25
    $region24: #{bert_forward.26} parent=1 // pred_region
      %s82 = ssub.s32 16, 16
      %83 = vsyncadd [#allocation15], %s82
      %s85 = sshll.u32 [#allocation14], 4
      %s86 = int_to_ptr.vmem [resolvable:$true] %s85
      %88 = dma.hbm_to_vmem [thread:$0]  %s5, 16, %s86, [#allocation15]
    $region25: #{bert_forward.26} parent=1 // pred_fallthru
      _
    // Predicated region
    $region26: #{bert_forward.26} parent=1 // pred_check
      _
    $region27: #{bert_forward.26} parent=1 // pred_check_branch
      %90 = sbr.rel (0) target = $region29
    $region28: #{bert_forward.26} parent=1 // pred_region
      %s92 = ssub.s32 16, 16
      %93 = vsyncadd [#allocation15], %s92
      %s95 = sshll.u32 [#allocation16], 4
      %s96 = int_to_ptr.vmem [resolvable:$true] %s95
      %98 = dma.hbm_to_vmem [thread:$0]  %s6, 16, %s96, [#allocation15]
    $region29: #{bert_forward.26} parent=1 // pred_fallthru
      _
    // Predicated region
    $region30: #{bert_forward.26} parent=1 // pred_check
      _
    $region31: #{bert_forward.26} parent=1 // pred_check_branch
      %100 = sbr.rel (0) target = $region33
    $region32: #{bert_forward.26} parent=1 // pred_region
      %101 = dma.done [#allocation6], 128
    $region33: #{bert_forward.26} parent=1 // pred_fallthru
      _
    // Predicated region
    $region34: #{bert_forward.26} parent=1 // pred_check
      _
    $region35: #{bert_forward.26} parent=1 // pred_check_branch
      %103 = sbr.rel (0) target = $region37
    $region36: #{bert_forward.26} parent=1 // pred_region
      %104 = dma.done [#allocation9], 256
    $region37: #{bert_forward.26} parent=1 // pred_fallthru
      _
    // Predicated region
    $region38: #{bert_forward.26} parent=1 // pred_check
      _
    $region39: #{bert_forward.26} parent=1 // pred_check_branch
      %106 = sbr.rel (0) target = $region41
    $region40: #{bert_forward.26} parent=1 // pred_region
      %107 = dma.done [#allocation9], 256
    $region41: #{bert_forward.26} parent=1 // pred_fallthru
      _
    // Predicated region
    $region42: #{bert_forward.26} parent=1 // pred_check
      _
    $region43: #{bert_forward.26} parent=1 // pred_check_branch
      %109 = sbr.rel (0) target = $region45
    $region44: #{bert_forward.26} parent=1 // pred_region
      %110 = dma.done [#allocation12], 256
    $region45: #{bert_forward.26} parent=1 // pred_fallthru
      _
    // Predicated region
    $region46: #{bert_forward.26} parent=1 // pred_check
      _
    $region47: #{bert_forward.26} parent=1 // pred_check_branch
      %112 = sbr.rel (0) target = $region49
    $region48: #{bert_forward.26} parent=1 // pred_region
      %113 = dma.done [#allocation12], 16
    $region49: #{bert_forward.26} parent=1 // pred_fallthru
      _
    // Predicated region
    $region50: #{bert_forward.26} parent=1 // pred_check
      _
    $region51: #{bert_forward.26} parent=1 // pred_check_branch
      %115 = sbr.rel (0) target = $region53
    $region52: #{bert_forward.26} parent=1 // pred_region
      %116 = dma.done [#allocation15], 16
    $region53: #{bert_forward.26} parent=1 // pred_fallthru
      _
    // Predicated region
    $region54: #{bert_forward.26} parent=1 // pred_check
      _
    $region55: #{bert_forward.26} parent=1 // pred_check_branch
      %118 = sbr.rel (0) target = $region57
    $region56: #{bert_forward.26} parent=1 // pred_region
      %119 = dma.done [#allocation15], 16
    $region57: #{bert_forward.26} parent=1 // pred_fallthru
      _
    %p121 = scmp.eq.s32.totalorder 0, 0
    // Predicated region
    $region58: #{bert_forward.26} parent=1 // pred_check
      %p122 = pneg %p121
    $region59: #{bert_forward.26} parent=1 // pred_check_branch
      %124 = sbr.rel (%p122) target = $region61
    $region60: #{bert_forward.26} parent=1 // pred_region
      %vm125 = vcmask 261120
      %126 = vst.msk [vmem:[#allocation2] sm:$0xff] %vm125, 0.0
      %127 = vst.msk [vmem:[#allocation2 + $0x8] sm:$0xff] %vm125, 0.0
      %128 = vst.msk [vmem:[#allocation3] sm:$0xff] %vm125, 0.0
      %129 = vst.msk [vmem:[#allocation3 + $0x8] sm:$0xff] %vm125, 0.0
      %130 = vst.msk [vmem:[#allocation4] sm:$0xff] %vm125, 0.0
      %131 = vst.msk [vmem:[#allocation4 + $0x8] sm:$0xff] %vm125, 0.0
    $region61: #{bert_forward.26} parent=1 // pred_fallthru
      _
    %v132 = vld [vmem:[#allocation5] sm:$0xf]
    %v133 = vld [vmem:[#allocation5 + $0x4] sm:$0xf]
    %v134 = vld [vmem:[#allocation2] sm:$0xff]
    %v135 = vld [vmem:[#allocation2 + $0x8] sm:$0xff]
    %v136 = vld [vmem:[#allocation8] sm:$0xf]
    %v137 = vld [vmem:[#allocation8 + $0x4] sm:$0xf]
    %v138 = vld [vmem:[#allocation8 + $0x8] sm:$0xf]
    %v139 = vld [vmem:[#allocation8 + $0xc] sm:$0xf]
    %v142 = vunpack.c.l.b16 %v132
    %v143 = vunpack.c.l.b16 %v133
    %v144 = vpack.c.b16 %v143, %v142
    %v149 = vunpack.c.l.b16 %v136
    %v150 = vunpack.c.l.b16 %v137
    %v151 = vunpack.c.l.b16 %v138
    %v152 = vunpack.c.l.b16 %v139
    %v153 = vpack.c.b16 %v150, %v149
    %v154 = vpack.c.b16 %v152, %v151
    %vm157 = vcmask 261120
    %v159 = vsel %vm157, %v144, 0
    %161 = vmatprep.subr.bf16.mxu0 0
    %162 = vmatpush1.bf16.msra.mxu0 %v153
    %163 = vmatprep.subr.bf16.mxu0 0
    %164 = vmatpush1.bf16.msra.mxu0 %v154
    %165 = vmatprep.subr.bf16.mxu0 0
    %166 = vmatpush1.bf16.msra.mxu0 0
    %167 = vmatprep.subr.bf16.mxu0 0
    %168 = vmatpush1.bf16.msra.mxu0 0
    %169 = vmatprep.subr.bf16.mxu0 0
    %170 = vmatpush1.bf16.msra.mxu0 0
    %171 = vmatprep.subr.bf16.mxu0 0
    %172 = vmatpush1.bf16.msra.mxu0 0
    %173 = vmatprep.subr.bf16.mxu0 0
    %174 = vmatpush1.bf16.msra.mxu0 0
    %175 = vmatprep.subr.bf16.mxu0 0
    %176 = vmatpush1.bf16.msra.mxu0 0
    %177 = vmatprep.subr.bf16.mxu0 0
    %178 = vmatpush1.bf16.msra.mxu0 0
    %179 = vmatprep.subr.bf16.mxu0 0
    %180 = vmatpush1.bf16.msra.mxu0 0
    %181 = vmatprep.subr.bf16.mxu0 0
    %182 = vmatpush1.bf16.msra.mxu0 0
    %183 = vmatprep.subr.bf16.mxu0 0
    %184 = vmatpush1.bf16.msra.mxu0 0
    %185 = vmatprep.subr.bf16.mxu0 0
    %186 = vmatpush1.bf16.msra.mxu0 0
    %187 = vmatprep.subr.bf16.mxu0 0
    %188 = vmatpush1.bf16.msra.mxu0 0
    %189 = vmatprep.subr.bf16.mxu0 0
    %190 = vmatpush1.bf16.msra.mxu0 0
    %191 = vmatprep.subr.bf16.mxu0 0
    %192 = vmatpush1.bf16.msra.mxu0 0
    %193 = vmatprep.mubr.bf16.mxu0 0
    %194 = vmatmul.mubr.bf16.gmra.mrb[0].mxu0 %v159
    %v195 = vpop.f32.mrb[0].mxu0
    %v196 = vadd.f32 0.0, %v195
    %v197 = vpop.f32.mrb[0].mxu0
    %v198 = vpop.f32.mrb[0].mxu0
    %v199 = vadd.f32 0.0, %v198
    %v200 = vpop.f32.mrb[0].mxu0
    %201 = vdwg.mxu0
    %v202 = vadd.f32 %v134, %v196
    %v203 = vadd.f32 %v135, %v199
    %204 = vst.msk [vmem:[#allocation2] sm:$0xff] %vm157, %v202
    %205 = vst.msk [vmem:[#allocation2 + $0x8] sm:$0xff] %vm157, %v203
    %v206 = vld [vmem:[#allocation3] sm:$0xff]
    %v207 = vld [vmem:[#allocation3 + $0x8] sm:$0xff]
    %v208 = vld [vmem:[#allocation10] sm:$0xf]
    %v209 = vld [vmem:[#allocation10 + $0x4] sm:$0xf]
    %v210 = vld [vmem:[#allocation10 + $0x8] sm:$0xf]
    %v211 = vld [vmem:[#allocation10 + $0xc] sm:$0xf]
    %v216 = vunpack.c.l.b16 %v208
    %v217 = vunpack.c.l.b16 %v209
    %v218 = vunpack.c.l.b16 %v210
    %v219 = vunpack.c.l.b16 %v211
    %v220 = vpack.c.b16 %v217, %v216
    %v221 = vpack.c.b16 %v219, %v218
    %224 = vmatprep.subr.bf16.mxu0 0
    %225 = vmatpush1.bf16.msra.mxu0 %v220
    %226 = vmatprep.subr.bf16.mxu0 0
    %227 = vmatpush1.bf16.msra.mxu0 %v221
    %228 = vmatprep.subr.bf16.mxu0 0
    %229 = vmatpush1.bf16.msra.mxu0 0
    %230 = vmatprep.subr.bf16.mxu0 0
    %231 = vmatpush1.bf16.msra.mxu0 0
    %232 = vmatprep.subr.bf16.mxu0 0
    %233 = vmatpush1.bf16.msra.mxu0 0
    %234 = vmatprep.subr.bf16.mxu0 0
    %235 = vmatpush1.bf16.msra.mxu0 0
    %236 = vmatprep.subr.bf16.mxu0 0
    %237 = vmatpush1.bf16.msra.mxu0 0
    %238 = vmatprep.subr.bf16.mxu0 0
    %239 = vmatpush1.bf16.msra.mxu0 0
    %240 = vmatprep.subr.bf16.mxu0 0
    %241 = vmatpush1.bf16.msra.mxu0 0
    %242 = vmatprep.subr.bf16.mxu0 0
    %243 = vmatpush1.bf16.msra.mxu0 0
    %244 = vmatprep.subr.bf16.mxu0 0
    %245 = vmatpush1.bf16.msra.mxu0 0
    %246 = vmatprep.subr.bf16.mxu0 0
    %247 = vmatpush1.bf16.msra.mxu0 0
    %248 = vmatprep.subr.bf16.mxu0 0
    %249 = vmatpush1.bf16.msra.mxu0 0
    %250 = vmatprep.subr.bf16.mxu0 0
    %251 = vmatpush1.bf16.msra.mxu0 0
    %252 = vmatprep.subr.bf16.mxu0 0
    %253 = vmatpush1.bf16.msra.mxu0 0
    %254 = vmatprep.subr.bf16.mxu0 0
    %255 = vmatpush1.bf16.msra.mxu0 0
    %256 = vmatprep.mubr.bf16.mxu0 0
    %257 = vmatmul.mubr.bf16.gmra.mrb[0].mxu0 %v159
    %v258 = vpop.f32.mrb[0].mxu0
    %v259 = vadd.f32 0.0, %v258
    %v260 = vpop.f32.mrb[0].mxu0
    %v261 = vpop.f32.mrb[0].mxu0
    %v262 = vadd.f32 0.0, %v261
    %v263 = vpop.f32.mrb[0].mxu0
    %264 = vdwg.mxu0
    %v265 = vadd.f32 %v206, %v259
    %v266 = vadd.f32 %v207, %v262
    %267 = vst.msk [vmem:[#allocation3] sm:$0xff] %vm157, %v265
    %268 = vst.msk [vmem:[#allocation3 + $0x8] sm:$0xff] %vm157, %v266
    %v269 = vld [vmem:[#allocation4] sm:$0xff]
    %v270 = vld [vmem:[#allocation4 + $0x8] sm:$0xff]
    %v271 = vld [vmem:[#allocation11] sm:$0xf]
    %v272 = vld [vmem:[#allocation11 + $0x4] sm:$0xf]
    %v273 = vld [vmem:[#allocation11 + $0x8] sm:$0xf]
    %v274 = vld [vmem:[#allocation11 + $0xc] sm:$0xf]
    %v279 = vunpack.c.l.b16 %v271
    %v280 = vunpack.c.l.b16 %v272
    %v281 = vunpack.c.l.b16 %v273
    %v282 = vunpack.c.l.b16 %v274
    %v283 = vpack.c.b16 %v280, %v279
    %v284 = vpack.c.b16 %v282, %v281
    %287 = vmatprep.subr.bf16.mxu0 0
    %288 = vmatpush1.bf16.msra.mxu0 %v283
    %289 = vmatprep.subr.bf16.mxu0 0
    %290 = vmatpush1.bf16.msra.mxu0 %v284
    %291 = vmatprep.subr.bf16.mxu0 0
    %292 = vmatpush1.bf16.msra.mxu0 0
    %293 = vmatprep.subr.bf16.mxu0 0
    %294 = vmatpush1.bf16.msra.mxu0 0
    %295 = vmatprep.subr.bf16.mxu0 0
    %296 = vmatpush1.bf16.msra.mxu0 0
    %297 = vmatprep.subr.bf16.mxu0 0
    %298 = vmatpush1.bf16.msra.mxu0 0
    %299 = vmatprep.subr.bf16.mxu0 0
    %300 = vmatpush1.bf16.msra.mxu0 0
    %301 = vmatprep.subr.bf16.mxu0 0
    %302 = vmatpush1.bf16.msra.mxu0 0
    %303 = vmatprep.subr.bf16.mxu0 0
    %304 = vmatpush1.bf16.msra.mxu0 0
    %305 = vmatprep.subr.bf16.mxu0 0
    %306 = vmatpush1.bf16.msra.mxu0 0
    %307 = vmatprep.subr.bf16.mxu0 0
    %308 = vmatpush1.bf16.msra.mxu0 0
    %309 = vmatprep.subr.bf16.mxu0 0
    %310 = vmatpush1.bf16.msra.mxu0 0
    %311 = vmatprep.subr.bf16.mxu0 0
    %312 = vmatpush1.bf16.msra.mxu0 0
    %313 = vmatprep.subr.bf16.mxu0 0
    %314 = vmatpush1.bf16.msra.mxu0 0
    %315 = vmatprep.subr.bf16.mxu0 0
    %316 = vmatpush1.bf16.msra.mxu0 0
    %317 = vmatprep.subr.bf16.mxu0 0
    %318 = vmatpush1.bf16.msra.mxu0 0
    %319 = vmatprep.mubr.bf16.mxu0 0
    %320 = vmatmul.mubr.bf16.gmra.mrb[0].mxu0 %v159
    %v321 = vpop.f32.mrb[0].mxu0
    %v322 = vadd.f32 0.0, %v321
    %v323 = vpop.f32.mrb[0].mxu0
    %v324 = vpop.f32.mrb[0].mxu0
    %v325 = vadd.f32 0.0, %v324
    %v326 = vpop.f32.mrb[0].mxu0
    %327 = vdwg.mxu0
    %v328 = vadd.f32 %v269, %v322
    %v329 = vadd.f32 %v270, %v325
    %330 = vst.msk [vmem:[#allocation4] sm:$0xff] %vm157, %v328
    %331 = vst.msk [vmem:[#allocation4 + $0x8] sm:$0xff] %vm157, %v329
    // Predicated region
    $region62: #{bert_forward.26} parent=1 // pred_check
      %p332 = pneg %p121
    $region63: #{bert_forward.26} parent=1 // pred_check_branch
      %334 = sbr.rel (%p332) target = $region65
    $region64: #{bert_forward.26} parent=1 // pred_region
      %v335 = vld [vmem:[#allocation2] sm:$0xff]
      %v336 = vld [vmem:[#allocation2 + $0x8] sm:$0xff]
      %v337 = vld [vmem:[#allocation13] sm:$0x1]
      %v339 = vlaneseq
      %v340 = vshrl.u32 %v339, 7
      %v341 = vsub.s32 0, %v340
      %v342 = vrot.slane %v337, %v341
      %v344 = vadd.f32 %v335, %v342
      %v345 = vadd.f32 %v336, %v342
      %v346 = vpack.c.bf16 %v345, %v344
      %v348 = vunpack.c.l.b16 %v346
      %v349 = vunpack.c.h.b16 %v346
      %v350 = vpack.c.b16 %v348, %v348
      %v351 = vpack.c.b16 %v349, %v349
      %vm354 = vcmask 257024
      %355 = vst.msk [vmem:[#allocation17] sm:$0xf] %vm354, %v350
      %356 = vst.msk [vmem:[#allocation17 + $0x4] sm:$0xf] %vm354, %v351
      %v357 = vld [vmem:[#allocation3] sm:$0xff]
      %v358 = vld [vmem:[#allocation3 + $0x8] sm:$0xff]
      %v359 = vld [vmem:[#allocation14] sm:$0x1]
      %v361 = vlaneseq
      %v362 = vshrl.u32 %v361, 7
      %v363 = vsub.s32 0, %v362
      %v364 = vrot.slane %v359, %v363
      %v366 = vadd.f32 %v357, %v364
      %v367 = vadd.f32 %v358, %v364
      %v368 = vpack.c.bf16 %v367, %v366
      %v370 = vunpack.c.l.b16 %v368
      %v371 = vunpack.c.h.b16 %v368
      %v372 = vpack.c.b16 %v370, %v370
      %v373 = vpack.c.b16 %v371, %v371
      %376 = vst.msk [vmem:[#allocation18] sm:$0xf] %vm354, %v372
      %377 = vst.msk [vmem:[#allocation18 + $0x4] sm:$0xf] %vm354, %v373
      %v378 = vld [vmem:[#allocation4] sm:$0xff]
      %v379 = vld [vmem:[#allocation4 + $0x8] sm:$0xff]
      %v380 = vld [vmem:[#allocation16] sm:$0x1]
      %v382 = vlaneseq
      %v383 = vshrl.u32 %v382, 7
      %v384 = vsub.s32 0, %v383
      %v385 = vrot.slane %v380, %v384
      %v387 = vadd.f32 %v378, %v385
      %v388 = vadd.f32 %v379, %v385
      %v389 = vpack.c.bf16 %v388, %v387
      %v391 = vunpack.c.l.b16 %v389
      %v392 = vunpack.c.h.b16 %v389
      %v393 = vpack.c.b16 %v391, %v391
      %v394 = vpack.c.b16 %v392, %v392
      %397 = vst.msk [vmem:[#allocation20] sm:$0xf] %vm354, %v393
      %398 = vst.msk [vmem:[#allocation20 + $0x4] sm:$0xf] %vm354, %v394
    $region65: #{bert_forward.26} parent=1 // pred_fallthru
      _
    // Predicated region
    $region66: #{bert_forward.26} parent=1 // pred_check
      _
    $region67: #{bert_forward.26} parent=1 // pred_check_branch
      %400 = sbr.rel (0) target = $region69
    $region68: #{bert_forward.26} parent=1 // pred_region
      %s402 = ssub.s32 128, 128
      %403 = vsyncadd [#allocation7], %s402
      %s404 = sshll.u32 [#allocation17], 4
      %s405 = int_to_ptr.vmem [resolvable:$true] %s404
      %410 = dma.vmem_to_hbm [thread:$0]  %s405, 128, %s7, [#allocation7], 64, 64, 4
    $region69: #{bert_forward.26} parent=1 // pred_fallthru
      _
    // Predicated region
    $region70: #{bert_forward.26} parent=1 // pred_check
      _
    $region71: #{bert_forward.26} parent=1 // pred_check_branch
      %412 = sbr.rel (0) target = $region73
    $region72: #{bert_forward.26} parent=1 // pred_region
      %s414 = ssub.s32 128, 128
      %415 = vsyncadd [#allocation19], %s414
      %s416 = sshll.u32 [#allocation18], 4
      %s417 = int_to_ptr.vmem [resolvable:$true] %s416
      %422 = dma.vmem_to_hbm [thread:$0]  %s417, 128, %s8, [#allocation19], 64, 64, 4
    $region73: #{bert_forward.26} parent=1 // pred_fallthru
      _
    // Predicated region
    $region74: #{bert_forward.26} parent=1 // pred_check
      _
    $region75: #{bert_forward.26} parent=1 // pred_check_branch
      %424 = sbr.rel (0) target = $region77
    $region76: #{bert_forward.26} parent=1 // pred_region
      %s426 = ssub.s32 128, 128
      %427 = vsyncadd [#allocation19], %s426
      %s428 = sshll.u32 [#allocation20], 4
      %s429 = int_to_ptr.vmem [resolvable:$true] %s428
      %434 = dma.vmem_to_hbm [thread:$0]  %s429, 128, %s9, [#allocation19], 64, 64, 4
    $region77: #{bert_forward.26} parent=1 // pred_fallthru
      _
    // Predicated region
    $region78: #{bert_forward.26} parent=1 // pred_check
      _
    $region79: #{bert_forward.26} parent=1 // pred_check_branch
      %436 = sbr.rel (0) target = $region81
    $region80: #{bert_forward.26} parent=1 // pred_region
      %437 = dma.done [#allocation7], 128
    $region81: #{bert_forward.26} parent=1 // pred_fallthru
      _
    // Predicated region
    $region82: #{bert_forward.26} parent=1 // pred_check
      _
    $region83: #{bert_forward.26} parent=1 // pred_check_branch
      %439 = sbr.rel (0) target = $region85
    $region84: #{bert_forward.26} parent=1 // pred_region
      %440 = dma.done [#allocation19], 128
    $region85: #{bert_forward.26} parent=1 // pred_fallthru
      _
    // Predicated region
    $region86: #{bert_forward.26} parent=1 // pred_check
      _
    $region87: #{bert_forward.26} parent=1 // pred_check_branch
      %442 = sbr.rel (0) target = $region89
    $region88: #{bert_forward.26} parent=1 // pred_region
      %443 = dma.done [#allocation19], 128
    $region89: #{bert_forward.26} parent=1 // pred_fallthru
      _
    %444 = vsyncpa [#allocation6], 1
    %445 = vsyncpa [#allocation9], 1
    %446 = vsyncpa [#allocation12], 1
    %447 = vsyncpa [#allocation15], 1
    %448 = vsyncpa [#allocation7], 1
    %449 = vsyncpa [#allocation19], 1

// kernel: bert_forward.38
$region0: #{bert_forward.38}
  #allocation0 [shape = 'u32[]', space=smem, size = 0x4, offset = 0x4, fixed_abs, tag = 'smem constant byte address 0x4 - core index']
  #allocation1 [shape = 'u32[144,128]{1,0:T(1,128)}', space=vmem, size = 0x12000, scoped, tag = 'internal scratch']
  #allocation2 [shape = 'f32[16,32]{1,0:T(8,128)}', space=vmem, size = 0x2000, scoped, tag = 'scratch operand']
  %s0 = inlined_call_operand.hbm [shape: bf16[16,32], index: 0, kind: input, shape index: {}]
  %s1 = inlined_call_operand.hbm [shape: bf16[32,32], index: 1, kind: input, shape index: {}]
  %s2 = inlined_call_operand.hbm [shape: f32[1,32], index: 2, kind: input, shape index: {}]
  %s3 = inlined_call_operand.hbm [shape: bf16[16,32], index: 3, kind: output, shape index: {}]
  %s4 = sld [smem:[#allocation0]]
  $region42: #{bert_forward.38} parent=0
    _
  %s6 = ssub.s32 1, %s4
  %s7 = scalar_select 0, %s6, %s4
  $region1: #{bert_forward.38} parent=0
    #allocation3 [shape = 'u8[4096]{0}', space=vmem, size = 0x1000, scoped, tag = 'input window, operand 0, single buffered']
    #allocation4 [shape = 's32[1]{0}', space=sflag, size = 0x4, scoped, tag = 'scoped memory for bert_forward.38']
    #allocation5 [shape = 's32[1]{0}', space=sflag, size = 0x4, scoped, tag = 'scoped memory for bert_forward.38']
    #allocation6 [shape = 'u8[8192]{0}', space=vmem, size = 0x2000, scoped, tag = 'input window, operand 1, single buffered']
    #allocation7 [shape = 's32[1]{0}', space=sflag, size = 0x4, scoped, tag = 'scoped memory for bert_forward.38']
    #allocation8 [shape = 'u8[512]{0}', space=vmem, size = 0x400, scoped, tag = 'input window, operand 2, single buffered']
    #allocation9 [shape = 'u8[4096]{0}', space=vmem, size = 0x1000, scoped, tag = 'output window, operand 0, single buffered']
    %8 = vsyncpa [#allocation4], 0
    %9 = vsyncpa [#allocation7], 0
    %10 = vsyncpa [#allocation5], 0
    // Predicated region
    $region2: #{bert_forward.38} parent=1 // pred_check
      _
    $region3: #{bert_forward.38} parent=1 // pred_check_branch
      %12 = sbr.rel (0) target = $region5
    $region4: #{bert_forward.38} parent=1 // pred_region
      %s14 = ssub.s32 128, 128
      %15 = vsyncadd [#allocation4], %s14
      %s16 = sshll.u32 [#allocation3], 4
      %s17 = int_to_ptr.vmem [resolvable:$true] %s16
      %22 = dma.hbm_to_vmem [thread:$0]  %s0, 128, %s17, [#allocation4], 64, 64, 4
    $region5: #{bert_forward.38} parent=1 // pred_fallthru
      _
    // Predicated region
    $region6: #{bert_forward.38} parent=1 // pred_check
      _
    $region7: #{bert_forward.38} parent=1 // pred_check_branch
      %24 = sbr.rel (0) target = $region9
    $region8: #{bert_forward.38} parent=1 // pred_region
      %s26 = ssub.s32 256, 256
      %27 = vsyncadd [#allocation7], %s26
      %s28 = sshll.u32 [#allocation6], 4
      %s29 = int_to_ptr.vmem [resolvable:$true] %s28
      %34 = dma.hbm_to_vmem [thread:$0]  %s1, 256, %s29, [#allocation7], 64, 64, 4
    $region9: #{bert_forward.38} parent=1 // pred_fallthru
      _
    // Predicated region
    $region10: #{bert_forward.38} parent=1 // pred_check
      _
    $region11: #{bert_forward.38} parent=1 // pred_check_branch
      %36 = sbr.rel (0) target = $region13
    $region12: #{bert_forward.38} parent=1 // pred_region
      %s38 = ssub.s32 16, 16
      %39 = vsyncadd [#allocation7], %s38
      %s41 = sshll.u32 [#allocation8], 4
      %s42 = int_to_ptr.vmem [resolvable:$true] %s41
      %44 = dma.hbm_to_vmem [thread:$0]  %s2, 16, %s42, [#allocation7]
    $region13: #{bert_forward.38} parent=1 // pred_fallthru
      _
    // Predicated region
    $region14: #{bert_forward.38} parent=1 // pred_check
      _
    $region15: #{bert_forward.38} parent=1 // pred_check_branch
      %46 = sbr.rel (0) target = $region17
    $region16: #{bert_forward.38} parent=1 // pred_region
      %47 = dma.done [#allocation4], 128
    $region17: #{bert_forward.38} parent=1 // pred_fallthru
      _
    // Predicated region
    $region18: #{bert_forward.38} parent=1 // pred_check
      _
    $region19: #{bert_forward.38} parent=1 // pred_check_branch
      %49 = sbr.rel (0) target = $region21
    $region20: #{bert_forward.38} parent=1 // pred_region
      %50 = dma.done [#allocation7], 256
    $region21: #{bert_forward.38} parent=1 // pred_fallthru
      _
    // Predicated region
    $region22: #{bert_forward.38} parent=1 // pred_check
      _
    $region23: #{bert_forward.38} parent=1 // pred_check_branch
      %52 = sbr.rel (0) target = $region25
    $region24: #{bert_forward.38} parent=1 // pred_region
      %53 = dma.done [#allocation7], 16
    $region25: #{bert_forward.38} parent=1 // pred_fallthru
      _
    %p55 = scmp.eq.s32.totalorder 0, 0
    // Predicated region
    $region26: #{bert_forward.38} parent=1 // pred_check
      %p56 = pneg %p55
    $region27: #{bert_forward.38} parent=1 // pred_check_branch
      %58 = sbr.rel (%p56) target = $region29
    $region28: #{bert_forward.38} parent=1 // pred_region
      %vm59 = vcmask 261120
      %60 = vst.msk [vmem:[#allocation2] sm:$0xff] %vm59, 0.0
      %61 = vst.msk [vmem:[#allocation2 + $0x8] sm:$0xff] %vm59, 0.0
    $region29: #{bert_forward.38} parent=1 // pred_fallthru
      _
    %v62 = vld [vmem:[#allocation3] sm:$0xf]
    %v63 = vld [vmem:[#allocation3 + $0x4] sm:$0xf]
    %v64 = vld [vmem:[#allocation2] sm:$0xff]
    %v65 = vld [vmem:[#allocation2 + $0x8] sm:$0xff]
    %v66 = vld [vmem:[#allocation6] sm:$0xf]
    %v67 = vld [vmem:[#allocation6 + $0x4] sm:$0xf]
    %v68 = vld [vmem:[#allocation6 + $0x8] sm:$0xf]
    %v69 = vld [vmem:[#allocation6 + $0xc] sm:$0xf]
    %v72 = vunpack.c.l.b16 %v62
    %v73 = vunpack.c.l.b16 %v63
    %v74 = vpack.c.b16 %v73, %v72
    %v79 = vunpack.c.l.b16 %v66
    %v80 = vunpack.c.l.b16 %v67
    %v81 = vunpack.c.l.b16 %v68
    %v82 = vunpack.c.l.b16 %v69
    %v83 = vpack.c.b16 %v80, %v79
    %v84 = vpack.c.b16 %v82, %v81
    %vm87 = vcmask 261120
    %v89 = vsel %vm87, %v74, 0
    %91 = vmatprep.subr.bf16.mxu0 0
    %92 = vmatpush1.bf16.msra.mxu0 %v83
    %93 = vmatprep.subr.bf16.mxu0 0
    %94 = vmatpush1.bf16.msra.mxu0 %v84
    %95 = vmatprep.subr.bf16.mxu0 0
    %96 = vmatpush1.bf16.msra.mxu0 0
    %97 = vmatprep.subr.bf16.mxu0 0
    %98 = vmatpush1.bf16.msra.mxu0 0
    %99 = vmatprep.subr.bf16.mxu0 0
    %100 = vmatpush1.bf16.msra.mxu0 0
    %101 = vmatprep.subr.bf16.mxu0 0
    %102 = vmatpush1.bf16.msra.mxu0 0
    %103 = vmatprep.subr.bf16.mxu0 0
    %104 = vmatpush1.bf16.msra.mxu0 0
    %105 = vmatprep.subr.bf16.mxu0 0
    %106 = vmatpush1.bf16.msra.mxu0 0
    %107 = vmatprep.subr.bf16.mxu0 0
    %108 = vmatpush1.bf16.msra.mxu0 0
    %109 = vmatprep.subr.bf16.mxu0 0
    %110 = vmatpush1.bf16.msra.mxu0 0
    %111 = vmatprep.subr.bf16.mxu0 0
    %112 = vmatpush1.bf16.msra.mxu0 0
    %113 = vmatprep.subr.bf16.mxu0 0
    %114 = vmatpush1.bf16.msra.mxu0 0
    %115 = vmatprep.subr.bf16.mxu0 0
    %116 = vmatpush1.bf16.msra.mxu0 0
    %117 = vmatprep.subr.bf16.mxu0 0
    %118 = vmatpush1.bf16.msra.mxu0 0
    %119 = vmatprep.subr.bf16.mxu0 0
    %120 = vmatpush1.bf16.msra.mxu0 0
    %121 = vmatprep.subr.bf16.mxu0 0
    %122 = vmatpush1.bf16.msra.mxu0 0
    %123 = vmatprep.mubr.bf16.mxu0 0
    %124 = vmatmul.mubr.bf16.gmra.mrb[0].mxu0 %v89
    %v125 = vpop.f32.mrb[0].mxu0
    %v126 = vadd.f32 0.0, %v125
    %v127 = vpop.f32.mrb[0].mxu0
    %v128 = vpop.f32.mrb[0].mxu0
    %v129 = vadd.f32 0.0, %v128
    %v130 = vpop.f32.mrb[0].mxu0
    %131 = vdwg.mxu0
    %v132 = vadd.f32 %v64, %v126
    %v133 = vadd.f32 %v65, %v129
    %134 = vst.msk [vmem:[#allocation2] sm:$0xff] %vm87, %v132
    %135 = vst.msk [vmem:[#allocation2 + $0x8] sm:$0xff] %vm87, %v133
    // Predicated region
    $region30: #{bert_forward.38} parent=1 // pred_check
      %p136 = pneg %p55
    $region31: #{bert_forward.38} parent=1 // pred_check_branch
      %138 = sbr.rel (%p136) target = $region33
    $region32: #{bert_forward.38} parent=1 // pred_region
      %v139 = vld [vmem:[#allocation2] sm:$0xff]
      %v140 = vld [vmem:[#allocation2 + $0x8] sm:$0xff]
      %v141 = vld [vmem:[#allocation8] sm:$0x1]
      %v143 = vlaneseq
      %v144 = vshrl.u32 %v143, 7
      %v145 = vsub.s32 0, %v144
      %v146 = vrot.slane %v141, %v145
      %v148 = vadd.f32 %v139, %v146
      %v149 = vadd.f32 %v140, %v146
      %v150 = vpack.c.bf16 %v149, %v148
      %v152 = vunpack.c.l.b16 %v150
      %v153 = vunpack.c.h.b16 %v150
      %v154 = vpack.c.b16 %v152, %v152
      %v155 = vpack.c.b16 %v153, %v153
      %vm158 = vcmask 257024
      %159 = vst.msk [vmem:[#allocation9] sm:$0xf] %vm158, %v154
      %160 = vst.msk [vmem:[#allocation9 + $0x4] sm:$0xf] %vm158, %v155
    $region33: #{bert_forward.38} parent=1 // pred_fallthru
      _
    // Predicated region
    $region34: #{bert_forward.38} parent=1 // pred_check
      _
    $region35: #{bert_forward.38} parent=1 // pred_check_branch
      %162 = sbr.rel (0) target = $region37
    $region36: #{bert_forward.38} parent=1 // pred_region
      %s164 = ssub.s32 128, 128
      %165 = vsyncadd [#allocation5], %s164
      %s166 = sshll.u32 [#allocation9], 4
      %s167 = int_to_ptr.vmem [resolvable:$true] %s166
      %172 = dma.vmem_to_hbm [thread:$0]  %s167, 128, %s3, [#allocation5], 64, 64, 4
    $region37: #{bert_forward.38} parent=1 // pred_fallthru
      _
    // Predicated region
    $region38: #{bert_forward.38} parent=1 // pred_check
      _
    $region39: #{bert_forward.38} parent=1 // pred_check_branch
      %174 = sbr.rel (0) target = $region41
    $region40: #{bert_forward.38} parent=1 // pred_region
      %175 = dma.done [#allocation5], 128
    $region41: #{bert_forward.38} parent=1 // pred_fallthru
      _
    %176 = vsyncpa [#allocation4], 1
    %177 = vsyncpa [#allocation7], 1
    %178 = vsyncpa [#allocation5], 1

// kernel: bert_forward.34
$region0: #{bert_forward.34}
  #allocation0 [shape = 'u32[]', space=smem, size = 0x4, offset = 0x4, fixed_abs, tag = 'smem constant byte address 0x4 - core index']
  #allocation1 [shape = 'u32[144,128]{1,0:T(1,128)}', space=vmem, size = 0x12000, scoped, tag = 'internal scratch']
  %s0 = inlined_call_operand.hbm [shape: bf16[16,32], index: 0, kind: input, shape index: {}]
  %s1 = inlined_call_operand.hbm [shape: f32[1,32], index: 1, kind: input, shape index: {}]
  %s2 = inlined_call_operand.hbm [shape: f32[1,32], index: 2, kind: input, shape index: {}]
  %s3 = inlined_call_operand.hbm [shape: f32[16,32], index: 3, kind: output, shape index: {}]
  %s4 = sld [smem:[#allocation0]]
  $region34: #{bert_forward.34} parent=0
    _
  %s6 = ssub.s32 1, %s4
  %s7 = scalar_select 0, %s6, %s4
  $region1: #{bert_forward.34} parent=0
    #allocation2 [shape = 'u8[4096]{0}', space=vmem, size = 0x1000, scoped, tag = 'input window, operand 0, single buffered']
    #allocation3 [shape = 's32[1]{0}', space=sflag, size = 0x4, scoped, tag = 'scoped memory for bert_forward.34']
    #allocation4 [shape = 's32[1]{0}', space=sflag, size = 0x4, scoped, tag = 'scoped memory for bert_forward.34']
    #allocation5 [shape = 'u8[512]{0}', space=vmem, size = 0x400, scoped, tag = 'input window, operand 1, single buffered']
    #allocation6 [shape = 's32[1]{0}', space=sflag, size = 0x4, scoped, tag = 'scoped memory for bert_forward.34']
    #allocation7 [shape = 'u8[512]{0}', space=vmem, size = 0x400, scoped, tag = 'input window, operand 2, single buffered']
    #allocation8 [shape = 'u8[8192]{0}', space=vmem, size = 0x2000, scoped, tag = 'output window, operand 0, single buffered']
    %8 = vsyncpa [#allocation3], 0
    %9 = vsyncpa [#allocation6], 0
    %10 = vsyncpa [#allocation4], 0
    // Predicated region
    $region2: #{bert_forward.34} parent=1 // pred_check
      _
    $region3: #{bert_forward.34} parent=1 // pred_check_branch
      %12 = sbr.rel (0) target = $region5
    $region4: #{bert_forward.34} parent=1 // pred_region
      %s14 = ssub.s32 128, 128
      %15 = vsyncadd [#allocation3], %s14
      %s16 = sshll.u32 [#allocation2], 4
      %s17 = int_to_ptr.vmem [resolvable:$true] %s16
      %22 = dma.hbm_to_vmem [thread:$0]  %s0, 128, %s17, [#allocation3], 64, 64, 4
    $region5: #{bert_forward.34} parent=1 // pred_fallthru
      _
    // Predicated region
    $region6: #{bert_forward.34} parent=1 // pred_check
      _
    $region7: #{bert_forward.34} parent=1 // pred_check_branch
      %24 = sbr.rel (0) target = $region9
    $region8: #{bert_forward.34} parent=1 // pred_region
      %s26 = ssub.s32 16, 16
      %27 = vsyncadd [#allocation6], %s26
      %s29 = sshll.u32 [#allocation5], 4
      %s30 = int_to_ptr.vmem [resolvable:$true] %s29
      %32 = dma.hbm_to_vmem [thread:$0]  %s1, 16, %s30, [#allocation6]
    $region9: #{bert_forward.34} parent=1 // pred_fallthru
      _
    // Predicated region
    $region10: #{bert_forward.34} parent=1 // pred_check
      _
    $region11: #{bert_forward.34} parent=1 // pred_check_branch
      %34 = sbr.rel (0) target = $region13
    $region12: #{bert_forward.34} parent=1 // pred_region
      %s36 = ssub.s32 16, 16
      %37 = vsyncadd [#allocation6], %s36
      %s39 = sshll.u32 [#allocation7], 4
      %s40 = int_to_ptr.vmem [resolvable:$true] %s39
      %42 = dma.hbm_to_vmem [thread:$0]  %s2, 16, %s40, [#allocation6]
    $region13: #{bert_forward.34} parent=1 // pred_fallthru
      _
    // Predicated region
    $region14: #{bert_forward.34} parent=1 // pred_check
      _
    $region15: #{bert_forward.34} parent=1 // pred_check_branch
      %44 = sbr.rel (0) target = $region17
    $region16: #{bert_forward.34} parent=1 // pred_region
      %45 = dma.done [#allocation3], 128
    $region17: #{bert_forward.34} parent=1 // pred_fallthru
      _
    // Predicated region
    $region18: #{bert_forward.34} parent=1 // pred_check
      _
    $region19: #{bert_forward.34} parent=1 // pred_check_branch
      %47 = sbr.rel (0) target = $region21
    $region20: #{bert_forward.34} parent=1 // pred_region
      %48 = dma.done [#allocation6], 16
    $region21: #{bert_forward.34} parent=1 // pred_fallthru
      _
    // Predicated region
    $region22: #{bert_forward.34} parent=1 // pred_check
      _
    $region23: #{bert_forward.34} parent=1 // pred_check_branch
      %50 = sbr.rel (0) target = $region25
    $region24: #{bert_forward.34} parent=1 // pred_region
      %51 = dma.done [#allocation6], 16
    $region25: #{bert_forward.34} parent=1 // pred_fallthru
      _
    %v52 = vld [vmem:[#allocation2] sm:$0xf]
    %v53 = vld [vmem:[#allocation2 + $0x4] sm:$0xf]
    %v54 = vunpack.c.l.bf16 %v52
    %v55 = vunpack.c.l.bf16 %v53
    %vm56 = vcmask 261120
    %v57 = vsel %vm56, %v54, 0.0
    %58 = vadd.xlane.f32.xlu0 %v57
    %v59 = vpop.xlane.xlu0 %58
    %v60 = vsel %vm56, %v55, 0.0
    %61 = vadd.xlane.f32.xlu0 %v60
    %v62 = vpop.xlane.xlu0 %61
    %v63 = vrcp.pop 32.0
    %v64 = vmul.f32 %v59, %v63
    %v65 = vmul.f32 %v62, %v63
    %v66 = vsub.f32 %v54, %v64
    %v67 = vsub.f32 %v55, %v65
    %v68 = vmul.f32 %v66, %v66
    %v69 = vmul.f32 %v67, %v67
    %v70 = vsel %vm56, %v68, 0.0
    %71 = vadd.xlane.f32.xlu0 %v70
    %v72 = vpop.xlane.xlu0 %71
    %v73 = vsel %vm56, %v69, 0.0
    %74 = vadd.xlane.f32.xlu0 %v73
    %v75 = vpop.xlane.xlu0 %74
    %v76 = vmul.f32 %v72, %v63
    %v77 = vmul.f32 %v75, %v63
    %v78 = vadd.f32 %v76, 1e-05
    %v79 = vadd.f32 %v77, 1e-05
    %v80 = vrsqrt.pop %v78
    %v81 = vrsqrt.pop %v79
    %v82 = vmul.f32 %v66, %v80
    %v83 = vmul.f32 %v67, %v81
    %v84 = vld [vmem:[#allocation5] sm:$0x1]
    %v86 = vlaneseq
    %v87 = vshrl.u32 %v86, 7
    %v88 = vsub.s32 0, %v87
    %v89 = vrot.slane %v84, %v88
    %v91 = vmul.f32 %v82, %v89
    %v92 = vmul.f32 %v83, %v89
    %v93 = vld [vmem:[#allocation7] sm:$0x1]
    %v95 = vlaneseq
    %v96 = vshrl.u32 %v95, 7
    %v97 = vsub.s32 0, %v96
    %v98 = vrot.slane %v93, %v97
    %v100 = vadd.f32 %v91, %v98
    %v101 = vadd.f32 %v92, %v98
    %102 = vst.msk [vmem:[#allocation8] sm:$0xff] %vm56, %v100
    %103 = vst.msk [vmem:[#allocation8 + $0x8] sm:$0xff] %vm56, %v101
    // Predicated region
    $region26: #{bert_forward.34} parent=1 // pred_check
      _
    $region27: #{bert_forward.34} parent=1 // pred_check_branch
      %105 = sbr.rel (0) target = $region29
    $region28: #{bert_forward.34} parent=1 // pred_region
      %s107 = ssub.s32 256, 256
      %108 = vsyncadd [#allocation4], %s107
      %s109 = sshll.u32 [#allocation8], 4
      %s110 = int_to_ptr.vmem [resolvable:$true] %s109
      %115 = dma.vmem_to_hbm [thread:$0]  %s110, 256, %s3, [#allocation4], 128, 128, 8
    $region29: #{bert_forward.34} parent=1 // pred_fallthru
      _
    // Predicated region
    $region30: #{bert_forward.34} parent=1 // pred_check
      _
    $region31: #{bert_forward.34} parent=1 // pred_check_branch
      %117 = sbr.rel (0) target = $region33
    $region32: #{bert_forward.34} parent=1 // pred_region
      %118 = dma.done [#allocation4], 256
    $region33: #{bert_forward.34} parent=1 // pred_fallthru
      _
    %119 = vsyncpa [#allocation3], 1
    %120 = vsyncpa [#allocation6], 1
    %121 = vsyncpa [#allocation4], 1

// kernel: bert_forward.39
$region0: #{bert_forward.39}
  #allocation0 [shape = 'u32[]', space=smem, size = 0x4, offset = 0x4, fixed_abs, tag = 'smem constant byte address 0x4 - core index']
  #allocation1 [shape = 'u32[144,128]{1,0:T(1,128)}', space=vmem, size = 0x12000, scoped, tag = 'internal scratch']
  #allocation2 [shape = 'f32[16,32]{1,0:T(8,128)}', space=vmem, size = 0x2000, scoped, tag = 'scratch operand']
  #allocation3 [shape = 'f32[16,32]{1,0:T(8,128)}', space=vmem, size = 0x2000, scoped, tag = 'scratch operand']
  %s0 = inlined_call_operand.hbm [shape: bf16[16,32], index: 0, kind: input, shape index: {}]
  %s1 = inlined_call_operand.hbm [shape: bf16[32,32], index: 1, kind: input, shape index: {}]
  %s2 = inlined_call_operand.hbm [shape: bf16[32,32], index: 2, kind: input, shape index: {}]
  %s3 = inlined_call_operand.hbm [shape: f32[1,32], index: 3, kind: input, shape index: {}]
  %s4 = inlined_call_operand.hbm [shape: f32[1,32], index: 4, kind: input, shape index: {}]
  %s5 = inlined_call_operand.hbm [shape: bf16[16,32], index: 5, kind: output, shape index: {0}]
  %s6 = inlined_call_operand.hbm [shape: bf16[16,32], index: 6, kind: output, shape index: {1}]
  %7 = xla_tuple %s5, %s6
  %s8 = sld [smem:[#allocation0]]
  $region66: #{bert_forward.39} parent=0
    _
  %s10 = ssub.s32 1, %s8
  %s11 = scalar_select 0, %s10, %s8
  $region1: #{bert_forward.39} parent=0
    #allocation4 [shape = 'u8[4096]{0}', space=vmem, size = 0x1000, scoped, tag = 'input window, operand 0, single buffered']
    #allocation5 [shape = 's32[1]{0}', space=sflag, size = 0x4, scoped, tag = 'scoped memory for bert_forward.39']
    #allocation6 [shape = 's32[1]{0}', space=sflag, size = 0x4, scoped, tag = 'scoped memory for bert_forward.39']
    #allocation7 [shape = 'u8[8192]{0}', space=vmem, size = 0x2000, scoped, tag = 'input window, operand 1, single buffered']
    #allocation8 [shape = 's32[1]{0}', space=sflag, size = 0x4, scoped, tag = 'scoped memory for bert_forward.39']
    #allocation9 [shape = 'u8[8192]{0}', space=vmem, size = 0x2000, scoped, tag = 'input window, operand 2, single buffered']
    #allocation10 [shape = 'u8[512]{0}', space=vmem, size = 0x400, scoped, tag = 'input window, operand 3, single buffered']
    #allocation11 [shape = 's32[1]{0}', space=sflag, size = 0x4, scoped, tag = 'scoped memory for bert_forward.39']
    #allocation12 [shape = 'u8[512]{0}', space=vmem, size = 0x400, scoped, tag = 'input window, operand 4, single buffered']
    #allocation13 [shape = 'u8[4096]{0}', space=vmem, size = 0x1000, scoped, tag = 'output window, operand 0, single buffered']
    #allocation14 [shape = 'u8[4096]{0}', space=vmem, size = 0x1000, scoped, tag = 'output window, operand 1, single buffered']
    #allocation15 [shape = 's32[1]{0}', space=sflag, size = 0x4, scoped, tag = 'scoped memory for bert_forward.39']
    %12 = vsyncpa [#allocation5], 0
    %13 = vsyncpa [#allocation8], 0
    %14 = vsyncpa [#allocation11], 0
    %15 = vsyncpa [#allocation6], 0
    %16 = vsyncpa [#allocation15], 0
    // Predicated region
    $region2: #{bert_forward.39} parent=1 // pred_check
      _
    $region3: #{bert_forward.39} parent=1 // pred_check_branch
      %18 = sbr.rel (0) target = $region5
    $region4: #{bert_forward.39} parent=1 // pred_region
      %s20 = ssub.s32 128, 128
      %21 = vsyncadd [#allocation5], %s20
      %s22 = sshll.u32 [#allocation4], 4
      %s23 = int_to_ptr.vmem [resolvable:$true] %s22
      %28 = dma.hbm_to_vmem [thread:$0]  %s0, 128, %s23, [#allocation5], 64, 64, 4
    $region5: #{bert_forward.39} parent=1 // pred_fallthru
      _
    // Predicated region
    $region6: #{bert_forward.39} parent=1 // pred_check
      _
    $region7: #{bert_forward.39} parent=1 // pred_check_branch
      %30 = sbr.rel (0) target = $region9
    $region8: #{bert_forward.39} parent=1 // pred_region
      %s32 = ssub.s32 256, 256
      %33 = vsyncadd [#allocation8], %s32
      %s34 = sshll.u32 [#allocation7], 4
      %s35 = int_to_ptr.vmem [resolvable:$true] %s34
      %40 = dma.hbm_to_vmem [thread:$0]  %s1, 256, %s35, [#allocation8], 64, 64, 4
    $region9: #{bert_forward.39} parent=1 // pred_fallthru
      _
    // Predicated region
    $region10: #{bert_forward.39} parent=1 // pred_check
      _
    $region11: #{bert_forward.39} parent=1 // pred_check_branch
      %42 = sbr.rel (0) target = $region13
    $region12: #{bert_forward.39} parent=1 // pred_region
      %s44 = ssub.s32 256, 256
      %45 = vsyncadd [#allocation8], %s44
      %s46 = sshll.u32 [#allocation9], 4
      %s47 = int_to_ptr.vmem [resolvable:$true] %s46
      %52 = dma.hbm_to_vmem [thread:$0]  %s2, 256, %s47, [#allocation8], 64, 64, 4
    $region13: #{bert_forward.39} parent=1 // pred_fallthru
      _
    // Predicated region
    $region14: #{bert_forward.39} parent=1 // pred_check
      _
    $region15: #{bert_forward.39} parent=1 // pred_check_branch
      %54 = sbr.rel (0) target = $region17
    $region16: #{bert_forward.39} parent=1 // pred_region
      %s56 = ssub.s32 16, 16
      %57 = vsyncadd [#allocation11], %s56
      %s59 = sshll.u32 [#allocation10], 4
      %s60 = int_to_ptr.vmem [resolvable:$true] %s59
      %62 = dma.hbm_to_vmem [thread:$0]  %s3, 16, %s60, [#allocation11]
    $region17: #{bert_forward.39} parent=1 // pred_fallthru
      _
    // Predicated region
    $region18: #{bert_forward.39} parent=1 // pred_check
      _
    $region19: #{bert_forward.39} parent=1 // pred_check_branch
      %64 = sbr.rel (0) target = $region21
    $region20: #{bert_forward.39} parent=1 // pred_region
      %s66 = ssub.s32 16, 16
      %67 = vsyncadd [#allocation11], %s66
      %s69 = sshll.u32 [#allocation12], 4
      %s70 = int_to_ptr.vmem [resolvable:$true] %s69
      %72 = dma.hbm_to_vmem [thread:$0]  %s4, 16, %s70, [#allocation11]
    $region21: #{bert_forward.39} parent=1 // pred_fallthru
      _
    // Predicated region
    $region22: #{bert_forward.39} parent=1 // pred_check
      _
    $region23: #{bert_forward.39} parent=1 // pred_check_branch
      %74 = sbr.rel (0) target = $region25
    $region24: #{bert_forward.39} parent=1 // pred_region
      %75 = dma.done [#allocation5], 128
    $region25: #{bert_forward.39} parent=1 // pred_fallthru
      _
    // Predicated region
    $region26: #{bert_forward.39} parent=1 // pred_check
      _
    $region27: #{bert_forward.39} parent=1 // pred_check_branch
      %77 = sbr.rel (0) target = $region29
    $region28: #{bert_forward.39} parent=1 // pred_region
      %78 = dma.done [#allocation8], 256
    $region29: #{bert_forward.39} parent=1 // pred_fallthru
      _
    // Predicated region
    $region30: #{bert_forward.39} parent=1 // pred_check
      _
    $region31: #{bert_forward.39} parent=1 // pred_check_branch
      %80 = sbr.rel (0) target = $region33
    $region32: #{bert_forward.39} parent=1 // pred_region
      %81 = dma.done [#allocation8], 256
    $region33: #{bert_forward.39} parent=1 // pred_fallthru
      _
    // Predicated region
    $region34: #{bert_forward.39} parent=1 // pred_check
      _
    $region35: #{bert_forward.39} parent=1 // pred_check_branch
      %83 = sbr.rel (0) target = $region37
    $region36: #{bert_forward.39} parent=1 // pred_region
      %84 = dma.done [#allocation11], 16
    $region37: #{bert_forward.39} parent=1 // pred_fallthru
      _
    // Predicated region
    $region38: #{bert_forward.39} parent=1 // pred_check
      _
    $region39: #{bert_forward.39} parent=1 // pred_check_branch
      %86 = sbr.rel (0) target = $region41
    $region40: #{bert_forward.39} parent=1 // pred_region
      %87 = dma.done [#allocation11], 16
    $region41: #{bert_forward.39} parent=1 // pred_fallthru
      _
    %p89 = scmp.eq.s32.totalorder 0, 0
    // Predicated region
    $region42: #{bert_forward.39} parent=1 // pred_check
      %p90 = pneg %p89
    $region43: #{bert_forward.39} parent=1 // pred_check_branch
      %92 = sbr.rel (%p90) target = $region45
    $region44: #{bert_forward.39} parent=1 // pred_region
      %vm93 = vcmask 261120
      %94 = vst.msk [vmem:[#allocation2] sm:$0xff] %vm93, 0.0
      %95 = vst.msk [vmem:[#allocation2 + $0x8] sm:$0xff] %vm93, 0.0
      %96 = vst.msk [vmem:[#allocation3] sm:$0xff] %vm93, 0.0
      %97 = vst.msk [vmem:[#allocation3 + $0x8] sm:$0xff] %vm93, 0.0
    $region45: #{bert_forward.39} parent=1 // pred_fallthru
      _
    %v98 = vld [vmem:[#allocation4] sm:$0xf]
    %v99 = vld [vmem:[#allocation4 + $0x4] sm:$0xf]
    %v100 = vld [vmem:[#allocation2] sm:$0xff]
    %v101 = vld [vmem:[#allocation2 + $0x8] sm:$0xff]
    %v102 = vld [vmem:[#allocation7] sm:$0xf]
    %v103 = vld [vmem:[#allocation7 + $0x4] sm:$0xf]
    %v104 = vld [vmem:[#allocation7 + $0x8] sm:$0xf]
    %v105 = vld [vmem:[#allocation7 + $0xc] sm:$0xf]
    %v108 = vunpack.c.l.b16 %v98
    %v109 = vunpack.c.l.b16 %v99
    %v110 = vpack.c.b16 %v109, %v108
    %v115 = vunpack.c.l.b16 %v102
    %v116 = vunpack.c.l.b16 %v103
    %v117 = vunpack.c.l.b16 %v104
    %v118 = vunpack.c.l.b16 %v105
    %v119 = vpack.c.b16 %v116, %v115
    %v120 = vpack.c.b16 %v118, %v117
    %vm123 = vcmask 261120
    %v125 = vsel %vm123, %v110, 0
    %127 = vmatprep.subr.bf16.mxu0 0
    %128 = vmatpush1.bf16.msra.mxu0 %v119
    %129 = vmatprep.subr.bf16.mxu0 0
    %130 = vmatpush1.bf16.msra.mxu0 %v120
    %131 = vmatprep.subr.bf16.mxu0 0
    %132 = vmatpush1.bf16.msra.mxu0 0
    %133 = vmatprep.subr.bf16.mxu0 0
    %134 = vmatpush1.bf16.msra.mxu0 0
    %135 = vmatprep.subr.bf16.mxu0 0
    %136 = vmatpush1.bf16.msra.mxu0 0
    %137 = vmatprep.subr.bf16.mxu0 0
    %138 = vmatpush1.bf16.msra.mxu0 0
    %139 = vmatprep.subr.bf16.mxu0 0
    %140 = vmatpush1.bf16.msra.mxu0 0
    %141 = vmatprep.subr.bf16.mxu0 0
    %142 = vmatpush1.bf16.msra.mxu0 0
    %143 = vmatprep.subr.bf16.mxu0 0
    %144 = vmatpush1.bf16.msra.mxu0 0
    %145 = vmatprep.subr.bf16.mxu0 0
    %146 = vmatpush1.bf16.msra.mxu0 0
    %147 = vmatprep.subr.bf16.mxu0 0
    %148 = vmatpush1.bf16.msra.mxu0 0
    %149 = vmatprep.subr.bf16.mxu0 0
    %150 = vmatpush1.bf16.msra.mxu0 0
    %151 = vmatprep.subr.bf16.mxu0 0
    %152 = vmatpush1.bf16.msra.mxu0 0
    %153 = vmatprep.subr.bf16.mxu0 0
    %154 = vmatpush1.bf16.msra.mxu0 0
    %155 = vmatprep.subr.bf16.mxu0 0
    %156 = vmatpush1.bf16.msra.mxu0 0
    %157 = vmatprep.subr.bf16.mxu0 0
    %158 = vmatpush1.bf16.msra.mxu0 0
    %159 = vmatprep.mubr.bf16.mxu0 0
    %160 = vmatmul.mubr.bf16.gmra.mrb[0].mxu0 %v125
    %v161 = vpop.f32.mrb[0].mxu0
    %v162 = vadd.f32 0.0, %v161
    %v163 = vpop.f32.mrb[0].mxu0
    %v164 = vpop.f32.mrb[0].mxu0
    %v165 = vadd.f32 0.0, %v164
    %v166 = vpop.f32.mrb[0].mxu0
    %167 = vdwg.mxu0
    %v168 = vadd.f32 %v100, %v162
    %v169 = vadd.f32 %v101, %v165
    %170 = vst.msk [vmem:[#allocation2] sm:$0xff] %vm123, %v168
    %171 = vst.msk [vmem:[#allocation2 + $0x8] sm:$0xff] %vm123, %v169
    %v172 = vld [vmem:[#allocation3] sm:$0xff]
    %v173 = vld [vmem:[#allocation3 + $0x8] sm:$0xff]
    %v174 = vld [vmem:[#allocation9] sm:$0xf]
    %v175 = vld [vmem:[#allocation9 + $0x4] sm:$0xf]
    %v176 = vld [vmem:[#allocation9 + $0x8] sm:$0xf]
    %v177 = vld [vmem:[#allocation9 + $0xc] sm:$0xf]
    %v182 = vunpack.c.l.b16 %v174
    %v183 = vunpack.c.l.b16 %v175
    %v184 = vunpack.c.l.b16 %v176
    %v185 = vunpack.c.l.b16 %v177
    %v186 = vpack.c.b16 %v183, %v182
    %v187 = vpack.c.b16 %v185, %v184
    %190 = vmatprep.subr.bf16.mxu0 0
    %191 = vmatpush1.bf16.msra.mxu0 %v186
    %192 = vmatprep.subr.bf16.mxu0 0
    %193 = vmatpush1.bf16.msra.mxu0 %v187
    %194 = vmatprep.subr.bf16.mxu0 0
    %195 = vmatpush1.bf16.msra.mxu0 0
    %196 = vmatprep.subr.bf16.mxu0 0
    %197 = vmatpush1.bf16.msra.mxu0 0
    %198 = vmatprep.subr.bf16.mxu0 0
    %199 = vmatpush1.bf16.msra.mxu0 0
    %200 = vmatprep.subr.bf16.mxu0 0
    %201 = vmatpush1.bf16.msra.mxu0 0
    %202 = vmatprep.subr.bf16.mxu0 0
    %203 = vmatpush1.bf16.msra.mxu0 0
    %204 = vmatprep.subr.bf16.mxu0 0
    %205 = vmatpush1.bf16.msra.mxu0 0
    %206 = vmatprep.subr.bf16.mxu0 0
    %207 = vmatpush1.bf16.msra.mxu0 0
    %208 = vmatprep.subr.bf16.mxu0 0
    %209 = vmatpush1.bf16.msra.mxu0 0
    %210 = vmatprep.subr.bf16.mxu0 0
    %211 = vmatpush1.bf16.msra.mxu0 0
    %212 = vmatprep.subr.bf16.mxu0 0
    %213 = vmatpush1.bf16.msra.mxu0 0
    %214 = vmatprep.subr.bf16.mxu0 0
    %215 = vmatpush1.bf16.msra.mxu0 0
    %216 = vmatprep.subr.bf16.mxu0 0
    %217 = vmatpush1.bf16.msra.mxu0 0
    %218 = vmatprep.subr.bf16.mxu0 0
    %219 = vmatpush1.bf16.msra.mxu0 0
    %220 = vmatprep.subr.bf16.mxu0 0
    %221 = vmatpush1.bf16.msra.mxu0 0
    %222 = vmatprep.mubr.bf16.mxu0 0
    %223 = vmatmul.mubr.bf16.gmra.mrb[0].mxu0 %v125
    %v224 = vpop.f32.mrb[0].mxu0
    %v225 = vadd.f32 0.0, %v224
    %v226 = vpop.f32.mrb[0].mxu0
    %v227 = vpop.f32.mrb[0].mxu0
    %v228 = vadd.f32 0.0, %v227
    %v229 = vpop.f32.mrb[0].mxu0
    %230 = vdwg.mxu0
    %v231 = vadd.f32 %v172, %v225
    %v232 = vadd.f32 %v173, %v228
    %233 = vst.msk [vmem:[#allocation3] sm:$0xff] %vm123, %v231
    %234 = vst.msk [vmem:[#allocation3 + $0x8] sm:$0xff] %vm123, %v232
    // Predicated region
    $region46: #{bert_forward.39} parent=1 // pred_check
      %p235 = pneg %p89
    $region47: #{bert_forward.39} parent=1 // pred_check_branch
      %237 = sbr.rel (%p235) target = $region49
    $region48: #{bert_forward.39} parent=1 // pred_region
      %v238 = vld [vmem:[#allocation2] sm:$0xff]
      %v239 = vld [vmem:[#allocation2 + $0x8] sm:$0xff]
      %v240 = vld [vmem:[#allocation10] sm:$0x1]
      %v242 = vlaneseq
      %v243 = vshrl.u32 %v242, 7
      %v244 = vsub.s32 0, %v243
      %v245 = vrot.slane %v240, %v244
      %v247 = vadd.f32 %v238, %v245
      %v248 = vadd.f32 %v239, %v245
      %v249 = vpack.c.bf16 %v248, %v247
      %v251 = vunpack.c.l.b16 %v249
      %v252 = vunpack.c.h.b16 %v249
      %v253 = vpack.c.b16 %v251, %v251
      %v254 = vpack.c.b16 %v252, %v252
      %vm257 = vcmask 257024
      %258 = vst.msk [vmem:[#allocation13] sm:$0xf] %vm257, %v253
      %259 = vst.msk [vmem:[#allocation13 + $0x4] sm:$0xf] %vm257, %v254
      %v260 = vld [vmem:[#allocation3] sm:$0xff]
      %v261 = vld [vmem:[#allocation3 + $0x8] sm:$0xff]
      %v262 = vld [vmem:[#allocation12] sm:$0x1]
      %v264 = vlaneseq
      %v265 = vshrl.u32 %v264, 7
      %v266 = vsub.s32 0, %v265
      %v267 = vrot.slane %v262, %v266
      %v269 = vadd.f32 %v260, %v267
      %v270 = vadd.f32 %v261, %v267
      %v271 = vpack.c.bf16 %v270, %v269
      %v273 = vunpack.c.l.b16 %v271
      %v274 = vunpack.c.h.b16 %v271
      %v275 = vpack.c.b16 %v273, %v273
      %v276 = vpack.c.b16 %v274, %v274
      %279 = vst.msk [vmem:[#allocation14] sm:$0xf] %vm257, %v275
      %280 = vst.msk [vmem:[#allocation14 + $0x4] sm:$0xf] %vm257, %v276
    $region49: #{bert_forward.39} parent=1 // pred_fallthru
      _
    // Predicated region
    $region50: #{bert_forward.39} parent=1 // pred_check
      _
    $region51: #{bert_forward.39} parent=1 // pred_check_branch
      %282 = sbr.rel (0) target = $region53
    $region52: #{bert_forward.39} parent=1 // pred_region
      %s284 = ssub.s32 128, 128
      %285 = vsyncadd [#allocation6], %s284
      %s286 = sshll.u32 [#allocation13], 4
      %s287 = int_to_ptr.vmem [resolvable:$true] %s286
      %292 = dma.vmem_to_hbm [thread:$0]  %s287, 128, %s5, [#allocation6], 64, 64, 4
    $region53: #{bert_forward.39} parent=1 // pred_fallthru
      _
    // Predicated region
    $region54: #{bert_forward.39} parent=1 // pred_check
      _
    $region55: #{bert_forward.39} parent=1 // pred_check_branch
      %294 = sbr.rel (0) target = $region57
    $region56: #{bert_forward.39} parent=1 // pred_region
      %s296 = ssub.s32 128, 128
      %297 = vsyncadd [#allocation15], %s296
      %s298 = sshll.u32 [#allocation14], 4
      %s299 = int_to_ptr.vmem [resolvable:$true] %s298
      %304 = dma.vmem_to_hbm [thread:$0]  %s299, 128, %s6, [#allocation15], 64, 64, 4
    $region57: #{bert_forward.39} parent=1 // pred_fallthru
      _
    // Predicated region
    $region58: #{bert_forward.39} parent=1 // pred_check
      _
    $region59: #{bert_forward.39} parent=1 // pred_check_branch
      %306 = sbr.rel (0) target = $region61
    $region60: #{bert_forward.39} parent=1 // pred_region
      %307 = dma.done [#allocation6], 128
    $region61: #{bert_forward.39} parent=1 // pred_fallthru
      _
    // Predicated region
    $region62: #{bert_forward.39} parent=1 // pred_check
      _
    $region63: #{bert_forward.39} parent=1 // pred_check_branch
      %309 = sbr.rel (0) target = $region65
    $region64: #{bert_forward.39} parent=1 // pred_region
      %310 = dma.done [#allocation15], 128
    $region65: #{bert_forward.39} parent=1 // pred_fallthru
      _
    %311 = vsyncpa [#allocation5], 1
    %312 = vsyncpa [#allocation8], 1
    %313 = vsyncpa [#allocation11], 1
    %314 = vsyncpa [#allocation6], 1
    %315 = vsyncpa [#allocation15], 1

// kernel: bert_forward.27
$region0: #{bert_forward.27}
  #allocation0 [shape = 'u32[]', space=smem, size = 0x4, offset = 0x4, fixed_abs, tag = 'smem constant byte address 0x4 - core index']
  #allocation1 [shape = 'u32[144,128]{1,0:T(1,128)}', space=vmem, size = 0x12000, scoped, tag = 'internal scratch']
  %s0 = inlined_call_operand.hbm [shape: bf16[2,8,32], index: 0, kind: input, shape index: {}]
  %s1 = inlined_call_operand.hbm [shape: bf16[2,8,32], index: 1, kind: input, shape index: {}]
  %s2 = inlined_call_operand.hbm [shape: bf16[2,8,32], index: 2, kind: input, shape index: {}]
  %s3 = inlined_call_operand.hbm [shape: bf16[2,8,32], index: 3, kind: output, shape index: {}]
  %s4 = sld [smem:[#allocation0]]
  $region57: #{bert_forward.27} parent=0
    _
  %s6 = ssub.s32 1, %s4
  %s7 = scalar_select 0, %s6, %s4
  $region1: #{bert_forward.27} parent=0
    #allocation2 [shape = 'u8[4096]{0}', space=vmem, size = 0x1000, scoped, tag = 'input window, operand 0']
    #allocation3 [shape = 's32[2]{0}', space=sflag, size = 0x8, scoped, tag = 'scoped memory for bert_forward.27']
    #allocation4 [shape = 's32[2]{0}', space=sflag, size = 0x8, scoped, tag = 'scoped memory for bert_forward.27']
    #allocation5 [shape = 'u8[4096]{0}', space=vmem, size = 0x1000, scoped, tag = 'input window, operand 1']
    #allocation6 [shape = 's32[2]{0}', space=sflag, size = 0x8, scoped, tag = 'scoped memory for bert_forward.27']
    #allocation7 [shape = 'u8[4096]{0}', space=vmem, size = 0x1000, scoped, tag = 'input window, operand 2']
    #allocation8 [shape = 'u8[4096]{0}', space=vmem, size = 0x1000, scoped, tag = 'output window, operand 0']
    %8 = vsyncpa [#allocation3], 0
    %s9 = scalar_lea.sflag [#allocation3], 1
    %10 = vsyncpa %s9, 0
    %11 = vsyncpa [#allocation6], 0
    %s12 = scalar_lea.sflag [#allocation6], 1
    %13 = vsyncpa %s12, 0
    %14 = vsyncpa [#allocation4], 0
    %s15 = scalar_lea.sflag [#allocation4], 1
    %16 = vsyncpa %s15, 0
    loop: start=0, step=1, limit=4
    $region2: #{bert_forward.27} parent=1 // loop_pre_header
      _
    $region3: #{bert_forward.27} parent=1 // loop_header
      %s18 = sphi 0, %s22
      %p19 = scmp.ge.s32.totalorder %s18, 4
      %s25 = sphi 0, %s37
      %s26 = sphi 0, %s33
      %s27 = sphi 0, %s25
      %s28 = sphi 0, %s26
      %s29 = sphi 0, %s27
      %s30 = sphi 0, %s28
      %s42 = sphi 0, %s44
      %s45 = sphi 0, %s42
      %s46 = sphi 0, %s45
      %s62 = sphi 0, %s46
      %s68 = sphi 0, %s70
      %s71 = sphi 0, %s68
      %s72 = sphi 0, %s71
      %s88 = sphi 0, %s72
      %s94 = sphi 0, %s96
      %s97 = sphi 0, %s94
      %s98 = sphi 0, %s97
      %s114 = sphi 0, %s98
      %s122 = sphi 0, %s124
      %s125 = sphi 0, %s122
      %s126 = sphi 0, %s125
      %s142 = sphi 0, %s126
    $region4: #{bert_forward.27} parent=1 // loop_header_branch
      %21 = sbr.rel (%p19) target = $region8
    $region5: #{bert_forward.27} parent=1 // loop_body
      %s23 = ssub.s32 %s18, 1
      %s24 = ssub.s32 %s18, 2
      %s31 = sadd.s32 1, %s26
      %p32 = scmp.ge.s32.totalorder %s31, 1
      %s33 = scalar_select %p32, 0, %s31
      %s34 = sadd.s32 1, %s25
      %s35 = scalar_select %p32, %s34, %s25
      %p36 = scmp.ge.s32.totalorder %s35, 2
      %s37 = scalar_select %p36, 0, %s35
      %s38 = ssub.s32 %s25, %s37
      %s39 = ssub.s32 %s26, %s33
      %s40 = sor.u32 %s38, %s39
      %p41 = scmp.eq.s32.totalorder %s40, 0
      %s43 = sadd.s32 %s42, 1
      %s44 = scalar_select %p41, %s42, %s43
      %p47 = pneg %p41
      %p48 = scmp.eq.s32.totalorder %s18, 1
      %p49 = por %p47, %p48
      %p50 = scmp.ne.s32.totalorder %s42, %s45
      %p51 = scmp.eq.s32.totalorder %s18, 0
      %p52 = por %p50, %p51
      %p53 = scmp.ne.s32.totalorder %s42, %s45
      %p54 = scmp.eq.s32.totalorder %s23, 1
      %p55 = por %p53, %p54
      %p56 = scmp.ne.s32.totalorder %s45, %s46
      %p57 = scmp.eq.s32.totalorder %s23, 0
      %p58 = por %p56, %p57
      %p59 = scmp.ne.s32.totalorder %s45, %s46
      %p60 = scmp.eq.s32.totalorder %s24, 1
      %p61 = por %p59, %p60
      %p63 = scmp.ne.s32.totalorder %s46, %s62
      %p64 = scmp.eq.s32.totalorder %s24, 0
      %p65 = por %p63, %p64
      %s66 = ssub.s32 %s25, %s37
      %p67 = scmp.eq.s32.totalorder %s66, 0
      %s69 = sadd.s32 %s68, 1
      %s70 = scalar_select %p67, %s68, %s69
      %p73 = pneg %p67
      %p74 = scmp.eq.s32.totalorder %s18, 1
      %p75 = por %p73, %p74
      %p76 = scmp.ne.s32.totalorder %s68, %s71
      %p77 = scmp.eq.s32.totalorder %s18, 0
      %p78 = por %p76, %p77
      %p79 = scmp.ne.s32.totalorder %s68, %s71
      %p80 = scmp.eq.s32.totalorder %s23, 1
      %p81 = por %p79, %p80
      %p82 = scmp.ne.s32.totalorder %s71, %s72
      %p83 = scmp.eq.s32.totalorder %s23, 0
      %p84 = por %p82, %p83
      %p85 = scmp.ne.s32.totalorder %s71, %s72
      %p86 = scmp.eq.s32.totalorder %s24, 1
      %p87 = por %p85, %p86
      %p89 = scmp.ne.s32.totalorder %s72, %s88
      %p90 = scmp.eq.s32.totalorder %s24, 0
      %p91 = por %p89, %p90
      %s92 = ssub.s32 %s25, %s37
      %p93 = scmp.eq.s32.totalorder %s92, 0
      %s95 = sadd.s32 %s94, 1
      %s96 = scalar_select %p93, %s94, %s95
      %p99 = pneg %p93
      %p100 = scmp.eq.s32.totalorder %s18, 1
      %p101 = por %p99, %p100
      %p102 = scmp.ne.s32.totalorder %s94, %s97
      %p103 = scmp.eq.s32.totalorder %s18, 0
      %p104 = por %p102, %p103
      %p105 = scmp.ne.s32.totalorder %s94, %s97
      %p106 = scmp.eq.s32.totalorder %s23, 1
      %p107 = por %p105, %p106
      %p108 = scmp.ne.s32.totalorder %s97, %s98
      %p109 = scmp.eq.s32.totalorder %s23, 0
      %p110 = por %p108, %p109
      %p111 = scmp.ne.s32.totalorder %s97, %s98
      %p112 = scmp.eq.s32.totalorder %s24, 1
      %p113 = por %p111, %p112
      %p115 = scmp.ne.s32.totalorder %s98, %s114
      %p116 = scmp.eq.s32.totalorder %s24, 0
      %p117 = por %p115, %p116
      %s118 = ssub.s32 %s25, %s37
      %s119 = ssub.s32 %s26, %s33
      %s120 = sor.u32 %s118, %s119
      %p121 = scmp.eq.s32.totalorder %s120, 0
      %s123 = sadd.s32 %s122, 1
      %s124 = scalar_select %p121, %s122, %s123
      %p127 = pneg %p121
      %p128 = scmp.eq.s32.totalorder %s18, 1
      %p129 = por %p127, %p128
      %p130 = scmp.ne.s32.totalorder %s122, %s125
      %p131 = scmp.eq.s32.totalorder %s18, 0
      %p132 = por %p130, %p131
      %p133 = scmp.ne.s32.totalorder %s122, %s125
      %p134 = scmp.eq.s32.totalorder %s23, 1
      %p135 = por %p133, %p134
      %p136 = scmp.ne.s32.totalorder %s125, %s126
      %p137 = scmp.eq.s32.totalorder %s23, 0
      %p138 = por %p136, %p137
      %p139 = scmp.ne.s32.totalorder %s125, %s126
      %p140 = scmp.eq.s32.totalorder %s24, 1
      %p141 = por %p139, %p140
      %p143 = scmp.ne.s32.totalorder %s126, %s142
      %p144 = scmp.eq.s32.totalorder %s24, 0
      %p145 = por %p143, %p144
      %p146 = scmp.le.s32.totalorder 1, %s18
      %p147 = scmp.lt.s32.totalorder %s18, 3
      %p148 = pnand %p146, %p147
      %p149 = pneg %p148
      // Predicated region
      $region9: #{bert_forward.27} parent=5 // pred_check
        _
      $region10: #{bert_forward.27} parent=5 // pred_check_branch
        %151 = sbr.rel (%p148) target = $region12
      $region11: #{bert_forward.27} parent=5 // pred_region
        %s152 = ssub.s32 %s18, 1
      $region12: #{bert_forward.27} parent=5 // pred_fallthru
        _
      %p153 = scmp.lt.s32.totalorder %s18, 2
      // Predicated region
      $region13: #{bert_forward.27} parent=5 // pred_check
        %p154 = pneg %p153
      $region14: #{bert_forward.27} parent=5 // pred_check_branch
        %156 = sbr.rel (%p154) target = $region16
      $region15: #{bert_forward.27} parent=5 // pred_region
        // Predicated region
        $region17: #{bert_forward.27} parent=15 // pred_check
          %p157 = pneg %p52
        $region18: #{bert_forward.27} parent=15 // pred_check_branch
          %159 = sbr.rel (%p157) target = $region20
        $region19: #{bert_forward.27} parent=15 // pred_region
          %s160 = sand.u32 %s42, 1
          %s161 = scalar_lea.sflag [#allocation3], %s160
          %s162 = sand.u32 %s42, 1
          %s163 = smul.addr %s162, 4
          %s164 = scalar_lea.vmem [#allocation2], %s163
          %s166 = ssub.s32 64, 64
          %167 = vsyncadd %s161, %s166
          %s168 = sadd.s32 %s26, %s25
          %s169 = smul.addr %s168, 64
          %s170 = scalar_lea.hbm %s0, %s169
          %s172 = sshll.u32 %s164, 4
          %s173 = int_to_ptr.vmem [resolvable:$true] %s172
          %175 = dma.hbm_to_vmem [thread:$0]  %s170, 64, %s173, %s161
        $region20: #{bert_forward.27} parent=15 // pred_fallthru
          _
        // Predicated region
        $region21: #{bert_forward.27} parent=15 // pred_check
          %p176 = pneg %p78
        $region22: #{bert_forward.27} parent=15 // pred_check_branch
          %178 = sbr.rel (%p176) target = $region24
        $region23: #{bert_forward.27} parent=15 // pred_region
          %s179 = sand.u32 %s18, 1
          %s180 = scalar_lea.sflag [#allocation6], %s179
          %s181 = sand.u32 %s68, 1
          %s182 = smul.addr %s181, 4
          %s183 = scalar_lea.vmem [#allocation5], %s182
          %s185 = ssub.s32 64, 64
          %186 = vsyncadd %s180, %s185
          %s187 = smul.addr %s25, 64
          %s188 = scalar_lea.hbm %s1, %s187
          %s190 = sshll.u32 %s183, 4
          %s191 = int_to_ptr.vmem [resolvable:$true] %s190
          %193 = dma.hbm_to_vmem [thread:$0]  %s188, 64, %s191, %s180
        $region24: #{bert_forward.27} parent=15 // pred_fallthru
          _
        // Predicated region
        $region25: #{bert_forward.27} parent=15 // pred_check
          %p194 = pneg %p104
        $region26: #{bert_forward.27} parent=15 // pred_check_branch
          %196 = sbr.rel (%p194) target = $region28
        $region27: #{bert_forward.27} parent=15 // pred_region
          %s197 = sand.u32 %s18, 1
          %s198 = scalar_lea.sflag [#allocation6], %s197
          %s199 = sand.u32 %s94, 1
          %s200 = smul.addr %s199, 4
          %s201 = scalar_lea.vmem [#allocation7], %s200
          %s203 = ssub.s32 64, 64
          %204 = vsyncadd %s198, %s203
          %s205 = smul.addr %s25, 64
          %s206 = scalar_lea.hbm %s2, %s205
          %s208 = sshll.u32 %s201, 4
          %s209 = int_to_ptr.vmem [resolvable:$true] %s208
          %211 = dma.hbm_to_vmem [thread:$0]  %s206, 64, %s209, %s198
        $region28: #{bert_forward.27} parent=15 // pred_fallthru
          _
      $region16: #{bert_forward.27} parent=5 // pred_fallthru
        _
      %p212 = scmp.le.s32.totalorder 1, %s18
      %p213 = scmp.lt.s32.totalorder %s18, 3
      %p214 = pnand %p212, %p213
      %p215 = pneg %p214
      // Predicated region
      $region29: #{bert_forward.27} parent=5 // pred_check
        _
      $region30: #{bert_forward.27} parent=5 // pred_check_branch
        %217 = sbr.rel (%p214) target = $region32
      $region31: #{bert_forward.27} parent=5 // pred_region
        %s218 = ssub.s32 %s18, 1
        %s219 = sand.u32 %s45, 1
        %s220 = scalar_lea.sflag [#allocation3], %s219
        %s221 = sand.u32 %s45, 1
        %s222 = smul.addr %s221, 4
        %s223 = scalar_lea.vmem [#allocation2], %s222
        // Predicated region
        $region33: #{bert_forward.27} parent=31 // pred_check
          %p224 = pneg %p58
        $region34: #{bert_forward.27} parent=31 // pred_check_branch
          %226 = sbr.rel (%p224) target = $region36
        $region35: #{bert_forward.27} parent=31 // pred_region
          %227 = dma.done %s220, 64
        $region36: #{bert_forward.27} parent=31 // pred_fallthru
          _
        %s228 = sand.u32 %s23, 1
        %s229 = scalar_lea.sflag [#allocation6], %s228
        %s230 = sand.u32 %s71, 1
        %s231 = smul.addr %s230, 4
        %s232 = scalar_lea.vmem [#allocation5], %s231
        // Predicated region
        $region37: #{bert_forward.27} parent=31 // pred_check
          %p233 = pneg %p84
        $region38: #{bert_forward.27} parent=31 // pred_check_branch
          %235 = sbr.rel (%p233) target = $region40
        $region39: #{bert_forward.27} parent=31 // pred_region
          %236 = dma.done %s229, 64
        $region40: #{bert_forward.27} parent=31 // pred_fallthru
          _
        %s237 = sand.u32 %s23, 1
        %s238 = scalar_lea.sflag [#allocation6], %s237
        %s239 = sand.u32 %s97, 1
        %s240 = smul.addr %s239, 4
        %s241 = scalar_lea.vmem [#allocation7], %s240
        // Predicated region
        $region41: #{bert_forward.27} parent=31 // pred_check
          %p242 = pneg %p110
        $region42: #{bert_forward.27} parent=31 // pred_check_branch
          %244 = sbr.rel (%p242) target = $region44
        $region43: #{bert_forward.27} parent=31 // pred_region
          %245 = dma.done %s238, 64
        $region44: #{bert_forward.27} parent=31 // pred_fallthru
          _
        %s246 = sand.u32 %s45, 1
        %s247 = scalar_lea.sflag [#allocation3], %s246
        %s248 = sand.u32 %s45, 1
        %s249 = smul.addr %s248, 4
        %s250 = scalar_lea.vmem [#allocation2], %s249
        %p251 = pneg %p58
        %p252 = pneg %p55
        %s253 = sand.u32 %s23, 1
        %s254 = scalar_lea.sflag [#allocation6], %s253
        %s255 = sand.u32 %s71, 1
        %s256 = smul.addr %s255, 4
        %s257 = scalar_lea.vmem [#allocation5], %s256
        %p258 = pneg %p84
        %p259 = pneg %p81
        %s260 = sand.u32 %s23, 1
        %s261 = scalar_lea.sflag [#allocation6], %s260
        %s262 = sand.u32 %s97, 1
        %s263 = smul.addr %s262, 4
        %s264 = scalar_lea.vmem [#allocation7], %s263
        %p265 = pneg %p110
        %p266 = pneg %p107
        %p267 = pneg %p138
        %p268 = pneg %p135
        %s269 = sand.u32 %s125, 1
        %s270 = scalar_lea.sflag [#allocation4], %s269
        %s271 = sand.u32 %s125, 1
        %s272 = smul.addr %s271, 4
        %s273 = scalar_lea.vmem [#allocation8], %s272
        %v275 = vld [vmem:[%s223] sm:$0xf]
        %v276 = vunpack.c.l.bf16 %v275
        %v277 = vmul.f32 %v276, 0.35355338
        %v278 = vpack.c.bf16 %v277, %v277
        %v279 = vld [vmem:[%s232] sm:$0xf]
        %v280 = vld [vmem:[%s241] sm:$0xf]
        %vm281 = vcmask 64512
        %v283 = vsel %vm281, %v278, 0
        %v286 = vsel %vm281, %v279, 0
        %288 = vmatprep.subr.bf16.mxu0 0
        %289 = vmatpush1.bf16.xpose.msra.mxu0 %v286
        %290 = vmatprep.subr.bf16.mxu0 0
        %291 = vmatpush1.bf16.xpose.msra.mxu0 0
        %292 = vmatprep.subr.bf16.mxu0 0
        %293 = vmatpush1.bf16.xpose.msra.mxu0 0
        %294 = vmatprep.subr.bf16.mxu0 0
        %295 = vmatpush1.bf16.xpose.msra.mxu0 0
        %296 = vmatprep.subr.bf16.mxu0 0
        %297 = vmatpush1.bf16.xpose.msra.mxu0 0
        %298 = vmatprep.subr.bf16.mxu0 0
        %299 = vmatpush1.bf16.xpose.msra.mxu0 0
        %300 = vmatprep.subr.bf16.mxu0 0
        %301 = vmatpush1.bf16.xpose.msra.mxu0 0
        %302 = vmatprep.subr.bf16.mxu0 0
        %303 = vmatpush1.bf16.xpose.msra.mxu0 0
        %304 = vmatprep.subr.bf16.mxu0 0
        %305 = vmatpush1.bf16.xpose.msra.mxu0 0
        %306 = vmatprep.subr.bf16.mxu0 0
        %307 = vmatpush1.bf16.xpose.msra.mxu0 0
        %308 = vmatprep.subr.bf16.mxu0 0
        %309 = vmatpush1.bf16.xpose.msra.mxu0 0
        %310 = vmatprep.subr.bf16.mxu0 0
        %311 = vmatpush1.bf16.xpose.msra.mxu0 0
        %312 = vmatprep.subr.bf16.mxu0 0
        %313 = vmatpush1.bf16.xpose.msra.mxu0 0
        %314 = vmatprep.subr.bf16.mxu0 0
        %315 = vmatpush1.bf16.xpose.msra.mxu0 0
        %316 = vmatprep.subr.bf16.mxu0 0
        %317 = vmatpush1.bf16.xpose.msra.mxu0 0
        %318 = vmatprep.subr.bf16.mxu0 0
        %319 = vmatpush1.bf16.xpose.msra.mxu0 0
        %320 = vmatprep.mubr.bf16.mxu0 0
        %321 = vmatmul.mubr.bf16.gmra.mrb[0].mxu0 %v283
        %v322 = vpop.f32.mrb[0].mxu0
        %v323 = vadd.f32 0.0, %v322
        %v324 = vpop.f32.mrb[0].mxu0
        %v325 = vpop.f32.mrb[0].mxu0
        %v326 = vpop.f32.mrb[0].mxu0
        %327 = vdwg.mxu0
        %v328 = vsel %vm281, %v323, -inf
        %329 = vmax.xlane.f32.xlu0 %v328
        %v330 = vpop.xlane.xlu0 %329
        %v331 = vsub.f32 %v323, %v330
        %v332 = vmul.f32 %v331, 1.442695
        %v333 = vpow.pop %v332
        %v334 = vsel %vm281, %v333, 0.0
        %335 = vadd.xlane.f32.xlu0 %v334
        %v336 = vpop.xlane.xlu0 %335
        %v337 = vrcp.pop %v336
        %v338 = vmul.f32 %v333, %v337
        %v339 = vpack.c.bf16 %v338, %v338
        %v341 = vsel %vm281, %v339, 0
        %vm343 = vcmask 1043456
        %v345 = vsel %vm343, %v280, 0
        %347 = vmatprep.subr.bf16.mxu0 0
        %348 = vmatpush1.bf16.msra.mxu0 %v345
        %349 = vmatprep.subr.bf16.mxu0 0
        %350 = vmatpush1.bf16.msra.mxu0 0
        %351 = vmatprep.subr.bf16.mxu0 0
        %352 = vmatpush1.bf16.msra.mxu0 0
        %353 = vmatprep.subr.bf16.mxu0 0
        %354 = vmatpush1.bf16.msra.mxu0 0
        %355 = vmatprep.subr.bf16.mxu0 0
        %356 = vmatpush1.bf16.msra.mxu0 0
        %357 = vmatprep.subr.bf16.mxu0 0
        %358 = vmatpush1.bf16.msra.mxu0 0
        %359 = vmatprep.subr.bf16.mxu0 0
        %360 = vmatpush1.bf16.msra.mxu0 0
        %361 = vmatprep.subr.bf16.mxu0 0
        %362 = vmatpush1.bf16.msra.mxu0 0
        %363 = vmatprep.subr.bf16.mxu0 0
        %364 = vmatpush1.bf16.msra.mxu0 0
        %365 = vmatprep.subr.bf16.mxu0 0
        %366 = vmatpush1.bf16.msra.mxu0 0
        %367 = vmatprep.subr.bf16.mxu0 0
        %368 = vmatpush1.bf16.msra.mxu0 0
        %369 = vmatprep.subr.bf16.mxu0 0
        %370 = vmatpush1.bf16.msra.mxu0 0
        %371 = vmatprep.subr.bf16.mxu0 0
        %372 = vmatpush1.bf16.msra.mxu0 0
        %373 = vmatprep.subr.bf16.mxu0 0
        %374 = vmatpush1.bf16.msra.mxu0 0
        %375 = vmatprep.subr.bf16.mxu0 0
        %376 = vmatpush1.bf16.msra.mxu0 0
        %377 = vmatprep.subr.bf16.mxu0 0
        %378 = vmatpush1.bf16.msra.mxu0 0
        %379 = vmatprep.mubr.bf16.mxu0 0
        %380 = vmatmul.mubr.bf16.gmra.mrb[0].mxu0 %v341
        %v381 = vpop.f32.mrb[0].mxu0
        %v382 = vadd.f32 0.0, %v381
        %v383 = vpop.f32.mrb[0].mxu0
        %v384 = vpop.f32.mrb[0].mxu0
        %v385 = vpop.f32.mrb[0].mxu0
        %386 = vdwg.mxu0
        %v387 = vpack.c.bf16 %v382, %v382
        %vm388 = vcmask 60416
        %389 = vst.msk [vmem:[%s273] sm:$0xf] %vm388, %v387
        %391 = vrot.lane.b32.xlu0 %v278, 120
        %v392 = vpop.permute.xlu0 %391
        %v394 = vunpack.c.l.b16 %v279
        %v395 = vpack.c.b16 %v394, %v394
        %396 = vrot.lane.b32.xlu0 %v395, 120
        %v397 = vpop.permute.xlu0 %396
        %v399 = vsel %vm281, %v392, 0
        %v402 = vsel %vm281, %v397, 0
        %404 = vmatprep.subr.bf16.mxu0 0
        %405 = vmatpush1.bf16.xpose.msra.mxu0 %v402
        %406 = vmatprep.subr.bf16.mxu0 0
        %407 = vmatpush1.bf16.xpose.msra.mxu0 0
        %408 = vmatprep.subr.bf16.mxu0 0
        %409 = vmatpush1.bf16.xpose.msra.mxu0 0
        %410 = vmatprep.subr.bf16.mxu0 0
        %411 = vmatpush1.bf16.xpose.msra.mxu0 0
        %412 = vmatprep.subr.bf16.mxu0 0
        %413 = vmatpush1.bf16.xpose.msra.mxu0 0
        %414 = vmatprep.subr.bf16.mxu0 0
        %415 = vmatpush1.bf16.xpose.msra.mxu0 0
        %416 = vmatprep.subr.bf16.mxu0 0
        %417 = vmatpush1.bf16.xpose.msra.mxu0 0
        %418 = vmatprep.subr.bf16.mxu0 0
        %419 = vmatpush1.bf16.xpose.msra.mxu0 0
        %420 = vmatprep.subr.bf16.mxu0 0
        %421 = vmatpush1.bf16.xpose.msra.mxu0 0
        %422 = vmatprep.subr.bf16.mxu0 0
        %423 = vmatpush1.bf16.xpose.msra.mxu0 0
        %424 = vmatprep.subr.bf16.mxu0 0
        %425 = vmatpush1.bf16.xpose.msra.mxu0 0
        %426 = vmatprep.subr.bf16.mxu0 0
        %427 = vmatpush1.bf16.xpose.msra.mxu0 0
        %428 = vmatprep.subr.bf16.mxu0 0
        %429 = vmatpush1.bf16.xpose.msra.mxu0 0
        %430 = vmatprep.subr.bf16.mxu0 0
        %431 = vmatpush1.bf16.xpose.msra.mxu0 0
        %432 = vmatprep.subr.bf16.mxu0 0
        %433 = vmatpush1.bf16.xpose.msra.mxu0 0
        %434 = vmatprep.subr.bf16.mxu0 0
        %435 = vmatpush1.bf16.xpose.msra.mxu0 0
        %436 = vmatprep.mubr.bf16.mxu0 0
        %437 = vmatmul.mubr.bf16.gmra.mrb[0].mxu0 %v399
        %v438 = vpop.f32.mrb[0].mxu0
        %v439 = vadd.f32 0.0, %v438
        %v440 = vpop.f32.mrb[0].mxu0
        %v441 = vpop.f32.mrb[0].mxu0
        %v442 = vpop.f32.mrb[0].mxu0
        %443 = vdwg.mxu0
        %v444 = vsel %vm281, %v439, -inf
        %445 = vmax.xlane.f32.xlu0 %v444
        %v446 = vpop.xlane.xlu0 %445
        %v447 = vsub.f32 %v439, %v446
        %v448 = vmul.f32 %v447, 1.442695
        %v449 = vpow.pop %v448
        %v450 = vsel %vm281, %v449, 0.0
        %451 = vadd.xlane.f32.xlu0 %v450
        %v452 = vpop.xlane.xlu0 %451
        %v453 = vrcp.pop %v452
        %v454 = vmul.f32 %v449, %v453
        %v455 = vpack.c.bf16 %v454, %v454
        %v457 = vunpack.c.l.b16 %v280
        %v458 = vpack.c.b16 %v457, %v457
        %459 = vrot.lane.b32.xlu0 %v458, 120
        %v460 = vpop.permute.xlu0 %459
        %v462 = vsel %vm281, %v455, 0
        %v465 = vsel %vm343, %v460, 0
        %467 = vmatprep.subr.bf16.mxu0 0
        %468 = vmatpush1.bf16.msra.mxu0 %v465
        %469 = vmatprep.subr.bf16.mxu0 0
        %470 = vmatpush1.bf16.msra.mxu0 0
        %471 = vmatprep.subr.bf16.mxu0 0
        %472 = vmatpush1.bf16.msra.mxu0 0
        %473 = vmatprep.subr.bf16.mxu0 0
        %474 = vmatpush1.bf16.msra.mxu0 0
        %475 = vmatprep.subr.bf16.mxu0 0
        %476 = vmatpush1.bf16.msra.mxu0 0
        %477 = vmatprep.subr.bf16.mxu0 0
        %478 = vmatpush1.bf16.msra.mxu0 0
        %479 = vmatprep.subr.bf16.mxu0 0
        %480 = vmatpush1.bf16.msra.mxu0 0
        %481 = vmatprep.subr.bf16.mxu0 0
        %482 = vmatpush1.bf16.msra.mxu0 0
        %483 = vmatprep.subr.bf16.mxu0 0
        %484 = vmatpush1.bf16.msra.mxu0 0
        %485 = vmatprep.subr.bf16.mxu0 0
        %486 = vmatpush1.bf16.msra.mxu0 0
        %487 = vmatprep.subr.bf16.mxu0 0
        %488 = vmatpush1.bf16.msra.mxu0 0
        %489 = vmatprep.subr.bf16.mxu0 0
        %490 = vmatpush1.bf16.msra.mxu0 0
        %491 = vmatprep.subr.bf16.mxu0 0
        %492 = vmatpush1.bf16.msra.mxu0 0
        %493 = vmatprep.subr.bf16.mxu0 0
        %494 = vmatpush1.bf16.msra.mxu0 0
        %495 = vmatprep.subr.bf16.mxu0 0
        %496 = vmatpush1.bf16.msra.mxu0 0
        %497 = vmatprep.subr.bf16.mxu0 0
        %498 = vmatpush1.bf16.msra.mxu0 0
        %499 = vmatprep.mubr.bf16.mxu0 0
        %500 = vmatmul.mubr.bf16.gmra.mrb[0].mxu0 %v462
        %v501 = vpop.f32.mrb[0].mxu0
        %v502 = vadd.f32 0.0, %v501
        %v503 = vpop.f32.mrb[0].mxu0
        %v504 = vpop.f32.mrb[0].mxu0
        %v505 = vpop.f32.mrb[0].mxu0
        %506 = vdwg.mxu0
        %v507 = vpack.c.bf16 %v502, %v502
        %v509 = vunpack.c.l.b16 %v507
        %v510 = vpack.c.b16 %v509, %v509
        %511 = vrot.lane.b32.xlu0 %v510, 8
        %v512 = vpop.permute.xlu0 %511
        %vm514 = vcmask 126016
        %515 = vst.msk [vmem:[%s273] sm:$0xf] %vm514, %v512
        %516 = vrot.lane.b32.xlu0 %v278, 112
        %v517 = vpop.permute.xlu0 %516
        %518 = vrot.lane.b32.xlu0 %v395, 112
        %v519 = vpop.permute.xlu0 %518
        %v521 = vsel %vm281, %v517, 0
        %v524 = vsel %vm281, %v519, 0
        %526 = vmatprep.subr.bf16.mxu0 0
        %527 = vmatpush1.bf16.xpose.msra.mxu0 %v524
        %528 = vmatprep.subr.bf16.mxu0 0
        %529 = vmatpush1.bf16.xpose.msra.mxu0 0
        %530 = vmatprep.subr.bf16.mxu0 0
        %531 = vmatpush1.bf16.xpose.msra.mxu0 0
        %532 = vmatprep.subr.bf16.mxu0 0
        %533 = vmatpush1.bf16.xpose.msra.mxu0 0
        %534 = vmatprep.subr.bf16.mxu0 0
        %535 = vmatpush1.bf16.xpose.msra.mxu0 0
        %536 = vmatprep.subr.bf16.mxu0 0
        %537 = vmatpush1.bf16.xpose.msra.mxu0 0
        %538 = vmatprep.subr.bf16.mxu0 0
        %539 = vmatpush1.bf16.xpose.msra.mxu0 0
        %540 = vmatprep.subr.bf16.mxu0 0
        %541 = vmatpush1.bf16.xpose.msra.mxu0 0
        %542 = vmatprep.subr.bf16.mxu0 0
        %543 = vmatpush1.bf16.xpose.msra.mxu0 0
        %544 = vmatprep.subr.bf16.mxu0 0
        %545 = vmatpush1.bf16.xpose.msra.mxu0 0
        %546 = vmatprep.subr.bf16.mxu0 0
        %547 = vmatpush1.bf16.xpose.msra.mxu0 0
        %548 = vmatprep.subr.bf16.mxu0 0
        %549 = vmatpush1.bf16.xpose.msra.mxu0 0
        %550 = vmatprep.subr.bf16.mxu0 0
        %551 = vmatpush1.bf16.xpose.msra.mxu0 0
        %552 = vmatprep.subr.bf16.mxu0 0
        %553 = vmatpush1.bf16.xpose.msra.mxu0 0
        %554 = vmatprep.subr.bf16.mxu0 0
        %555 = vmatpush1.bf16.xpose.msra.mxu0 0
        %556 = vmatprep.subr.bf16.mxu0 0
        %557 = vmatpush1.bf16.xpose.msra.mxu0 0
        %558 = vmatprep.mubr.bf16.mxu0 0
        %559 = vmatmul.mubr.bf16.gmra.mrb[0].mxu0 %v521
        %v560 = vpop.f32.mrb[0].mxu0
        %v561 = vadd.f32 0.0, %v560
        %v562 = vpop.f32.mrb[0].mxu0
        %v563 = vpop.f32.mrb[0].mxu0
        %v564 = vpop.f32.mrb[0].mxu0
        %565 = vdwg.mxu0
        %v566 = vsel %vm281, %v561, -inf
        %567 = vmax.xlane.f32.xlu0 %v566
        %v568 = vpop.xlane.xlu0 %567
        %v569 = vsub.f32 %v561, %v568
        %v570 = vmul.f32 %v569, 1.442695
        %v571 = vpow.pop %v570
        %v572 = vsel %vm281, %v571, 0.0
        %573 = vadd.xlane.f32.xlu0 %v572
        %v574 = vpop.xlane.xlu0 %573
        %v575 = vrcp.pop %v574
        %v576 = vmul.f32 %v571, %v575
        %v577 = vpack.c.bf16 %v576, %v576
        %578 = vrot.lane.b32.xlu0 %v458, 112
        %v579 = vpop.permute.xlu0 %578
        %v581 = vsel %vm281, %v577, 0
        %v584 = vsel %vm343, %v579, 0
        %586 = vmatprep.subr.bf16.mxu0 0
        %587 = vmatpush1.bf16.msra.mxu0 %v584
        %588 = vmatprep.subr.bf16.mxu0 0
        %589 = vmatpush1.bf16.msra.mxu0 0
        %590 = vmatprep.subr.bf16.mxu0 0
        %591 = vmatpush1.bf16.msra.mxu0 0
        %592 = vmatprep.subr.bf16.mxu0 0
        %593 = vmatpush1.bf16.msra.mxu0 0
        %594 = vmatprep.subr.bf16.mxu0 0
        %595 = vmatpush1.bf16.msra.mxu0 0
        %596 = vmatprep.subr.bf16.mxu0 0
        %597 = vmatpush1.bf16.msra.mxu0 0
        %598 = vmatprep.subr.bf16.mxu0 0
        %599 = vmatpush1.bf16.msra.mxu0 0
        %600 = vmatprep.subr.bf16.mxu0 0
        %601 = vmatpush1.bf16.msra.mxu0 0
        %602 = vmatprep.subr.bf16.mxu0 0
        %603 = vmatpush1.bf16.msra.mxu0 0
        %604 = vmatprep.subr.bf16.mxu0 0
        %605 = vmatpush1.bf16.msra.mxu0 0
        %606 = vmatprep.subr.bf16.mxu0 0
        %607 = vmatpush1.bf16.msra.mxu0 0
        %608 = vmatprep.subr.bf16.mxu0 0
        %609 = vmatpush1.bf16.msra.mxu0 0
        %610 = vmatprep.subr.bf16.mxu0 0
        %611 = vmatpush1.bf16.msra.mxu0 0
        %612 = vmatprep.subr.bf16.mxu0 0
        %613 = vmatpush1.bf16.msra.mxu0 0
        %614 = vmatprep.subr.bf16.mxu0 0
        %615 = vmatpush1.bf16.msra.mxu0 0
        %616 = vmatprep.subr.bf16.mxu0 0
        %617 = vmatpush1.bf16.msra.mxu0 0
        %618 = vmatprep.mubr.bf16.mxu0 0
        %619 = vmatmul.mubr.bf16.gmra.mrb[0].mxu0 %v581
        %v620 = vpop.f32.mrb[0].mxu0
        %v621 = vadd.f32 0.0, %v620
        %v622 = vpop.f32.mrb[0].mxu0
        %v623 = vpop.f32.mrb[0].mxu0
        %v624 = vpop.f32.mrb[0].mxu0
        %625 = vdwg.mxu0
        %v626 = vpack.c.bf16 %v621, %v621
        %v628 = vunpack.c.l.b16 %v626
        %v629 = vpack.c.b16 %v628, %v628
        %630 = vrot.lane.b32.xlu0 %v629, 16
        %v631 = vpop.permute.xlu0 %630
        %vm633 = vcmask 191616
        %634 = vst.msk [vmem:[%s273] sm:$0xf] %vm633, %v631
        %635 = vrot.lane.b32.xlu0 %v278, 104
        %v636 = vpop.permute.xlu0 %635
        %637 = vrot.lane.b32.xlu0 %v395, 104
        %v638 = vpop.permute.xlu0 %637
        %v640 = vsel %vm281, %v636, 0
        %v643 = vsel %vm281, %v638, 0
        %645 = vmatprep.subr.bf16.mxu0 0
        %646 = vmatpush1.bf16.xpose.msra.mxu0 %v643
        %647 = vmatprep.subr.bf16.mxu0 0
        %648 = vmatpush1.bf16.xpose.msra.mxu0 0
        %649 = vmatprep.subr.bf16.mxu0 0
        %650 = vmatpush1.bf16.xpose.msra.mxu0 0
        %651 = vmatprep.subr.bf16.mxu0 0
        %652 = vmatpush1.bf16.xpose.msra.mxu0 0
        %653 = vmatprep.subr.bf16.mxu0 0
        %654 = vmatpush1.bf16.xpose.msra.mxu0 0
        %655 = vmatprep.subr.bf16.mxu0 0
        %656 = vmatpush1.bf16.xpose.msra.mxu0 0
        %657 = vmatprep.subr.bf16.mxu0 0
        %658 = vmatpush1.bf16.xpose.msra.mxu0 0
        %659 = vmatprep.subr.bf16.mxu0 0
        %660 = vmatpush1.bf16.xpose.msra.mxu0 0
        %661 = vmatprep.subr.bf16.mxu0 0
        %662 = vmatpush1.bf16.xpose.msra.mxu0 0
        %663 = vmatprep.subr.bf16.mxu0 0
        %664 = vmatpush1.bf16.xpose.msra.mxu0 0
        %665 = vmatprep.subr.bf16.mxu0 0
        %666 = vmatpush1.bf16.xpose.msra.mxu0 0
        %667 = vmatprep.subr.bf16.mxu0 0
        %668 = vmatpush1.bf16.xpose.msra.mxu0 0
        %669 = vmatprep.subr.bf16.mxu0 0
        %670 = vmatpush1.bf16.xpose.msra.mxu0 0
        %671 = vmatprep.subr.bf16.mxu0 0
        %672 = vmatpush1.bf16.xpose.msra.mxu0 0
        %673 = vmatprep.subr.bf16.mxu0 0
        %674 = vmatpush1.bf16.xpose.msra.mxu0 0
        %675 = vmatprep.subr.bf16.mxu0 0
        %676 = vmatpush1.bf16.xpose.msra.mxu0 0
        %677 = vmatprep.mubr.bf16.mxu0 0
        %678 = vmatmul.mubr.bf16.gmra.mrb[0].mxu0 %v640
        %v679 = vpop.f32.mrb[0].mxu0
        %v680 = vadd.f32 0.0, %v679
        %v681 = vpop.f32.mrb[0].mxu0
        %v682 = vpop.f32.mrb[0].mxu0
        %v683 = vpop.f32.mrb[0].mxu0
        %684 = vdwg.mxu0
        %v685 = vsel %vm281, %v680, -inf
        %686 = vmax.xlane.f32.xlu0 %v685
        %v687 = vpop.xlane.xlu0 %686
        %v688 = vsub.f32 %v680, %v687
        %v689 = vmul.f32 %v688, 1.442695
        %v690 = vpow.pop %v689
        %v691 = vsel %vm281, %v690, 0.0
        %692 = vadd.xlane.f32.xlu0 %v691
        %v693 = vpop.xlane.xlu0 %692
        %v694 = vrcp.pop %v693
        %v695 = vmul.f32 %v690, %v694
        %v696 = vpack.c.bf16 %v695, %v695
        %697 = vrot.lane.b32.xlu0 %v458, 104
        %v698 = vpop.permute.xlu0 %697
        %v700 = vsel %vm281, %v696, 0
        %v703 = vsel %vm343, %v698, 0
        %705 = vmatprep.subr.bf16.mxu0 0
        %706 = vmatpush1.bf16.msra.mxu0 %v703
        %707 = vmatprep.subr.bf16.mxu0 0
        %708 = vmatpush1.bf16.msra.mxu0 0
        %709 = vmatprep.subr.bf16.mxu0 0
        %710 = vmatpush1.bf16.msra.mxu0 0
        %711 = vmatprep.subr.bf16.mxu0 0
        %712 = vmatpush1.bf16.msra.mxu0 0
        %713 = vmatprep.subr.bf16.mxu0 0
        %714 = vmatpush1.bf16.msra.mxu0 0
        %715 = vmatprep.subr.bf16.mxu0 0
        %716 = vmatpush1.bf16.msra.mxu0 0
        %717 = vmatprep.subr.bf16.mxu0 0
        %718 = vmatpush1.bf16.msra.mxu0 0
        %719 = vmatprep.subr.bf16.mxu0 0
        %720 = vmatpush1.bf16.msra.mxu0 0
        %721 = vmatprep.subr.bf16.mxu0 0
        %722 = vmatpush1.bf16.msra.mxu0 0
        %723 = vmatprep.subr.bf16.mxu0 0
        %724 = vmatpush1.bf16.msra.mxu0 0
        %725 = vmatprep.subr.bf16.mxu0 0
        %726 = vmatpush1.bf16.msra.mxu0 0
        %727 = vmatprep.subr.bf16.mxu0 0
        %728 = vmatpush1.bf16.msra.mxu0 0
        %729 = vmatprep.subr.bf16.mxu0 0
        %730 = vmatpush1.bf16.msra.mxu0 0
        %731 = vmatprep.subr.bf16.mxu0 0
        %732 = vmatpush1.bf16.msra.mxu0 0
        %733 = vmatprep.subr.bf16.mxu0 0
        %734 = vmatpush1.bf16.msra.mxu0 0
        %735 = vmatprep.subr.bf16.mxu0 0
        %736 = vmatpush1.bf16.msra.mxu0 0
        %737 = vmatprep.mubr.bf16.mxu0 0
        %738 = vmatmul.mubr.bf16.gmra.mrb[0].mxu0 %v700
        %v739 = vpop.f32.mrb[0].mxu0
        %v740 = vadd.f32 0.0, %v739
        %v741 = vpop.f32.mrb[0].mxu0
        %v742 = vpop.f32.mrb[0].mxu0
        %v743 = vpop.f32.mrb[0].mxu0
        %744 = vdwg.mxu0
        %v745 = vpack.c.bf16 %v740, %v740
        %v747 = vunpack.c.l.b16 %v745
        %v748 = vpack.c.b16 %v747, %v747
        %749 = vrot.lane.b32.xlu0 %v748, 24
        %v750 = vpop.permute.xlu0 %749
        %vm752 = vcmask 257216
        %753 = vst.msk [vmem:[%s273] sm:$0xf] %vm752, %v750
        %s754 = sand.u32 %s125, 1
        %s755 = scalar_lea.sflag [#allocation4], %s754
        %s756 = sand.u32 %s125, 1
        %s757 = smul.addr %s756, 4
        %s758 = scalar_lea.vmem [#allocation8], %s757
        // Predicated region
        $region45: #{bert_forward.27} parent=31 // pred_check
          %p759 = pneg %p135
        $region46: #{bert_forward.27} parent=31 // pred_check_branch
          %761 = sbr.rel (%p759) target = $region48
        $region47: #{bert_forward.27} parent=31 // pred_region
          %s763 = ssub.s32 64, 64
          %764 = vsyncadd %s755, %s763
          %s765 = sadd.s32 %s28, %s27
          %s766 = smul.addr %s765, 64
          %s767 = scalar_lea.hbm %s3, %s766
          %s769 = sshll.u32 %s758, 4
          %s770 = int_to_ptr.vmem [resolvable:$true] %s769
          %772 = dma.vmem_to_hbm [thread:$0]  %s770, 64, %s767, %s755
        $region48: #{bert_forward.27} parent=31 // pred_fallthru
          _
      $region32: #{bert_forward.27} parent=5 // pred_fallthru
        _
      %p773 = scmp.le.s32.totalorder 2, %s18
      // Predicated region
      $region49: #{bert_forward.27} parent=5 // pred_check
        %p774 = pneg %p773
      $region50: #{bert_forward.27} parent=5 // pred_check_branch
        %776 = sbr.rel (%p774) target = $region52
      $region51: #{bert_forward.27} parent=5 // pred_region
        %s777 = ssub.s32 %s18, 2
        // Predicated region
        $region53: #{bert_forward.27} parent=51 // pred_check
          %p778 = pneg %p141
        $region54: #{bert_forward.27} parent=51 // pred_check_branch
          %780 = sbr.rel (%p778) target = $region56
        $region55: #{bert_forward.27} parent=51 // pred_region
          %s781 = sand.u32 %s126, 1
          %s782 = scalar_lea.sflag [#allocation4], %s781
          %s783 = sand.u32 %s126, 1
          %s784 = smul.addr %s783, 4
          %s785 = scalar_lea.vmem [#allocation8], %s784
          %786 = dma.done %s782, 64
        $region56: #{bert_forward.27} parent=51 // pred_fallthru
          _
      $region52: #{bert_forward.27} parent=5 // pred_fallthru
        _
    $region6: #{bert_forward.27} parent=1 // loop_footer
      %s22 = sadd.s32 1, %s18
    $region7: #{bert_forward.27} parent=1 // loop_footer_branch
      %17 = sbr.rel target = $region3
    $region8: #{bert_forward.27} parent=1 // loop_exit
      _
    %787 = vsyncpa [#allocation3], 1
    %s788 = scalar_lea.sflag [#allocation3], 1
    %789 = vsyncpa %s788, 1
    %790 = vsyncpa [#allocation6], 1
    %s791 = scalar_lea.sflag [#allocation6], 1
    %792 = vsyncpa %s791, 1
    %793 = vsyncpa [#allocation4], 1
    %s794 = scalar_lea.sflag [#allocation4], 1
    %795 = vsyncpa %s794, 1

// kernel: bert_forward.28
$region0: #{bert_forward.28}
  #allocation0 [shape = 'u32[]', space=smem, size = 0x4, offset = 0x4, fixed_abs, tag = 'smem constant byte address 0x4 - core index']
  #allocation1 [shape = 'u32[144,128]{1,0:T(1,128)}', space=vmem, size = 0x12000, scoped, tag = 'internal scratch']
  #allocation2 [shape = 'f32[16,32]{1,0:T(8,128)}', space=vmem, size = 0x2000, scoped, tag = 'scratch operand']
  %s0 = inlined_call_operand.hbm [shape: bf16[16,32], index: 0, kind: input, shape index: {}]
  %s1 = inlined_call_operand.hbm [shape: bf16[32,32], index: 1, kind: input, shape index: {}]
  %s2 = inlined_call_operand.hbm [shape: f32[1,32], index: 2, kind: input, shape index: {}]
  %s3 = inlined_call_operand.hbm [shape: bf16[16,32], index: 3, kind: input, shape index: {}]
  %s4 = inlined_call_operand.hbm [shape: f32[1,32], index: 4, kind: input, shape index: {}]
  %s5 = inlined_call_operand.hbm [shape: f32[1,32], index: 5, kind: input, shape index: {}]
  %s6 = inlined_call_operand.hbm [shape: bf16[16,32], index: 6, kind: output, shape index: {}]
  %s7 = sld [smem:[#allocation0]]
  $region66: #{bert_forward.28} parent=0
    _
  %s9 = ssub.s32 1, %s7
  %s10 = scalar_select 0, %s9, %s7
  $region1: #{bert_forward.28} parent=0
    #allocation3 [shape = 'u8[4096]{0}', space=vmem, size = 0x1000, scoped, tag = 'input window, operand 0, single buffered']
    #allocation4 [shape = 's32[1]{0}', space=sflag, size = 0x4, scoped, tag = 'scoped memory for bert_forward.28']
    #allocation5 [shape = 's32[1]{0}', space=sflag, size = 0x4, scoped, tag = 'scoped memory for bert_forward.28']
    #allocation6 [shape = 'u8[8192]{0}', space=vmem, size = 0x2000, scoped, tag = 'input window, operand 1, single buffered']
    #allocation7 [shape = 's32[1]{0}', space=sflag, size = 0x4, scoped, tag = 'scoped memory for bert_forward.28']
    #allocation8 [shape = 'u8[512]{0}', space=vmem, size = 0x400, scoped, tag = 'input window, operand 2, single buffered']
    #allocation9 [shape = 'u8[4096]{0}', space=vmem, size = 0x1000, scoped, tag = 'input window, operand 3, single buffered']
    #allocation10 [shape = 's32[1]{0}', space=sflag, size = 0x4, scoped, tag = 'scoped memory for bert_forward.28']
    #allocation11 [shape = 'u8[512]{0}', space=vmem, size = 0x400, scoped, tag = 'input window, operand 4, single buffered']
    #allocation12 [shape = 'u8[512]{0}', space=vmem, size = 0x400, scoped, tag = 'input window, operand 5, single buffered']
    #allocation13 [shape = 's32[1]{0}', space=sflag, size = 0x4, scoped, tag = 'scoped memory for bert_forward.28']
    #allocation14 [shape = 'u8[4096]{0}', space=vmem, size = 0x1000, scoped, tag = 'output window, operand 0, single buffered']
    %11 = vsyncpa [#allocation4], 0
    %12 = vsyncpa [#allocation7], 0
    %13 = vsyncpa [#allocation10], 0
    %14 = vsyncpa [#allocation13], 0
    %15 = vsyncpa [#allocation5], 0
    // Predicated region
    $region2: #{bert_forward.28} parent=1 // pred_check
      _
    $region3: #{bert_forward.28} parent=1 // pred_check_branch
      %17 = sbr.rel (0) target = $region5
    $region4: #{bert_forward.28} parent=1 // pred_region
      %s19 = ssub.s32 128, 128
      %20 = vsyncadd [#allocation4], %s19
      %s21 = sshll.u32 [#allocation3], 4
      %s22 = int_to_ptr.vmem [resolvable:$true] %s21
      %27 = dma.hbm_to_vmem [thread:$0]  %s0, 128, %s22, [#allocation4], 64, 64, 4
    $region5: #{bert_forward.28} parent=1 // pred_fallthru
      _
    // Predicated region
    $region6: #{bert_forward.28} parent=1 // pred_check
      _
    $region7: #{bert_forward.28} parent=1 // pred_check_branch
      %29 = sbr.rel (0) target = $region9
    $region8: #{bert_forward.28} parent=1 // pred_region
      %s31 = ssub.s32 256, 256
      %32 = vsyncadd [#allocation7], %s31
      %s33 = sshll.u32 [#allocation6], 4
      %s34 = int_to_ptr.vmem [resolvable:$true] %s33
      %39 = dma.hbm_to_vmem [thread:$0]  %s1, 256, %s34, [#allocation7], 64, 64, 4
    $region9: #{bert_forward.28} parent=1 // pred_fallthru
      _
    // Predicated region
    $region10: #{bert_forward.28} parent=1 // pred_check
      _
    $region11: #{bert_forward.28} parent=1 // pred_check_branch
      %41 = sbr.rel (0) target = $region13
    $region12: #{bert_forward.28} parent=1 // pred_region
      %s43 = ssub.s32 16, 16
      %44 = vsyncadd [#allocation7], %s43
      %s46 = sshll.u32 [#allocation8], 4
      %s47 = int_to_ptr.vmem [resolvable:$true] %s46
      %49 = dma.hbm_to_vmem [thread:$0]  %s2, 16, %s47, [#allocation7]
    $region13: #{bert_forward.28} parent=1 // pred_fallthru
      _
    // Predicated region
    $region14: #{bert_forward.28} parent=1 // pred_check
      _
    $region15: #{bert_forward.28} parent=1 // pred_check_branch
      %51 = sbr.rel (0) target = $region17
    $region16: #{bert_forward.28} parent=1 // pred_region
      %s53 = ssub.s32 128, 128
      %54 = vsyncadd [#allocation10], %s53
      %s55 = sshll.u32 [#allocation9], 4
      %s56 = int_to_ptr.vmem [resolvable:$true] %s55
      %61 = dma.hbm_to_vmem [thread:$0]  %s3, 128, %s56, [#allocation10], 64, 64, 4
    $region17: #{bert_forward.28} parent=1 // pred_fallthru
      _
    // Predicated region
    $region18: #{bert_forward.28} parent=1 // pred_check
      _
    $region19: #{bert_forward.28} parent=1 // pred_check_branch
      %63 = sbr.rel (0) target = $region21
    $region20: #{bert_forward.28} parent=1 // pred_region
      %s65 = ssub.s32 16, 16
      %66 = vsyncadd [#allocation10], %s65
      %s68 = sshll.u32 [#allocation11], 4
      %s69 = int_to_ptr.vmem [resolvable:$true] %s68
      %71 = dma.hbm_to_vmem [thread:$0]  %s4, 16, %s69, [#allocation10]
    $region21: #{bert_forward.28} parent=1 // pred_fallthru
      _
    // Predicated region
    $region22: #{bert_forward.28} parent=1 // pred_check
      _
    $region23: #{bert_forward.28} parent=1 // pred_check_branch
      %73 = sbr.rel (0) target = $region25
    $region24: #{bert_forward.28} parent=1 // pred_region
      %s75 = ssub.s32 16, 16
      %76 = vsyncadd [#allocation13], %s75
      %s78 = sshll.u32 [#allocation12], 4
      %s79 = int_to_ptr.vmem [resolvable:$true] %s78
      %81 = dma.hbm_to_vmem [thread:$0]  %s5, 16, %s79, [#allocation13]
    $region25: #{bert_forward.28} parent=1 // pred_fallthru
      _
    // Predicated region
    $region26: #{bert_forward.28} parent=1 // pred_check
      _
    $region27: #{bert_forward.28} parent=1 // pred_check_branch
      %83 = sbr.rel (0) target = $region29
    $region28: #{bert_forward.28} parent=1 // pred_region
      %84 = dma.done [#allocation4], 128
    $region29: #{bert_forward.28} parent=1 // pred_fallthru
      _
    // Predicated region
    $region30: #{bert_forward.28} parent=1 // pred_check
      _
    $region31: #{bert_forward.28} parent=1 // pred_check_branch
      %86 = sbr.rel (0) target = $region33
    $region32: #{bert_forward.28} parent=1 // pred_region
      %87 = dma.done [#allocation7], 256
    $region33: #{bert_forward.28} parent=1 // pred_fallthru
      _
    // Predicated region
    $region34: #{bert_forward.28} parent=1 // pred_check
      _
    $region35: #{bert_forward.28} parent=1 // pred_check_branch
      %89 = sbr.rel (0) target = $region37
    $region36: #{bert_forward.28} parent=1 // pred_region
      %90 = dma.done [#allocation7], 16
    $region37: #{bert_forward.28} parent=1 // pred_fallthru
      _
    // Predicated region
    $region38: #{bert_forward.28} parent=1 // pred_check
      _
    $region39: #{bert_forward.28} parent=1 // pred_check_branch
      %92 = sbr.rel (0) target = $region41
    $region40: #{bert_forward.28} parent=1 // pred_region
      %93 = dma.done [#allocation10], 128
    $region41: #{bert_forward.28} parent=1 // pred_fallthru
      _
    // Predicated region
    $region42: #{bert_forward.28} parent=1 // pred_check
      _
    $region43: #{bert_forward.28} parent=1 // pred_check_branch
      %95 = sbr.rel (0) target = $region45
    $region44: #{bert_forward.28} parent=1 // pred_region
      %96 = dma.done [#allocation10], 16
    $region45: #{bert_forward.28} parent=1 // pred_fallthru
      _
    // Predicated region
    $region46: #{bert_forward.28} parent=1 // pred_check
      _
    $region47: #{bert_forward.28} parent=1 // pred_check_branch
      %98 = sbr.rel (0) target = $region49
    $region48: #{bert_forward.28} parent=1 // pred_region
      %99 = dma.done [#allocation13], 16
    $region49: #{bert_forward.28} parent=1 // pred_fallthru
      _
    %p101 = scmp.eq.s32.totalorder 0, 0
    // Predicated region
    $region50: #{bert_forward.28} parent=1 // pred_check
      %p102 = pneg %p101
    $region51: #{bert_forward.28} parent=1 // pred_check_branch
      %104 = sbr.rel (%p102) target = $region53
    $region52: #{bert_forward.28} parent=1 // pred_region
      %vm105 = vcmask 261120
      %106 = vst.msk [vmem:[#allocation2] sm:$0xff] %vm105, 0.0
      %107 = vst.msk [vmem:[#allocation2 + $0x8] sm:$0xff] %vm105, 0.0
    $region53: #{bert_forward.28} parent=1 // pred_fallthru
      _
    %v108 = vld [vmem:[#allocation2] sm:$0xff]
    %v109 = vld [vmem:[#allocation2 + $0x8] sm:$0xff]
    %v110 = vld [vmem:[#allocation3] sm:$0xf]
    %v111 = vld [vmem:[#allocation3 + $0x4] sm:$0xf]
    %v112 = vld [vmem:[#allocation6] sm:$0xf]
    %v113 = vld [vmem:[#allocation6 + $0x4] sm:$0xf]
    %v114 = vld [vmem:[#allocation6 + $0x8] sm:$0xf]
    %v115 = vld [vmem:[#allocation6 + $0xc] sm:$0xf]
    %v118 = vunpack.c.l.b16 %v110
    %v119 = vunpack.c.l.b16 %v111
    %v120 = vpack.c.b16 %v119, %v118
    %v125 = vunpack.c.l.b16 %v112
    %v126 = vunpack.c.l.b16 %v113
    %v127 = vunpack.c.l.b16 %v114
    %v128 = vunpack.c.l.b16 %v115
    %v129 = vpack.c.b16 %v126, %v125
    %v130 = vpack.c.b16 %v128, %v127
    %vm133 = vcmask 261120
    %v135 = vsel %vm133, %v120, 0
    %137 = vmatprep.subr.bf16.mxu0 0
    %138 = vmatpush1.bf16.msra.mxu0 %v129
    %139 = vmatprep.subr.bf16.mxu0 0
    %140 = vmatpush1.bf16.msra.mxu0 %v130
    %141 = vmatprep.subr.bf16.mxu0 0
    %142 = vmatpush1.bf16.msra.mxu0 0
    %143 = vmatprep.subr.bf16.mxu0 0
    %144 = vmatpush1.bf16.msra.mxu0 0
    %145 = vmatprep.subr.bf16.mxu0 0
    %146 = vmatpush1.bf16.msra.mxu0 0
    %147 = vmatprep.subr.bf16.mxu0 0
    %148 = vmatpush1.bf16.msra.mxu0 0
    %149 = vmatprep.subr.bf16.mxu0 0
    %150 = vmatpush1.bf16.msra.mxu0 0
    %151 = vmatprep.subr.bf16.mxu0 0
    %152 = vmatpush1.bf16.msra.mxu0 0
    %153 = vmatprep.subr.bf16.mxu0 0
    %154 = vmatpush1.bf16.msra.mxu0 0
    %155 = vmatprep.subr.bf16.mxu0 0
    %156 = vmatpush1.bf16.msra.mxu0 0
    %157 = vmatprep.subr.bf16.mxu0 0
    %158 = vmatpush1.bf16.msra.mxu0 0
    %159 = vmatprep.subr.bf16.mxu0 0
    %160 = vmatpush1.bf16.msra.mxu0 0
    %161 = vmatprep.subr.bf16.mxu0 0
    %162 = vmatpush1.bf16.msra.mxu0 0
    %163 = vmatprep.subr.bf16.mxu0 0
    %164 = vmatpush1.bf16.msra.mxu0 0
    %165 = vmatprep.subr.bf16.mxu0 0
    %166 = vmatpush1.bf16.msra.mxu0 0
    %167 = vmatprep.subr.bf16.mxu0 0
    %168 = vmatpush1.bf16.msra.mxu0 0
    %169 = vmatprep.mubr.bf16.mxu0 0
    %170 = vmatmul.mubr.bf16.gmra.mrb[0].mxu0 %v135
    %v171 = vpop.f32.mrb[0].mxu0
    %v172 = vadd.f32 0.0, %v171
    %v173 = vpop.f32.mrb[0].mxu0
    %v174 = vpop.f32.mrb[0].mxu0
    %v175 = vadd.f32 0.0, %v174
    %v176 = vpop.f32.mrb[0].mxu0
    %177 = vdwg.mxu0
    %v178 = vadd.f32 %v108, %v172
    %v179 = vadd.f32 %v109, %v175
    %180 = vst.msk [vmem:[#allocation2] sm:$0xff] %vm133, %v178
    %181 = vst.msk [vmem:[#allocation2 + $0x8] sm:$0xff] %vm133, %v179
    // Predicated region
    $region54: #{bert_forward.28} parent=1 // pred_check
      %p182 = pneg %p101
    $region55: #{bert_forward.28} parent=1 // pred_check_branch
      %184 = sbr.rel (%p182) target = $region57
    $region56: #{bert_forward.28} parent=1 // pred_region
      %v185 = vld [vmem:[#allocation2] sm:$0xff]
      %v186 = vld [vmem:[#allocation2 + $0x8] sm:$0xff]
      %v187 = vld [vmem:[#allocation8] sm:$0x1]
      %v189 = vlaneseq
      %v190 = vshrl.u32 %v189, 7
      %v191 = vsub.s32 0, %v190
      %v192 = vrot.slane %v187, %v191
      %v194 = vadd.f32 %v185, %v192
      %v195 = vadd.f32 %v186, %v192
      %v196 = vld [vmem:[#allocation9] sm:$0xf]
      %v197 = vld [vmem:[#allocation9 + $0x4] sm:$0xf]
      %v198 = vunpack.c.l.bf16 %v196
      %v199 = vunpack.c.l.bf16 %v197
      %v200 = vadd.f32 %v194, %v198
      %v201 = vadd.f32 %v195, %v199
      %v202 = vsel %vm133, %v200, 0.0
      %203 = vadd.xlane.f32.xlu0 %v202
      %v204 = vpop.xlane.xlu0 %203
      %v205 = vsel %vm133, %v201, 0.0
      %206 = vadd.xlane.f32.xlu0 %v205
      %v207 = vpop.xlane.xlu0 %206
      %v208 = vrcp.pop 32.0
      %v209 = vmul.f32 %v204, %v208
      %v210 = vmul.f32 %v207, %v208
      %v211 = vsub.f32 %v200, %v209
      %v212 = vsub.f32 %v201, %v210
      %v213 = vmul.f32 %v211, %v211
      %v214 = vmul.f32 %v212, %v212
      %v215 = vsel %vm133, %v213, 0.0
      %216 = vadd.xlane.f32.xlu0 %v215
      %v217 = vpop.xlane.xlu0 %216
      %v218 = vsel %vm133, %v214, 0.0
      %219 = vadd.xlane.f32.xlu0 %v218
      %v220 = vpop.xlane.xlu0 %219
      %v221 = vmul.f32 %v217, %v208
      %v222 = vmul.f32 %v220, %v208
      %v223 = vadd.f32 %v221, 1e-05
      %v224 = vadd.f32 %v222, 1e-05
      %v225 = vrsqrt.pop %v223
      %v226 = vrsqrt.pop %v224
      %v227 = vmul.f32 %v211, %v225
      %v228 = vmul.f32 %v212, %v226
      %v229 = vld [vmem:[#allocation11] sm:$0x1]
      %v231 = vlaneseq
      %v232 = vshrl.u32 %v231, 7
      %v233 = vsub.s32 0, %v232
      %v234 = vrot.slane %v229, %v233
      %v236 = vmul.f32 %v227, %v234
      %v237 = vmul.f32 %v228, %v234
      %v238 = vld [vmem:[#allocation12] sm:$0x1]
      %v240 = vlaneseq
      %v241 = vshrl.u32 %v240, 7
      %v242 = vsub.s32 0, %v241
      %v243 = vrot.slane %v238, %v242
      %v245 = vadd.f32 %v236, %v243
      %v246 = vadd.f32 %v237, %v243
      %v247 = vpack.c.bf16 %v246, %v245
      %v249 = vunpack.c.l.b16 %v247
      %v250 = vunpack.c.h.b16 %v247
      %v251 = vpack.c.b16 %v249, %v249
      %v252 = vpack.c.b16 %v250, %v250
      %vm255 = vcmask 257024
      %256 = vst.msk [vmem:[#allocation14] sm:$0xf] %vm255, %v251
      %257 = vst.msk [vmem:[#allocation14 + $0x4] sm:$0xf] %vm255, %v252
    $region57: #{bert_forward.28} parent=1 // pred_fallthru
      _
    // Predicated region
    $region58: #{bert_forward.28} parent=1 // pred_check
      _
    $region59: #{bert_forward.28} parent=1 // pred_check_branch
      %259 = sbr.rel (0) target = $region61
    $region60: #{bert_forward.28} parent=1 // pred_region
      %s261 = ssub.s32 128, 128
      %262 = vsyncadd [#allocation5], %s261
      %s263 = sshll.u32 [#allocation14], 4
      %s264 = int_to_ptr.vmem [resolvable:$true] %s263
      %269 = dma.vmem_to_hbm [thread:$0]  %s264, 128, %s6, [#allocation5], 64, 64, 4
    $region61: #{bert_forward.28} parent=1 // pred_fallthru
      _
    // Predicated region
    $region62: #{bert_forward.28} parent=1 // pred_check
      _
    $region63: #{bert_forward.28} parent=1 // pred_check_branch
      %271 = sbr.rel (0) target = $region65
    $region64: #{bert_forward.28} parent=1 // pred_region
      %272 = dma.done [#allocation5], 128
    $region65: #{bert_forward.28} parent=1 // pred_fallthru
      _
    %273 = vsyncpa [#allocation4], 1
    %274 = vsyncpa [#allocation7], 1
    %275 = vsyncpa [#allocation10], 1
    %276 = vsyncpa [#allocation13], 1
    %277 = vsyncpa [#allocation5], 1

// kernel: bert_forward.26
$region0: #{bert_forward.26}
  #allocation0 [shape = 'u32[]', space=smem, size = 0x4, offset = 0x4, fixed_abs, tag = 'smem constant byte address 0x4 - core index']
  #allocation1 [shape = 'u32[144,128]{1,0:T(1,128)}', space=vmem, size = 0x12000, scoped, tag = 'internal scratch']
  #allocation2 [shape = 'f32[16,32]{1,0:T(8,128)}', space=vmem, size = 0x2000, scoped, tag = 'scratch operand']
  #allocation3 [shape = 'f32[16,32]{1,0:T(8,128)}', space=vmem, size = 0x2000, scoped, tag = 'scratch operand']
  #allocation4 [shape = 'f32[16,32]{1,0:T(8,128)}', space=vmem, size = 0x2000, scoped, tag = 'scratch operand']
  %s0 = inlined_call_operand.hbm [shape: bf16[16,32], index: 0, kind: input, shape index: {}]
  %s1 = inlined_call_operand.hbm [shape: bf16[32,32], index: 1, kind: input, shape index: {}]
  %s2 = inlined_call_operand.hbm [shape: bf16[32,32], index: 2, kind: input, shape index: {}]
  %s3 = inlined_call_operand.hbm [shape: bf16[32,32], index: 3, kind: input, shape index: {}]
  %s4 = inlined_call_operand.hbm [shape: f32[1,32], index: 4, kind: input, shape index: {}]
  %s5 = inlined_call_operand.hbm [shape: f32[1,32], index: 5, kind: input, shape index: {}]
  %s6 = inlined_call_operand.hbm [shape: f32[1,32], index: 6, kind: input, shape index: {}]
  %s7 = inlined_call_operand.hbm [shape: bf16[16,32], index: 7, kind: output, shape index: {0}]
  %s8 = inlined_call_operand.hbm [shape: bf16[16,32], index: 8, kind: output, shape index: {1}]
  %s9 = inlined_call_operand.hbm [shape: bf16[16,32], index: 9, kind: output, shape index: {2}]
  %10 = xla_tuple %s7, %s8, %s9
  %s11 = sld [smem:[#allocation0]]
  $region90: #{bert_forward.26} parent=0
    _
  %s13 = ssub.s32 1, %s11
  %s14 = scalar_select 0, %s13, %s11
  $region1: #{bert_forward.26} parent=0
    #allocation5 [shape = 'u8[4096]{0}', space=vmem, size = 0x1000, scoped, tag = 'input window, operand 0, single buffered']
    #allocation6 [shape = 's32[1]{0}', space=sflag, size = 0x4, scoped, tag = 'scoped memory for bert_forward.26']
    #allocation7 [shape = 's32[1]{0}', space=sflag, size = 0x4, scoped, tag = 'scoped memory for bert_forward.26']
    #allocation8 [shape = 'u8[8192]{0}', space=vmem, size = 0x2000, scoped, tag = 'input window, operand 1, single buffered']
    #allocation9 [shape = 's32[1]{0}', space=sflag, size = 0x4, scoped, tag = 'scoped memory for bert_forward.26']
    #allocation10 [shape = 'u8[8192]{0}', space=vmem, size = 0x2000, scoped, tag = 'input window, operand 2, single buffered']
    #allocation11 [shape = 'u8[8192]{0}', space=vmem, size = 0x2000, scoped, tag = 'input window, operand 3, single buffered']
    #allocation12 [shape = 's32[1]{0}', space=sflag, size = 0x4, scoped, tag = 'scoped memory for bert_forward.26']
    #allocation13 [shape = 'u8[512]{0}', space=vmem, size = 0x400, scoped, tag = 'input window, operand 4, single buffered']
    #allocation14 [shape = 'u8[512]{0}', space=vmem, size = 0x400, scoped, tag = 'input window, operand 5, single buffered']
    #allocation15 [shape = 's32[1]{0}', space=sflag, size = 0x4, scoped, tag = 'scoped memory for bert_forward.26']
    #allocation16 [shape = 'u8[512]{0}', space=vmem, size = 0x400, scoped, tag = 'input window, operand 6, single buffered']
    #allocation17 [shape = 'u8[4096]{0}', space=vmem, size = 0x1000, scoped, tag = 'output window, operand 0, single buffered']
    #allocation18 [shape = 'u8[4096]{0}', space=vmem, size = 0x1000, scoped, tag = 'output window, operand 1, single buffered']
    #allocation19 [shape = 's32[1]{0}', space=sflag, size = 0x4, scoped, tag = 'scoped memory for bert_forward.26']
    #allocation20 [shape = 'u8[4096]{0}', space=vmem, size = 0x1000, scoped, tag = 'output window, operand 2, single buffered']
    %15 = vsyncpa [#allocation6], 0
    %16 = vsyncpa [#allocation9], 0
    %17 = vsyncpa [#allocation12], 0
    %18 = vsyncpa [#allocation15], 0
    %19 = vsyncpa [#allocation7], 0
    %20 = vsyncpa [#allocation19], 0
    // Predicated region
    $region2: #{bert_forward.26} parent=1 // pred_check
      _
    $region3: #{bert_forward.26} parent=1 // pred_check_branch
      %22 = sbr.rel (0) target = $region5
    $region4: #{bert_forward.26} parent=1 // pred_region
      %s24 = ssub.s32 128, 128
      %25 = vsyncadd [#allocation6], %s24
      %s26 = sshll.u32 [#allocation5], 4
      %s27 = int_to_ptr.vmem [resolvable:$true] %s26
      %32 = dma.hbm_to_vmem [thread:$0]  %s0, 128, %s27, [#allocation6], 64, 64, 4
    $region5: #{bert_forward.26} parent=1 // pred_fallthru
      _
    // Predicated region
    $region6: #{bert_forward.26} parent=1 // pred_check
      _
    $region7: #{bert_forward.26} parent=1 // pred_check_branch
      %34 = sbr.rel (0) target = $region9
    $region8: #{bert_forward.26} parent=1 // pred_region
      %s36 = ssub.s32 256, 256
      %37 = vsyncadd [#allocation9], %s36
      %s38 = sshll.u32 [#allocation8], 4
      %s39 = int_to_ptr.vmem [resolvable:$true] %s38
      %44 = dma.hbm_to_vmem [thread:$0]  %s1, 256, %s39, [#allocation9], 64, 64, 4
    $region9: #{bert_forward.26} parent=1 // pred_fallthru
      _
    // Predicated region
    $region10: #{bert_forward.26} parent=1 // pred_check
      _
    $region11: #{bert_forward.26} parent=1 // pred_check_branch
      %46 = sbr.rel (0) target = $region13
    $region12: #{bert_forward.26} parent=1 // pred_region
      %s48 = ssub.s32 256, 256
      %49 = vsyncadd [#allocation9], %s48
      %s50 = sshll.u32 [#allocation10], 4
      %s51 = int_to_ptr.vmem [resolvable:$true] %s50
      %56 = dma.hbm_to_vmem [thread:$0]  %s2, 256, %s51, [#allocation9], 64, 64, 4
    $region13: #{bert_forward.26} parent=1 // pred_fallthru
      _
    // Predicated region
    $region14: #{bert_forward.26} parent=1 // pred_check
      _
    $region15: #{bert_forward.26} parent=1 // pred_check_branch
      %58 = sbr.rel (0) target = $region17
    $region16: #{bert_forward.26} parent=1 // pred_region
      %s60 = ssub.s32 256, 256
      %61 = vsyncadd [#allocation12], %s60
      %s62 = sshll.u32 [#allocation11], 4
      %s63 = int_to_ptr.vmem [resolvable:$true] %s62
      %68 = dma.hbm_to_vmem [thread:$0]  %s3, 256, %s63, [#allocation12], 64, 64, 4
    $region17: #{bert_forward.26} parent=1 // pred_fallthru
      _
    // Predicated region
    $region18: #{bert_forward.26} parent=1 // pred_check
      _
    $region19: #{bert_forward.26} parent=1 // pred_check_branch
      %70 = sbr.rel (0) target = $region21
    $region20: #{bert_forward.26} parent=1 // pred_region
      %s72 = ssub.s32 16, 16
      %73 = vsyncadd [#allocation12], %s72
      %s75 = sshll.u32 [#allocation13], 4
      %s76 = int_to_ptr.vmem [resolvable:$true] %s75
      %78 = dma.hbm_to_vmem [thread:$0]  %s4, 16, %s76, [#allocation12]
    $region21: #{bert_forward.26} parent=1 // pred_fallthru
      _
    // Predicated region
    $region22: #{bert_forward.26} parent=1 // pred_check
      _
    $region23: #{bert_forward.26} parent=1 // pred_check_branch
      %80 = sbr.rel (0) target = $region25
    $region24: #{bert_forward.26} parent=1 // pred_region
      %s82 = ssub.s32 16, 16
      %83 = vsyncadd [#allocation15], %s82
      %s85 = sshll.u32 [#allocation14], 4
      %s86 = int_to_ptr.vmem [resolvable:$true] %s85
      %88 = dma.hbm_to_vmem [thread:$0]  %s5, 16, %s86, [#allocation15]
    $region25: #{bert_forward.26} parent=1 // pred_fallthru
      _
    // Predicated region
    $region26: #{bert_forward.26} parent=1 // pred_check
      _
    $region27: #{bert_forward.26} parent=1 // pred_check_branch
      %90 = sbr.rel (0) target = $region29
    $region28: #{bert_forward.26} parent=1 // pred_region
      %s92 = ssub.s32 16, 16
      %93 = vsyncadd [#allocation15], %s92
      %s95 = sshll.u32 [#allocation16], 4
      %s96 = int_to_ptr.vmem [resolvable:$true] %s95
      %98 = dma.hbm_to_vmem [thread:$0]  %s6, 16, %s96, [#allocation15]
    $region29: #{bert_forward.26} parent=1 // pred_fallthru
      _
    // Predicated region
    $region30: #{bert_forward.26} parent=1 // pred_check
      _
    $region31: #{bert_forward.26} parent=1 // pred_check_branch
      %100 = sbr.rel (0) target = $region33
    $region32: #{bert_forward.26} parent=1 // pred_region
      %101 = dma.done [#allocation6], 128
    $region33: #{bert_forward.26} parent=1 // pred_fallthru
      _
    // Predicated region
    $region34: #{bert_forward.26} parent=1 // pred_check
      _
    $region35: #{bert_forward.26} parent=1 // pred_check_branch
      %103 = sbr.rel (0) target = $region37
    $region36: #{bert_forward.26} parent=1 // pred_region
      %104 = dma.done [#allocation9], 256
    $region37: #{bert_forward.26} parent=1 // pred_fallthru
      _
    // Predicated region
    $region38: #{bert_forward.26} parent=1 // pred_check
      _
    $region39: #{bert_forward.26} parent=1 // pred_check_branch
      %106 = sbr.rel (0) target = $region41
    $region40: #{bert_forward.26} parent=1 // pred_region
      %107 = dma.done [#allocation9], 256
    $region41: #{bert_forward.26} parent=1 // pred_fallthru
      _
    // Predicated region
    $region42: #{bert_forward.26} parent=1 // pred_check
      _
    $region43: #{bert_forward.26} parent=1 // pred_check_branch
      %109 = sbr.rel (0) target = $region45
    $region44: #{bert_forward.26} parent=1 // pred_region
      %110 = dma.done [#allocation12], 256
    $region45: #{bert_forward.26} parent=1 // pred_fallthru
      _
    // Predicated region
    $region46: #{bert_forward.26} parent=1 // pred_check
      _
    $region47: #{bert_forward.26} parent=1 // pred_check_branch
      %112 = sbr.rel (0) target = $region49
    $region48: #{bert_forward.26} parent=1 // pred_region
      %113 = dma.done [#allocation12], 16
    $region49: #{bert_forward.26} parent=1 // pred_fallthru
      _
    // Predicated region
    $region50: #{bert_forward.26} parent=1 // pred_check
      _
    $region51: #{bert_forward.26} parent=1 // pred_check_branch
      %115 = sbr.rel (0) target = $region53
    $region52: #{bert_forward.26} parent=1 // pred_region
      %116 = dma.done [#allocation15], 16
    $region53: #{bert_forward.26} parent=1 // pred_fallthru
      _
    // Predicated region
    $region54: #{bert_forward.26} parent=1 // pred_check
      _
    $region55: #{bert_forward.26} parent=1 // pred_check_branch
      %118 = sbr.rel (0) target = $region57
    $region56: #{bert_forward.26} parent=1 // pred_region
      %119 = dma.done [#allocation15], 16
    $region57: #{bert_forward.26} parent=1 // pred_fallthru
      _
    %p121 = scmp.eq.s32.totalorder 0, 0
    // Predicated region
    $region58: #{bert_forward.26} parent=1 // pred_check
      %p122 = pneg %p121
    $region59: #{bert_forward.26} parent=1 // pred_check_branch
      %124 = sbr.rel (%p122) target = $region61
    $region60: #{bert_forward.26} parent=1 // pred_region
      %vm125 = vcmask 261120
      %126 = vst.msk [vmem:[#allocation2] sm:$0xff] %vm125, 0.0
      %127 = vst.msk [vmem:[#allocation2 + $0x8] sm:$0xff] %vm125, 0.0
      %128 = vst.msk [vmem:[#allocation3] sm:$0xff] %vm125, 0.0
      %129 = vst.msk [vmem:[#allocation3 + $0x8] sm:$0xff] %vm125, 0.0
      %130 = vst.msk [vmem:[#allocation4] sm:$0xff] %vm125, 0.0
      %131 = vst.msk [vmem:[#allocation4 + $0x8] sm:$0xff] %vm125, 0.0
    $region61: #{bert_forward.26} parent=1 // pred_fallthru
      _
    %v132 = vld [vmem:[#allocation5] sm:$0xf]
    %v133 = vld [vmem:[#allocation5 + $0x4] sm:$0xf]
    %v134 = vld [vmem:[#allocation2] sm:$0xff]
    %v135 = vld [vmem:[#allocation2 + $0x8] sm:$0xff]
    %v136 = vld [vmem:[#allocation8] sm:$0xf]
    %v137 = vld [vmem:[#allocation8 + $0x4] sm:$0xf]
    %v138 = vld [vmem:[#allocation8 + $0x8] sm:$0xf]
    %v139 = vld [vmem:[#allocation8 + $0xc] sm:$0xf]
    %v142 = vunpack.c.l.b16 %v132
    %v143 = vunpack.c.l.b16 %v133
    %v144 = vpack.c.b16 %v143, %v142
    %v149 = vunpack.c.l.b16 %v136
    %v150 = vunpack.c.l.b16 %v137
    %v151 = vunpack.c.l.b16 %v138
    %v152 = vunpack.c.l.b16 %v139
    %v153 = vpack.c.b16 %v150, %v149
    %v154 = vpack.c.b16 %v152, %v151
    %vm157 = vcmask 261120
    %v159 = vsel %vm157, %v144, 0
    %161 = vmatprep.subr.bf16.mxu0 0
    %162 = vmatpush1.bf16.msra.mxu0 %v153
    %163 = vmatprep.subr.bf16.mxu0 0
    %164 = vmatpush1.bf16.msra.mxu0 %v154
    %165 = vmatprep.subr.bf16.mxu0 0
    %166 = vmatpush1.bf16.msra.mxu0 0
    %167 = vmatprep.subr.bf16.mxu0 0
    %168 = vmatpush1.bf16.msra.mxu0 0
    %169 = vmatprep.subr.bf16.mxu0 0
    %170 = vmatpush1.bf16.msra.mxu0 0
    %171 = vmatprep.subr.bf16.mxu0 0
    %172 = vmatpush1.bf16.msra.mxu0 0
    %173 = vmatprep.subr.bf16.mxu0 0
    %174 = vmatpush1.bf16.msra.mxu0 0
    %175 = vmatprep.subr.bf16.mxu0 0
    %176 = vmatpush1.bf16.msra.mxu0 0
    %177 = vmatprep.subr.bf16.mxu0 0
    %178 = vmatpush1.bf16.msra.mxu0 0
    %179 = vmatprep.subr.bf16.mxu0 0
    %180 = vmatpush1.bf16.msra.mxu0 0
    %181 = vmatprep.subr.bf16.mxu0 0
    %182 = vmatpush1.bf16.msra.mxu0 0
    %183 = vmatprep.subr.bf16.mxu0 0
    %184 = vmatpush1.bf16.msra.mxu0 0
    %185 = vmatprep.subr.bf16.mxu0 0
    %186 = vmatpush1.bf16.msra.mxu0 0
    %187 = vmatprep.subr.bf16.mxu0 0
    %188 = vmatpush1.bf16.msra.mxu0 0
    %189 = vmatprep.subr.bf16.mxu0 0
    %190 = vmatpush1.bf16.msra.mxu0 0
    %191 = vmatprep.subr.bf16.mxu0 0
    %192 = vmatpush1.bf16.msra.mxu0 0
    %193 = vmatprep.mubr.bf16.mxu0 0
    %194 = vmatmul.mubr.bf16.gmra.mrb[0].mxu0 %v159
    %v195 = vpop.f32.mrb[0].mxu0
    %v196 = vadd.f32 0.0, %v195
    %v197 = vpop.f32.mrb[0].mxu0
    %v198 = vpop.f32.mrb[0].mxu0
    %v199 = vadd.f32 0.0, %v198
    %v200 = vpop.f32.mrb[0].mxu0
    %201 = vdwg.mxu0
    %v202 = vadd.f32 %v134, %v196
    %v203 = vadd.f32 %v135, %v199
    %204 = vst.msk [vmem:[#allocation2] sm:$0xff] %vm157, %v202
    %205 = vst.msk [vmem:[#allocation2 + $0x8] sm:$0xff] %vm157, %v203
    %v206 = vld [vmem:[#allocation3] sm:$0xff]
    %v207 = vld [vmem:[#allocation3 + $0x8] sm:$0xff]
    %v208 = vld [vmem:[#allocation10] sm:$0xf]
    %v209 = vld [vmem:[#allocation10 + $0x4] sm:$0xf]
    %v210 = vld [vmem:[#allocation10 + $0x8] sm:$0xf]
    %v211 = vld [vmem:[#allocation10 + $0xc] sm:$0xf]
    %v216 = vunpack.c.l.b16 %v208
    %v217 = vunpack.c.l.b16 %v209
    %v218 = vunpack.c.l.b16 %v210
    %v219 = vunpack.c.l.b16 %v211
    %v220 = vpack.c.b16 %v217, %v216
    %v221 = vpack.c.b16 %v219, %v218
    %224 = vmatprep.subr.bf16.mxu0 0
    %225 = vmatpush1.bf16.msra.mxu0 %v220
    %226 = vmatprep.subr.bf16.mxu0 0
    %227 = vmatpush1.bf16.msra.mxu0 %v221
    %228 = vmatprep.subr.bf16.mxu0 0
    %229 = vmatpush1.bf16.msra.mxu0 0
    %230 = vmatprep.subr.bf16.mxu0 0
    %231 = vmatpush1.bf16.msra.mxu0 0
    %232 = vmatprep.subr.bf16.mxu0 0
    %233 = vmatpush1.bf16.msra.mxu0 0
    %234 = vmatprep.subr.bf16.mxu0 0
    %235 = vmatpush1.bf16.msra.mxu0 0
    %236 = vmatprep.subr.bf16.mxu0 0
    %237 = vmatpush1.bf16.msra.mxu0 0
    %238 = vmatprep.subr.bf16.mxu0 0
    %239 = vmatpush1.bf16.msra.mxu0 0
    %240 = vmatprep.subr.bf16.mxu0 0
    %241 = vmatpush1.bf16.msra.mxu0 0
    %242 = vmatprep.subr.bf16.mxu0 0
    %243 = vmatpush1.bf16.msra.mxu0 0
    %244 = vmatprep.subr.bf16.mxu0 0
    %245 = vmatpush1.bf16.msra.mxu0 0
    %246 = vmatprep.subr.bf16.mxu0 0
    %247 = vmatpush1.bf16.msra.mxu0 0
    %248 = vmatprep.subr.bf16.mxu0 0
    %249 = vmatpush1.bf16.msra.mxu0 0
    %250 = vmatprep.subr.bf16.mxu0 0
    %251 = vmatpush1.bf16.msra.mxu0 0
    %252 = vmatprep.subr.bf16.mxu0 0
    %253 = vmatpush1.bf16.msra.mxu0 0
    %254 = vmatprep.subr.bf16.mxu0 0
    %255 = vmatpush1.bf16.msra.mxu0 0
    %256 = vmatprep.mubr.bf16.mxu0 0
    %257 = vmatmul.mubr.bf16.gmra.mrb[0].mxu0 %v159
    %v258 = vpop.f32.mrb[0].mxu0
    %v259 = vadd.f32 0.0, %v258
    %v260 = vpop.f32.mrb[0].mxu0
    %v261 = vpop.f32.mrb[0].mxu0
    %v262 = vadd.f32 0.0, %v261
    %v263 = vpop.f32.mrb[0].mxu0
    %264 = vdwg.mxu0
    %v265 = vadd.f32 %v206, %v259
    %v266 = vadd.f32 %v207, %v262
    %267 = vst.msk [vmem:[#allocation3] sm:$0xff] %vm157, %v265
    %268 = vst.msk [vmem:[#allocation3 + $0x8] sm:$0xff] %vm157, %v266
    %v269 = vld [vmem:[#allocation4] sm:$0xff]
    %v270 = vld [vmem:[#allocation4 + $0x8] sm:$0xff]
    %v271 = vld [vmem:[#allocation11] sm:$0xf]
    %v272 = vld [vmem:[#allocation11 + $0x4] sm:$0xf]
    %v273 = vld [vmem:[#allocation11 + $0x8] sm:$0xf]
    %v274 = vld [vmem:[#allocation11 + $0xc] sm:$0xf]
    %v279 = vunpack.c.l.b16 %v271
    %v280 = vunpack.c.l.b16 %v272
    %v281 = vunpack.c.l.b16 %v273
    %v282 = vunpack.c.l.b16 %v274
    %v283 = vpack.c.b16 %v280, %v279
    %v284 = vpack.c.b16 %v282, %v281
    %287 = vmatprep.subr.bf16.mxu0 0
    %288 = vmatpush1.bf16.msra.mxu0 %v283
    %289 = vmatprep.subr.bf16.mxu0 0
    %290 = vmatpush1.bf16.msra.mxu0 %v284
    %291 = vmatprep.subr.bf16.mxu0 0
    %292 = vmatpush1.bf16.msra.mxu0 0
    %293 = vmatprep.subr.bf16.mxu0 0
    %294 = vmatpush1.bf16.msra.mxu0 0
    %295 = vmatprep.subr.bf16.mxu0 0
    %296 = vmatpush1.bf16.msra.mxu0 0
    %297 = vmatprep.subr.bf16.mxu0 0
    %298 = vmatpush1.bf16.msra.mxu0 0
    %299 = vmatprep.subr.bf16.mxu0 0
    %300 = vmatpush1.bf16.msra.mxu0 0
    %301 = vmatprep.subr.bf16.mxu0 0
    %302 = vmatpush1.bf16.msra.mxu0 0
    %303 = vmatprep.subr.bf16.mxu0 0
    %304 = vmatpush1.bf16.msra.mxu0 0
    %305 = vmatprep.subr.bf16.mxu0 0
    %306 = vmatpush1.bf16.msra.mxu0 0
    %307 = vmatprep.subr.bf16.mxu0 0
    %308 = vmatpush1.bf16.msra.mxu0 0
    %309 = vmatprep.subr.bf16.mxu0 0
    %310 = vmatpush1.bf16.msra.mxu0 0
    %311 = vmatprep.subr.bf16.mxu0 0
    %312 = vmatpush1.bf16.msra.mxu0 0
    %313 = vmatprep.subr.bf16.mxu0 0
    %314 = vmatpush1.bf16.msra.mxu0 0
    %315 = vmatprep.subr.bf16.mxu0 0
    %316 = vmatpush1.bf16.msra.mxu0 0
    %317 = vmatprep.subr.bf16.mxu0 0
    %318 = vmatpush1.bf16.msra.mxu0 0
    %319 = vmatprep.mubr.bf16.mxu0 0
    %320 = vmatmul.mubr.bf16.gmra.mrb[0].mxu0 %v159
    %v321 = vpop.f32.mrb[0].mxu0
    %v322 = vadd.f32 0.0, %v321
    %v323 = vpop.f32.mrb[0].mxu0
    %v324 = vpop.f32.mrb[0].mxu0
    %v325 = vadd.f32 0.0, %v324
    %v326 = vpop.f32.mrb[0].mxu0
    %327 = vdwg.mxu0
    %v328 = vadd.f32 %v269, %v322
    %v329 = vadd.f32 %v270, %v325
    %330 = vst.msk [vmem:[#allocation4] sm:$0xff] %vm157, %v328
    %331 = vst.msk [vmem:[#allocation4 + $0x8] sm:$0xff] %vm157, %v329
    // Predicated region
    $region62: #{bert_forward.26} parent=1 // pred_check
      %p332 = pneg %p121
    $region63: #{bert_forward.26} parent=1 // pred_check_branch
      %334 = sbr.rel (%p332) target = $region65
    $region64: #{bert_forward.26} parent=1 // pred_region
      %v335 = vld [vmem:[#allocation2] sm:$0xff]
      %v336 = vld [vmem:[#allocation2 + $0x8] sm:$0xff]
      %v337 = vld [vmem:[#allocation13] sm:$0x1]
      %v339 = vlaneseq
      %v340 = vshrl.u32 %v339, 7
      %v341 = vsub.s32 0, %v340
      %v342 = vrot.slane %v337, %v341
      %v344 = vadd.f32 %v335, %v342
      %v345 = vadd.f32 %v336, %v342
      %v346 = vpack.c.bf16 %v345, %v344
      %v348 = vunpack.c.l.b16 %v346
      %v349 = vunpack.c.h.b16 %v346
      %v350 = vpack.c.b16 %v348, %v348
      %v351 = vpack.c.b16 %v349, %v349
      %vm354 = vcmask 257024
      %355 = vst.msk [vmem:[#allocation17] sm:$0xf] %vm354, %v350
      %356 = vst.msk [vmem:[#allocation17 + $0x4] sm:$0xf] %vm354, %v351
      %v357 = vld [vmem:[#allocation3] sm:$0xff]
      %v358 = vld [vmem:[#allocation3 + $0x8] sm:$0xff]
      %v359 = vld [vmem:[#allocation14] sm:$0x1]
      %v361 = vlaneseq
      %v362 = vshrl.u32 %v361, 7
      %v363 = vsub.s32 0, %v362
      %v364 = vrot.slane %v359, %v363
      %v366 = vadd.f32 %v357, %v364
      %v367 = vadd.f32 %v358, %v364
      %v368 = vpack.c.bf16 %v367, %v366
      %v370 = vunpack.c.l.b16 %v368
      %v371 = vunpack.c.h.b16 %v368
      %v372 = vpack.c.b16 %v370, %v370
      %v373 = vpack.c.b16 %v371, %v371
      %376 = vst.msk [vmem:[#allocation18] sm:$0xf] %vm354, %v372
      %377 = vst.msk [vmem:[#allocation18 + $0x4] sm:$0xf] %vm354, %v373
      %v378 = vld [vmem:[#allocation4] sm:$0xff]
      %v379 = vld [vmem:[#allocation4 + $0x8] sm:$0xff]
      %v380 = vld [vmem:[#allocation16] sm:$0x1]
      %v382 = vlaneseq
      %v383 = vshrl.u32 %v382, 7
      %v384 = vsub.s32 0, %v383
      %v385 = vrot.slane %v380, %v384
      %v387 = vadd.f32 %v378, %v385
      %v388 = vadd.f32 %v379, %v385
      %v389 = vpack.c.bf16 %v388, %v387
      %v391 = vunpack.c.l.b16 %v389
      %v392 = vunpack.c.h.b16 %v389
      %v393 = vpack.c.b16 %v391, %v391
      %v394 = vpack.c.b16 %v392, %v392
      %397 = vst.msk [vmem:[#allocation20] sm:$0xf] %vm354, %v393
      %398 = vst.msk [vmem:[#allocation20 + $0x4] sm:$0xf] %vm354, %v394
    $region65: #{bert_forward.26} parent=1 // pred_fallthru
      _
    // Predicated region
    $region66: #{bert_forward.26} parent=1 // pred_check
      _
    $region67: #{bert_forward.26} parent=1 // pred_check_branch
      %400 = sbr.rel (0) target = $region69
    $region68: #{bert_forward.26} parent=1 // pred_region
      %s402 = ssub.s32 128, 128
      %403 = vsyncadd [#allocation7], %s402
      %s404 = sshll.u32 [#allocation17], 4
      %s405 = int_to_ptr.vmem [resolvable:$true] %s404
      %410 = dma.vmem_to_hbm [thread:$0]  %s405, 128, %s7, [#allocation7], 64, 64, 4
    $region69: #{bert_forward.26} parent=1 // pred_fallthru
      _
    // Predicated region
    $region70: #{bert_forward.26} parent=1 // pred_check
      _
    $region71: #{bert_forward.26} parent=1 // pred_check_branch
      %412 = sbr.rel (0) target = $region73
    $region72: #{bert_forward.26} parent=1 // pred_region
      %s414 = ssub.s32 128, 128
      %415 = vsyncadd [#allocation19], %s414
      %s416 = sshll.u32 [#allocation18], 4
      %s417 = int_to_ptr.vmem [resolvable:$true] %s416
      %422 = dma.vmem_to_hbm [thread:$0]  %s417, 128, %s8, [#allocation19], 64, 64, 4
    $region73: #{bert_forward.26} parent=1 // pred_fallthru
      _
    // Predicated region
    $region74: #{bert_forward.26} parent=1 // pred_check
      _
    $region75: #{bert_forward.26} parent=1 // pred_check_branch
      %424 = sbr.rel (0) target = $region77
    $region76: #{bert_forward.26} parent=1 // pred_region
      %s426 = ssub.s32 128, 128
      %427 = vsyncadd [#allocation19], %s426
      %s428 = sshll.u32 [#allocation20], 4
      %s429 = int_to_ptr.vmem [resolvable:$true] %s428
      %434 = dma.vmem_to_hbm [thread:$0]  %s429, 128, %s9, [#allocation19], 64, 64, 4
    $region77: #{bert_forward.26} parent=1 // pred_fallthru
      _
    // Predicated region
    $region78: #{bert_forward.26} parent=1 // pred_check
      _
    $region79: #{bert_forward.26} parent=1 // pred_check_branch
      %436 = sbr.rel (0) target = $region81
    $region80: #{bert_forward.26} parent=1 // pred_region
      %437 = dma.done [#allocation7], 128
    $region81: #{bert_forward.26} parent=1 // pred_fallthru
      _
    // Predicated region
    $region82: #{bert_forward.26} parent=1 // pred_check
      _
    $region83: #{bert_forward.26} parent=1 // pred_check_branch
      %439 = sbr.rel (0) target = $region85
    $region84: #{bert_forward.26} parent=1 // pred_region
      %440 = dma.done [#allocation19], 128
    $region85: #{bert_forward.26} parent=1 // pred_fallthru
      _
    // Predicated region
    $region86: #{bert_forward.26} parent=1 // pred_check
      _
    $region87: #{bert_forward.26} parent=1 // pred_check_branch
      %442 = sbr.rel (0) target = $region89
    $region88: #{bert_forward.26} parent=1 // pred_region
      %443 = dma.done [#allocation19], 128
    $region89: #{bert_forward.26} parent=1 // pred_fallthru
      _
    %444 = vsyncpa [#allocation6], 1
    %445 = vsyncpa [#allocation9], 1
    %446 = vsyncpa [#allocation12], 1
    %447 = vsyncpa [#allocation15], 1
    %448 = vsyncpa [#allocation7], 1
    %449 = vsyncpa [#allocation19], 1

// kernel: bert_forward.29
$region0: #{bert_forward.29}
  #allocation0 [shape = 'u32[]', space=smem, size = 0x4, offset = 0x4, fixed_abs, tag = 'smem constant byte address 0x4 - core index']
  #allocation1 [shape = 'u32[144,128]{1,0:T(1,128)}', space=vmem, size = 0x12000, scoped, tag = 'internal scratch']
  %s0 = inlined_call_operand.hbm [shape: bf16[16,32], index: 0, kind: input, shape index: {}]
  %s1 = inlined_call_operand.hbm [shape: bf16[32,64], index: 1, kind: input, shape index: {}]
  %s2 = inlined_call_operand.hbm [shape: f32[1,64], index: 2, kind: input, shape index: {}]
  %s3 = inlined_call_operand.hbm [shape: bf16[64,32], index: 3, kind: input, shape index: {}]
  %s4 = inlined_call_operand.hbm [shape: f32[1,32], index: 4, kind: input, shape index: {}]
  %s5 = inlined_call_operand.hbm [shape: f32[1,32], index: 5, kind: input, shape index: {}]
  %s6 = inlined_call_operand.hbm [shape: f32[1,32], index: 6, kind: input, shape index: {}]
  %s7 = inlined_call_operand.hbm [shape: bf16[16,32], index: 7, kind: output, shape index: {}]
  %s8 = sld [smem:[#allocation0]]
  $region66: #{bert_forward.29} parent=0
    _
  %s10 = ssub.s32 1, %s8
  %s11 = scalar_select 0, %s10, %s8
  $region1: #{bert_forward.29} parent=0
    #allocation2 [shape = 'u8[4096]{0}', space=vmem, size = 0x1000, scoped, tag = 'input window, operand 0, single buffered']
    #allocation3 [shape = 's32[1]{0}', space=sflag, size = 0x4, scoped, tag = 'scoped memory for bert_forward.29']
    #allocation4 [shape = 's32[1]{0}', space=sflag, size = 0x4, scoped, tag = 'scoped memory for bert_forward.29']
    #allocation5 [shape = 'u8[8192]{0}', space=vmem, size = 0x2000, scoped, tag = 'input window, operand 1, single buffered']
    #allocation6 [shape = 's32[1]{0}', space=sflag, size = 0x4, scoped, tag = 'scoped memory for bert_forward.29']
    #allocation7 [shape = 'u8[512]{0}', space=vmem, size = 0x400, scoped, tag = 'input window, operand 2, single buffered']
    #allocation8 [shape = 'u8[16384]{0}', space=vmem, size = 0x4000, scoped, tag = 'input window, operand 3, single buffered']
    #allocation9 [shape = 's32[1]{0}', space=sflag, size = 0x4, scoped, tag = 'scoped memory for bert_forward.29']
    #allocation10 [shape = 'u8[512]{0}', space=vmem, size = 0x400, scoped, tag = 'input window, operand 4, single buffered']
    #allocation11 [shape = 'u8[512]{0}', space=vmem, size = 0x400, scoped, tag = 'input window, operand 5, single buffered']
    #allocation12 [shape = 's32[1]{0}', space=sflag, size = 0x4, scoped, tag = 'scoped memory for bert_forward.29']
    #allocation13 [shape = 'u8[512]{0}', space=vmem, size = 0x400, scoped, tag = 'input window, operand 6, single buffered']
    #allocation14 [shape = 'u8[4096]{0}', space=vmem, size = 0x1000, scoped, tag = 'output window, operand 0, single buffered']
    %12 = vsyncpa [#allocation3], 0
    %13 = vsyncpa [#allocation6], 0
    %14 = vsyncpa [#allocation9], 0
    %15 = vsyncpa [#allocation12], 0
    %16 = vsyncpa [#allocation4], 0
    // Predicated region
    $region2: #{bert_forward.29} parent=1 // pred_check
      _
    $region3: #{bert_forward.29} parent=1 // pred_check_branch
      %18 = sbr.rel (0) target = $region5
    $region4: #{bert_forward.29} parent=1 // pred_region
      %s20 = ssub.s32 128, 128
      %21 = vsyncadd [#allocation3], %s20
      %s22 = sshll.u32 [#allocation2], 4
      %s23 = int_to_ptr.vmem [resolvable:$true] %s22
      %28 = dma.hbm_to_vmem [thread:$0]  %s0, 128, %s23, [#allocation3], 64, 64, 4
    $region5: #{bert_forward.29} parent=1 // pred_fallthru
      _
    // Predicated region
    $region6: #{bert_forward.29} parent=1 // pred_check
      _
    $region7: #{bert_forward.29} parent=1 // pred_check_branch
      %30 = sbr.rel (0) target = $region9
    $region8: #{bert_forward.29} parent=1 // pred_region
      %s32 = ssub.s32 256, 256
      %33 = vsyncadd [#allocation6], %s32
      %s34 = sshll.u32 [#allocation5], 4
      %s35 = int_to_ptr.vmem [resolvable:$true] %s34
      %40 = dma.hbm_to_vmem [thread:$0]  %s1, 256, %s35, [#allocation6], 64, 64, 4
    $region9: #{bert_forward.29} parent=1 // pred_fallthru
      _
    // Predicated region
    $region10: #{bert_forward.29} parent=1 // pred_check
      _
    $region11: #{bert_forward.29} parent=1 // pred_check_branch
      %42 = sbr.rel (0) target = $region13
    $region12: #{bert_forward.29} parent=1 // pred_region
      %s44 = ssub.s32 16, 16
      %45 = vsyncadd [#allocation6], %s44
      %s47 = sshll.u32 [#allocation7], 4
      %s48 = int_to_ptr.vmem [resolvable:$true] %s47
      %50 = dma.hbm_to_vmem [thread:$0]  %s2, 16, %s48, [#allocation6]
    $region13: #{bert_forward.29} parent=1 // pred_fallthru
      _
    // Predicated region
    $region14: #{bert_forward.29} parent=1 // pred_check
      _
    $region15: #{bert_forward.29} parent=1 // pred_check_branch
      %52 = sbr.rel (0) target = $region17
    $region16: #{bert_forward.29} parent=1 // pred_region
      %s54 = ssub.s32 512, 512
      %55 = vsyncadd [#allocation9], %s54
      %s56 = sshll.u32 [#allocation8], 4
      %s57 = int_to_ptr.vmem [resolvable:$true] %s56
      %62 = dma.hbm_to_vmem [thread:$0]  %s3, 512, %s57, [#allocation9], 64, 64, 4
    $region17: #{bert_forward.29} parent=1 // pred_fallthru
      _
    // Predicated region
    $region18: #{bert_forward.29} parent=1 // pred_check
      _
    $region19: #{bert_forward.29} parent=1 // pred_check_branch
      %64 = sbr.rel (0) target = $region21
    $region20: #{bert_forward.29} parent=1 // pred_region
      %s66 = ssub.s32 16, 16
      %67 = vsyncadd [#allocation9], %s66
      %s69 = sshll.u32 [#allocation10], 4
      %s70 = int_to_ptr.vmem [resolvable:$true] %s69
      %72 = dma.hbm_to_vmem [thread:$0]  %s4, 16, %s70, [#allocation9]
    $region21: #{bert_forward.29} parent=1 // pred_fallthru
      _
    // Predicated region
    $region22: #{bert_forward.29} parent=1 // pred_check
      _
    $region23: #{bert_forward.29} parent=1 // pred_check_branch
      %74 = sbr.rel (0) target = $region25
    $region24: #{bert_forward.29} parent=1 // pred_region
      %s76 = ssub.s32 16, 16
      %77 = vsyncadd [#allocation12], %s76
      %s79 = sshll.u32 [#allocation11], 4
      %s80 = int_to_ptr.vmem [resolvable:$true] %s79
      %82 = dma.hbm_to_vmem [thread:$0]  %s5, 16, %s80, [#allocation12]
    $region25: #{bert_forward.29} parent=1 // pred_fallthru
      _
    // Predicated region
    $region26: #{bert_forward.29} parent=1 // pred_check
      _
    $region27: #{bert_forward.29} parent=1 // pred_check_branch
      %84 = sbr.rel (0) target = $region29
    $region28: #{bert_forward.29} parent=1 // pred_region
      %s86 = ssub.s32 16, 16
      %87 = vsyncadd [#allocation12], %s86
      %s89 = sshll.u32 [#allocation13], 4
      %s90 = int_to_ptr.vmem [resolvable:$true] %s89
      %92 = dma.hbm_to_vmem [thread:$0]  %s6, 16, %s90, [#allocation12]
    $region29: #{bert_forward.29} parent=1 // pred_fallthru
      _
    // Predicated region
    $region30: #{bert_forward.29} parent=1 // pred_check
      _
    $region31: #{bert_forward.29} parent=1 // pred_check_branch
      %94 = sbr.rel (0) target = $region33
    $region32: #{bert_forward.29} parent=1 // pred_region
      %95 = dma.done [#allocation3], 128
    $region33: #{bert_forward.29} parent=1 // pred_fallthru
      _
    // Predicated region
    $region34: #{bert_forward.29} parent=1 // pred_check
      _
    $region35: #{bert_forward.29} parent=1 // pred_check_branch
      %97 = sbr.rel (0) target = $region37
    $region36: #{bert_forward.29} parent=1 // pred_region
      %98 = dma.done [#allocation6], 256
    $region37: #{bert_forward.29} parent=1 // pred_fallthru
      _
    // Predicated region
    $region38: #{bert_forward.29} parent=1 // pred_check
      _
    $region39: #{bert_forward.29} parent=1 // pred_check_branch
      %100 = sbr.rel (0) target = $region41
    $region40: #{bert_forward.29} parent=1 // pred_region
      %101 = dma.done [#allocation6], 16
    $region41: #{bert_forward.29} parent=1 // pred_fallthru
      _
    // Predicated region
    $region42: #{bert_forward.29} parent=1 // pred_check
      _
    $region43: #{bert_forward.29} parent=1 // pred_check_branch
      %103 = sbr.rel (0) target = $region45
    $region44: #{bert_forward.29} parent=1 // pred_region
      %104 = dma.done [#allocation9], 512
    $region45: #{bert_forward.29} parent=1 // pred_fallthru
      _
    // Predicated region
    $region46: #{bert_forward.29} parent=1 // pred_check
      _
    $region47: #{bert_forward.29} parent=1 // pred_check_branch
      %106 = sbr.rel (0) target = $region49
    $region48: #{bert_forward.29} parent=1 // pred_region
      %107 = dma.done [#allocation9], 16
    $region49: #{bert_forward.29} parent=1 // pred_fallthru
      _
    // Predicated region
    $region50: #{bert_forward.29} parent=1 // pred_check
      _
    $region51: #{bert_forward.29} parent=1 // pred_check_branch
      %109 = sbr.rel (0) target = $region53
    $region52: #{bert_forward.29} parent=1 // pred_region
      %110 = dma.done [#allocation12], 16
    $region53: #{bert_forward.29} parent=1 // pred_fallthru
      _
    // Predicated region
    $region54: #{bert_forward.29} parent=1 // pred_check
      _
    $region55: #{bert_forward.29} parent=1 // pred_check_branch
      %112 = sbr.rel (0) target = $region57
    $region56: #{bert_forward.29} parent=1 // pred_region
      %113 = dma.done [#allocation12], 16
    $region57: #{bert_forward.29} parent=1 // pred_fallthru
      _
    %v115 = vld [vmem:[#allocation2] sm:$0xf]
    %v116 = vld [vmem:[#allocation2 + $0x4] sm:$0xf]
    %v117 = vld [vmem:[#allocation5] sm:$0xf]
    %v118 = vld [vmem:[#allocation5 + $0x4] sm:$0xf]
    %v119 = vld [vmem:[#allocation5 + $0x8] sm:$0xf]
    %v120 = vld [vmem:[#allocation5 + $0xc] sm:$0xf]
    %v121 = vld [vmem:[#allocation7] sm:$0x1]
    %v123 = vlaneseq
    %v124 = vshrl.u32 %v123, 7
    %v125 = vsub.s32 0, %v124
    %v126 = vrot.slane %v121, %v125
    %v130 = vunpack.c.l.b16 %v115
    %v131 = vunpack.c.l.b16 %v116
    %v132 = vpack.c.b16 %v131, %v130
    %v137 = vunpack.c.l.b16 %v117
    %v138 = vunpack.c.l.b16 %v118
    %v139 = vunpack.c.l.b16 %v119
    %v140 = vunpack.c.l.b16 %v120
    %v141 = vpack.c.b16 %v138, %v137
    %v142 = vpack.c.b16 %v140, %v139
    %vm145 = vcmask 261120
    %v147 = vsel %vm145, %v132, 0
    %149 = vmatprep.subr.bf16.mxu0 0
    %150 = vmatpush1.bf16.msra.mxu0 %v141
    %151 = vmatprep.subr.bf16.mxu0 0
    %152 = vmatpush1.bf16.msra.mxu0 %v142
    %153 = vmatprep.subr.bf16.mxu0 0
    %154 = vmatpush1.bf16.msra.mxu0 0
    %155 = vmatprep.subr.bf16.mxu0 0
    %156 = vmatpush1.bf16.msra.mxu0 0
    %157 = vmatprep.subr.bf16.mxu0 0
    %158 = vmatpush1.bf16.msra.mxu0 0
    %159 = vmatprep.subr.bf16.mxu0 0
    %160 = vmatpush1.bf16.msra.mxu0 0
    %161 = vmatprep.subr.bf16.mxu0 0
    %162 = vmatpush1.bf16.msra.mxu0 0
    %163 = vmatprep.subr.bf16.mxu0 0
    %164 = vmatpush1.bf16.msra.mxu0 0
    %165 = vmatprep.subr.bf16.mxu0 0
    %166 = vmatpush1.bf16.msra.mxu0 0
    %167 = vmatprep.subr.bf16.mxu0 0
    %168 = vmatpush1.bf16.msra.mxu0 0
    %169 = vmatprep.subr.bf16.mxu0 0
    %170 = vmatpush1.bf16.msra.mxu0 0
    %171 = vmatprep.subr.bf16.mxu0 0
    %172 = vmatpush1.bf16.msra.mxu0 0
    %173 = vmatprep.subr.bf16.mxu0 0
    %174 = vmatpush1.bf16.msra.mxu0 0
    %175 = vmatprep.subr.bf16.mxu0 0
    %176 = vmatpush1.bf16.msra.mxu0 0
    %177 = vmatprep.subr.bf16.mxu0 0
    %178 = vmatpush1.bf16.msra.mxu0 0
    %179 = vmatprep.subr.bf16.mxu0 0
    %180 = vmatpush1.bf16.msra.mxu0 0
    %181 = vmatprep.mubr.bf16.mxu0 0
    %182 = vmatmul.mubr.bf16.gmra.mrb[0].mxu0 %v147
    %v183 = vpop.f32.mrb[0].mxu0
    %v184 = vadd.f32 %v126, %v183
    %v185 = vpop.f32.mrb[0].mxu0
    %v186 = vpop.f32.mrb[0].mxu0
    %v187 = vadd.f32 %v126, %v186
    %v188 = vpop.f32.mrb[0].mxu0
    %189 = vdwg.mxu0
    %v190 = vmax.f32 %v184, 0.0
    %v191 = vmax.f32 %v187, 0.0
    %v192 = vpack.c.bf16 %v191, %v190
    %v193 = vld [vmem:[#allocation8] sm:$0xf]
    %v194 = vld [vmem:[#allocation8 + $0x4] sm:$0xf]
    %v195 = vld [vmem:[#allocation8 + $0x8] sm:$0xf]
    %v196 = vld [vmem:[#allocation8 + $0xc] sm:$0xf]
    %v197 = vld [vmem:[#allocation8 + $0x10] sm:$0xf]
    %v198 = vld [vmem:[#allocation8 + $0x14] sm:$0xf]
    %v199 = vld [vmem:[#allocation8 + $0x18] sm:$0xf]
    %v200 = vld [vmem:[#allocation8 + $0x1c] sm:$0xf]
    %v201 = vld [vmem:[#allocation10] sm:$0x1]
    %v203 = vlaneseq
    %v204 = vshrl.u32 %v203, 7
    %v205 = vsub.s32 0, %v204
    %v206 = vrot.slane %v201, %v205
    %v216 = vunpack.c.l.b16 %v193
    %v217 = vunpack.c.l.b16 %v194
    %v218 = vunpack.c.l.b16 %v195
    %v219 = vunpack.c.l.b16 %v196
    %v220 = vunpack.c.l.b16 %v197
    %v221 = vunpack.c.l.b16 %v198
    %v222 = vunpack.c.l.b16 %v199
    %v223 = vunpack.c.l.b16 %v200
    %v224 = vpack.c.b16 %v217, %v216
    %v225 = vpack.c.b16 %v219, %v218
    %v226 = vpack.c.b16 %v221, %v220
    %v227 = vpack.c.b16 %v223, %v222
    %vm232 = vcmask 523264
    %v234 = vsel %vm232, %v192, 0
    %236 = vmatprep.subr.bf16.mxu0 0
    %237 = vmatpush1.bf16.msra.mxu0 %v224
    %238 = vmatprep.subr.bf16.mxu0 0
    %239 = vmatpush1.bf16.msra.mxu0 %v225
    %240 = vmatprep.subr.bf16.mxu0 0
    %241 = vmatpush1.bf16.msra.mxu0 %v226
    %242 = vmatprep.subr.bf16.mxu0 0
    %243 = vmatpush1.bf16.msra.mxu0 %v227
    %244 = vmatprep.subr.bf16.mxu0 0
    %245 = vmatpush1.bf16.msra.mxu0 0
    %246 = vmatprep.subr.bf16.mxu0 0
    %247 = vmatpush1.bf16.msra.mxu0 0
    %248 = vmatprep.subr.bf16.mxu0 0
    %249 = vmatpush1.bf16.msra.mxu0 0
    %250 = vmatprep.subr.bf16.mxu0 0
    %251 = vmatpush1.bf16.msra.mxu0 0
    %252 = vmatprep.subr.bf16.mxu0 0
    %253 = vmatpush1.bf16.msra.mxu0 0
    %254 = vmatprep.subr.bf16.mxu0 0
    %255 = vmatpush1.bf16.msra.mxu0 0
    %256 = vmatprep.subr.bf16.mxu0 0
    %257 = vmatpush1.bf16.msra.mxu0 0
    %258 = vmatprep.subr.bf16.mxu0 0
    %259 = vmatpush1.bf16.msra.mxu0 0
    %260 = vmatprep.subr.bf16.mxu0 0
    %261 = vmatpush1.bf16.msra.mxu0 0
    %262 = vmatprep.subr.bf16.mxu0 0
    %263 = vmatpush1.bf16.msra.mxu0 0
    %264 = vmatprep.subr.bf16.mxu0 0
    %265 = vmatpush1.bf16.msra.mxu0 0
    %266 = vmatprep.subr.bf16.mxu0 0
    %267 = vmatpush1.bf16.msra.mxu0 0
    %268 = vmatprep.mubr.bf16.mxu0 0
    %269 = vmatmul.mubr.bf16.gmra.mrb[0].mxu0 %v234
    %v270 = vpop.f32.mrb[0].mxu0
    %v271 = vadd.f32 %v206, %v270
    %v272 = vpop.f32.mrb[0].mxu0
    %v273 = vpop.f32.mrb[0].mxu0
    %v274 = vadd.f32 %v206, %v273
    %v275 = vpop.f32.mrb[0].mxu0
    %276 = vdwg.mxu0
    %v277 = vunpack.c.l.bf16 %v115
    %v278 = vunpack.c.l.bf16 %v116
    %v279 = vadd.f32 %v277, %v271
    %v280 = vadd.f32 %v278, %v274
    %v281 = vsel %vm145, %v279, 0.0
    %282 = vadd.xlane.f32.xlu0 %v281
    %v283 = vpop.xlane.xlu0 %282
    %v284 = vsel %vm145, %v280, 0.0
    %285 = vadd.xlane.f32.xlu0 %v284
    %v286 = vpop.xlane.xlu0 %285
    %v287 = vrcp.pop 32.0
    %v288 = vmul.f32 %v283, %v287
    %v289 = vmul.f32 %v286, %v287
    %v290 = vsub.f32 %v279, %v288
    %v291 = vsub.f32 %v280, %v289
    %v292 = vmul.f32 %v290, %v290
    %v293 = vmul.f32 %v291, %v291
    %v294 = vsel %vm145, %v292, 0.0
    %295 = vadd.xlane.f32.xlu0 %v294
    %v296 = vpop.xlane.xlu0 %295
    %v297 = vsel %vm145, %v293, 0.0
    %298 = vadd.xlane.f32.xlu0 %v297
    %v299 = vpop.xlane.xlu0 %298
    %v300 = vmul.f32 %v296, %v287
    %v301 = vmul.f32 %v299, %v287
    %v302 = vadd.f32 %v300, 1e-05
    %v303 = vadd.f32 %v301, 1e-05
    %v304 = vrsqrt.pop %v302
    %v305 = vrsqrt.pop %v303
    %v306 = vmul.f32 %v290, %v304
    %v307 = vmul.f32 %v291, %v305
    %v308 = vld [vmem:[#allocation11] sm:$0x1]
    %v310 = vlaneseq
    %v311 = vshrl.u32 %v310, 7
    %v312 = vsub.s32 0, %v311
    %v313 = vrot.slane %v308, %v312
    %v315 = vmul.f32 %v306, %v313
    %v316 = vmul.f32 %v307, %v313
    %v317 = vld [vmem:[#allocation13] sm:$0x1]
    %v319 = vlaneseq
    %v320 = vshrl.u32 %v319, 7
    %v321 = vsub.s32 0, %v320
    %v322 = vrot.slane %v317, %v321
    %v324 = vadd.f32 %v315, %v322
    %v325 = vadd.f32 %v316, %v322
    %v326 = vpack.c.bf16 %v325, %v324
    %v328 = vunpack.c.l.b16 %v326
    %v329 = vunpack.c.h.b16 %v326
    %v330 = vpack.c.b16 %v328, %v328
    %v331 = vpack.c.b16 %v329, %v329
    %vm334 = vcmask 257024
    %335 = vst.msk [vmem:[#allocation14] sm:$0xf] %vm334, %v330
    %336 = vst.msk [vmem:[#allocation14 + $0x4] sm:$0xf] %vm334, %v331
    // Predicated region
    $region58: #{bert_forward.29} parent=1 // pred_check
      _
    $region59: #{bert_forward.29} parent=1 // pred_check_branch
      %338 = sbr.rel (0) target = $region61
    $region60: #{bert_forward.29} parent=1 // pred_region
      %s340 = ssub.s32 128, 128
      %341 = vsyncadd [#allocation4], %s340
      %s342 = sshll.u32 [#allocation14], 4
      %s343 = int_to_ptr.vmem [resolvable:$true] %s342
      %348 = dma.vmem_to_hbm [thread:$0]  %s343, 128, %s7, [#allocation4], 64, 64, 4
    $region61: #{bert_forward.29} parent=1 // pred_fallthru
      _
    // Predicated region
    $region62: #{bert_forward.29} parent=1 // pred_check
      _
    $region63: #{bert_forward.29} parent=1 // pred_check_branch
      %350 = sbr.rel (0) target = $region65
    $region64: #{bert_forward.29} parent=1 // pred_region
      %351 = dma.done [#allocation4], 128
    $region65: #{bert_forward.29} parent=1 // pred_fallthru
      _
    %352 = vsyncpa [#allocation3], 1
    %353 = vsyncpa [#allocation6], 1
    %354 = vsyncpa [#allocation9], 1
    %355 = vsyncpa [#allocation12], 1
    %356 = vsyncpa [#allocation4], 1

// kernel: bert_forward.38
$region0: #{bert_forward.38}
  #allocation0 [shape = 'u32[]', space=smem, size = 0x4, offset = 0x4, fixed_abs, tag = 'smem constant byte address 0x4 - core index']
  #allocation1 [shape = 'u32[144,128]{1,0:T(1,128)}', space=vmem, size = 0x12000, scoped, tag = 'internal scratch']
  #allocation2 [shape = 'f32[16,32]{1,0:T(8,128)}', space=vmem, size = 0x2000, scoped, tag = 'scratch operand']
  %s0 = inlined_call_operand.hbm [shape: bf16[16,32], index: 0, kind: input, shape index: {}]
  %s1 = inlined_call_operand.hbm [shape: bf16[32,32], index: 1, kind: input, shape index: {}]
  %s2 = inlined_call_operand.hbm [shape: f32[1,32], index: 2, kind: input, shape index: {}]
  %s3 = inlined_call_operand.hbm [shape: bf16[16,32], index: 3, kind: output, shape index: {}]
  %s4 = sld [smem:[#allocation0]]
  $region42: #{bert_forward.38} parent=0
    _
  %s6 = ssub.s32 1, %s4
  %s7 = scalar_select 0, %s6, %s4
  $region1: #{bert_forward.38} parent=0
    #allocation3 [shape = 'u8[4096]{0}', space=vmem, size = 0x1000, scoped, tag = 'input window, operand 0, single buffered']
    #allocation4 [shape = 's32[1]{0}', space=sflag, size = 0x4, scoped, tag = 'scoped memory for bert_forward.38']
    #allocation5 [shape = 's32[1]{0}', space=sflag, size = 0x4, scoped, tag = 'scoped memory for bert_forward.38']
    #allocation6 [shape = 'u8[8192]{0}', space=vmem, size = 0x2000, scoped, tag = 'input window, operand 1, single buffered']
    #allocation7 [shape = 's32[1]{0}', space=sflag, size = 0x4, scoped, tag = 'scoped memory for bert_forward.38']
    #allocation8 [shape = 'u8[512]{0}', space=vmem, size = 0x400, scoped, tag = 'input window, operand 2, single buffered']
    #allocation9 [shape = 'u8[4096]{0}', space=vmem, size = 0x1000, scoped, tag = 'output window, operand 0, single buffered']
    %8 = vsyncpa [#allocation4], 0
    %9 = vsyncpa [#allocation7], 0
    %10 = vsyncpa [#allocation5], 0
    // Predicated region
    $region2: #{bert_forward.38} parent=1 // pred_check
      _
    $region3: #{bert_forward.38} parent=1 // pred_check_branch
      %12 = sbr.rel (0) target = $region5
    $region4: #{bert_forward.38} parent=1 // pred_region
      %s14 = ssub.s32 128, 128
      %15 = vsyncadd [#allocation4], %s14
      %s16 = sshll.u32 [#allocation3], 4
      %s17 = int_to_ptr.vmem [resolvable:$true] %s16
      %22 = dma.hbm_to_vmem [thread:$0]  %s0, 128, %s17, [#allocation4], 64, 64, 4
    $region5: #{bert_forward.38} parent=1 // pred_fallthru
      _
    // Predicated region
    $region6: #{bert_forward.38} parent=1 // pred_check
      _
    $region7: #{bert_forward.38} parent=1 // pred_check_branch
      %24 = sbr.rel (0) target = $region9
    $region8: #{bert_forward.38} parent=1 // pred_region
      %s26 = ssub.s32 256, 256
      %27 = vsyncadd [#allocation7], %s26
      %s28 = sshll.u32 [#allocation6], 4
      %s29 = int_to_ptr.vmem [resolvable:$true] %s28
      %34 = dma.hbm_to_vmem [thread:$0]  %s1, 256, %s29, [#allocation7], 64, 64, 4
    $region9: #{bert_forward.38} parent=1 // pred_fallthru
      _
    // Predicated region
    $region10: #{bert_forward.38} parent=1 // pred_check
      _
    $region11: #{bert_forward.38} parent=1 // pred_check_branch
      %36 = sbr.rel (0) target = $region13
    $region12: #{bert_forward.38} parent=1 // pred_region
      %s38 = ssub.s32 16, 16
      %39 = vsyncadd [#allocation7], %s38
      %s41 = sshll.u32 [#allocation8], 4
      %s42 = int_to_ptr.vmem [resolvable:$true] %s41
      %44 = dma.hbm_to_vmem [thread:$0]  %s2, 16, %s42, [#allocation7]
    $region13: #{bert_forward.38} parent=1 // pred_fallthru
      _
    // Predicated region
    $region14: #{bert_forward.38} parent=1 // pred_check
      _
    $region15: #{bert_forward.38} parent=1 // pred_check_branch
      %46 = sbr.rel (0) target = $region17
    $region16: #{bert_forward.38} parent=1 // pred_region
      %47 = dma.done [#allocation4], 128
    $region17: #{bert_forward.38} parent=1 // pred_fallthru
      _
    // Predicated region
    $region18: #{bert_forward.38} parent=1 // pred_check
      _
    $region19: #{bert_forward.38} parent=1 // pred_check_branch
      %49 = sbr.rel (0) target = $region21
    $region20: #{bert_forward.38} parent=1 // pred_region
      %50 = dma.done [#allocation7], 256
    $region21: #{bert_forward.38} parent=1 // pred_fallthru
      _
    // Predicated region
    $region22: #{bert_forward.38} parent=1 // pred_check
      _
    $region23: #{bert_forward.38} parent=1 // pred_check_branch
      %52 = sbr.rel (0) target = $region25
    $region24: #{bert_forward.38} parent=1 // pred_region
      %53 = dma.done [#allocation7], 16
    $region25: #{bert_forward.38} parent=1 // pred_fallthru
      _
    %p55 = scmp.eq.s32.totalorder 0, 0
    // Predicated region
    $region26: #{bert_forward.38} parent=1 // pred_check
      %p56 = pneg %p55
    $region27: #{bert_forward.38} parent=1 // pred_check_branch
      %58 = sbr.rel (%p56) target = $region29
    $region28: #{bert_forward.38} parent=1 // pred_region
      %vm59 = vcmask 261120
      %60 = vst.msk [vmem:[#allocation2] sm:$0xff] %vm59, 0.0
      %61 = vst.msk [vmem:[#allocation2 + $0x8] sm:$0xff] %vm59, 0.0
    $region29: #{bert_forward.38} parent=1 // pred_fallthru
      _
    %v62 = vld [vmem:[#allocation3] sm:$0xf]
    %v63 = vld [vmem:[#allocation3 + $0x4] sm:$0xf]
    %v64 = vld [vmem:[#allocation2] sm:$0xff]
    %v65 = vld [vmem:[#allocation2 + $0x8] sm:$0xff]
    %v66 = vld [vmem:[#allocation6] sm:$0xf]
    %v67 = vld [vmem:[#allocation6 + $0x4] sm:$0xf]
    %v68 = vld [vmem:[#allocation6 + $0x8] sm:$0xf]
    %v69 = vld [vmem:[#allocation6 + $0xc] sm:$0xf]
    %v72 = vunpack.c.l.b16 %v62
    %v73 = vunpack.c.l.b16 %v63
    %v74 = vpack.c.b16 %v73, %v72
    %v79 = vunpack.c.l.b16 %v66
    %v80 = vunpack.c.l.b16 %v67
    %v81 = vunpack.c.l.b16 %v68
    %v82 = vunpack.c.l.b16 %v69
    %v83 = vpack.c.b16 %v80, %v79
    %v84 = vpack.c.b16 %v82, %v81
    %vm87 = vcmask 261120
    %v89 = vsel %vm87, %v74, 0
    %91 = vmatprep.subr.bf16.mxu0 0
    %92 = vmatpush1.bf16.msra.mxu0 %v83
    %93 = vmatprep.subr.bf16.mxu0 0
    %94 = vmatpush1.bf16.msra.mxu0 %v84
    %95 = vmatprep.subr.bf16.mxu0 0
    %96 = vmatpush1.bf16.msra.mxu0 0
    %97 = vmatprep.subr.bf16.mxu0 0
    %98 = vmatpush1.bf16.msra.mxu0 0
    %99 = vmatprep.subr.bf16.mxu0 0
    %100 = vmatpush1.bf16.msra.mxu0 0
    %101 = vmatprep.subr.bf16.mxu0 0
    %102 = vmatpush1.bf16.msra.mxu0 0
    %103 = vmatprep.subr.bf16.mxu0 0
    %104 = vmatpush1.bf16.msra.mxu0 0
    %105 = vmatprep.subr.bf16.mxu0 0
    %106 = vmatpush1.bf16.msra.mxu0 0
    %107 = vmatprep.subr.bf16.mxu0 0
    %108 = vmatpush1.bf16.msra.mxu0 0
    %109 = vmatprep.subr.bf16.mxu0 0
    %110 = vmatpush1.bf16.msra.mxu0 0
    %111 = vmatprep.subr.bf16.mxu0 0
    %112 = vmatpush1.bf16.msra.mxu0 0
    %113 = vmatprep.subr.bf16.mxu0 0
    %114 = vmatpush1.bf16.msra.mxu0 0
    %115 = vmatprep.subr.bf16.mxu0 0
    %116 = vmatpush1.bf16.msra.mxu0 0
    %117 = vmatprep.subr.bf16.mxu0 0
    %118 = vmatpush1.bf16.msra.mxu0 0
    %119 = vmatprep.subr.bf16.mxu0 0
    %120 = vmatpush1.bf16.msra.mxu0 0
    %121 = vmatprep.subr.bf16.mxu0 0
    %122 = vmatpush1.bf16.msra.mxu0 0
    %123 = vmatprep.mubr.bf16.mxu0 0
    %124 = vmatmul.mubr.bf16.gmra.mrb[0].mxu0 %v89
    %v125 = vpop.f32.mrb[0].mxu0
    %v126 = vadd.f32 0.0, %v125
    %v127 = vpop.f32.mrb[0].mxu0
    %v128 = vpop.f32.mrb[0].mxu0
    %v129 = vadd.f32 0.0, %v128
    %v130 = vpop.f32.mrb[0].mxu0
    %131 = vdwg.mxu0
    %v132 = vadd.f32 %v64, %v126
    %v133 = vadd.f32 %v65, %v129
    %134 = vst.msk [vmem:[#allocation2] sm:$0xff] %vm87, %v132
    %135 = vst.msk [vmem:[#allocation2 + $0x8] sm:$0xff] %vm87, %v133
    // Predicated region
    $region30: #{bert_forward.38} parent=1 // pred_check
      %p136 = pneg %p55
    $region31: #{bert_forward.38} parent=1 // pred_check_branch
      %138 = sbr.rel (%p136) target = $region33
    $region32: #{bert_forward.38} parent=1 // pred_region
      %v139 = vld [vmem:[#allocation2] sm:$0xff]
      %v140 = vld [vmem:[#allocation2 + $0x8] sm:$0xff]
      %v141 = vld [vmem:[#allocation8] sm:$0x1]
      %v143 = vlaneseq
      %v144 = vshrl.u32 %v143, 7
      %v145 = vsub.s32 0, %v144
      %v146 = vrot.slane %v141, %v145
      %v148 = vadd.f32 %v139, %v146
      %v149 = vadd.f32 %v140, %v146
      %v150 = vpack.c.bf16 %v149, %v148
      %v152 = vunpack.c.l.b16 %v150
      %v153 = vunpack.c.h.b16 %v150
      %v154 = vpack.c.b16 %v152, %v152
      %v155 = vpack.c.b16 %v153, %v153
      %vm158 = vcmask 257024
      %159 = vst.msk [vmem:[#allocation9] sm:$0xf] %vm158, %v154
      %160 = vst.msk [vmem:[#allocation9 + $0x4] sm:$0xf] %vm158, %v155
    $region33: #{bert_forward.38} parent=1 // pred_fallthru
      _
    // Predicated region
    $region34: #{bert_forward.38} parent=1 // pred_check
      _
    $region35: #{bert_forward.38} parent=1 // pred_check_branch
      %162 = sbr.rel (0) target = $region37
    $region36: #{bert_forward.38} parent=1 // pred_region
      %s164 = ssub.s32 128, 128
      %165 = vsyncadd [#allocation5], %s164
      %s166 = sshll.u32 [#allocation9], 4
      %s167 = int_to_ptr.vmem [resolvable:$true] %s166
      %172 = dma.vmem_to_hbm [thread:$0]  %s167, 128, %s3, [#allocation5], 64, 64, 4
    $region37: #{bert_forward.38} parent=1 // pred_fallthru
      _
    // Predicated region
    $region38: #{bert_forward.38} parent=1 // pred_check
      _
    $region39: #{bert_forward.38} parent=1 // pred_check_branch
      %174 = sbr.rel (0) target = $region41
    $region40: #{bert_forward.38} parent=1 // pred_region
      %175 = dma.done [#allocation5], 128
    $region41: #{bert_forward.38} parent=1 // pred_fallthru
      _
    %176 = vsyncpa [#allocation4], 1
    %177 = vsyncpa [#allocation7], 1
    %178 = vsyncpa [#allocation5], 1

// kernel: bert_forward.34
$region0: #{bert_forward.34}
  #allocation0 [shape = 'u32[]', space=smem, size = 0x4, offset = 0x4, fixed_abs, tag = 'smem constant byte address 0x4 - core index']
  #allocation1 [shape = 'u32[144,128]{1,0:T(1,128)}', space=vmem, size = 0x12000, scoped, tag = 'internal scratch']
  %s0 = inlined_call_operand.hbm [shape: bf16[16,32], index: 0, kind: input, shape index: {}]
  %s1 = inlined_call_operand.hbm [shape: f32[1,32], index: 1, kind: input, shape index: {}]
  %s2 = inlined_call_operand.hbm [shape: f32[1,32], index: 2, kind: input, shape index: {}]
  %s3 = inlined_call_operand.hbm [shape: f32[16,32], index: 3, kind: output, shape index: {}]
  %s4 = sld [smem:[#allocation0]]
  $region34: #{bert_forward.34} parent=0
    _
  %s6 = ssub.s32 1, %s4
  %s7 = scalar_select 0, %s6, %s4
  $region1: #{bert_forward.34} parent=0
    #allocation2 [shape = 'u8[4096]{0}', space=vmem, size = 0x1000, scoped, tag = 'input window, operand 0, single buffered']
    #allocation3 [shape = 's32[1]{0}', space=sflag, size = 0x4, scoped, tag = 'scoped memory for bert_forward.34']
    #allocation4 [shape = 's32[1]{0}', space=sflag, size = 0x4, scoped, tag = 'scoped memory for bert_forward.34']
    #allocation5 [shape = 'u8[512]{0}', space=vmem, size = 0x400, scoped, tag = 'input window, operand 1, single buffered']
    #allocation6 [shape = 's32[1]{0}', space=sflag, size = 0x4, scoped, tag = 'scoped memory for bert_forward.34']
    #allocation7 [shape = 'u8[512]{0}', space=vmem, size = 0x400, scoped, tag = 'input window, operand 2, single buffered']
    #allocation8 [shape = 'u8[8192]{0}', space=vmem, size = 0x2000, scoped, tag = 'output window, operand 0, single buffered']
    %8 = vsyncpa [#allocation3], 0
    %9 = vsyncpa [#allocation6], 0
    %10 = vsyncpa [#allocation4], 0
    // Predicated region
    $region2: #{bert_forward.34} parent=1 // pred_check
      _
    $region3: #{bert_forward.34} parent=1 // pred_check_branch
      %12 = sbr.rel (0) target = $region5
    $region4: #{bert_forward.34} parent=1 // pred_region
      %s14 = ssub.s32 128, 128
      %15 = vsyncadd [#allocation3], %s14
      %s16 = sshll.u32 [#allocation2], 4
      %s17 = int_to_ptr.vmem [resolvable:$true] %s16
      %22 = dma.hbm_to_vmem [thread:$0]  %s0, 128, %s17, [#allocation3], 64, 64, 4
    $region5: #{bert_forward.34} parent=1 // pred_fallthru
      _
    // Predicated region
    $region6: #{bert_forward.34} parent=1 // pred_check
      _
    $region7: #{bert_forward.34} parent=1 // pred_check_branch
      %24 = sbr.rel (0) target = $region9
    $region8: #{bert_forward.34} parent=1 // pred_region
      %s26 = ssub.s32 16, 16
      %27 = vsyncadd [#allocation6], %s26
      %s29 = sshll.u32 [#allocation5], 4
      %s30 = int_to_ptr.vmem [resolvable:$true] %s29
      %32 = dma.hbm_to_vmem [thread:$0]  %s1, 16, %s30, [#allocation6]
    $region9: #{bert_forward.34} parent=1 // pred_fallthru
      _
    // Predicated region
    $region10: #{bert_forward.34} parent=1 // pred_check
      _
    $region11: #{bert_forward.34} parent=1 // pred_check_branch
      %34 = sbr.rel (0) target = $region13
    $region12: #{bert_forward.34} parent=1 // pred_region
      %s36 = ssub.s32 16, 16
      %37 = vsyncadd [#allocation6], %s36
      %s39 = sshll.u32 [#allocation7], 4
      %s40 = int_to_ptr.vmem [resolvable:$true] %s39
      %42 = dma.hbm_to_vmem [thread:$0]  %s2, 16, %s40, [#allocation6]
    $region13: #{bert_forward.34} parent=1 // pred_fallthru
      _
    // Predicated region
    $region14: #{bert_forward.34} parent=1 // pred_check
      _
    $region15: #{bert_forward.34} parent=1 // pred_check_branch
      %44 = sbr.rel (0) target = $region17
    $region16: #{bert_forward.34} parent=1 // pred_region
      %45 = dma.done [#allocation3], 128
    $region17: #{bert_forward.34} parent=1 // pred_fallthru
      _
    // Predicated region
    $region18: #{bert_forward.34} parent=1 // pred_check
      _
    $region19: #{bert_forward.34} parent=1 // pred_check_branch
      %47 = sbr.rel (0) target = $region21
    $region20: #{bert_forward.34} parent=1 // pred_region
      %48 = dma.done [#allocation6], 16
    $region21: #{bert_forward.34} parent=1 // pred_fallthru
      _
    // Predicated region
    $region22: #{bert_forward.34} parent=1 // pred_check
      _
    $region23: #{bert_forward.34} parent=1 // pred_check_branch
      %50 = sbr.rel (0) target = $region25
    $region24: #{bert_forward.34} parent=1 // pred_region
      %51 = dma.done [#allocation6], 16
    $region25: #{bert_forward.34} parent=1 // pred_fallthru
      _
    %v52 = vld [vmem:[#allocation2] sm:$0xf]
    %v53 = vld [vmem:[#allocation2 + $0x4] sm:$0xf]
    %v54 = vunpack.c.l.bf16 %v52
    %v55 = vunpack.c.l.bf16 %v53
    %vm56 = vcmask 261120
    %v57 = vsel %vm56, %v54, 0.0
    %58 = vadd.xlane.f32.xlu0 %v57
    %v59 = vpop.xlane.xlu0 %58
    %v60 = vsel %vm56, %v55, 0.0
    %61 = vadd.xlane.f32.xlu0 %v60
    %v62 = vpop.xlane.xlu0 %61
    %v63 = vrcp.pop 32.0
    %v64 = vmul.f32 %v59, %v63
    %v65 = vmul.f32 %v62, %v63
    %v66 = vsub.f32 %v54, %v64
    %v67 = vsub.f32 %v55, %v65
    %v68 = vmul.f32 %v66, %v66
    %v69 = vmul.f32 %v67, %v67
    %v70 = vsel %vm56, %v68, 0.0
    %71 = vadd.xlane.f32.xlu0 %v70
    %v72 = vpop.xlane.xlu0 %71
    %v73 = vsel %vm56, %v69, 0.0
    %74 = vadd.xlane.f32.xlu0 %v73
    %v75 = vpop.xlane.xlu0 %74
    %v76 = vmul.f32 %v72, %v63
    %v77 = vmul.f32 %v75, %v63
    %v78 = vadd.f32 %v76, 1e-05
    %v79 = vadd.f32 %v77, 1e-05
    %v80 = vrsqrt.pop %v78
    %v81 = vrsqrt.pop %v79
    %v82 = vmul.f32 %v66, %v80
    %v83 = vmul.f32 %v67, %v81
    %v84 = vld [vmem:[#allocation5] sm:$0x1]
    %v86 = vlaneseq
    %v87 = vshrl.u32 %v86, 7
    %v88 = vsub.s32 0, %v87
    %v89 = vrot.slane %v84, %v88
    %v91 = vmul.f32 %v82, %v89
    %v92 = vmul.f32 %v83, %v89
    %v93 = vld [vmem:[#allocation7] sm:$0x1]
    %v95 = vlaneseq
    %v96 = vshrl.u32 %v95, 7
    %v97 = vsub.s32 0, %v96
    %v98 = vrot.slane %v93, %v97
    %v100 = vadd.f32 %v91, %v98
    %v101 = vadd.f32 %v92, %v98
    %102 = vst.msk [vmem:[#allocation8] sm:$0xff] %vm56, %v100
    %103 = vst.msk [vmem:[#allocation8 + $0x8] sm:$0xff] %vm56, %v101
    // Predicated region
    $region26: #{bert_forward.34} parent=1 // pred_check
      _
    $region27: #{bert_forward.34} parent=1 // pred_check_branch
      %105 = sbr.rel (0) target = $region29
    $region28: #{bert_forward.34} parent=1 // pred_region
      %s107 = ssub.s32 256, 256
      %108 = vsyncadd [#allocation4], %s107
      %s109 = sshll.u32 [#allocation8], 4
      %s110 = int_to_ptr.vmem [resolvable:$true] %s109
      %115 = dma.vmem_to_hbm [thread:$0]  %s110, 256, %s3, [#allocation4], 128, 128, 8
    $region29: #{bert_forward.34} parent=1 // pred_fallthru
      _
    // Predicated region
    $region30: #{bert_forward.34} parent=1 // pred_check
      _
    $region31: #{bert_forward.34} parent=1 // pred_check_branch
      %117 = sbr.rel (0) target = $region33
    $region32: #{bert_forward.34} parent=1 // pred_region
      %118 = dma.done [#allocation4], 256
    $region33: #{bert_forward.34} parent=1 // pred_fallthru
      _
    %119 = vsyncpa [#allocation3], 1
    %120 = vsyncpa [#allocation6], 1
    %121 = vsyncpa [#allocation4], 1

// kernel: bert_forward.39
$region0: #{bert_forward.39}
  #allocation0 [shape = 'u32[]', space=smem, size = 0x4, offset = 0x4, fixed_abs, tag = 'smem constant byte address 0x4 - core index']
  #allocation1 [shape = 'u32[144,128]{1,0:T(1,128)}', space=vmem, size = 0x12000, scoped, tag = 'internal scratch']
  #allocation2 [shape = 'f32[16,32]{1,0:T(8,128)}', space=vmem, size = 0x2000, scoped, tag = 'scratch operand']
  #allocation3 [shape = 'f32[16,32]{1,0:T(8,128)}', space=vmem, size = 0x2000, scoped, tag = 'scratch operand']
  %s0 = inlined_call_operand.hbm [shape: bf16[16,32], index: 0, kind: input, shape index: {}]
  %s1 = inlined_call_operand.hbm [shape: bf16[32,32], index: 1, kind: input, shape index: {}]
  %s2 = inlined_call_operand.hbm [shape: bf16[32,32], index: 2, kind: input, shape index: {}]
  %s3 = inlined_call_operand.hbm [shape: f32[1,32], index: 3, kind: input, shape index: {}]
  %s4 = inlined_call_operand.hbm [shape: f32[1,32], index: 4, kind: input, shape index: {}]
  %s5 = inlined_call_operand.hbm [shape: bf16[16,32], index: 5, kind: output, shape index: {0}]
  %s6 = inlined_call_operand.hbm [shape: bf16[16,32], index: 6, kind: output, shape index: {1}]
  %7 = xla_tuple %s5, %s6
  %s8 = sld [smem:[#allocation0]]
  $region66: #{bert_forward.39} parent=0
    _
  %s10 = ssub.s32 1, %s8
  %s11 = scalar_select 0, %s10, %s8
  $region1: #{bert_forward.39} parent=0
    #allocation4 [shape = 'u8[4096]{0}', space=vmem, size = 0x1000, scoped, tag = 'input window, operand 0, single buffered']
    #allocation5 [shape = 's32[1]{0}', space=sflag, size = 0x4, scoped, tag = 'scoped memory for bert_forward.39']
    #allocation6 [shape = 's32[1]{0}', space=sflag, size = 0x4, scoped, tag = 'scoped memory for bert_forward.39']
    #allocation7 [shape = 'u8[8192]{0}', space=vmem, size = 0x2000, scoped, tag = 'input window, operand 1, single buffered']
    #allocation8 [shape = 's32[1]{0}', space=sflag, size = 0x4, scoped, tag = 'scoped memory for bert_forward.39']
    #allocation9 [shape = 'u8[8192]{0}', space=vmem, size = 0x2000, scoped, tag = 'input window, operand 2, single buffered']
    #allocation10 [shape = 'u8[512]{0}', space=vmem, size = 0x400, scoped, tag = 'input window, operand 3, single buffered']
    #allocation11 [shape = 's32[1]{0}', space=sflag, size = 0x4, scoped, tag = 'scoped memory for bert_forward.39']
    #allocation12 [shape = 'u8[512]{0}', space=vmem, size = 0x400, scoped, tag = 'input window, operand 4, single buffered']
    #allocation13 [shape = 'u8[4096]{0}', space=vmem, size = 0x1000, scoped, tag = 'output window, operand 0, single buffered']
    #allocation14 [shape = 'u8[4096]{0}', space=vmem, size = 0x1000, scoped, tag = 'output window, operand 1, single buffered']
    #allocation15 [shape = 's32[1]{0}', space=sflag, size = 0x4, scoped, tag = 'scoped memory for bert_forward.39']
    %12 = vsyncpa [#allocation5], 0
    %13 = vsyncpa [#allocation8], 0
    %14 = vsyncpa [#allocation11], 0
    %15 = vsyncpa [#allocation6], 0
    %16 = vsyncpa [#allocation15], 0
    // Predicated region
    $region2: #{bert_forward.39} parent=1 // pred_check
      _
    $region3: #{bert_forward.39} parent=1 // pred_check_branch
      %18 = sbr.rel (0) target = $region5
    $region4: #{bert_forward.39} parent=1 // pred_region
      %s20 = ssub.s32 128, 128
      %21 = vsyncadd [#allocation5], %s20
      %s22 = sshll.u32 [#allocation4], 4
      %s23 = int_to_ptr.vmem [resolvable:$true] %s22
      %28 = dma.hbm_to_vmem [thread:$0]  %s0, 128, %s23, [#allocation5], 64, 64, 4
    $region5: #{bert_forward.39} parent=1 // pred_fallthru
      _
    // Predicated region
    $region6: #{bert_forward.39} parent=1 // pred_check
      _
    $region7: #{bert_forward.39} parent=1 // pred_check_branch
      %30 = sbr.rel (0) target = $region9
    $region8: #{bert_forward.39} parent=1 // pred_region
      %s32 = ssub.s32 256, 256
      %33 = vsyncadd [#allocation8], %s32
      %s34 = sshll.u32 [#allocation7], 4
      %s35 = int_to_ptr.vmem [resolvable:$true] %s34
      %40 = dma.hbm_to_vmem [thread:$0]  %s1, 256, %s35, [#allocation8], 64, 64, 4
    $region9: #{bert_forward.39} parent=1 // pred_fallthru
      _
    // Predicated region
    $region10: #{bert_forward.39} parent=1 // pred_check
      _
    $region11: #{bert_forward.39} parent=1 // pred_check_branch
      %42 = sbr.rel (0) target = $region13
    $region12: #{bert_forward.39} parent=1 // pred_region
      %s44 = ssub.s32 256, 256
      %45 = vsyncadd [#allocation8], %s44
      %s46 = sshll.u32 [#allocation9], 4
      %s47 = int_to_ptr.vmem [resolvable:$true] %s46
      %52 = dma.hbm_to_vmem [thread:$0]  %s2, 256, %s47, [#allocation8], 64, 64, 4
    $region13: #{bert_forward.39} parent=1 // pred_fallthru
      _
    // Predicated region
    $region14: #{bert_forward.39} parent=1 // pred_check
      _
    $region15: #{bert_forward.39} parent=1 // pred_check_branch
      %54 = sbr.rel (0) target = $region17
    $region16: #{bert_forward.39} parent=1 // pred_region
      %s56 = ssub.s32 16, 16
      %57 = vsyncadd [#allocation11], %s56
      %s59 = sshll.u32 [#allocation10], 4
      %s60 = int_to_ptr.vmem [resolvable:$true] %s59
      %62 = dma.hbm_to_vmem [thread:$0]  %s3, 16, %s60, [#allocation11]
    $region17: #{bert_forward.39} parent=1 // pred_fallthru
      _
    // Predicated region
    $region18: #{bert_forward.39} parent=1 // pred_check
      _
    $region19: #{bert_forward.39} parent=1 // pred_check_branch
      %64 = sbr.rel (0) target = $region21
    $region20: #{bert_forward.39} parent=1 // pred_region
      %s66 = ssub.s32 16, 16
      %67 = vsyncadd [#allocation11], %s66
      %s69 = sshll.u32 [#allocation12], 4
      %s70 = int_to_ptr.vmem [resolvable:$true] %s69
      %72 = dma.hbm_to_vmem [thread:$0]  %s4, 16, %s70, [#allocation11]
    $region21: #{bert_forward.39} parent=1 // pred_fallthru
      _
    // Predicated region
    $region22: #{bert_forward.39} parent=1 // pred_check
      _
    $region23: #{bert_forward.39} parent=1 // pred_check_branch
      %74 = sbr.rel (0) target = $region25
    $region24: #{bert_forward.39} parent=1 // pred_region
      %75 = dma.done [#allocation5], 128
    $region25: #{bert_forward.39} parent=1 // pred_fallthru
      _
    // Predicated region
    $region26: #{bert_forward.39} parent=1 // pred_check
      _
    $region27: #{bert_forward.39} parent=1 // pred_check_branch
      %77 = sbr.rel (0) target = $region29
    $region28: #{bert_forward.39} parent=1 // pred_region
      %78 = dma.done [#allocation8], 256
    $region29: #{bert_forward.39} parent=1 // pred_fallthru
      _
    // Predicated region
    $region30: #{bert_forward.39} parent=1 // pred_check
      _
    $region31: #{bert_forward.39} parent=1 // pred_check_branch
      %80 = sbr.rel (0) target = $region33
    $region32: #{bert_forward.39} parent=1 // pred_region
      %81 = dma.done [#allocation8], 256
    $region33: #{bert_forward.39} parent=1 // pred_fallthru
      _
    // Predicated region
    $region34: #{bert_forward.39} parent=1 // pred_check
      _
    $region35: #{bert_forward.39} parent=1 // pred_check_branch
      %83 = sbr.rel (0) target = $region37
    $region36: #{bert_forward.39} parent=1 // pred_region
      %84 = dma.done [#allocation11], 16
    $region37: #{bert_forward.39} parent=1 // pred_fallthru
      _
    // Predicated region
    $region38: #{bert_forward.39} parent=1 // pred_check
      _
    $region39: #{bert_forward.39} parent=1 // pred_check_branch
      %86 = sbr.rel (0) target = $region41
    $region40: #{bert_forward.39} parent=1 // pred_region
      %87 = dma.done [#allocation11], 16
    $region41: #{bert_forward.39} parent=1 // pred_fallthru
      _
    %p89 = scmp.eq.s32.totalorder 0, 0
    // Predicated region
    $region42: #{bert_forward.39} parent=1 // pred_check
      %p90 = pneg %p89
    $region43: #{bert_forward.39} parent=1 // pred_check_branch
      %92 = sbr.rel (%p90) target = $region45
    $region44: #{bert_forward.39} parent=1 // pred_region
      %vm93 = vcmask 261120
      %94 = vst.msk [vmem:[#allocation2] sm:$0xff] %vm93, 0.0
      %95 = vst.msk [vmem:[#allocation2 + $0x8] sm:$0xff] %vm93, 0.0
      %96 = vst.msk [vmem:[#allocation3] sm:$0xff] %vm93, 0.0
      %97 = vst.msk [vmem:[#allocation3 + $0x8] sm:$0xff] %vm93, 0.0
    $region45: #{bert_forward.39} parent=1 // pred_fallthru
      _
    %v98 = vld [vmem:[#allocation4] sm:$0xf]
    %v99 = vld [vmem:[#allocation4 + $0x4] sm:$0xf]
    %v100 = vld [vmem:[#allocation2] sm:$0xff]
    %v101 = vld [vmem:[#allocation2 + $0x8] sm:$0xff]
    %v102 = vld [vmem:[#allocation7] sm:$0xf]
    %v103 = vld [vmem:[#allocation7 + $0x4] sm:$0xf]
    %v104 = vld [vmem:[#allocation7 + $0x8] sm:$0xf]
    %v105 = vld [vmem:[#allocation7 + $0xc] sm:$0xf]
    %v108 = vunpack.c.l.b16 %v98
    %v109 = vunpack.c.l.b16 %v99
    %v110 = vpack.c.b16 %v109, %v108
    %v115 = vunpack.c.l.b16 %v102
    %v116 = vunpack.c.l.b16 %v103
    %v117 = vunpack.c.l.b16 %v104
    %v118 = vunpack.c.l.b16 %v105
    %v119 = vpack.c.b16 %v116, %v115
    %v120 = vpack.c.b16 %v118, %v117
    %vm123 = vcmask 261120
    %v125 = vsel %vm123, %v110, 0
    %127 = vmatprep.subr.bf16.mxu0 0
    %128 = vmatpush1.bf16.msra.mxu0 %v119
    %129 = vmatprep.subr.bf16.mxu0 0
    %130 = vmatpush1.bf16.msra.mxu0 %v120
    %131 = vmatprep.subr.bf16.mxu0 0
    %132 = vmatpush1.bf16.msra.mxu0 0
    %133 = vmatprep.subr.bf16.mxu0 0
    %134 = vmatpush1.bf16.msra.mxu0 0
    %135 = vmatprep.subr.bf16.mxu0 0
    %136 = vmatpush1.bf16.msra.mxu0 0
    %137 = vmatprep.subr.bf16.mxu0 0
    %138 = vmatpush1.bf16.msra.mxu0 0
    %139 = vmatprep.subr.bf16.mxu0 0
    %140 = vmatpush1.bf16.msra.mxu0 0
    %141 = vmatprep.subr.bf16.mxu0 0
    %142 = vmatpush1.bf16.msra.mxu0 0
    %143 = vmatprep.subr.bf16.mxu0 0
    %144 = vmatpush1.bf16.msra.mxu0 0
    %145 = vmatprep.subr.bf16.mxu0 0
    %146 = vmatpush1.bf16.msra.mxu0 0
    %147 = vmatprep.subr.bf16.mxu0 0
    %148 = vmatpush1.bf16.msra.mxu0 0
    %149 = vmatprep.subr.bf16.mxu0 0
    %150 = vmatpush1.bf16.msra.mxu0 0
    %151 = vmatprep.subr.bf16.mxu0 0
    %152 = vmatpush1.bf16.msra.mxu0 0
    %153 = vmatprep.subr.bf16.mxu0 0
    %154 = vmatpush1.bf16.msra.mxu0 0
    %155 = vmatprep.subr.bf16.mxu0 0
    %156 = vmatpush1.bf16.msra.mxu0 0
    %157 = vmatprep.subr.bf16.mxu0 0
    %158 = vmatpush1.bf16.msra.mxu0 0
    %159 = vmatprep.mubr.bf16.mxu0 0
    %160 = vmatmul.mubr.bf16.gmra.mrb[0].mxu0 %v125
    %v161 = vpop.f32.mrb[0].mxu0
    %v162 = vadd.f32 0.0, %v161
    %v163 = vpop.f32.mrb[0].mxu0
    %v164 = vpop.f32.mrb[0].mxu0
    %v165 = vadd.f32 0.0, %v164
    %v166 = vpop.f32.mrb[0].mxu0
    %167 = vdwg.mxu0
    %v168 = vadd.f32 %v100, %v162
    %v169 = vadd.f32 %v101, %v165
    %170 = vst.msk [vmem:[#allocation2] sm:$0xff] %vm123, %v168
    %171 = vst.msk [vmem:[#allocation2 + $0x8] sm:$0xff] %vm123, %v169
    %v172 = vld [vmem:[#allocation3] sm:$0xff]
    %v173 = vld [vmem:[#allocation3 + $0x8] sm:$0xff]
    %v174 = vld [vmem:[#allocation9] sm:$0xf]
    %v175 = vld [vmem:[#allocation9 + $0x4] sm:$0xf]
    %v176 = vld [vmem:[#allocation9 + $0x8] sm:$0xf]
    %v177 = vld [vmem:[#allocation9 + $0xc] sm:$0xf]
    %v182 = vunpack.c.l.b16 %v174
    %v183 = vunpack.c.l.b16 %v175
    %v184 = vunpack.c.l.b16 %v176
    %v185 = vunpack.c.l.b16 %v177
    %v186 = vpack.c.b16 %v183, %v182
    %v187 = vpack.c.b16 %v185, %v184
    %190 = vmatprep.subr.bf16.mxu0 0
    %191 = vmatpush1.bf16.msra.mxu0 %v186
    %192 = vmatprep.subr.bf16.mxu0 0
    %193 = vmatpush1.bf16.msra.mxu0 %v187
    %194 = vmatprep.subr.bf16.mxu0 0
    %195 = vmatpush1.bf16.msra.mxu0 0
    %196 = vmatprep.subr.bf16.mxu0 0
    %197 = vmatpush1.bf16.msra.mxu0 0
    %198 = vmatprep.subr.bf16.mxu0 0
    %199 = vmatpush1.bf16.msra.mxu0 0
    %200 = vmatprep.subr.bf16.mxu0 0
    %201 = vmatpush1.bf16.msra.mxu0 0
    %202 = vmatprep.subr.bf16.mxu0 0
    %203 = vmatpush1.bf16.msra.mxu0 0
    %204 = vmatprep.subr.bf16.mxu0 0
    %205 = vmatpush1.bf16.msra.mxu0 0
    %206 = vmatprep.subr.bf16.mxu0 0
    %207 = vmatpush1.bf16.msra.mxu0 0
    %208 = vmatprep.subr.bf16.mxu0 0
    %209 = vmatpush1.bf16.msra.mxu0 0
    %210 = vmatprep.subr.bf16.mxu0 0
    %211 = vmatpush1.bf16.msra.mxu0 0
    %212 = vmatprep.subr.bf16.mxu0 0
    %213 = vmatpush1.bf16.msra.mxu0 0
    %214 = vmatprep.subr.bf16.mxu0 0
    %215 = vmatpush1.bf16.msra.mxu0 0
    %216 = vmatprep.subr.bf16.mxu0 0
    %217 = vmatpush1.bf16.msra.mxu0 0
    %218 = vmatprep.subr.bf16.mxu0 0
    %219 = vmatpush1.bf16.msra.mxu0 0
    %220 = vmatprep.subr.bf16.mxu0 0
    %221 = vmatpush1.bf16.msra.mxu0 0
    %222 = vmatprep.mubr.bf16.mxu0 0
    %223 = vmatmul.mubr.bf16.gmra.mrb[0].mxu0 %v125
    %v224 = vpop.f32.mrb[0].mxu0
    %v225 = vadd.f32 0.0, %v224
    %v226 = vpop.f32.mrb[0].mxu0
    %v227 = vpop.f32.mrb[0].mxu0
    %v228 = vadd.f32 0.0, %v227
    %v229 = vpop.f32.mrb[0].mxu0
    %230 = vdwg.mxu0
    %v231 = vadd.f32 %v172, %v225
    %v232 = vadd.f32 %v173, %v228
    %233 = vst.msk [vmem:[#allocation3] sm:$0xff] %vm123, %v231
    %234 = vst.msk [vmem:[#allocation3 + $0x8] sm:$0xff] %vm123, %v232
    // Predicated region
    $region46: #{bert_forward.39} parent=1 // pred_check
      %p235 = pneg %p89
    $region47: #{bert_forward.39} parent=1 // pred_check_branch
      %237 = sbr.rel (%p235) target = $region49
    $region48: #{bert_forward.39} parent=1 // pred_region
      %v238 = vld [vmem:[#allocation2] sm:$0xff]
      %v239 = vld [vmem:[#allocation2 + $0x8] sm:$0xff]
      %v240 = vld [vmem:[#allocation10] sm:$0x1]
      %v242 = vlaneseq
      %v243 = vshrl.u32 %v242, 7
      %v244 = vsub.s32 0, %v243
      %v245 = vrot.slane %v240, %v244
      %v247 = vadd.f32 %v238, %v245
      %v248 = vadd.f32 %v239, %v245
      %v249 = vpack.c.bf16 %v248, %v247
      %v251 = vunpack.c.l.b16 %v249
      %v252 = vunpack.c.h.b16 %v249
      %v253 = vpack.c.b16 %v251, %v251
      %v254 = vpack.c.b16 %v252, %v252
      %vm257 = vcmask 257024
      %258 = vst.msk [vmem:[#allocation13] sm:$0xf] %vm257, %v253
      %259 = vst.msk [vmem:[#allocation13 + $0x4] sm:$0xf] %vm257, %v254
      %v260 = vld [vmem:[#allocation3] sm:$0xff]
      %v261 = vld [vmem:[#allocation3 + $0x8] sm:$0xff]
      %v262 = vld [vmem:[#allocation12] sm:$0x1]
      %v264 = vlaneseq
      %v265 = vshrl.u32 %v264, 7
      %v266 = vsub.s32 0, %v265
      %v267 = vrot.slane %v262, %v266
      %v269 = vadd.f32 %v260, %v267
      %v270 = vadd.f32 %v261, %v267
      %v271 = vpack.c.bf16 %v270, %v269
      %v273 = vunpack.c.l.b16 %v271
      %v274 = vunpack.c.h.b16 %v271
      %v275 = vpack.c.b16 %v273, %v273
      %v276 = vpack.c.b16 %v274, %v274
      %279 = vst.msk [vmem:[#allocation14] sm:$0xf] %vm257, %v275
      %280 = vst.msk [vmem:[#allocation14 + $0x4] sm:$0xf] %vm257, %v276
    $region49: #{bert_forward.39} parent=1 // pred_fallthru
      _
    // Predicated region
    $region50: #{bert_forward.39} parent=1 // pred_check
      _
    $region51: #{bert_forward.39} parent=1 // pred_check_branch
      %282 = sbr.rel (0) target = $region53
    $region52: #{bert_forward.39} parent=1 // pred_region
      %s284 = ssub.s32 128, 128
      %285 = vsyncadd [#allocation6], %s284
      %s286 = sshll.u32 [#allocation13], 4
      %s287 = int_to_ptr.vmem [resolvable:$true] %s286
      %292 = dma.vmem_to_hbm [thread:$0]  %s287, 128, %s5, [#allocation6], 64, 64, 4
    $region53: #{bert_forward.39} parent=1 // pred_fallthru
      _
    // Predicated region
    $region54: #{bert_forward.39} parent=1 // pred_check
      _
    $region55: #{bert_forward.39} parent=1 // pred_check_branch
      %294 = sbr.rel (0) target = $region57
    $region56: #{bert_forward.39} parent=1 // pred_region
      %s296 = ssub.s32 128, 128
      %297 = vsyncadd [#allocation15], %s296
      %s298 = sshll.u32 [#allocation14], 4
      %s299 = int_to_ptr.vmem [resolvable:$true] %s298
      %304 = dma.vmem_to_hbm [thread:$0]  %s299, 128, %s6, [#allocation15], 64, 64, 4
    $region57: #{bert_forward.39} parent=1 // pred_fallthru
      _
    // Predicated region
    $region58: #{bert_forward.39} parent=1 // pred_check
      _
    $region59: #{bert_forward.39} parent=1 // pred_check_branch
      %306 = sbr.rel (0) target = $region61
    $region60: #{bert_forward.39} parent=1 // pred_region
      %307 = dma.done [#allocation6], 128
    $region61: #{bert_forward.39} parent=1 // pred_fallthru
      _
    // Predicated region
    $region62: #{bert_forward.39} parent=1 // pred_check
      _
    $region63: #{bert_forward.39} parent=1 // pred_check_branch
      %309 = sbr.rel (0) target = $region65
    $region64: #{bert_forward.39} parent=1 // pred_region
      %310 = dma.done [#allocation15], 128
    $region65: #{bert_forward.39} parent=1 // pred_fallthru
      _
    %311 = vsyncpa [#allocation5], 1
    %312 = vsyncpa [#allocation8], 1
    %313 = vsyncpa [#allocation11], 1
    %314 = vsyncpa [#allocation6], 1
    %315 = vsyncpa [#allocation15], 1

</llo_original>
